<compile_context>
chip_gen: v6e
topology: v6e:2x2x1
jax: 0.10.0
libtpu: 0.0.40
codegen_flags: <defaults>
</compile_context>

<pallas_src>
import functools

import jax
import jax.numpy as jnp
from jax import lax
from jax.experimental import pallas as pl
from jax.experimental.pallas import tpu as pltpu

NODE_DIM = 75      # data.x feature dim
DIM = 64           # hidden dim
EDGE_FEAT = 6      # edge_attr feature dim
EDGE_HID = 128     # edge-MLP hidden dim
MP_STEPS = 5       # NNConv+GRU iterations
S2S_STEPS = 3      # Set2Set processing steps
W2_CHUNK = 512     # lane chunk used when building the per-edge weight slab


# --------------------------- fused Pallas kernel -----------------------------

def _net_kernel(
    # graph data
    x_ref, edge_attr_ref, esrc_ref, etgt_ref, batch_ref,
    # lin0
    lin0_w_ref, lin0_b_ref,
    # edge MLP (6 -> 128 -> DIM*DIM)
    nn_w1_ref, nn_b1_ref, nn_w2_ref, nn_b2_ref,
    # NNConv root weight / bias
    conv_root_ref, conv_b_ref,
    # GRU (gates [r, z, n], weights stored transposed)
    gru_wih_ref, gru_bih_ref, gru_whh_ref, gru_bhh_ref,
    # Set2Set LSTM (gates [i, f, g, o], weights stored transposed)
    s2s_wih_ref, s2s_bih_ref, s2s_whh_ref, s2s_bhh_ref,
    # output head
    lin1_w_ref, lin1_b_ref, lin2_wt_ref, lin2_b_ref,
    # output
    out_ref,
    # scratch
    w_edge_ref,
):
    f32 = jnp.float32
    n_nodes = x_ref.shape[0]
    n_edges = edge_attr_ref.shape[0]
    n_graphs = out_ref.shape[0]
    one = jnp.float32(1.0)
    zero = jnp.float32(0.0)
    neg_big = jnp.float32(-1e30)

    # ---- in-VMEM one-hot gather / scatter / pooling matrices -----------------
    src_oh = jnp.where(
        esrc_ref[...] == lax.broadcasted_iota(jnp.int32, (n_edges, n_nodes), 1),
        one, zero)                                                 # (E, N)
    tgt_oh_t = jnp.where(
        lax.broadcasted_iota(jnp.int32, (n_nodes, n_edges), 0) == etgt_ref[...],
        one, zero)                                                 # (N, E)
    batch_mask = (
        lax.broadcasted_iota(jnp.int32, (n_graphs, n_nodes), 0) == batch_ref[...]
    )                                                              # (G, N) bool

    # ---- lin0 + relu ----------------------------------------------------------
    out0 = jnp.maximum(
        jnp.dot(x_ref[...], lin0_w_ref[...], preferred_element_type=f32)
        + lin0_b_ref[...], 0.0)                                    # (N, DIM)
    # TODO(synk): torch Dropout(p=0.2) is identity in eval mode; train-mode RNG not implemented.

    # ---- edge MLP -> per-edge weight slab, computed ONCE, kept in VMEM --------
    h_e = jnp.maximum(
        jnp.dot(edge_attr_ref[...], nn_w1_ref[...], preferred_element_type=f32)
        + nn_b1_ref[...], 0.0)                                     # (E, 128)
    for c in range(0, DIM * DIM, W2_CHUNK):
        w_edge_ref[:, c:c + W2_CHUNK] = (
            jnp.dot(h_e, nn_w2_ref[:, c:c + W2_CHUNK], preferred_element_type=f32)
            + nn_b2_ref[:, c:c + W2_CHUNK])                        # rows = flat W_e [d*DIM+f]

    # ---- 5 x (NNConv(aggr='add') + ReLU + GRU), state resident in VMEM --------
    def mp_body(_, out):                                           # out == GRU hidden (N, DIM)
        # gather source-node features as a one-hot matmul
        x_src = jnp.dot(src_oh, out, preferred_element_type=f32)   # (E, DIM)
        # per-edge message msg[e, f] = sum_d x_src[e, d] * W_e[d, f]
        # done as 64 column-scaled VPU accumulations over 128-lane-aligned chunks
        msgs = jnp.zeros((n_edges, DIM), f32)
        for c in range(0, DIM * DIM, 2 * DIM):
            chunk = w_edge_ref[:, c:c + 2 * DIM]                   # (E, 128)
            d0 = c // DIM
            msgs = msgs + x_src[:, d0:d0 + 1] * chunk[:, 0:DIM]
            msgs = msgs + x_src[:, d0 + 1:d0 + 2] * chunk[:, DIM:2 * DIM]
        # scatter-add to target nodes (aggr='add') as a one-hot matmul
        aggr = jnp.dot(tgt_oh_t, msgs, preferred_element_type=f32)  # (N, DIM)
        m = jnp.maximum(
            aggr + jnp.dot(out, conv_root_ref[...], preferred_element_type=f32)
            + conv_b_ref[...], 0.0)                                 # (N, DIM)
        # GRU cell, gate order [r, z, n]
        gi = jnp.dot(m, gru_wih_ref[...], preferred_element_type=f32) + gru_bih_ref[...]
        gh = jnp.dot(out, gru_whh_ref[...], preferred_element_type=f32) + gru_bhh_ref[...]
        r = jax.nn.sigmoid(gi[:, 0:DIM] + gh[:, 0:DIM])
        z = jax.nn.sigmoid(gi[:, DIM:2 * DIM] + gh[:, DIM:2 * DIM])
        n = jnp.tanh(gi[:, 2 * DIM:3 * DIM] + r * gh[:, 2 * DIM:3 * DIM])
        return (1.0 - z) * n + z * out

    out_nodes = lax.fori_loop(0, MP_STEPS, mp_body, out0)          # (N, DIM)

    # ---- Set2Set(dim, processing_steps=3, num_layers=1) -----------------------
    q_star = jnp.zeros((n_graphs, 2 * DIM), f32)
    hs = jnp.zeros((n_graphs, DIM), f32)
    cs = jnp.zeros((n_graphs, DIM), f32)
    for _ in range(S2S_STEPS):
        # LSTM cell, gate order [i, f, g, o]
        gi = jnp.dot(q_star, s2s_wih_ref[...], preferred_element_type=f32) + s2s_bih_ref[...]
        gh = jnp.dot(hs, s2s_whh_ref[...], preferred_element_type=f32) + s2s_bhh_ref[...]
        g = gi + gh                                                 # (G, 4*DIM)
        i_g = jax.nn.sigmoid(g[:, 0:DIM])
        f_g = jax.nn.sigmoid(g[:, DIM:2 * DIM])
        g_g = jnp.tanh(g[:, 2 * DIM:3 * DIM])
        o_g = jax.nn.sigmoid(g[:, 3 * DIM:4 * DIM])
        cs = f_g * cs + i_g * g_g
        hs = o_g * jnp.tanh(cs)
        q = hs                                                      # (G, DIM)
        # attention scores for every (graph, node) pair, masked to graph membership
        scores = lax.dot_general(q, out_nodes, (((1,), (1,)), ((), ())),
                                 preferred_element_type=f32)        # (G, N)
        masked = jnp.where(batch_mask, scores, neg_big)
        s_max = jnp.max(masked, axis=1, keepdims=True)              # (G, 1)
        p = jnp.exp(jnp.where(batch_mask, scores - s_max, neg_big)) # (G, N)
        denom = jnp.sum(p, axis=1, keepdims=True)                   # (G, 1)
        attn = p / denom                                            # segment softmax
        r_g = jnp.dot(attn, out_nodes, preferred_element_type=f32)  # (G, DIM) readout
        q_star = jnp.concatenate([q, r_g], axis=1)                  # (G, 2*DIM)

    # ---- lin1 + relu, lin2 (dropout is identity in eval mode) -----------------
    y = jnp.maximum(
        jnp.dot(q_star, lin1_w_ref[...], preferred_element_type=f32)
        + lin1_b_ref[...], 0.0)                                     # (G, DIM)
    y = jnp.sum(y * lin2_wt_ref[...], axis=1, keepdims=True) + lin2_b_ref[...]  # (G, 1)
    out_ref[...] = y


# --------------------------- parameters --------------------------------------

def init_params(key):
    def uniform(k, shape, fan_in):
        bound = 1.0 / (fan_in ** 0.5)
        return jax.random.uniform(k, shape, jnp.float32, -bound, bound)

    ks = jax.random.split(key, 20)
    p = {}
    p["lin0_w"] = uniform(ks[0], (NODE_DIM, DIM), NODE_DIM)
    p["lin0_b"] = uniform(ks[1], (DIM,), NODE_DIM)
    # edge MLP: 6 -> 128 -> DIM*DIM
    p["nn_w1"] = uniform(ks[2], (EDGE_FEAT, EDGE_HID), EDGE_FEAT)
    p["nn_b1"] = uniform(ks[3], (EDGE_HID,), EDGE_FEAT)
    p["nn_w2"] = uniform(ks[4], (EDGE_HID, DIM * DIM), EDGE_HID)
    p["nn_b2"] = uniform(ks[5], (DIM * DIM,), EDGE_HID)
    # NNConv root weight + bias
    p["conv_root"] = uniform(ks[6], (DIM, DIM), DIM)
    p["conv_bias"] = uniform(ks[7], (DIM,), DIM)
    # GRU(dim, dim): gates stored transposed, chunk order [r, z, n]
    p["gru_wih"] = uniform(ks[8], (DIM, 3 * DIM), DIM)
    p["gru_whh"] = uniform(ks[9], (DIM, 3 * DIM), DIM)
    p["gru_bih"] = uniform(ks[10], (3 * DIM,), DIM)
    p["gru_bhh"] = uniform(ks[11], (3 * DIM,), DIM)
    # Set2Set LSTM(2*dim -> dim): chunk order [i, f, g, o]
    p["s2s_wih"] = uniform(ks[12], (2 * DIM, 4 * DIM), DIM)
    p["s2s_whh"] = uniform(ks[13], (DIM, 4 * DIM), DIM)
    p["s2s_bih"] = uniform(ks[14], (4 * DIM,), DIM)
    p["s2s_bhh"] = uniform(ks[15], (4 * DIM,), DIM)
    p["lin1_w"] = uniform(ks[16], (2 * DIM, DIM), 2 * DIM)
    p["lin1_b"] = uniform(ks[17], (DIM,), 2 * DIM)
    p["lin2_w"] = uniform(ks[18], (DIM, 1), DIM)
    p["lin2_b"] = uniform(ks[19], (1,), DIM)
    return p


# --------------------------- forward pass ------------------------------------

def _prep_args(params, x, edge_index, edge_attr, batch):
    n_nodes = x.shape[0]
    n_edges = edge_attr.shape[0]
    esrc = edge_index[0].reshape(n_edges, 1).astype(jnp.int32)   # PyG: row 0 = source (x_j)
    etgt = edge_index[1].reshape(1, n_edges).astype(jnp.int32)   # row 1 = aggregation target
    batch2d = batch.reshape(1, n_nodes).astype(jnp.int32)
    row = lambda b: b.reshape(1, -1)
    return (
        x.astype(jnp.float32), edge_attr.astype(jnp.float32), esrc, etgt, batch2d,
        params["lin0_w"], row(params["lin0_b"]),
        params["nn_w1"], row(params["nn_b1"]),
        params["nn_w2"], row(params["nn_b2"]),
        params["conv_root"], row(params["conv_bias"]),
        params["gru_wih"], row(params["gru_bih"]),
        params["gru_whh"], row(params["gru_bhh"]),
        params["s2s_wih"], row(params["s2s_bih"]),
        params["s2s_whh"], row(params["s2s_bhh"]),
        params["lin1_w"], row(params["lin1_b"]),
        params["lin2_w"].reshape(1, DIM), row(params["lin2_b"]),
    )


def net_forward(params, x, edge_index, edge_attr, batch, num_graphs):
    n_edges = edge_attr.shape[0]
    args = _prep_args(params, x, edge_index, edge_attr, batch)
    y = pl.pallas_call(
        _net_kernel,
        out_shape=jax.ShapeDtypeStruct((num_graphs, 1), jnp.float32),
        scratch_shapes=[pltpu.VMEM((n_edges, DIM * DIM), jnp.float32)],
    )(*args)
    return y.reshape(-1)                                           # (G,)


# --------------------------- demo ---------------------------------------------

if __name__ == "__main__":
    key = jax.random.PRNGKey(0)
    kp, kx, ke, ksrc, ktgt = jax.random.split(key, 5)
    params = init_params(kp)

    n_per_graph = 8
    num_graphs = 2
    n_nodes = n_per_graph * num_graphs          # 16
    n_edges = 32

    x = jax.random.normal(kx, (n_nodes, NODE_DIM), jnp.float32)
    edge_attr = jax.random.normal(ke, (n_edges, EDGE_FEAT), jnp.float32)
    src0 = jax.random.randint(ksrc, (n_edges // 2,), 0, n_per_graph)
    tgt0 = jax.random.randint(ktgt, (n_edges // 2,), 0, n_per_graph)
    edge_src = jnp.concatenate([src0, src0 + n_per_graph])
    edge_tgt = jnp.concatenate([tgt0, tgt0 + n_per_graph])
    edge_index = jnp.stack([edge_src, edge_tgt]).astype(jnp.int32)
    batch = jnp.repeat(jnp.arange(num_graphs), n_per_graph).astype(jnp.int32)

    fwd = jax.jit(functools.partial(net_forward, num_graphs=num_graphs))
    y = fwd(params, x, edge_index, edge_attr, batch)
    jax.block_until_ready(y)
    assert y.shape == (num_graphs,) and y.dtype == jnp.float32
    print("KERNEL_OK")
</pallas_src>

<mosaic_0001>
module attributes {stable_mosaic.version = 11 : i64} {
  func.func @_net_kernel(%arg0: memref<16x75xf32, #tpu.memory_space<vmem>>, %arg1: memref<32x6xf32, #tpu.memory_space<vmem>>, %arg2: memref<32x1xi32, #tpu.memory_space<vmem>>, %arg3: memref<1x32xi32, #tpu.memory_space<vmem>>, %arg4: memref<1x16xi32, #tpu.memory_space<vmem>>, %arg5: memref<75x64xf32, #tpu.memory_space<vmem>>, %arg6: memref<1x64xf32, #tpu.memory_space<vmem>>, %arg7: memref<6x128xf32, #tpu.memory_space<vmem>>, %arg8: memref<1x128xf32, #tpu.memory_space<vmem>>, %arg9: memref<128x4096xf32, #tpu.memory_space<vmem>>, %arg10: memref<1x4096xf32, #tpu.memory_space<vmem>>, %arg11: memref<64x64xf32, #tpu.memory_space<vmem>>, %arg12: memref<1x64xf32, #tpu.memory_space<vmem>>, %arg13: memref<64x192xf32, #tpu.memory_space<vmem>>, %arg14: memref<1x192xf32, #tpu.memory_space<vmem>>, %arg15: memref<64x192xf32, #tpu.memory_space<vmem>>, %arg16: memref<1x192xf32, #tpu.memory_space<vmem>>, %arg17: memref<128x256xf32, #tpu.memory_space<vmem>>, %arg18: memref<1x256xf32, #tpu.memory_space<vmem>>, %arg19: memref<64x256xf32, #tpu.memory_space<vmem>>, %arg20: memref<1x256xf32, #tpu.memory_space<vmem>>, %arg21: memref<128x64xf32, #tpu.memory_space<vmem>>, %arg22: memref<1x64xf32, #tpu.memory_space<vmem>>, %arg23: memref<1x64xf32, #tpu.memory_space<vmem>>, %arg24: memref<1x1xf32, #tpu.memory_space<vmem>>, %arg25: memref<2x1xf32, #tpu.memory_space<vmem>>, %arg26: memref<32x4096xf32, #tpu.memory_space<vmem>>) attributes {dimension_semantics = [], scalar_prefetch = 0 : i64, scratch_operands = 1 : i64, tpu.core_type = #tpu.core_type<tc>} {
    %c0 = arith.constant 0 : index
    %c0_0 = arith.constant 0 : index
    %0 = vector.load %arg2[%c0, %c0_0] : memref<32x1xi32, #tpu.memory_space<vmem>>, vector<32x1xi32>
    %1 = tpu.iota {dimensions = array<i32: 1>} : vector<32x16xi32>
    %2 = vector.broadcast %0 : vector<32x1xi32> to vector<32x16xi32>
    %3 = arith.cmpi eq, %2, %1 : vector<32x16xi32>
    %cst = arith.constant 1.000000e+00 : f32
    %cst_1 = arith.constant 0.000000e+00 : f32
    %4 = vector.broadcast %cst : f32 to vector<32x16xf32>
    %5 = vector.broadcast %cst_1 : f32 to vector<32x16xf32>
    %6 = arith.select %3, %4, %5 : vector<32x16xi1>, vector<32x16xf32>
    %7 = tpu.iota {dimensions = array<i32: 0>} : vector<16x32xi32>
    %c0_2 = arith.constant 0 : index
    %c0_3 = arith.constant 0 : index
    %8 = vector.load %arg3[%c0_2, %c0_3] : memref<1x32xi32, #tpu.memory_space<vmem>>, vector<1x32xi32>
    %9 = vector.broadcast %8 : vector<1x32xi32> to vector<16x32xi32>
    %10 = arith.cmpi eq, %7, %9 : vector<16x32xi32>
    %cst_4 = arith.constant 1.000000e+00 : f32
    %cst_5 = arith.constant 0.000000e+00 : f32
    %11 = vector.broadcast %cst_4 : f32 to vector<16x32xf32>
    %12 = vector.broadcast %cst_5 : f32 to vector<16x32xf32>
    %13 = arith.select %10, %11, %12 : vector<16x32xi1>, vector<16x32xf32>
    %14 = tpu.iota {dimensions = array<i32: 0>} : vector<2x16xi32>
    %c0_6 = arith.constant 0 : index
    %c0_7 = arith.constant 0 : index
    %15 = vector.load %arg4[%c0_6, %c0_7] : memref<1x16xi32, #tpu.memory_space<vmem>>, vector<1x16xi32>
    %16 = vector.broadcast %15 : vector<1x16xi32> to vector<2x16xi32>
    %17 = arith.cmpi eq, %14, %16 : vector<2x16xi32>
    %c0_8 = arith.constant 0 : index
    %c0_9 = arith.constant 0 : index
    %18 = vector.load %arg0[%c0_8, %c0_9] : memref<16x75xf32, #tpu.memory_space<vmem>>, vector<16x75xf32>
    %c0_10 = arith.constant 0 : index
    %c0_11 = arith.constant 0 : index
    %19 = vector.load %arg5[%c0_10, %c0_11] : memref<75x64xf32, #tpu.memory_space<vmem>>, vector<75x64xf32>
    %cst_12 = arith.constant dense<0.000000e+00> : vector<16x64xf32>
    %20 = tpu.matmul %18, %19, %cst_12 {dimension_numbers = #tpu.dot_dimension_numbers<[1], [0], [0], [1], [0, 0, 1, 1], [], []>} : vector<16x75xf32>, vector<75x64xf32>, vector<16x64xf32> -> vector<16x64xf32>
    %c0_13 = arith.constant 0 : index
    %c0_14 = arith.constant 0 : index
    %21 = vector.load %arg6[%c0_13, %c0_14] : memref<1x64xf32, #tpu.memory_space<vmem>>, vector<1x64xf32>
    %22 = vector.broadcast %21 : vector<1x64xf32> to vector<16x64xf32>
    %23 = arith.addf %20, %22 : vector<16x64xf32>
    %cst_15 = arith.constant 0.000000e+00 : f32
    %24 = vector.broadcast %cst_15 : f32 to vector<16x64xf32>
    %25 = arith.maximumf %23, %24 : vector<16x64xf32>
    %c0_16 = arith.constant 0 : index
    %c0_17 = arith.constant 0 : index
    %26 = vector.load %arg1[%c0_16, %c0_17] : memref<32x6xf32, #tpu.memory_space<vmem>>, vector<32x6xf32>
    %c0_18 = arith.constant 0 : index
    %c0_19 = arith.constant 0 : index
    %27 = vector.load %arg7[%c0_18, %c0_19] : memref<6x128xf32, #tpu.memory_space<vmem>>, vector<6x128xf32>
    %cst_20 = arith.constant dense<0.000000e+00> : vector<32x128xf32>
    %28 = tpu.matmul %26, %27, %cst_20 {dimension_numbers = #tpu.dot_dimension_numbers<[1], [0], [0], [1], [0, 0, 1, 1], [], []>} : vector<32x6xf32>, vector<6x128xf32>, vector<32x128xf32> -> vector<32x128xf32>
    %c0_21 = arith.constant 0 : index
    %c0_22 = arith.constant 0 : index
    %29 = vector.load %arg8[%c0_21, %c0_22] : memref<1x128xf32, #tpu.memory_space<vmem>>, vector<1x128xf32>
    %30 = vector.broadcast %29 : vector<1x128xf32> to vector<32x128xf32>
    %31 = arith.addf %28, %30 : vector<32x128xf32>
    %cst_23 = arith.constant 0.000000e+00 : f32
    %32 = vector.broadcast %cst_23 : f32 to vector<32x128xf32>
    %33 = arith.maximumf %31, %32 : vector<32x128xf32>
    %c0_24 = arith.constant 0 : index
    %c0_25 = arith.constant 0 : index
    %34 = vector.load %arg9[%c0_24, %c0_25] : memref<128x4096xf32, #tpu.memory_space<vmem>>, vector<128x512xf32>
    %cst_26 = arith.constant dense<0.000000e+00> : vector<32x512xf32>
    %35 = tpu.matmul %33, %34, %cst_26 {dimension_numbers = #tpu.dot_dimension_numbers<[1], [0], [0], [1], [0, 0, 1, 1], [], []>} : vector<32x128xf32>, vector<128x512xf32>, vector<32x512xf32> -> vector<32x512xf32>
    %c0_27 = arith.constant 0 : index
    %c0_28 = arith.constant 0 : index
    %36 = vector.load %arg10[%c0_27, %c0_28] : memref<1x4096xf32, #tpu.memory_space<vmem>>, vector<1x512xf32>
    %37 = vector.broadcast %36 : vector<1x512xf32> to vector<32x512xf32>
    %38 = arith.addf %35, %37 : vector<32x512xf32>
    %c0_29 = arith.constant 0 : index
    %c0_30 = arith.constant 0 : index
    %39 = vector.load %arg26[%c0_29, %c0_30] : memref<32x4096xf32, #tpu.memory_space<vmem>>, vector<32x512xf32>
    tpu.vector_store %arg26[%c0_29, %c0_30], %38 {strides = array<i32>} : memref<32x4096xf32, #tpu.memory_space<vmem>>, vector<32x512xf32>,
    %c0_31 = arith.constant 0 : index
    %c512 = arith.constant 512 : index
    %40 = vector.load %arg9[%c0_31, %c512] : memref<128x4096xf32, #tpu.memory_space<vmem>>, vector<128x512xf32>
    %cst_32 = arith.constant dense<0.000000e+00> : vector<32x512xf32>
    %41 = tpu.matmul %33, %40, %cst_32 {dimension_numbers = #tpu.dot_dimension_numbers<[1], [0], [0], [1], [0, 0, 1, 1], [], []>} : vector<32x128xf32>, vector<128x512xf32>, vector<32x512xf32> -> vector<32x512xf32>
    %c0_33 = arith.constant 0 : index
    %c512_34 = arith.constant 512 : index
    %42 = vector.load %arg10[%c0_33, %c512_34] : memref<1x4096xf32, #tpu.memory_space<vmem>>, vector<1x512xf32>
    %43 = vector.broadcast %42 : vector<1x512xf32> to vector<32x512xf32>
    %44 = arith.addf %41, %43 : vector<32x512xf32>
    %c0_35 = arith.constant 0 : index
    %c512_36 = arith.constant 512 : index
    %45 = vector.load %arg26[%c0_35, %c512_36] : memref<32x4096xf32, #tpu.memory_space<vmem>>, vector<32x512xf32>
    tpu.vector_store %arg26[%c0_35, %c512_36], %44 {strides = array<i32>} : memref<32x4096xf32, #tpu.memory_space<vmem>>, vector<32x512xf32>,
    %c0_37 = arith.constant 0 : index
    %c1024 = arith.constant 1024 : index
    %46 = vector.load %arg9[%c0_37, %c1024] : memref<128x4096xf32, #tpu.memory_space<vmem>>, vector<128x512xf32>
    %cst_38 = arith.constant dense<0.000000e+00> : vector<32x512xf32>
    %47 = tpu.matmul %33, %46, %cst_38 {dimension_numbers = #tpu.dot_dimension_numbers<[1], [0], [0], [1], [0, 0, 1, 1], [], []>} : vector<32x128xf32>, vector<128x512xf32>, vector<32x512xf32> -> vector<32x512xf32>
    %c0_39 = arith.constant 0 : index
    %c1024_40 = arith.constant 1024 : index
    %48 = vector.load %arg10[%c0_39, %c1024_40] : memref<1x4096xf32, #tpu.memory_space<vmem>>, vector<1x512xf32>
    %49 = vector.broadcast %48 : vector<1x512xf32> to vector<32x512xf32>
    %50 = arith.addf %47, %49 : vector<32x512xf32>
    %c0_41 = arith.constant 0 : index
    %c1024_42 = arith.constant 1024 : index
    %51 = vector.load %arg26[%c0_41, %c1024_42] : memref<32x4096xf32, #tpu.memory_space<vmem>>, vector<32x512xf32>
    tpu.vector_store %arg26[%c0_41, %c1024_42], %50 {strides = array<i32>} : memref<32x4096xf32, #tpu.memory_space<vmem>>, vector<32x512xf32>,
    %c0_43 = arith.constant 0 : index
    %c1536 = arith.constant 1536 : index
    %52 = vector.load %arg9[%c0_43, %c1536] : memref<128x4096xf32, #tpu.memory_space<vmem>>, vector<128x512xf32>
    %cst_44 = arith.constant dense<0.000000e+00> : vector<32x512xf32>
    %53 = tpu.matmul %33, %52, %cst_44 {dimension_numbers = #tpu.dot_dimension_numbers<[1], [0], [0], [1], [0, 0, 1, 1], [], []>} : vector<32x128xf32>, vector<128x512xf32>, vector<32x512xf32> -> vector<32x512xf32>
    %c0_45 = arith.constant 0 : index
    %c1536_46 = arith.constant 1536 : index
    %54 = vector.load %arg10[%c0_45, %c1536_46] : memref<1x4096xf32, #tpu.memory_space<vmem>>, vector<1x512xf32>
    %55 = vector.broadcast %54 : vector<1x512xf32> to vector<32x512xf32>
    %56 = arith.addf %53, %55 : vector<32x512xf32>
    %c0_47 = arith.constant 0 : index
    %c1536_48 = arith.constant 1536 : index
    %57 = vector.load %arg26[%c0_47, %c1536_48] : memref<32x4096xf32, #tpu.memory_space<vmem>>, vector<32x512xf32>
    tpu.vector_store %arg26[%c0_47, %c1536_48], %56 {strides = array<i32>} : memref<32x4096xf32, #tpu.memory_space<vmem>>, vector<32x512xf32>,
    %c0_49 = arith.constant 0 : index
    %c2048 = arith.constant 2048 : index
    %58 = vector.load %arg9[%c0_49, %c2048] : memref<128x4096xf32, #tpu.memory_space<vmem>>, vector<128x512xf32>
    %cst_50 = arith.constant dense<0.000000e+00> : vector<32x512xf32>
    %59 = tpu.matmul %33, %58, %cst_50 {dimension_numbers = #tpu.dot_dimension_numbers<[1], [0], [0], [1], [0, 0, 1, 1], [], []>} : vector<32x128xf32>, vector<128x512xf32>, vector<32x512xf32> -> vector<32x512xf32>
    %c0_51 = arith.constant 0 : index
    %c2048_52 = arith.constant 2048 : index
    %60 = vector.load %arg10[%c0_51, %c2048_52] : memref<1x4096xf32, #tpu.memory_space<vmem>>, vector<1x512xf32>
    %61 = vector.broadcast %60 : vector<1x512xf32> to vector<32x512xf32>
    %62 = arith.addf %59, %61 : vector<32x512xf32>
    %c0_53 = arith.constant 0 : index
    %c2048_54 = arith.constant 2048 : index
    %63 = vector.load %arg26[%c0_53, %c2048_54] : memref<32x4096xf32, #tpu.memory_space<vmem>>, vector<32x512xf32>
    tpu.vector_store %arg26[%c0_53, %c2048_54], %62 {strides = array<i32>} : memref<32x4096xf32, #tpu.memory_space<vmem>>, vector<32x512xf32>,
    %c0_55 = arith.constant 0 : index
    %c2560 = arith.constant 2560 : index
    %64 = vector.load %arg9[%c0_55, %c2560] : memref<128x4096xf32, #tpu.memory_space<vmem>>, vector<128x512xf32>
    %cst_56 = arith.constant dense<0.000000e+00> : vector<32x512xf32>
    %65 = tpu.matmul %33, %64, %cst_56 {dimension_numbers = #tpu.dot_dimension_numbers<[1], [0], [0], [1], [0, 0, 1, 1], [], []>} : vector<32x128xf32>, vector<128x512xf32>, vector<32x512xf32> -> vector<32x512xf32>
    %c0_57 = arith.constant 0 : index
    %c2560_58 = arith.constant 2560 : index
    %66 = vector.load %arg10[%c0_57, %c2560_58] : memref<1x4096xf32, #tpu.memory_space<vmem>>, vector<1x512xf32>
    %67 = vector.broadcast %66 : vector<1x512xf32> to vector<32x512xf32>
    %68 = arith.addf %65, %67 : vector<32x512xf32>
    %c0_59 = arith.constant 0 : index
    %c2560_60 = arith.constant 2560 : index
    %69 = vector.load %arg26[%c0_59, %c2560_60] : memref<32x4096xf32, #tpu.memory_space<vmem>>, vector<32x512xf32>
    tpu.vector_store %arg26[%c0_59, %c2560_60], %68 {strides = array<i32>} : memref<32x4096xf32, #tpu.memory_space<vmem>>, vector<32x512xf32>,
    %c0_61 = arith.constant 0 : index
    %c3072 = arith.constant 3072 : index
    %70 = vector.load %arg9[%c0_61, %c3072] : memref<128x4096xf32, #tpu.memory_space<vmem>>, vector<128x512xf32>
    %cst_62 = arith.constant dense<0.000000e+00> : vector<32x512xf32>
    %71 = tpu.matmul %33, %70, %cst_62 {dimension_numbers = #tpu.dot_dimension_numbers<[1], [0], [0], [1], [0, 0, 1, 1], [], []>} : vector<32x128xf32>, vector<128x512xf32>, vector<32x512xf32> -> vector<32x512xf32>
    %c0_63 = arith.constant 0 : index
    %c3072_64 = arith.constant 3072 : index
    %72 = vector.load %arg10[%c0_63, %c3072_64] : memref<1x4096xf32, #tpu.memory_space<vmem>>, vector<1x512xf32>
    %73 = vector.broadcast %72 : vector<1x512xf32> to vector<32x512xf32>
    %74 = arith.addf %71, %73 : vector<32x512xf32>
    %c0_65 = arith.constant 0 : index
    %c3072_66 = arith.constant 3072 : index
    %75 = vector.load %arg26[%c0_65, %c3072_66] : memref<32x4096xf32, #tpu.memory_space<vmem>>, vector<32x512xf32>
    tpu.vector_store %arg26[%c0_65, %c3072_66], %74 {strides = array<i32>} : memref<32x4096xf32, #tpu.memory_space<vmem>>, vector<32x512xf32>,
    %c0_67 = arith.constant 0 : index
    %c3584 = arith.constant 3584 : index
    %76 = vector.load %arg9[%c0_67, %c3584] : memref<128x4096xf32, #tpu.memory_space<vmem>>, vector<128x512xf32>
    %cst_68 = arith.constant dense<0.000000e+00> : vector<32x512xf32>
    %77 = tpu.matmul %33, %76, %cst_68 {dimension_numbers = #tpu.dot_dimension_numbers<[1], [0], [0], [1], [0, 0, 1, 1], [], []>} : vector<32x128xf32>, vector<128x512xf32>, vector<32x512xf32> -> vector<32x512xf32>
    %c0_69 = arith.constant 0 : index
    %c3584_70 = arith.constant 3584 : index
    %78 = vector.load %arg10[%c0_69, %c3584_70] : memref<1x4096xf32, #tpu.memory_space<vmem>>, vector<1x512xf32>
    %79 = vector.broadcast %78 : vector<1x512xf32> to vector<32x512xf32>
    %80 = arith.addf %77, %79 : vector<32x512xf32>
    %c0_71 = arith.constant 0 : index
    %c3584_72 = arith.constant 3584 : index
    %81 = vector.load %arg26[%c0_71, %c3584_72] : memref<32x4096xf32, #tpu.memory_space<vmem>>, vector<32x512xf32>
    tpu.vector_store %arg26[%c0_71, %c3584_72], %80 {strides = array<i32>} : memref<32x4096xf32, #tpu.memory_space<vmem>>, vector<32x512xf32>,
    %c0_i32 = arith.constant 0 : i32
    %c5_i32 = arith.constant 5 : i32
    %82 = arith.addi %c0_i32, %c5_i32 : i32
    %c1_i32 = arith.constant 1 : i32
    %83 = scf.for %arg27 = %c0_i32 to %82 step %c1_i32 iter_args(%arg28 = %25) -> (vector<16x64xf32>)  : i32 {
      %cst_146 = arith.constant dense<0.000000e+00> : vector<32x64xf32>
      %259 = tpu.matmul %6, %arg28, %cst_146 {dimension_numbers = #tpu.dot_dimension_numbers<[1], [0], [0], [1], [0, 0, 1, 1], [], []>} : vector<32x16xf32>, vector<16x64xf32>, vector<32x64xf32> -> vector<32x64xf32>
      %cst_147 = arith.constant 0.000000e+00 : f32
      %260 = vector.broadcast %cst_147 : f32 to vector<32x64xf32>
      %c0_148 = arith.constant 0 : index
      %c0_149 = arith.constant 0 : index
      %261 = vector.load %arg26[%c0_148, %c0_149] : memref<32x4096xf32, #tpu.memory_space<vmem>>, vector<32x128xf32>
      %262 = vector.extract_strided_slice %259 {offsets = [0, 0], sizes = [32, 1], strides = [1, 1]} : vector<32x64xf32> to vector<32x1xf32>
      %263 = vector.extract_strided_slice %261 {offsets = [0, 0], sizes = [32, 64], strides = [1, 1]} : vector<32x128xf32> to vector<32x64xf32>
      %264 = vector.broadcast %262 : vector<32x1xf32> to vector<32x64xf32>
      %265 = arith.mulf %264, %263 : vector<32x64xf32>
      %266 = arith.addf %260, %265 : vector<32x64xf32>
      %267 = vector.extract_strided_slice %259 {offsets = [0, 1], sizes = [32, 1], strides = [1, 1]} : vector<32x64xf32> to vector<32x1xf32>
      %268 = vector.extract_strided_slice %261 {offsets = [0, 64], sizes = [32, 64], strides = [1, 1]} : vector<32x128xf32> to vector<32x64xf32>
      %269 = vector.broadcast %267 : vector<32x1xf32> to vector<32x64xf32>
      %270 = arith.mulf %269, %268 : vector<32x64xf32>
      %271 = arith.addf %266, %270 : vector<32x64xf32>
      %c0_150 = arith.constant 0 : index
      %c128 = arith.constant 128 : index
      %272 = vector.load %arg26[%c0_150, %c128] : memref<32x4096xf32, #tpu.memory_space<vmem>>, vector<32x128xf32>
      %273 = vector.extract_strided_slice %259 {offsets = [0, 2], sizes = [32, 1], strides = [1, 1]} : vector<32x64xf32> to vector<32x1xf32>
      %274 = vector.extract_strided_slice %272 {offsets = [0, 0], sizes = [32, 64], strides = [1, 1]} : vector<32x128xf32> to vector<32x64xf32>
      %275 = vector.broadcast %273 : vector<32x1xf32> to vector<32x64xf32>
      %276 = arith.mulf %275, %274 : vector<32x64xf32>
      %277 = arith.addf %271, %276 : vector<32x64xf32>
      %278 = vector.extract_strided_slice %259 {offsets = [0, 3], sizes = [32, 1], strides = [1, 1]} : vector<32x64xf32> to vector<32x1xf32>
      %279 = vector.extract_strided_slice %272 {offsets = [0, 64], sizes = [32, 64], strides = [1, 1]} : vector<32x128xf32> to vector<32x64xf32>
      %280 = vector.broadcast %278 : vector<32x1xf32> to vector<32x64xf32>
      %281 = arith.mulf %280, %279 : vector<32x64xf32>
      %282 = arith.addf %277, %281 : vector<32x64xf32>
      %c0_151 = arith.constant 0 : index
      %c256 = arith.constant 256 : index
      %283 = vector.load %arg26[%c0_151, %c256] : memref<32x4096xf32, #tpu.memory_space<vmem>>, vector<32x128xf32>
      %284 = vector.extract_strided_slice %259 {offsets = [0, 4], sizes = [32, 1], strides = [1, 1]} : vector<32x64xf32> to vector<32x1xf32>
      %285 = vector.extract_strided_slice %283 {offsets = [0, 0], sizes = [32, 64], strides = [1, 1]} : vector<32x128xf32> to vector<32x64xf32>
      %286 = vector.broadcast %284 : vector<32x1xf32> to vector<32x64xf32>
      %287 = arith.mulf %286, %285 : vector<32x64xf32>
      %288 = arith.addf %282, %287 : vector<32x64xf32>
      %289 = vector.extract_strided_slice %259 {offsets = [0, 5], sizes = [32, 1], strides = [1, 1]} : vector<32x64xf32> to vector<32x1xf32>
      %290 = vector.extract_strided_slice %283 {offsets = [0, 64], sizes = [32, 64], strides = [1, 1]} : vector<32x128xf32> to vector<32x64xf32>
      %291 = vector.broadcast %289 : vector<32x1xf32> to vector<32x64xf32>
      %292 = arith.mulf %291, %290 : vector<32x64xf32>
      %293 = arith.addf %288, %292 : vector<32x64xf32>
      %c0_152 = arith.constant 0 : index
      %c384 = arith.constant 384 : index
      %294 = vector.load %arg26[%c0_152, %c384] : memref<32x4096xf32, #tpu.memory_space<vmem>>, vector<32x128xf32>
      %295 = vector.extract_strided_slice %259 {offsets = [0, 6], sizes = [32, 1], strides = [1, 1]} : vector<32x64xf32> to vector<32x1xf32>
      %296 = vector.extract_strided_slice %294 {offsets = [0, 0], sizes = [32, 64], strides = [1, 1]} : vector<32x128xf32> to vector<32x64xf32>
      %297 = vector.broadcast %295 : vector<32x1xf32> to vector<32x64xf32>
      %298 = arith.mulf %297, %296 : vector<32x64xf32>
      %299 = arith.addf %293, %298 : vector<32x64xf32>
      %300 = vector.extract_strided_slice %259 {offsets = [0, 7], sizes = [32, 1], strides = [1, 1]} : vector<32x64xf32> to vector<32x1xf32>
      %301 = vector.extract_strided_slice %294 {offsets = [0, 64], sizes = [32, 64], strides = [1, 1]} : vector<32x128xf32> to vector<32x64xf32>
      %302 = vector.broadcast %300 : vector<32x1xf32> to vector<32x64xf32>
      %303 = arith.mulf %302, %301 : vector<32x64xf32>
      %304 = arith.addf %299, %303 : vector<32x64xf32>
      %c0_153 = arith.constant 0 : index
      %c512_154 = arith.constant 512 : index
      %305 = vector.load %arg26[%c0_153, %c512_154] : memref<32x4096xf32, #tpu.memory_space<vmem>>, vector<32x128xf32>
      %306 = vector.extract_strided_slice %259 {offsets = [0, 8], sizes = [32, 1], strides = [1, 1]} : vector<32x64xf32> to vector<32x1xf32>
      %307 = vector.extract_strided_slice %305 {offsets = [0, 0], sizes = [32, 64], strides = [1, 1]} : vector<32x128xf32> to vector<32x64xf32>
      %308 = vector.broadcast %306 : vector<32x1xf32> to vector<32x64xf32>
      %309 = arith.mulf %308, %307 : vector<32x64xf32>
      %310 = arith.addf %304, %309 : vector<32x64xf32>
      %311 = vector.extract_strided_slice %259 {offsets = [0, 9], sizes = [32, 1], strides = [1, 1]} : vector<32x64xf32> to vector<32x1xf32>
      %312 = vector.extract_strided_slice %305 {offsets = [0, 64], sizes = [32, 64], strides = [1, 1]} : vector<32x128xf32> to vector<32x64xf32>
      %313 = vector.broadcast %311 : vector<32x1xf32> to vector<32x64xf32>
      %314 = arith.mulf %313, %312 : vector<32x64xf32>
      %315 = arith.addf %310, %314 : vector<32x64xf32>
      %c0_155 = arith.constant 0 : index
      %c640 = arith.constant 640 : index
      %316 = vector.load %arg26[%c0_155, %c640] : memref<32x4096xf32, #tpu.memory_space<vmem>>, vector<32x128xf32>
      %317 = vector.extract_strided_slice %259 {offsets = [0, 10], sizes = [32, 1], strides = [1, 1]} : vector<32x64xf32> to vector<32x1xf32>
      %318 = vector.extract_strided_slice %316 {offsets = [0, 0], sizes = [32, 64], strides = [1, 1]} : vector<32x128xf32> to vector<32x64xf32>
      %319 = vector.broadcast %317 : vector<32x1xf32> to vector<32x64xf32>
      %320 = arith.mulf %319, %318 : vector<32x64xf32>
      %321 = arith.addf %315, %320 : vector<32x64xf32>
      %322 = vector.extract_strided_slice %259 {offsets = [0, 11], sizes = [32, 1], strides = [1, 1]} : vector<32x64xf32> to vector<32x1xf32>
      %323 = vector.extract_strided_slice %316 {offsets = [0, 64], sizes = [32, 64], strides = [1, 1]} : vector<32x128xf32> to vector<32x64xf32>
      %324 = vector.broadcast %322 : vector<32x1xf32> to vector<32x64xf32>
      %325 = arith.mulf %324, %323 : vector<32x64xf32>
      %326 = arith.addf %321, %325 : vector<32x64xf32>
      %c0_156 = arith.constant 0 : index
      %c768 = arith.constant 768 : index
      %327 = vector.load %arg26[%c0_156, %c768] : memref<32x4096xf32, #tpu.memory_space<vmem>>, vector<32x128xf32>
      %328 = vector.extract_strided_slice %259 {offsets = [0, 12], sizes = [32, 1], strides = [1, 1]} : vector<32x64xf32> to vector<32x1xf32>
      %329 = vector.extract_strided_slice %327 {offsets = [0, 0], sizes = [32, 64], strides = [1, 1]} : vector<32x128xf32> to vector<32x64xf32>
      %330 = vector.broadcast %328 : vector<32x1xf32> to vector<32x64xf32>
      %331 = arith.mulf %330, %329 : vector<32x64xf32>
      %332 = arith.addf %326, %331 : vector<32x64xf32>
      %333 = vector.extract_strided_slice %259 {offsets = [0, 13], sizes = [32, 1], strides = [1, 1]} : vector<32x64xf32> to vector<32x1xf32>
      %334 = vector.extract_strided_slice %327 {offsets = [0, 64], sizes = [32, 64], strides = [1, 1]} : vector<32x128xf32> to vector<32x64xf32>
      %335 = vector.broadcast %333 : vector<32x1xf32> to vector<32x64xf32>
      %336 = arith.mulf %335, %334 : vector<32x64xf32>
      %337 = arith.addf %332, %336 : vector<32x64xf32>
      %c0_157 = arith.constant 0 : index
      %c896 = arith.constant 896 : index
      %338 = vector.load %arg26[%c0_157, %c896] : memref<32x4096xf32, #tpu.memory_space<vmem>>, vector<32x128xf32>
      %339 = vector.extract_strided_slice %259 {offsets = [0, 14], sizes = [32, 1], strides = [1, 1]} : vector<32x64xf32> to vector<32x1xf32>
      %340 = vector.extract_strided_slice %338 {offsets = [0, 0], sizes = [32, 64], strides = [1, 1]} : vector<32x128xf32> to vector<32x64xf32>
      %341 = vector.broadcast %339 : vector<32x1xf32> to vector<32x64xf32>
      %342 = arith.mulf %341, %340 : vector<32x64xf32>
      %343 = arith.addf %337, %342 : vector<32x64xf32>
      %344 = vector.extract_strided_slice %259 {offsets = [0, 15], sizes = [32, 1], strides = [1, 1]} : vector<32x64xf32> to vector<32x1xf32>
      %345 = vector.extract_strided_slice %338 {offsets = [0, 64], sizes = [32, 64], strides = [1, 1]} : vector<32x128xf32> to vector<32x64xf32>
      %346 = vector.broadcast %344 : vector<32x1xf32> to vector<32x64xf32>
      %347 = arith.mulf %346, %345 : vector<32x64xf32>
      %348 = arith.addf %343, %347 : vector<32x64xf32>
      %c0_158 = arith.constant 0 : index
      %c1024_159 = arith.constant 1024 : index
      %349 = vector.load %arg26[%c0_158, %c1024_159] : memref<32x4096xf32, #tpu.memory_space<vmem>>, vector<32x128xf32>
      %350 = vector.extract_strided_slice %259 {offsets = [0, 16], sizes = [32, 1], strides = [1, 1]} : vector<32x64xf32> to vector<32x1xf32>
      %351 = vector.extract_strided_slice %349 {offsets = [0, 0], sizes = [32, 64], strides = [1, 1]} : vector<32x128xf32> to vector<32x64xf32>
      %352 = vector.broadcast %350 : vector<32x1xf32> to vector<32x64xf32>
      %353 = arith.mulf %352, %351 : vector<32x64xf32>
      %354 = arith.addf %348, %353 : vector<32x64xf32>
      %355 = vector.extract_strided_slice %259 {offsets = [0, 17], sizes = [32, 1], strides = [1, 1]} : vector<32x64xf32> to vector<32x1xf32>
      %356 = vector.extract_strided_slice %349 {offsets = [0, 64], sizes = [32, 64], strides = [1, 1]} : vector<32x128xf32> to vector<32x64xf32>
      %357 = vector.broadcast %355 : vector<32x1xf32> to vector<32x64xf32>
      %358 = arith.mulf %357, %356 : vector<32x64xf32>
      %359 = arith.addf %354, %358 : vector<32x64xf32>
      %c0_160 = arith.constant 0 : index
      %c1152 = arith.constant 1152 : index
      %360 = vector.load %arg26[%c0_160, %c1152] : memref<32x4096xf32, #tpu.memory_space<vmem>>, vector<32x128xf32>
      %361 = vector.extract_strided_slice %259 {offsets = [0, 18], sizes = [32, 1], strides = [1, 1]} : vector<32x64xf32> to vector<32x1xf32>
      %362 = vector.extract_strided_slice %360 {offsets = [0, 0], sizes = [32, 64], strides = [1, 1]} : vector<32x128xf32> to vector<32x64xf32>
      %363 = vector.broadcast %361 : vector<32x1xf32> to vector<32x64xf32>
      %364 = arith.mulf %363, %362 : vector<32x64xf32>
      %365 = arith.addf %359, %364 : vector<32x64xf32>
      %366 = vector.extract_strided_slice %259 {offsets = [0, 19], sizes = [32, 1], strides = [1, 1]} : vector<32x64xf32> to vector<32x1xf32>
      %367 = vector.extract_strided_slice %360 {offsets = [0, 64], sizes = [32, 64], strides = [1, 1]} : vector<32x128xf32> to vector<32x64xf32>
      %368 = vector.broadcast %366 : vector<32x1xf32> to vector<32x64xf32>
      %369 = arith.mulf %368, %367 : vector<32x64xf32>
      %370 = arith.addf %365, %369 : vector<32x64xf32>
      %c0_161 = arith.constant 0 : index
      %c1280 = arith.constant 1280 : index
      %371 = vector.load %arg26[%c0_161, %c1280] : memref<32x4096xf32, #tpu.memory_space<vmem>>, vector<32x128xf32>
      %372 = vector.extract_strided_slice %259 {offsets = [0, 20], sizes = [32, 1], strides = [1, 1]} : vector<32x64xf32> to vector<32x1xf32>
      %373 = vector.extract_strided_slice %371 {offsets = [0, 0], sizes = [32, 64], strides = [1, 1]} : vector<32x128xf32> to vector<32x64xf32>
      %374 = vector.broadcast %372 : vector<32x1xf32> to vector<32x64xf32>
      %375 = arith.mulf %374, %373 : vector<32x64xf32>
      %376 = arith.addf %370, %375 : vector<32x64xf32>
      %377 = vector.extract_strided_slice %259 {offsets = [0, 21], sizes = [32, 1], strides = [1, 1]} : vector<32x64xf32> to vector<32x1xf32>
      %378 = vector.extract_strided_slice %371 {offsets = [0, 64], sizes = [32, 64], strides = [1, 1]} : vector<32x128xf32> to vector<32x64xf32>
      %379 = vector.broadcast %377 : vector<32x1xf32> to vector<32x64xf32>
      %380 = arith.mulf %379, %378 : vector<32x64xf32>
      %381 = arith.addf %376, %380 : vector<32x64xf32>
      %c0_162 = arith.constant 0 : index
      %c1408 = arith.constant 1408 : index
      %382 = vector.load %arg26[%c0_162, %c1408] : memref<32x4096xf32, #tpu.memory_space<vmem>>, vector<32x128xf32>
      %383 = vector.extract_strided_slice %259 {offsets = [0, 22], sizes = [32, 1], strides = [1, 1]} : vector<32x64xf32> to vector<32x1xf32>
      %384 = vector.extract_strided_slice %382 {offsets = [0, 0], sizes = [32, 64], strides = [1, 1]} : vector<32x128xf32> to vector<32x64xf32>
      %385 = vector.broadcast %383 : vector<32x1xf32> to vector<32x64xf32>
      %386 = arith.mulf %385, %384 : vector<32x64xf32>
      %387 = arith.addf %381, %386 : vector<32x64xf32>
      %388 = vector.extract_strided_slice %259 {offsets = [0, 23], sizes = [32, 1], strides = [1, 1]} : vector<32x64xf32> to vector<32x1xf32>
      %389 = vector.extract_strided_slice %382 {offsets = [0, 64], sizes = [32, 64], strides = [1, 1]} : vector<32x128xf32> to vector<32x64xf32>
      %390 = vector.broadcast %388 : vector<32x1xf32> to vector<32x64xf32>
      %391 = arith.mulf %390, %389 : vector<32x64xf32>
      %392 = arith.addf %387, %391 : vector<32x64xf32>
      %c0_163 = arith.constant 0 : index
      %c1536_164 = arith.constant 1536 : index
      %393 = vector.load %arg26[%c0_163, %c1536_164] : memref<32x4096xf32, #tpu.memory_space<vmem>>, vector<32x128xf32>
      %394 = vector.extract_strided_slice %259 {offsets = [0, 24], sizes = [32, 1], strides = [1, 1]} : vector<32x64xf32> to vector<32x1xf32>
      %395 = vector.extract_strided_slice %393 {offsets = [0, 0], sizes = [32, 64], strides = [1, 1]} : vector<32x128xf32> to vector<32x64xf32>
      %396 = vector.broadcast %394 : vector<32x1xf32> to vector<32x64xf32>
      %397 = arith.mulf %396, %395 : vector<32x64xf32>
      %398 = arith.addf %392, %397 : vector<32x64xf32>
      %399 = vector.extract_strided_slice %259 {offsets = [0, 25], sizes = [32, 1], strides = [1, 1]} : vector<32x64xf32> to vector<32x1xf32>
      %400 = vector.extract_strided_slice %393 {offsets = [0, 64], sizes = [32, 64], strides = [1, 1]} : vector<32x128xf32> to vector<32x64xf32>
      %401 = vector.broadcast %399 : vector<32x1xf32> to vector<32x64xf32>
      %402 = arith.mulf %401, %400 : vector<32x64xf32>
      %403 = arith.addf %398, %402 : vector<32x64xf32>
      %c0_165 = arith.constant 0 : index
      %c1664 = arith.constant 1664 : index
      %404 = vector.load %arg26[%c0_165, %c1664] : memref<32x4096xf32, #tpu.memory_space<vmem>>, vector<32x128xf32>
      %405 = vector.extract_strided_slice %259 {offsets = [0, 26], sizes = [32, 1], strides = [1, 1]} : vector<32x64xf32> to vector<32x1xf32>
      %406 = vector.extract_strided_slice %404 {offsets = [0, 0], sizes = [32, 64], strides = [1, 1]} : vector<32x128xf32> to vector<32x64xf32>
      %407 = vector.broadcast %405 : vector<32x1xf32> to vector<32x64xf32>
      %408 = arith.mulf %407, %406 : vector<32x64xf32>
      %409 = arith.addf %403, %408 : vector<32x64xf32>
      %410 = vector.extract_strided_slice %259 {offsets = [0, 27], sizes = [32, 1], strides = [1, 1]} : vector<32x64xf32> to vector<32x1xf32>
      %411 = vector.extract_strided_slice %404 {offsets = [0, 64], sizes = [32, 64], strides = [1, 1]} : vector<32x128xf32> to vector<32x64xf32>
      %412 = vector.broadcast %410 : vector<32x1xf32> to vector<32x64xf32>
      %413 = arith.mulf %412, %411 : vector<32x64xf32>
      %414 = arith.addf %409, %413 : vector<32x64xf32>
      %c0_166 = arith.constant 0 : index
      %c1792 = arith.constant 1792 : index
      %415 = vector.load %arg26[%c0_166, %c1792] : memref<32x4096xf32, #tpu.memory_space<vmem>>, vector<32x128xf32>
      %416 = vector.extract_strided_slice %259 {offsets = [0, 28], sizes = [32, 1], strides = [1, 1]} : vector<32x64xf32> to vector<32x1xf32>
      %417 = vector.extract_strided_slice %415 {offsets = [0, 0], sizes = [32, 64], strides = [1, 1]} : vector<32x128xf32> to vector<32x64xf32>
      %418 = vector.broadcast %416 : vector<32x1xf32> to vector<32x64xf32>
      %419 = arith.mulf %418, %417 : vector<32x64xf32>
      %420 = arith.addf %414, %419 : vector<32x64xf32>
      %421 = vector.extract_strided_slice %259 {offsets = [0, 29], sizes = [32, 1], strides = [1, 1]} : vector<32x64xf32> to vector<32x1xf32>
      %422 = vector.extract_strided_slice %415 {offsets = [0, 64], sizes = [32, 64], strides = [1, 1]} : vector<32x128xf32> to vector<32x64xf32>
      %423 = vector.broadcast %421 : vector<32x1xf32> to vector<32x64xf32>
      %424 = arith.mulf %423, %422 : vector<32x64xf32>
      %425 = arith.addf %420, %424 : vector<32x64xf32>
      %c0_167 = arith.constant 0 : index
      %c1920 = arith.constant 1920 : index
      %426 = vector.load %arg26[%c0_167, %c1920] : memref<32x4096xf32, #tpu.memory_space<vmem>>, vector<32x128xf32>
      %427 = vector.extract_strided_slice %259 {offsets = [0, 30], sizes = [32, 1], strides = [1, 1]} : vector<32x64xf32> to vector<32x1xf32>
      %428 = vector.extract_strided_slice %426 {offsets = [0, 0], sizes = [32, 64], strides = [1, 1]} : vector<32x128xf32> to vector<32x64xf32>
      %429 = vector.broadcast %427 : vector<32x1xf32> to vector<32x64xf32>
      %430 = arith.mulf %429, %428 : vector<32x64xf32>
      %431 = arith.addf %425, %430 : vector<32x64xf32>
      %432 = vector.extract_strided_slice %259 {offsets = [0, 31], sizes = [32, 1], strides = [1, 1]} : vector<32x64xf32> to vector<32x1xf32>
      %433 = vector.extract_strided_slice %426 {offsets = [0, 64], sizes = [32, 64], strides = [1, 1]} : vector<32x128xf32> to vector<32x64xf32>
      %434 = vector.broadcast %432 : vector<32x1xf32> to vector<32x64xf32>
      %435 = arith.mulf %434, %433 : vector<32x64xf32>
      %436 = arith.addf %431, %435 : vector<32x64xf32>
      %c0_168 = arith.constant 0 : index
      %c2048_169 = arith.constant 2048 : index
      %437 = vector.load %arg26[%c0_168, %c2048_169] : memref<32x4096xf32, #tpu.memory_space<vmem>>, vector<32x128xf32>
      %438 = vector.extract_strided_slice %259 {offsets = [0, 32], sizes = [32, 1], strides = [1, 1]} : vector<32x64xf32> to vector<32x1xf32>
      %439 = vector.extract_strided_slice %437 {offsets = [0, 0], sizes = [32, 64], strides = [1, 1]} : vector<32x128xf32> to vector<32x64xf32>
      %440 = vector.broadcast %438 : vector<32x1xf32> to vector<32x64xf32>
      %441 = arith.mulf %440, %439 : vector<32x64xf32>
      %442 = arith.addf %436, %441 : vector<32x64xf32>
      %443 = vector.extract_strided_slice %259 {offsets = [0, 33], sizes = [32, 1], strides = [1, 1]} : vector<32x64xf32> to vector<32x1xf32>
      %444 = vector.extract_strided_slice %437 {offsets = [0, 64], sizes = [32, 64], strides = [1, 1]} : vector<32x128xf32> to vector<32x64xf32>
      %445 = vector.broadcast %443 : vector<32x1xf32> to vector<32x64xf32>
      %446 = arith.mulf %445, %444 : vector<32x64xf32>
      %447 = arith.addf %442, %446 : vector<32x64xf32>
      %c0_170 = arith.constant 0 : index
      %c2176 = arith.constant 2176 : index
      %448 = vector.load %arg26[%c0_170, %c2176] : memref<32x4096xf32, #tpu.memory_space<vmem>>, vector<32x128xf32>
      %449 = vector.extract_strided_slice %259 {offsets = [0, 34], sizes = [32, 1], strides = [1, 1]} : vector<32x64xf32> to vector<32x1xf32>
      %450 = vector.extract_strided_slice %448 {offsets = [0, 0], sizes = [32, 64], strides = [1, 1]} : vector<32x128xf32> to vector<32x64xf32>
      %451 = vector.broadcast %449 : vector<32x1xf32> to vector<32x64xf32>
      %452 = arith.mulf %451, %450 : vector<32x64xf32>
      %453 = arith.addf %447, %452 : vector<32x64xf32>
      %454 = vector.extract_strided_slice %259 {offsets = [0, 35], sizes = [32, 1], strides = [1, 1]} : vector<32x64xf32> to vector<32x1xf32>
      %455 = vector.extract_strided_slice %448 {offsets = [0, 64], sizes = [32, 64], strides = [1, 1]} : vector<32x128xf32> to vector<32x64xf32>
      %456 = vector.broadcast %454 : vector<32x1xf32> to vector<32x64xf32>
      %457 = arith.mulf %456, %455 : vector<32x64xf32>
      %458 = arith.addf %453, %457 : vector<32x64xf32>
      %c0_171 = arith.constant 0 : index
      %c2304 = arith.constant 2304 : index
      %459 = vector.load %arg26[%c0_171, %c2304] : memref<32x4096xf32, #tpu.memory_space<vmem>>, vector<32x128xf32>
      %460 = vector.extract_strided_slice %259 {offsets = [0, 36], sizes = [32, 1], strides = [1, 1]} : vector<32x64xf32> to vector<32x1xf32>
      %461 = vector.extract_strided_slice %459 {offsets = [0, 0], sizes = [32, 64], strides = [1, 1]} : vector<32x128xf32> to vector<32x64xf32>
      %462 = vector.broadcast %460 : vector<32x1xf32> to vector<32x64xf32>
      %463 = arith.mulf %462, %461 : vector<32x64xf32>
      %464 = arith.addf %458, %463 : vector<32x64xf32>
      %465 = vector.extract_strided_slice %259 {offsets = [0, 37], sizes = [32, 1], strides = [1, 1]} : vector<32x64xf32> to vector<32x1xf32>
      %466 = vector.extract_strided_slice %459 {offsets = [0, 64], sizes = [32, 64], strides = [1, 1]} : vector<32x128xf32> to vector<32x64xf32>
      %467 = vector.broadcast %465 : vector<32x1xf32> to vector<32x64xf32>
      %468 = arith.mulf %467, %466 : vector<32x64xf32>
      %469 = arith.addf %464, %468 : vector<32x64xf32>
      %c0_172 = arith.constant 0 : index
      %c2432 = arith.constant 2432 : index
      %470 = vector.load %arg26[%c0_172, %c2432] : memref<32x4096xf32, #tpu.memory_space<vmem>>, vector<32x128xf32>
      %471 = vector.extract_strided_slice %259 {offsets = [0, 38], sizes = [32, 1], strides = [1, 1]} : vector<32x64xf32> to vector<32x1xf32>
      %472 = vector.extract_strided_slice %470 {offsets = [0, 0], sizes = [32, 64], strides = [1, 1]} : vector<32x128xf32> to vector<32x64xf32>
      %473 = vector.broadcast %471 : vector<32x1xf32> to vector<32x64xf32>
      %474 = arith.mulf %473, %472 : vector<32x64xf32>
      %475 = arith.addf %469, %474 : vector<32x64xf32>
      %476 = vector.extract_strided_slice %259 {offsets = [0, 39], sizes = [32, 1], strides = [1, 1]} : vector<32x64xf32> to vector<32x1xf32>
      %477 = vector.extract_strided_slice %470 {offsets = [0, 64], sizes = [32, 64], strides = [1, 1]} : vector<32x128xf32> to vector<32x64xf32>
      %478 = vector.broadcast %476 : vector<32x1xf32> to vector<32x64xf32>
      %479 = arith.mulf %478, %477 : vector<32x64xf32>
      %480 = arith.addf %475, %479 : vector<32x64xf32>
      %c0_173 = arith.constant 0 : index
      %c2560_174 = arith.constant 2560 : index
      %481 = vector.load %arg26[%c0_173, %c2560_174] : memref<32x4096xf32, #tpu.memory_space<vmem>>, vector<32x128xf32>
      %482 = vector.extract_strided_slice %259 {offsets = [0, 40], sizes = [32, 1], strides = [1, 1]} : vector<32x64xf32> to vector<32x1xf32>
      %483 = vector.extract_strided_slice %481 {offsets = [0, 0], sizes = [32, 64], strides = [1, 1]} : vector<32x128xf32> to vector<32x64xf32>
      %484 = vector.broadcast %482 : vector<32x1xf32> to vector<32x64xf32>
      %485 = arith.mulf %484, %483 : vector<32x64xf32>
      %486 = arith.addf %480, %485 : vector<32x64xf32>
      %487 = vector.extract_strided_slice %259 {offsets = [0, 41], sizes = [32, 1], strides = [1, 1]} : vector<32x64xf32> to vector<32x1xf32>
      %488 = vector.extract_strided_slice %481 {offsets = [0, 64], sizes = [32, 64], strides = [1, 1]} : vector<32x128xf32> to vector<32x64xf32>
      %489 = vector.broadcast %487 : vector<32x1xf32> to vector<32x64xf32>
      %490 = arith.mulf %489, %488 : vector<32x64xf32>
      %491 = arith.addf %486, %490 : vector<32x64xf32>
      %c0_175 = arith.constant 0 : index
      %c2688 = arith.constant 2688 : index
      %492 = vector.load %arg26[%c0_175, %c2688] : memref<32x4096xf32, #tpu.memory_space<vmem>>, vector<32x128xf32>
      %493 = vector.extract_strided_slice %259 {offsets = [0, 42], sizes = [32, 1], strides = [1, 1]} : vector<32x64xf32> to vector<32x1xf32>
      %494 = vector.extract_strided_slice %492 {offsets = [0, 0], sizes = [32, 64], strides = [1, 1]} : vector<32x128xf32> to vector<32x64xf32>
      %495 = vector.broadcast %493 : vector<32x1xf32> to vector<32x64xf32>
      %496 = arith.mulf %495, %494 : vector<32x64xf32>
      %497 = arith.addf %491, %496 : vector<32x64xf32>
      %498 = vector.extract_strided_slice %259 {offsets = [0, 43], sizes = [32, 1], strides = [1, 1]} : vector<32x64xf32> to vector<32x1xf32>
      %499 = vector.extract_strided_slice %492 {offsets = [0, 64], sizes = [32, 64], strides = [1, 1]} : vector<32x128xf32> to vector<32x64xf32>
      %500 = vector.broadcast %498 : vector<32x1xf32> to vector<32x64xf32>
      %501 = arith.mulf %500, %499 : vector<32x64xf32>
      %502 = arith.addf %497, %501 : vector<32x64xf32>
      %c0_176 = arith.constant 0 : index
      %c2816 = arith.constant 2816 : index
      %503 = vector.load %arg26[%c0_176, %c2816] : memref<32x4096xf32, #tpu.memory_space<vmem>>, vector<32x128xf32>
      %504 = vector.extract_strided_slice %259 {offsets = [0, 44], sizes = [32, 1], strides = [1, 1]} : vector<32x64xf32> to vector<32x1xf32>
      %505 = vector.extract_strided_slice %503 {offsets = [0, 0], sizes = [32, 64], strides = [1, 1]} : vector<32x128xf32> to vector<32x64xf32>
      %506 = vector.broadcast %504 : vector<32x1xf32> to vector<32x64xf32>
      %507 = arith.mulf %506, %505 : vector<32x64xf32>
      %508 = arith.addf %502, %507 : vector<32x64xf32>
      %509 = vector.extract_strided_slice %259 {offsets = [0, 45], sizes = [32, 1], strides = [1, 1]} : vector<32x64xf32> to vector<32x1xf32>
      %510 = vector.extract_strided_slice %503 {offsets = [0, 64], sizes = [32, 64], strides = [1, 1]} : vector<32x128xf32> to vector<32x64xf32>
      %511 = vector.broadcast %509 : vector<32x1xf32> to vector<32x64xf32>
      %512 = arith.mulf %511, %510 : vector<32x64xf32>
      %513 = arith.addf %508, %512 : vector<32x64xf32>
      %c0_177 = arith.constant 0 : index
      %c2944 = arith.constant 2944 : index
      %514 = vector.load %arg26[%c0_177, %c2944] : memref<32x4096xf32, #tpu.memory_space<vmem>>, vector<32x128xf32>
      %515 = vector.extract_strided_slice %259 {offsets = [0, 46], sizes = [32, 1], strides = [1, 1]} : vector<32x64xf32> to vector<32x1xf32>
      %516 = vector.extract_strided_slice %514 {offsets = [0, 0], sizes = [32, 64], strides = [1, 1]} : vector<32x128xf32> to vector<32x64xf32>
      %517 = vector.broadcast %515 : vector<32x1xf32> to vector<32x64xf32>
      %518 = arith.mulf %517, %516 : vector<32x64xf32>
      %519 = arith.addf %513, %518 : vector<32x64xf32>
      %520 = vector.extract_strided_slice %259 {offsets = [0, 47], sizes = [32, 1], strides = [1, 1]} : vector<32x64xf32> to vector<32x1xf32>
      %521 = vector.extract_strided_slice %514 {offsets = [0, 64], sizes = [32, 64], strides = [1, 1]} : vector<32x128xf32> to vector<32x64xf32>
      %522 = vector.broadcast %520 : vector<32x1xf32> to vector<32x64xf32>
      %523 = arith.mulf %522, %521 : vector<32x64xf32>
      %524 = arith.addf %519, %523 : vector<32x64xf32>
      %c0_178 = arith.constant 0 : index
      %c3072_179 = arith.constant 3072 : index
      %525 = vector.load %arg26[%c0_178, %c3072_179] : memref<32x4096xf32, #tpu.memory_space<vmem>>, vector<32x128xf32>
      %526 = vector.extract_strided_slice %259 {offsets = [0, 48], sizes = [32, 1], strides = [1, 1]} : vector<32x64xf32> to vector<32x1xf32>
      %527 = vector.extract_strided_slice %525 {offsets = [0, 0], sizes = [32, 64], strides = [1, 1]} : vector<32x128xf32> to vector<32x64xf32>
      %528 = vector.broadcast %526 : vector<32x1xf32> to vector<32x64xf32>
      %529 = arith.mulf %528, %527 : vector<32x64xf32>
      %530 = arith.addf %524, %529 : vector<32x64xf32>
      %531 = vector.extract_strided_slice %259 {offsets = [0, 49], sizes = [32, 1], strides = [1, 1]} : vector<32x64xf32> to vector<32x1xf32>
      %532 = vector.extract_strided_slice %525 {offsets = [0, 64], sizes = [32, 64], strides = [1, 1]} : vector<32x128xf32> to vector<32x64xf32>
      %533 = vector.broadcast %531 : vector<32x1xf32> to vector<32x64xf32>
      %534 = arith.mulf %533, %532 : vector<32x64xf32>
      %535 = arith.addf %530, %534 : vector<32x64xf32>
      %c0_180 = arith.constant 0 : index
      %c3200 = arith.constant 3200 : index
      %536 = vector.load %arg26[%c0_180, %c3200] : memref<32x4096xf32, #tpu.memory_space<vmem>>, vector<32x128xf32>
      %537 = vector.extract_strided_slice %259 {offsets = [0, 50], sizes = [32, 1], strides = [1, 1]} : vector<32x64xf32> to vector<32x1xf32>
      %538 = vector.extract_strided_slice %536 {offsets = [0, 0], sizes = [32, 64], strides = [1, 1]} : vector<32x128xf32> to vector<32x64xf32>
      %539 = vector.broadcast %537 : vector<32x1xf32> to vector<32x64xf32>
      %540 = arith.mulf %539, %538 : vector<32x64xf32>
      %541 = arith.addf %535, %540 : vector<32x64xf32>
      %542 = vector.extract_strided_slice %259 {offsets = [0, 51], sizes = [32, 1], strides = [1, 1]} : vector<32x64xf32> to vector<32x1xf32>
      %543 = vector.extract_strided_slice %536 {offsets = [0, 64], sizes = [32, 64], strides = [1, 1]} : vector<32x128xf32> to vector<32x64xf32>
      %544 = vector.broadcast %542 : vector<32x1xf32> to vector<32x64xf32>
      %545 = arith.mulf %544, %543 : vector<32x64xf32>
      %546 = arith.addf %541, %545 : vector<32x64xf32>
      %c0_181 = arith.constant 0 : index
      %c3328 = arith.constant 3328 : index
      %547 = vector.load %arg26[%c0_181, %c3328] : memref<32x4096xf32, #tpu.memory_space<vmem>>, vector<32x128xf32>
      %548 = vector.extract_strided_slice %259 {offsets = [0, 52], sizes = [32, 1], strides = [1, 1]} : vector<32x64xf32> to vector<32x1xf32>
      %549 = vector.extract_strided_slice %547 {offsets = [0, 0], sizes = [32, 64], strides = [1, 1]} : vector<32x128xf32> to vector<32x64xf32>
      %550 = vector.broadcast %548 : vector<32x1xf32> to vector<32x64xf32>
      %551 = arith.mulf %550, %549 : vector<32x64xf32>
      %552 = arith.addf %546, %551 : vector<32x64xf32>
      %553 = vector.extract_strided_slice %259 {offsets = [0, 53], sizes = [32, 1], strides = [1, 1]} : vector<32x64xf32> to vector<32x1xf32>
      %554 = vector.extract_strided_slice %547 {offsets = [0, 64], sizes = [32, 64], strides = [1, 1]} : vector<32x128xf32> to vector<32x64xf32>
      %555 = vector.broadcast %553 : vector<32x1xf32> to vector<32x64xf32>
      %556 = arith.mulf %555, %554 : vector<32x64xf32>
      %557 = arith.addf %552, %556 : vector<32x64xf32>
      %c0_182 = arith.constant 0 : index
      %c3456 = arith.constant 3456 : index
      %558 = vector.load %arg26[%c0_182, %c3456] : memref<32x4096xf32, #tpu.memory_space<vmem>>, vector<32x128xf32>
      %559 = vector.extract_strided_slice %259 {offsets = [0, 54], sizes = [32, 1], strides = [1, 1]} : vector<32x64xf32> to vector<32x1xf32>
      %560 = vector.extract_strided_slice %558 {offsets = [0, 0], sizes = [32, 64], strides = [1, 1]} : vector<32x128xf32> to vector<32x64xf32>
      %561 = vector.broadcast %559 : vector<32x1xf32> to vector<32x64xf32>
      %562 = arith.mulf %561, %560 : vector<32x64xf32>
      %563 = arith.addf %557, %562 : vector<32x64xf32>
      %564 = vector.extract_strided_slice %259 {offsets = [0, 55], sizes = [32, 1], strides = [1, 1]} : vector<32x64xf32> to vector<32x1xf32>
      %565 = vector.extract_strided_slice %558 {offsets = [0, 64], sizes = [32, 64], strides = [1, 1]} : vector<32x128xf32> to vector<32x64xf32>
      %566 = vector.broadcast %564 : vector<32x1xf32> to vector<32x64xf32>
      %567 = arith.mulf %566, %565 : vector<32x64xf32>
      %568 = arith.addf %563, %567 : vector<32x64xf32>
      %c0_183 = arith.constant 0 : index
      %c3584_184 = arith.constant 3584 : index
      %569 = vector.load %arg26[%c0_183, %c3584_184] : memref<32x4096xf32, #tpu.memory_space<vmem>>, vector<32x128xf32>
      %570 = vector.extract_strided_slice %259 {offsets = [0, 56], sizes = [32, 1], strides = [1, 1]} : vector<32x64xf32> to vector<32x1xf32>
      %571 = vector.extract_strided_slice %569 {offsets = [0, 0], sizes = [32, 64], strides = [1, 1]} : vector<32x128xf32> to vector<32x64xf32>
      %572 = vector.broadcast %570 : vector<32x1xf32> to vector<32x64xf32>
      %573 = arith.mulf %572, %571 : vector<32x64xf32>
      %574 = arith.addf %568, %573 : vector<32x64xf32>
      %575 = vector.extract_strided_slice %259 {offsets = [0, 57], sizes = [32, 1], strides = [1, 1]} : vector<32x64xf32> to vector<32x1xf32>
      %576 = vector.extract_strided_slice %569 {offsets = [0, 64], sizes = [32, 64], strides = [1, 1]} : vector<32x128xf32> to vector<32x64xf32>
      %577 = vector.broadcast %575 : vector<32x1xf32> to vector<32x64xf32>
      %578 = arith.mulf %577, %576 : vector<32x64xf32>
      %579 = arith.addf %574, %578 : vector<32x64xf32>
      %c0_185 = arith.constant 0 : index
      %c3712 = arith.constant 3712 : index
      %580 = vector.load %arg26[%c0_185, %c3712] : memref<32x4096xf32, #tpu.memory_space<vmem>>, vector<32x128xf32>
      %581 = vector.extract_strided_slice %259 {offsets = [0, 58], sizes = [32, 1], strides = [1, 1]} : vector<32x64xf32> to vector<32x1xf32>
      %582 = vector.extract_strided_slice %580 {offsets = [0, 0], sizes = [32, 64], strides = [1, 1]} : vector<32x128xf32> to vector<32x64xf32>
      %583 = vector.broadcast %581 : vector<32x1xf32> to vector<32x64xf32>
      %584 = arith.mulf %583, %582 : vector<32x64xf32>
      %585 = arith.addf %579, %584 : vector<32x64xf32>
      %586 = vector.extract_strided_slice %259 {offsets = [0, 59], sizes = [32, 1], strides = [1, 1]} : vector<32x64xf32> to vector<32x1xf32>
      %587 = vector.extract_strided_slice %580 {offsets = [0, 64], sizes = [32, 64], strides = [1, 1]} : vector<32x128xf32> to vector<32x64xf32>
      %588 = vector.broadcast %586 : vector<32x1xf32> to vector<32x64xf32>
      %589 = arith.mulf %588, %587 : vector<32x64xf32>
      %590 = arith.addf %585, %589 : vector<32x64xf32>
      %c0_186 = arith.constant 0 : index
      %c3840 = arith.constant 3840 : index
      %591 = vector.load %arg26[%c0_186, %c3840] : memref<32x4096xf32, #tpu.memory_space<vmem>>, vector<32x128xf32>
      %592 = vector.extract_strided_slice %259 {offsets = [0, 60], sizes = [32, 1], strides = [1, 1]} : vector<32x64xf32> to vector<32x1xf32>
      %593 = vector.extract_strided_slice %591 {offsets = [0, 0], sizes = [32, 64], strides = [1, 1]} : vector<32x128xf32> to vector<32x64xf32>
      %594 = vector.broadcast %592 : vector<32x1xf32> to vector<32x64xf32>
      %595 = arith.mulf %594, %593 : vector<32x64xf32>
      %596 = arith.addf %590, %595 : vector<32x64xf32>
      %597 = vector.extract_strided_slice %259 {offsets = [0, 61], sizes = [32, 1], strides = [1, 1]} : vector<32x64xf32> to vector<32x1xf32>
      %598 = vector.extract_strided_slice %591 {offsets = [0, 64], sizes = [32, 64], strides = [1, 1]} : vector<32x128xf32> to vector<32x64xf32>
      %599 = vector.broadcast %597 : vector<32x1xf32> to vector<32x64xf32>
      %600 = arith.mulf %599, %598 : vector<32x64xf32>
      %601 = arith.addf %596, %600 : vector<32x64xf32>
      %c0_187 = arith.constant 0 : index
      %c3968 = arith.constant 3968 : index
      %602 = vector.load %arg26[%c0_187, %c3968] : memref<32x4096xf32, #tpu.memory_space<vmem>>, vector<32x128xf32>
      %603 = vector.extract_strided_slice %259 {offsets = [0, 62], sizes = [32, 1], strides = [1, 1]} : vector<32x64xf32> to vector<32x1xf32>
      %604 = vector.extract_strided_slice %602 {offsets = [0, 0], sizes = [32, 64], strides = [1, 1]} : vector<32x128xf32> to vector<32x64xf32>
      %605 = vector.broadcast %603 : vector<32x1xf32> to vector<32x64xf32>
      %606 = arith.mulf %605, %604 : vector<32x64xf32>
      %607 = arith.addf %601, %606 : vector<32x64xf32>
      %608 = vector.extract_strided_slice %259 {offsets = [0, 63], sizes = [32, 1], strides = [1, 1]} : vector<32x64xf32> to vector<32x1xf32>
      %609 = vector.extract_strided_slice %602 {offsets = [0, 64], sizes = [32, 64], strides = [1, 1]} : vector<32x128xf32> to vector<32x64xf32>
      %610 = vector.broadcast %608 : vector<32x1xf32> to vector<32x64xf32>
      %611 = arith.mulf %610, %609 : vector<32x64xf32>
      %612 = arith.addf %607, %611 : vector<32x64xf32>
      %cst_188 = arith.constant dense<0.000000e+00> : vector<16x64xf32>
      %613 = tpu.matmul %13, %612, %cst_188 {dimension_numbers = #tpu.dot_dimension_numbers<[1], [0], [0], [1], [0, 0, 1, 1], [], []>} : vector<16x32xf32>, vector<32x64xf32>, vector<16x64xf32> -> vector<16x64xf32>
      %c0_189 = arith.constant 0 : index
      %c0_190 = arith.constant 0 : index
      %614 = vector.load %arg11[%c0_189, %c0_190] : memref<64x64xf32, #tpu.memory_space<vmem>>, vector<64x64xf32>
      %cst_191 = arith.constant dense<0.000000e+00> : vector<16x64xf32>
      %615 = tpu.matmul %arg28, %614, %cst_191 {dimension_numbers = #tpu.dot_dimension_numbers<[1], [0], [0], [1], [0, 0, 1, 1], [], []>} : vector<16x64xf32>, vector<64x64xf32>, vector<16x64xf32> -> vector<16x64xf32>
      %616 = arith.addf %613, %615 : vector<16x64xf32>
      %c0_192 = arith.constant 0 : index
      %c0_193 = arith.constant 0 : index
      %617 = vector.load %arg12[%c0_192, %c0_193] : memref<1x64xf32, #tpu.memory_space<vmem>>, vector<1x64xf32>
      %618 = vector.broadcast %617 : vector<1x64xf32> to vector<16x64xf32>
      %619 = arith.addf %616, %618 : vector<16x64xf32>
      %cst_194 = arith.constant 0.000000e+00 : f32
      %620 = vector.broadcast %cst_194 : f32 to vector<16x64xf32>
      %621 = arith.maximumf %619, %620 : vector<16x64xf32>
      %c0_195 = arith.constant 0 : index
      %c0_196 = arith.constant 0 : index
      %622 = vector.load %arg13[%c0_195, %c0_196] : memref<64x192xf32, #tpu.memory_space<vmem>>, vector<64x192xf32>
      %cst_197 = arith.constant dense<0.000000e+00> : vector<16x192xf32>
      %623 = tpu.matmul %621, %622, %cst_197 {dimension_numbers = #tpu.dot_dimension_numbers<[1], [0], [0], [1], [0, 0, 1, 1], [], []>} : vector<16x64xf32>, vector<64x192xf32>, vector<16x192xf32> -> vector<16x192xf32>
      %c0_198 = arith.constant 0 : index
      %c0_199 = arith.constant 0 : index
      %624 = vector.load %arg14[%c0_198, %c0_199] : memref<1x192xf32, #tpu.memory_space<vmem>>, vector<1x192xf32>
      %625 = vector.broadcast %624 : vector<1x192xf32> to vector<16x192xf32>
      %626 = arith.addf %623, %625 : vector<16x192xf32>
      %c0_200 = arith.constant 0 : index
      %c0_201 = arith.constant 0 : index
      %627 = vector.load %arg15[%c0_200, %c0_201] : memref<64x192xf32, #tpu.memory_space<vmem>>, vector<64x192xf32>
      %cst_202 = arith.constant dense<0.000000e+00> : vector<16x192xf32>
      %628 = tpu.matmul %arg28, %627, %cst_202 {dimension_numbers = #tpu.dot_dimension_numbers<[1], [0], [0], [1], [0, 0, 1, 1], [], []>} : vector<16x64xf32>, vector<64x192xf32>, vector<16x192xf32> -> vector<16x192xf32>
      %c0_203 = arith.constant 0 : index
      %c0_204 = arith.constant 0 : index
      %629 = vector.load %arg16[%c0_203, %c0_204] : memref<1x192xf32, #tpu.memory_space<vmem>>, vector<1x192xf32>
      %630 = vector.broadcast %629 : vector<1x192xf32> to vector<16x192xf32>
      %631 = arith.addf %628, %630 : vector<16x192xf32>
      %632 = vector.extract_strided_slice %626 {offsets = [0, 0], sizes = [16, 64], strides = [1, 1]} : vector<16x192xf32> to vector<16x64xf32>
      %633 = vector.extract_strided_slice %631 {offsets = [0, 0], sizes = [16, 64], strides = [1, 1]} : vector<16x192xf32> to vector<16x64xf32>
      %634 = arith.addf %632, %633 : vector<16x64xf32>
      %635 = arith.negf %634 : vector<16x64xf32>
      %636 = math.exp %635 : vector<16x64xf32>
      %cst_205 = arith.constant 1.000000e+00 : f32
      %637 = vector.broadcast %cst_205 : f32 to vector<16x64xf32>
      %638 = arith.addf %637, %636 : vector<16x64xf32>
      %639 = arith.divf %637, %638 : vector<16x64xf32>
      %640 = vector.extract_strided_slice %626 {offsets = [0, 64], sizes = [16, 64], strides = [1, 1]} : vector<16x192xf32> to vector<16x64xf32>
      %641 = vector.extract_strided_slice %631 {offsets = [0, 64], sizes = [16, 64], strides = [1, 1]} : vector<16x192xf32> to vector<16x64xf32>
      %642 = arith.addf %640, %641 : vector<16x64xf32>
      %643 = arith.negf %642 : vector<16x64xf32>
      %644 = math.exp %643 : vector<16x64xf32>
      %cst_206 = arith.constant 1.000000e+00 : f32
      %645 = vector.broadcast %cst_206 : f32 to vector<16x64xf32>
      %646 = arith.addf %645, %644 : vector<16x64xf32>
      %647 = arith.divf %645, %646 : vector<16x64xf32>
      %648 = vector.extract_strided_slice %626 {offsets = [0, 128], sizes = [16, 64], strides = [1, 1]} : vector<16x192xf32> to vector<16x64xf32>
      %649 = vector.extract_strided_slice %631 {offsets = [0, 128], sizes = [16, 64], strides = [1, 1]} : vector<16x192xf32> to vector<16x64xf32>
      %650 = arith.mulf %639, %649 : vector<16x64xf32>
      %651 = arith.addf %648, %650 : vector<16x64xf32>
      %652 = math.tanh %651 : vector<16x64xf32>
      %cst_207 = arith.constant 1.000000e+00 : f32
      %653 = vector.broadcast %cst_207 : f32 to vector<16x64xf32>
      %654 = arith.subf %653, %647 : vector<16x64xf32>
      %655 = arith.mulf %654, %652 : vector<16x64xf32>
      %656 = arith.mulf %647, %arg28 : vector<16x64xf32>
      %657 = arith.addf %655, %656 : vector<16x64xf32>
      scf.yield %657 : vector<16x64xf32>
    }
    %cst_73 = arith.constant 0.000000e+00 : f32
    %84 = vector.broadcast %cst_73 : f32 to vector<2x128xf32>
    %cst_74 = arith.constant 0.000000e+00 : f32
    %85 = vector.broadcast %cst_74 : f32 to vector<2x64xf32>
    %cst_75 = arith.constant 0.000000e+00 : f32
    %86 = vector.broadcast %cst_75 : f32 to vector<2x64xf32>
    %c0_76 = arith.constant 0 : index
    %c0_77 = arith.constant 0 : index
    %87 = vector.load %arg17[%c0_76, %c0_77] : memref<128x256xf32, #tpu.memory_space<vmem>>, vector<128x256xf32>
    %cst_78 = arith.constant dense<0.000000e+00> : vector<2x256xf32>
    %88 = tpu.matmul %84, %87, %cst_78 {dimension_numbers = #tpu.dot_dimension_numbers<[1], [0], [0], [1], [0, 0, 1, 1], [], []>} : vector<2x128xf32>, vector<128x256xf32>, vector<2x256xf32> -> vector<2x256xf32>
    %c0_79 = arith.constant 0 : index
    %c0_80 = arith.constant 0 : index
    %89 = vector.load %arg18[%c0_79, %c0_80] : memref<1x256xf32, #tpu.memory_space<vmem>>, vector<1x256xf32>
    %90 = vector.broadcast %89 : vector<1x256xf32> to vector<2x256xf32>
    %91 = arith.addf %88, %90 : vector<2x256xf32>
    %c0_81 = arith.constant 0 : index
    %c0_82 = arith.constant 0 : index
    %92 = vector.load %arg19[%c0_81, %c0_82] : memref<64x256xf32, #tpu.memory_space<vmem>>, vector<64x256xf32>
    %cst_83 = arith.constant dense<0.000000e+00> : vector<2x256xf32>
    %93 = tpu.matmul %85, %92, %cst_83 {dimension_numbers = #tpu.dot_dimension_numbers<[1], [0], [0], [1], [0, 0, 1, 1], [], []>} : vector<2x64xf32>, vector<64x256xf32>, vector<2x256xf32> -> vector<2x256xf32>
    %c0_84 = arith.constant 0 : index
    %c0_85 = arith.constant 0 : index
    %94 = vector.load %arg20[%c0_84, %c0_85] : memref<1x256xf32, #tpu.memory_space<vmem>>, vector<1x256xf32>
    %95 = vector.broadcast %94 : vector<1x256xf32> to vector<2x256xf32>
    %96 = arith.addf %93, %95 : vector<2x256xf32>
    %97 = arith.addf %91, %96 : vector<2x256xf32>
    %98 = vector.extract_strided_slice %97 {offsets = [0, 0], sizes = [2, 64], strides = [1, 1]} : vector<2x256xf32> to vector<2x64xf32>
    %99 = arith.negf %98 : vector<2x64xf32>
    %100 = math.exp %99 : vector<2x64xf32>
    %cst_86 = arith.constant 1.000000e+00 : f32
    %101 = vector.broadcast %cst_86 : f32 to vector<2x64xf32>
    %102 = arith.addf %101, %100 : vector<2x64xf32>
    %103 = arith.divf %101, %102 : vector<2x64xf32>
    %104 = vector.extract_strided_slice %97 {offsets = [0, 64], sizes = [2, 64], strides = [1, 1]} : vector<2x256xf32> to vector<2x64xf32>
    %105 = arith.negf %104 : vector<2x64xf32>
    %106 = math.exp %105 : vector<2x64xf32>
    %cst_87 = arith.constant 1.000000e+00 : f32
    %107 = vector.broadcast %cst_87 : f32 to vector<2x64xf32>
    %108 = arith.addf %107, %106 : vector<2x64xf32>
    %109 = arith.divf %107, %108 : vector<2x64xf32>
    %110 = vector.extract_strided_slice %97 {offsets = [0, 128], sizes = [2, 64], strides = [1, 1]} : vector<2x256xf32> to vector<2x64xf32>
    %111 = math.tanh %110 : vector<2x64xf32>
    %112 = vector.extract_strided_slice %97 {offsets = [0, 192], sizes = [2, 64], strides = [1, 1]} : vector<2x256xf32> to vector<2x64xf32>
    %113 = arith.negf %112 : vector<2x64xf32>
    %114 = math.exp %113 : vector<2x64xf32>
    %cst_88 = arith.constant 1.000000e+00 : f32
    %115 = vector.broadcast %cst_88 : f32 to vector<2x64xf32>
    %116 = arith.addf %115, %114 : vector<2x64xf32>
    %117 = arith.divf %115, %116 : vector<2x64xf32>
    %118 = arith.mulf %109, %86 : vector<2x64xf32>
    %119 = arith.mulf %103, %111 : vector<2x64xf32>
    %120 = arith.addf %118, %119 : vector<2x64xf32>
    %121 = math.tanh %120 : vector<2x64xf32>
    %122 = arith.mulf %117, %121 : vector<2x64xf32>
    %cst_89 = arith.constant dense<0.000000e+00> : vector<2x16xf32>
    %123 = tpu.matmul %122, %83, %cst_89 {dimension_numbers = #tpu.dot_dimension_numbers<[1], [1], [0], [0], [0, 0, 1, 0], [], []>} : vector<2x64xf32>, vector<16x64xf32>, vector<2x16xf32> -> vector<2x16xf32>
    %cst_90 = arith.constant -1.000000e+30 : f32
    %124 = vector.broadcast %cst_90 : f32 to vector<2x16xf32>
    %125 = arith.select %17, %123, %124 : vector<2x16xi1>, vector<2x16xf32>
    %cst_91 = arith.constant dense<0xFF800000> : vector<2xf32>
    %126 = vector.multi_reduction <maximumf>, %125, %cst_91 [1] : vector<2x16xf32> to vector<2xf32>
    %127 = vector.shape_cast %126 : vector<2xf32> to vector<2x1xf32>
    %128 = vector.broadcast %127 : vector<2x1xf32> to vector<2x16xf32>
    %129 = arith.subf %123, %128 : vector<2x16xf32>
    %cst_92 = arith.constant -1.000000e+30 : f32
    %130 = vector.broadcast %cst_92 : f32 to vector<2x16xf32>
    %131 = arith.select %17, %129, %130 : vector<2x16xi1>, vector<2x16xf32>
    %132 = math.exp %131 : vector<2x16xf32>
    %cst_93 = arith.constant dense<0.000000e+00> : vector<2xf32>
    %133 = vector.multi_reduction <add>, %132, %cst_93 [1] : vector<2x16xf32> to vector<2xf32>
    %134 = vector.shape_cast %133 : vector<2xf32> to vector<2x1xf32>
    %135 = vector.broadcast %134 : vector<2x1xf32> to vector<2x16xf32>
    %136 = arith.divf %132, %135 : vector<2x16xf32>
    %cst_94 = arith.constant dense<0.000000e+00> : vector<2x64xf32>
    %137 = tpu.matmul %136, %83, %cst_94 {dimension_numbers = #tpu.dot_dimension_numbers<[1], [0], [0], [1], [0, 0, 1, 1], [], []>} : vector<2x16xf32>, vector<16x64xf32>, vector<2x64xf32> -> vector<2x64xf32>
    %138 = tpu.concatenate %122, %137 in 1 : vector<2x64xf32>, vector<2x64xf32> -> vector<2x128xf32>
    %c0_95 = arith.constant 0 : index
    %c0_96 = arith.constant 0 : index
    %139 = vector.load %arg17[%c0_95, %c0_96] : memref<128x256xf32, #tpu.memory_space<vmem>>, vector<128x256xf32>
    %cst_97 = arith.constant dense<0.000000e+00> : vector<2x256xf32>
    %140 = tpu.matmul %138, %139, %cst_97 {dimension_numbers = #tpu.dot_dimension_numbers<[1], [0], [0], [1], [0, 0, 1, 1], [], []>} : vector<2x128xf32>, vector<128x256xf32>, vector<2x256xf32> -> vector<2x256xf32>
    %c0_98 = arith.constant 0 : index
    %c0_99 = arith.constant 0 : index
    %141 = vector.load %arg18[%c0_98, %c0_99] : memref<1x256xf32, #tpu.memory_space<vmem>>, vector<1x256xf32>
    %142 = vector.broadcast %141 : vector<1x256xf32> to vector<2x256xf32>
    %143 = arith.addf %140, %142 : vector<2x256xf32>
    %c0_100 = arith.constant 0 : index
    %c0_101 = arith.constant 0 : index
    %144 = vector.load %arg19[%c0_100, %c0_101] : memref<64x256xf32, #tpu.memory_space<vmem>>, vector<64x256xf32>
    %cst_102 = arith.constant dense<0.000000e+00> : vector<2x256xf32>
    %145 = tpu.matmul %122, %144, %cst_102 {dimension_numbers = #tpu.dot_dimension_numbers<[1], [0], [0], [1], [0, 0, 1, 1], [], []>} : vector<2x64xf32>, vector<64x256xf32>, vector<2x256xf32> -> vector<2x256xf32>
    %c0_103 = arith.constant 0 : index
    %c0_104 = arith.constant 0 : index
    %146 = vector.load %arg20[%c0_103, %c0_104] : memref<1x256xf32, #tpu.memory_space<vmem>>, vector<1x256xf32>
    %147 = vector.broadcast %146 : vector<1x256xf32> to vector<2x256xf32>
    %148 = arith.addf %145, %147 : vector<2x256xf32>
    %149 = arith.addf %143, %148 : vector<2x256xf32>
    %150 = vector.extract_strided_slice %149 {offsets = [0, 0], sizes = [2, 64], strides = [1, 1]} : vector<2x256xf32> to vector<2x64xf32>
    %151 = arith.negf %150 : vector<2x64xf32>
    %152 = math.exp %151 : vector<2x64xf32>
    %cst_105 = arith.constant 1.000000e+00 : f32
    %153 = vector.broadcast %cst_105 : f32 to vector<2x64xf32>
    %154 = arith.addf %153, %152 : vector<2x64xf32>
    %155 = arith.divf %153, %154 : vector<2x64xf32>
    %156 = vector.extract_strided_slice %149 {offsets = [0, 64], sizes = [2, 64], strides = [1, 1]} : vector<2x256xf32> to vector<2x64xf32>
    %157 = arith.negf %156 : vector<2x64xf32>
    %158 = math.exp %157 : vector<2x64xf32>
    %cst_106 = arith.constant 1.000000e+00 : f32
    %159 = vector.broadcast %cst_106 : f32 to vector<2x64xf32>
    %160 = arith.addf %159, %158 : vector<2x64xf32>
    %161 = arith.divf %159, %160 : vector<2x64xf32>
    %162 = vector.extract_strided_slice %149 {offsets = [0, 128], sizes = [2, 64], strides = [1, 1]} : vector<2x256xf32> to vector<2x64xf32>
    %163 = math.tanh %162 : vector<2x64xf32>
    %164 = vector.extract_strided_slice %149 {offsets = [0, 192], sizes = [2, 64], strides = [1, 1]} : vector<2x256xf32> to vector<2x64xf32>
    %165 = arith.negf %164 : vector<2x64xf32>
    %166 = math.exp %165 : vector<2x64xf32>
    %cst_107 = arith.constant 1.000000e+00 : f32
    %167 = vector.broadcast %cst_107 : f32 to vector<2x64xf32>
    %168 = arith.addf %167, %166 : vector<2x64xf32>
    %169 = arith.divf %167, %168 : vector<2x64xf32>
    %170 = arith.mulf %161, %120 : vector<2x64xf32>
    %171 = arith.mulf %155, %163 : vector<2x64xf32>
    %172 = arith.addf %170, %171 : vector<2x64xf32>
    %173 = math.tanh %172 : vector<2x64xf32>
    %174 = arith.mulf %169, %173 : vector<2x64xf32>
    %cst_108 = arith.constant dense<0.000000e+00> : vector<2x16xf32>
    %175 = tpu.matmul %174, %83, %cst_108 {dimension_numbers = #tpu.dot_dimension_numbers<[1], [1], [0], [0], [0, 0, 1, 0], [], []>} : vector<2x64xf32>, vector<16x64xf32>, vector<2x16xf32> -> vector<2x16xf32>
    %cst_109 = arith.constant -1.000000e+30 : f32
    %176 = vector.broadcast %cst_109 : f32 to vector<2x16xf32>
    %177 = arith.select %17, %175, %176 : vector<2x16xi1>, vector<2x16xf32>
    %cst_110 = arith.constant dense<0xFF800000> : vector<2xf32>
    %178 = vector.multi_reduction <maximumf>, %177, %cst_110 [1] : vector<2x16xf32> to vector<2xf32>
    %179 = vector.shape_cast %178 : vector<2xf32> to vector<2x1xf32>
    %180 = vector.broadcast %179 : vector<2x1xf32> to vector<2x16xf32>
    %181 = arith.subf %175, %180 : vector<2x16xf32>
    %cst_111 = arith.constant -1.000000e+30 : f32
    %182 = vector.broadcast %cst_111 : f32 to vector<2x16xf32>
    %183 = arith.select %17, %181, %182 : vector<2x16xi1>, vector<2x16xf32>
    %184 = math.exp %183 : vector<2x16xf32>
    %cst_112 = arith.constant dense<0.000000e+00> : vector<2xf32>
    %185 = vector.multi_reduction <add>, %184, %cst_112 [1] : vector<2x16xf32> to vector<2xf32>
    %186 = vector.shape_cast %185 : vector<2xf32> to vector<2x1xf32>
    %187 = vector.broadcast %186 : vector<2x1xf32> to vector<2x16xf32>
    %188 = arith.divf %184, %187 : vector<2x16xf32>
    %cst_113 = arith.constant dense<0.000000e+00> : vector<2x64xf32>
    %189 = tpu.matmul %188, %83, %cst_113 {dimension_numbers = #tpu.dot_dimension_numbers<[1], [0], [0], [1], [0, 0, 1, 1], [], []>} : vector<2x16xf32>, vector<16x64xf32>, vector<2x64xf32> -> vector<2x64xf32>
    %190 = tpu.concatenate %174, %189 in 1 : vector<2x64xf32>, vector<2x64xf32> -> vector<2x128xf32>
    %c0_114 = arith.constant 0 : index
    %c0_115 = arith.constant 0 : index
    %191 = vector.load %arg17[%c0_114, %c0_115] : memref<128x256xf32, #tpu.memory_space<vmem>>, vector<128x256xf32>
    %cst_116 = arith.constant dense<0.000000e+00> : vector<2x256xf32>
    %192 = tpu.matmul %190, %191, %cst_116 {dimension_numbers = #tpu.dot_dimension_numbers<[1], [0], [0], [1], [0, 0, 1, 1], [], []>} : vector<2x128xf32>, vector<128x256xf32>, vector<2x256xf32> -> vector<2x256xf32>
    %c0_117 = arith.constant 0 : index
    %c0_118 = arith.constant 0 : index
    %193 = vector.load %arg18[%c0_117, %c0_118] : memref<1x256xf32, #tpu.memory_space<vmem>>, vector<1x256xf32>
    %194 = vector.broadcast %193 : vector<1x256xf32> to vector<2x256xf32>
    %195 = arith.addf %192, %194 : vector<2x256xf32>
    %c0_119 = arith.constant 0 : index
    %c0_120 = arith.constant 0 : index
    %196 = vector.load %arg19[%c0_119, %c0_120] : memref<64x256xf32, #tpu.memory_space<vmem>>, vector<64x256xf32>
    %cst_121 = arith.constant dense<0.000000e+00> : vector<2x256xf32>
    %197 = tpu.matmul %174, %196, %cst_121 {dimension_numbers = #tpu.dot_dimension_numbers<[1], [0], [0], [1], [0, 0, 1, 1], [], []>} : vector<2x64xf32>, vector<64x256xf32>, vector<2x256xf32> -> vector<2x256xf32>
    %c0_122 = arith.constant 0 : index
    %c0_123 = arith.constant 0 : index
    %198 = vector.load %arg20[%c0_122, %c0_123] : memref<1x256xf32, #tpu.memory_space<vmem>>, vector<1x256xf32>
    %199 = vector.broadcast %198 : vector<1x256xf32> to vector<2x256xf32>
    %200 = arith.addf %197, %199 : vector<2x256xf32>
    %201 = arith.addf %195, %200 : vector<2x256xf32>
    %202 = vector.extract_strided_slice %201 {offsets = [0, 0], sizes = [2, 64], strides = [1, 1]} : vector<2x256xf32> to vector<2x64xf32>
    %203 = arith.negf %202 : vector<2x64xf32>
    %204 = math.exp %203 : vector<2x64xf32>
    %cst_124 = arith.constant 1.000000e+00 : f32
    %205 = vector.broadcast %cst_124 : f32 to vector<2x64xf32>
    %206 = arith.addf %205, %204 : vector<2x64xf32>
    %207 = arith.divf %205, %206 : vector<2x64xf32>
    %208 = vector.extract_strided_slice %201 {offsets = [0, 64], sizes = [2, 64], strides = [1, 1]} : vector<2x256xf32> to vector<2x64xf32>
    %209 = arith.negf %208 : vector<2x64xf32>
    %210 = math.exp %209 : vector<2x64xf32>
    %cst_125 = arith.constant 1.000000e+00 : f32
    %211 = vector.broadcast %cst_125 : f32 to vector<2x64xf32>
    %212 = arith.addf %211, %210 : vector<2x64xf32>
    %213 = arith.divf %211, %212 : vector<2x64xf32>
    %214 = vector.extract_strided_slice %201 {offsets = [0, 128], sizes = [2, 64], strides = [1, 1]} : vector<2x256xf32> to vector<2x64xf32>
    %215 = math.tanh %214 : vector<2x64xf32>
    %216 = vector.extract_strided_slice %201 {offsets = [0, 192], sizes = [2, 64], strides = [1, 1]} : vector<2x256xf32> to vector<2x64xf32>
    %217 = arith.negf %216 : vector<2x64xf32>
    %218 = math.exp %217 : vector<2x64xf32>
    %cst_126 = arith.constant 1.000000e+00 : f32
    %219 = vector.broadcast %cst_126 : f32 to vector<2x64xf32>
    %220 = arith.addf %219, %218 : vector<2x64xf32>
    %221 = arith.divf %219, %220 : vector<2x64xf32>
    %222 = arith.mulf %213, %172 : vector<2x64xf32>
    %223 = arith.mulf %207, %215 : vector<2x64xf32>
    %224 = arith.addf %222, %223 : vector<2x64xf32>
    %225 = math.tanh %224 : vector<2x64xf32>
    %226 = arith.mulf %221, %225 : vector<2x64xf32>
    %cst_127 = arith.constant dense<0.000000e+00> : vector<2x16xf32>
    %227 = tpu.matmul %226, %83, %cst_127 {dimension_numbers = #tpu.dot_dimension_numbers<[1], [1], [0], [0], [0, 0, 1, 0], [], []>} : vector<2x64xf32>, vector<16x64xf32>, vector<2x16xf32> -> vector<2x16xf32>
    %cst_128 = arith.constant -1.000000e+30 : f32
    %228 = vector.broadcast %cst_128 : f32 to vector<2x16xf32>
    %229 = arith.select %17, %227, %228 : vector<2x16xi1>, vector<2x16xf32>
    %cst_129 = arith.constant dense<0xFF800000> : vector<2xf32>
    %230 = vector.multi_reduction <maximumf>, %229, %cst_129 [1] : vector<2x16xf32> to vector<2xf32>
    %231 = vector.shape_cast %230 : vector<2xf32> to vector<2x1xf32>
    %232 = vector.broadcast %231 : vector<2x1xf32> to vector<2x16xf32>
    %233 = arith.subf %227, %232 : vector<2x16xf32>
    %cst_130 = arith.constant -1.000000e+30 : f32
    %234 = vector.broadcast %cst_130 : f32 to vector<2x16xf32>
    %235 = arith.select %17, %233, %234 : vector<2x16xi1>, vector<2x16xf32>
    %236 = math.exp %235 : vector<2x16xf32>
    %cst_131 = arith.constant dense<0.000000e+00> : vector<2xf32>
    %237 = vector.multi_reduction <add>, %236, %cst_131 [1] : vector<2x16xf32> to vector<2xf32>
    %238 = vector.shape_cast %237 : vector<2xf32> to vector<2x1xf32>
    %239 = vector.broadcast %238 : vector<2x1xf32> to vector<2x16xf32>
    %240 = arith.divf %236, %239 : vector<2x16xf32>
    %cst_132 = arith.constant dense<0.000000e+00> : vector<2x64xf32>
    %241 = tpu.matmul %240, %83, %cst_132 {dimension_numbers = #tpu.dot_dimension_numbers<[1], [0], [0], [1], [0, 0, 1, 1], [], []>} : vector<2x16xf32>, vector<16x64xf32>, vector<2x64xf32> -> vector<2x64xf32>
    %242 = tpu.concatenate %226, %241 in 1 : vector<2x64xf32>, vector<2x64xf32> -> vector<2x128xf32>
    %c0_133 = arith.constant 0 : index
    %c0_134 = arith.constant 0 : index
    %243 = vector.load %arg21[%c0_133, %c0_134] : memref<128x64xf32, #tpu.memory_space<vmem>>, vector<128x64xf32>
    %cst_135 = arith.constant dense<0.000000e+00> : vector<2x64xf32>
    %244 = tpu.matmul %242, %243, %cst_135 {dimension_numbers = #tpu.dot_dimension_numbers<[1], [0], [0], [1], [0, 0, 1, 1], [], []>} : vector<2x128xf32>, vector<128x64xf32>, vector<2x64xf32> -> vector<2x64xf32>
    %c0_136 = arith.constant 0 : index
    %c0_137 = arith.constant 0 : index
    %245 = vector.load %arg22[%c0_136, %c0_137] : memref<1x64xf32, #tpu.memory_space<vmem>>, vector<1x64xf32>
    %246 = vector.broadcast %245 : vector<1x64xf32> to vector<2x64xf32>
    %247 = arith.addf %244, %246 : vector<2x64xf32>
    %cst_138 = arith.constant 0.000000e+00 : f32
    %248 = vector.broadcast %cst_138 : f32 to vector<2x64xf32>
    %249 = arith.maximumf %247, %248 : vector<2x64xf32>
    %c0_139 = arith.constant 0 : index
    %c0_140 = arith.constant 0 : index
    %250 = vector.load %arg23[%c0_139, %c0_140] : memref<1x64xf32, #tpu.memory_space<vmem>>, vector<1x64xf32>
    %251 = vector.broadcast %250 : vector<1x64xf32> to vector<2x64xf32>
    %252 = arith.mulf %249, %251 : vector<2x64xf32>
    %cst_141 = arith.constant dense<0.000000e+00> : vector<2xf32>
    %253 = vector.multi_reduction <add>, %252, %cst_141 [1] : vector<2x64xf32> to vector<2xf32>
    %254 = vector.shape_cast %253 : vector<2xf32> to vector<2x1xf32>
    %c0_142 = arith.constant 0 : index
    %c0_143 = arith.constant 0 : index
    %255 = vector.load %arg24[%c0_142, %c0_143] : memref<1x1xf32, #tpu.memory_space<vmem>>, vector<1x1xf32>
    %256 = vector.broadcast %255 : vector<1x1xf32> to vector<2x1xf32>
    %257 = arith.addf %254, %256 : vector<2x1xf32>
    %c0_144 = arith.constant 0 : index
    %c0_145 = arith.constant 0 : index
    %258 = vector.load %arg25[%c0_144, %c0_145] : memref<2x1xf32, #tpu.memory_space<vmem>>, vector<2x1xf32>
    tpu.vector_store %arg25[%c0_144, %c0_145], %257 {strides = array<i32>} : memref<2x1xf32, #tpu.memory_space<vmem>>, vector<2x1xf32>,
    return
  }
}

</mosaic_0001>

<llo_original>
// kernel: net_forward.1
$region0: #{net_forward.1}
  #allocation0 [shape = 'u32[]', space=smem, size = 0x4, offset = 0x4, fixed_abs, tag = 'smem constant byte address 0x4 - core index']
  #allocation1 [shape = 'u32[144,128]{1,0:T(1,128)}', space=vmem, size = 0x12000, scoped, tag = 'internal scratch']
  #allocation2 [shape = 'f32[32,4096]{1,0:T(8,128)}', space=vmem, size = 0x80000, scoped, tag = 'scratch operand']
  #allocation3 [shape = 'f32[1,1]{1,0:T(1,128)S(1)}', space=vmem, size = 0x200, scoped, tag = 'scoped memory for net_forward.1']
  %s0 = inlined_call_operand.hbm [shape: f32[16,75], index: 0, kind: input, shape index: {}]
  %s1 = inlined_call_operand.vmem [shape: f32[32,6], index: 1, kind: input, shape index: {}]
  %s2 = inlined_call_operand.vmem [shape: s32[32,1], index: 2, kind: input, shape index: {}]
  %s3 = inlined_call_operand.vmem [shape: s32[1,32], index: 3, kind: input, shape index: {}]
  %s4 = inlined_call_operand.hbm [shape: s32[1,16], index: 4, kind: input, shape index: {}]
  %s5 = inlined_call_operand.vmem [shape: f32[75,64], index: 5, kind: input, shape index: {}]
  %s6 = inlined_call_operand.hbm [shape: f32[1,64], index: 6, kind: input, shape index: {}]
  %s7 = inlined_call_operand.hbm [shape: f32[6,128], index: 7, kind: input, shape index: {}]
  %s8 = inlined_call_operand.hbm [shape: f32[1,128], index: 8, kind: input, shape index: {}]
  %s9 = inlined_call_operand.hbm [shape: f32[128,4096], index: 9, kind: input, shape index: {}]
  %s10 = inlined_call_operand.hbm [shape: f32[1,4096], index: 10, kind: input, shape index: {}]
  %s11 = inlined_call_operand.hbm [shape: f32[64,64], index: 11, kind: input, shape index: {}]
  %s12 = inlined_call_operand.hbm [shape: f32[1,64], index: 12, kind: input, shape index: {}]
  %s13 = inlined_call_operand.hbm [shape: f32[64,192], index: 13, kind: input, shape index: {}]
  %s14 = inlined_call_operand.hbm [shape: f32[1,192], index: 14, kind: input, shape index: {}]
  %s15 = inlined_call_operand.hbm [shape: f32[64,192], index: 15, kind: input, shape index: {}]
  %s16 = inlined_call_operand.hbm [shape: f32[1,192], index: 16, kind: input, shape index: {}]
  %s17 = inlined_call_operand.hbm [shape: f32[128,256], index: 17, kind: input, shape index: {}]
  %s18 = inlined_call_operand.hbm [shape: f32[1,256], index: 18, kind: input, shape index: {}]
  %s19 = inlined_call_operand.hbm [shape: f32[64,256], index: 19, kind: input, shape index: {}]
  %s20 = inlined_call_operand.hbm [shape: f32[1,256], index: 20, kind: input, shape index: {}]
  %s21 = inlined_call_operand.vmem [shape: f32[128,64], index: 21, kind: input, shape index: {}]
  %s22 = inlined_call_operand.hbm [shape: f32[1,64], index: 22, kind: input, shape index: {}]
  %s23 = inlined_call_operand.hbm [shape: f32[1,64], index: 23, kind: input, shape index: {}]
  %s24 = inlined_call_operand.<no memory space> [shape: f32[1,1], index: 24, kind: input, shape index: {}]
  %s25 = inlined_call_operand.vmem [shape: f32[2,1], index: 25, kind: output, shape index: {}]
  %s26 = sld [smem:[#allocation0]]
  $region193: #{net_forward.1} parent=0
    _
  %s28 = ssub.s32 1, %s26
  %s29 = scalar_select 0, %s28, %s26
  %v30 = vstv %s24
  %31 = vst [vmem:[#allocation3] sm:$0x1] %v30
  $region1: #{net_forward.1} parent=0
    #allocation4 [shape = 'u8[8192]{0}', space=vmem, size = 0x2000, scoped, tag = 'input window, operand 0, single buffered']
    #allocation5 [shape = 's32[1]{0}', space=sflag, size = 0x4, scoped, tag = 'scoped memory for net_forward.1']
    #allocation6 [shape = 'u8[512]{0}', space=vmem, size = 0x400, scoped, tag = 'input window, operand 4, single buffered']
    #allocation7 [shape = 's32[1]{0}', space=sflag, size = 0x4, scoped, tag = 'scoped memory for net_forward.1']
    #allocation8 [shape = 'u8[512]{0}', space=vmem, size = 0x400, scoped, tag = 'input window, operand 6, single buffered']
    #allocation9 [shape = 'u8[4096]{0}', space=vmem, size = 0x1000, scoped, tag = 'input window, operand 7, single buffered']
    #allocation10 [shape = 's32[1]{0}', space=sflag, size = 0x4, scoped, tag = 'scoped memory for net_forward.1']
    #allocation11 [shape = 'u8[512]{0}', space=vmem, size = 0x400, scoped, tag = 'input window, operand 8, single buffered']
    #allocation12 [shape = 'u8[2097152]{0}', space=vmem, size = 0x200000, scoped, tag = 'input window, operand 9, single buffered']
    #allocation13 [shape = 's32[1]{0}', space=sflag, size = 0x4, scoped, tag = 'scoped memory for net_forward.1']
    #allocation14 [shape = 'u8[16384]{0}', space=vmem, size = 0x4000, scoped, tag = 'input window, operand 10, single buffered']
    #allocation15 [shape = 'u8[32768]{0}', space=vmem, size = 0x8000, scoped, tag = 'input window, operand 11, single buffered']
    #allocation16 [shape = 's32[1]{0}', space=sflag, size = 0x4, scoped, tag = 'scoped memory for net_forward.1']
    #allocation17 [shape = 'u8[512]{0}', space=vmem, size = 0x400, scoped, tag = 'input window, operand 12, single buffered']
    #allocation18 [shape = 'u8[65536]{0}', space=vmem, size = 0x10000, scoped, tag = 'input window, operand 13, single buffered']
    #allocation19 [shape = 's32[1]{0}', space=sflag, size = 0x4, scoped, tag = 'scoped memory for net_forward.1']
    #allocation20 [shape = 'u8[1024]{0}', space=vmem, size = 0x400, scoped, tag = 'input window, operand 14, single buffered']
    #allocation21 [shape = 'u8[65536]{0}', space=vmem, size = 0x10000, scoped, tag = 'input window, operand 15, single buffered']
    #allocation22 [shape = 's32[1]{0}', space=sflag, size = 0x4, scoped, tag = 'scoped memory for net_forward.1']
    #allocation23 [shape = 'u8[1024]{0}', space=vmem, size = 0x400, scoped, tag = 'input window, operand 16, single buffered']
    #allocation24 [shape = 'u8[131072]{0}', space=vmem, size = 0x20000, scoped, tag = 'input window, operand 17, single buffered']
    #allocation25 [shape = 's32[1]{0}', space=sflag, size = 0x4, scoped, tag = 'scoped memory for net_forward.1']
    #allocation26 [shape = 'u8[1024]{0}', space=vmem, size = 0x400, scoped, tag = 'input window, operand 18, single buffered']
    #allocation27 [shape = 'u8[65536]{0}', space=vmem, size = 0x10000, scoped, tag = 'input window, operand 19, single buffered']
    #allocation28 [shape = 's32[1]{0}', space=sflag, size = 0x4, scoped, tag = 'scoped memory for net_forward.1']
    #allocation29 [shape = 'u8[1024]{0}', space=vmem, size = 0x400, scoped, tag = 'input window, operand 20, single buffered']
    #allocation30 [shape = 'u8[512]{0}', space=vmem, size = 0x400, scoped, tag = 'input window, operand 22, single buffered']
    #allocation31 [shape = 's32[1]{0}', space=sflag, size = 0x4, scoped, tag = 'scoped memory for net_forward.1']
    #allocation32 [shape = 'u8[512]{0}', space=vmem, size = 0x400, scoped, tag = 'input window, operand 23, single buffered']
    %32 = vsyncpa [#allocation5], 0
    %33 = vsyncpa [#allocation7], 0
    %34 = vsyncpa [#allocation10], 0
    %35 = vsyncpa [#allocation13], 0
    %36 = vsyncpa [#allocation16], 0
    %37 = vsyncpa [#allocation19], 0
    %38 = vsyncpa [#allocation22], 0
    %39 = vsyncpa [#allocation25], 0
    %40 = vsyncpa [#allocation28], 0
    %41 = vsyncpa [#allocation31], 0
    // Predicated region
    $region2: #{net_forward.1} parent=1 // pred_check
      _
    $region3: #{net_forward.1} parent=1 // pred_check_branch
      %43 = sbr.rel (0) target = $region5
    $region4: #{net_forward.1} parent=1 // pred_region
      %s45 = ssub.s32 256, 256
      %46 = vsyncadd [#allocation5], %s45
      %s47 = sshll.u32 [#allocation4], 4
      %s48 = int_to_ptr.vmem [resolvable:$true] %s47
      %53 = dma.hbm_to_vmem [thread:$0]  %s0, 256, %s48, [#allocation5], 128, 128, 8
    $region5: #{net_forward.1} parent=1 // pred_fallthru
      _
    // Predicated region
    $region6: #{net_forward.1} parent=1 // pred_check
      _
    $region7: #{net_forward.1} parent=1 // pred_check_branch
      %55 = sbr.rel (0) target = $region9
    $region8: #{net_forward.1} parent=1 // pred_region
      _
    $region9: #{net_forward.1} parent=1 // pred_fallthru
      _
    // Predicated region
    $region10: #{net_forward.1} parent=1 // pred_check
      _
    $region11: #{net_forward.1} parent=1 // pred_check_branch
      %57 = sbr.rel (0) target = $region13
    $region12: #{net_forward.1} parent=1 // pred_region
      _
    $region13: #{net_forward.1} parent=1 // pred_fallthru
      _
    // Predicated region
    $region14: #{net_forward.1} parent=1 // pred_check
      _
    $region15: #{net_forward.1} parent=1 // pred_check_branch
      %59 = sbr.rel (0) target = $region17
    $region16: #{net_forward.1} parent=1 // pred_region
      _
    $region17: #{net_forward.1} parent=1 // pred_fallthru
      _
    // Predicated region
    $region18: #{net_forward.1} parent=1 // pred_check
      _
    $region19: #{net_forward.1} parent=1 // pred_check_branch
      %61 = sbr.rel (0) target = $region21
    $region20: #{net_forward.1} parent=1 // pred_region
      %s63 = ssub.s32 16, 16
      %64 = vsyncadd [#allocation7], %s63
      %s66 = sshll.u32 [#allocation6], 4
      %s67 = int_to_ptr.vmem [resolvable:$true] %s66
      %69 = dma.hbm_to_vmem [thread:$0]  %s4, 16, %s67, [#allocation7]
    $region21: #{net_forward.1} parent=1 // pred_fallthru
      _
    // Predicated region
    $region22: #{net_forward.1} parent=1 // pred_check
      _
    $region23: #{net_forward.1} parent=1 // pred_check_branch
      %71 = sbr.rel (0) target = $region25
    $region24: #{net_forward.1} parent=1 // pred_region
      _
    $region25: #{net_forward.1} parent=1 // pred_fallthru
      _
    // Predicated region
    $region26: #{net_forward.1} parent=1 // pred_check
      _
    $region27: #{net_forward.1} parent=1 // pred_check_branch
      %73 = sbr.rel (0) target = $region29
    $region28: #{net_forward.1} parent=1 // pred_region
      %s75 = ssub.s32 16, 16
      %76 = vsyncadd [#allocation7], %s75
      %s78 = sshll.u32 [#allocation8], 4
      %s79 = int_to_ptr.vmem [resolvable:$true] %s78
      %81 = dma.hbm_to_vmem [thread:$0]  %s6, 16, %s79, [#allocation7]
    $region29: #{net_forward.1} parent=1 // pred_fallthru
      _
    // Predicated region
    $region30: #{net_forward.1} parent=1 // pred_check
      _
    $region31: #{net_forward.1} parent=1 // pred_check_branch
      %83 = sbr.rel (0) target = $region33
    $region32: #{net_forward.1} parent=1 // pred_region
      %s85 = ssub.s32 128, 128
      %86 = vsyncadd [#allocation10], %s85
      %s88 = sshll.u32 [#allocation9], 4
      %s89 = int_to_ptr.vmem [resolvable:$true] %s88
      %91 = dma.hbm_to_vmem [thread:$0]  %s7, 128, %s89, [#allocation10]
    $region33: #{net_forward.1} parent=1 // pred_fallthru
      _
    // Predicated region
    $region34: #{net_forward.1} parent=1 // pred_check
      _
    $region35: #{net_forward.1} parent=1 // pred_check_branch
      %93 = sbr.rel (0) target = $region37
    $region36: #{net_forward.1} parent=1 // pred_region
      %s95 = ssub.s32 16, 16
      %96 = vsyncadd [#allocation10], %s95
      %s98 = sshll.u32 [#allocation11], 4
      %s99 = int_to_ptr.vmem [resolvable:$true] %s98
      %101 = dma.hbm_to_vmem [thread:$0]  %s8, 16, %s99, [#allocation10]
    $region37: #{net_forward.1} parent=1 // pred_fallthru
      _
    // Predicated region
    $region38: #{net_forward.1} parent=1 // pred_check
      _
    $region39: #{net_forward.1} parent=1 // pred_check_branch
      %103 = sbr.rel (0) target = $region41
    $region40: #{net_forward.1} parent=1 // pred_region
      %s105 = ssub.s32 65536, 65536
      %106 = vsyncadd [#allocation13], %s105
      %s107 = sshll.u32 [#allocation12], 4
      %s108 = int_to_ptr.vmem [resolvable:$true] %s107
      %113 = dma.hbm_to_vmem [thread:$0]  %s9, 65536, %s108, [#allocation13], 4096, 4096, 256
    $region41: #{net_forward.1} parent=1 // pred_fallthru
      _
    // Predicated region
    $region42: #{net_forward.1} parent=1 // pred_check
      _
    $region43: #{net_forward.1} parent=1 // pred_check_branch
      %115 = sbr.rel (0) target = $region45
    $region44: #{net_forward.1} parent=1 // pred_region
      %s117 = ssub.s32 512, 512
      %118 = vsyncadd [#allocation13], %s117
      %s120 = sshll.u32 [#allocation14], 4
      %s121 = int_to_ptr.vmem [resolvable:$true] %s120
      %123 = dma.hbm_to_vmem [thread:$0]  %s10, 512, %s121, [#allocation13]
    $region45: #{net_forward.1} parent=1 // pred_fallthru
      _
    // Predicated region
    $region46: #{net_forward.1} parent=1 // pred_check
      _
    $region47: #{net_forward.1} parent=1 // pred_check_branch
      %125 = sbr.rel (0) target = $region49
    $region48: #{net_forward.1} parent=1 // pred_region
      %s127 = ssub.s32 1024, 1024
      %128 = vsyncadd [#allocation16], %s127
      %s129 = sshll.u32 [#allocation15], 4
      %s130 = int_to_ptr.vmem [resolvable:$true] %s129
      %135 = dma.hbm_to_vmem [thread:$0]  %s11, 1024, %s130, [#allocation16], 128, 128, 8
    $region49: #{net_forward.1} parent=1 // pred_fallthru
      _
    // Predicated region
    $region50: #{net_forward.1} parent=1 // pred_check
      _
    $region51: #{net_forward.1} parent=1 // pred_check_branch
      %137 = sbr.rel (0) target = $region53
    $region52: #{net_forward.1} parent=1 // pred_region
      %s139 = ssub.s32 16, 16
      %140 = vsyncadd [#allocation16], %s139
      %s142 = sshll.u32 [#allocation17], 4
      %s143 = int_to_ptr.vmem [resolvable:$true] %s142
      %145 = dma.hbm_to_vmem [thread:$0]  %s12, 16, %s143, [#allocation16]
    $region53: #{net_forward.1} parent=1 // pred_fallthru
      _
    // Predicated region
    $region54: #{net_forward.1} parent=1 // pred_check
      _
    $region55: #{net_forward.1} parent=1 // pred_check_branch
      %147 = sbr.rel (0) target = $region57
    $region56: #{net_forward.1} parent=1 // pred_region
      %s149 = ssub.s32 2048, 2048
      %150 = vsyncadd [#allocation19], %s149
      %s151 = sshll.u32 [#allocation18], 4
      %s152 = int_to_ptr.vmem [resolvable:$true] %s151
      %157 = dma.hbm_to_vmem [thread:$0]  %s13, 2048, %s152, [#allocation19], 256, 256, 16
    $region57: #{net_forward.1} parent=1 // pred_fallthru
      _
    // Predicated region
    $region58: #{net_forward.1} parent=1 // pred_check
      _
    $region59: #{net_forward.1} parent=1 // pred_check_branch
      %159 = sbr.rel (0) target = $region61
    $region60: #{net_forward.1} parent=1 // pred_region
      %s161 = ssub.s32 32, 32
      %162 = vsyncadd [#allocation19], %s161
      %s164 = sshll.u32 [#allocation20], 4
      %s165 = int_to_ptr.vmem [resolvable:$true] %s164
      %167 = dma.hbm_to_vmem [thread:$0]  %s14, 32, %s165, [#allocation19]
    $region61: #{net_forward.1} parent=1 // pred_fallthru
      _
    // Predicated region
    $region62: #{net_forward.1} parent=1 // pred_check
      _
    $region63: #{net_forward.1} parent=1 // pred_check_branch
      %169 = sbr.rel (0) target = $region65
    $region64: #{net_forward.1} parent=1 // pred_region
      %s171 = ssub.s32 2048, 2048
      %172 = vsyncadd [#allocation22], %s171
      %s173 = sshll.u32 [#allocation21], 4
      %s174 = int_to_ptr.vmem [resolvable:$true] %s173
      %179 = dma.hbm_to_vmem [thread:$0]  %s15, 2048, %s174, [#allocation22], 256, 256, 16
    $region65: #{net_forward.1} parent=1 // pred_fallthru
      _
    // Predicated region
    $region66: #{net_forward.1} parent=1 // pred_check
      _
    $region67: #{net_forward.1} parent=1 // pred_check_branch
      %181 = sbr.rel (0) target = $region69
    $region68: #{net_forward.1} parent=1 // pred_region
      %s183 = ssub.s32 32, 32
      %184 = vsyncadd [#allocation22], %s183
      %s186 = sshll.u32 [#allocation23], 4
      %s187 = int_to_ptr.vmem [resolvable:$true] %s186
      %189 = dma.hbm_to_vmem [thread:$0]  %s16, 32, %s187, [#allocation22]
    $region69: #{net_forward.1} parent=1 // pred_fallthru
      _
    // Predicated region
    $region70: #{net_forward.1} parent=1 // pred_check
      _
    $region71: #{net_forward.1} parent=1 // pred_check_branch
      %191 = sbr.rel (0) target = $region73
    $region72: #{net_forward.1} parent=1 // pred_region
      %s193 = ssub.s32 4096, 4096
      %194 = vsyncadd [#allocation25], %s193
      %s195 = sshll.u32 [#allocation24], 4
      %s196 = int_to_ptr.vmem [resolvable:$true] %s195
      %201 = dma.hbm_to_vmem [thread:$0]  %s17, 4096, %s196, [#allocation25], 256, 256, 16
    $region73: #{net_forward.1} parent=1 // pred_fallthru
      _
    // Predicated region
    $region74: #{net_forward.1} parent=1 // pred_check
      _
    $region75: #{net_forward.1} parent=1 // pred_check_branch
      %203 = sbr.rel (0) target = $region77
    $region76: #{net_forward.1} parent=1 // pred_region
      %s205 = ssub.s32 32, 32
      %206 = vsyncadd [#allocation25], %s205
      %s208 = sshll.u32 [#allocation26], 4
      %s209 = int_to_ptr.vmem [resolvable:$true] %s208
      %211 = dma.hbm_to_vmem [thread:$0]  %s18, 32, %s209, [#allocation25]
    $region77: #{net_forward.1} parent=1 // pred_fallthru
      _
    // Predicated region
    $region78: #{net_forward.1} parent=1 // pred_check
      _
    $region79: #{net_forward.1} parent=1 // pred_check_branch
      %213 = sbr.rel (0) target = $region81
    $region80: #{net_forward.1} parent=1 // pred_region
      %s215 = ssub.s32 2048, 2048
      %216 = vsyncadd [#allocation28], %s215
      %s217 = sshll.u32 [#allocation27], 4
      %s218 = int_to_ptr.vmem [resolvable:$true] %s217
      %223 = dma.hbm_to_vmem [thread:$0]  %s19, 2048, %s218, [#allocation28], 256, 256, 16
    $region81: #{net_forward.1} parent=1 // pred_fallthru
      _
    // Predicated region
    $region82: #{net_forward.1} parent=1 // pred_check
      _
    $region83: #{net_forward.1} parent=1 // pred_check_branch
      %225 = sbr.rel (0) target = $region85
    $region84: #{net_forward.1} parent=1 // pred_region
      %s227 = ssub.s32 32, 32
      %228 = vsyncadd [#allocation28], %s227
      %s230 = sshll.u32 [#allocation29], 4
      %s231 = int_to_ptr.vmem [resolvable:$true] %s230
      %233 = dma.hbm_to_vmem [thread:$0]  %s20, 32, %s231, [#allocation28]
    $region85: #{net_forward.1} parent=1 // pred_fallthru
      _
    // Predicated region
    $region86: #{net_forward.1} parent=1 // pred_check
      _
    $region87: #{net_forward.1} parent=1 // pred_check_branch
      %235 = sbr.rel (0) target = $region89
    $region88: #{net_forward.1} parent=1 // pred_region
      _
    $region89: #{net_forward.1} parent=1 // pred_fallthru
      _
    // Predicated region
    $region90: #{net_forward.1} parent=1 // pred_check
      _
    $region91: #{net_forward.1} parent=1 // pred_check_branch
      %237 = sbr.rel (0) target = $region93
    $region92: #{net_forward.1} parent=1 // pred_region
      %s239 = ssub.s32 16, 16
      %240 = vsyncadd [#allocation31], %s239
      %s242 = sshll.u32 [#allocation30], 4
      %s243 = int_to_ptr.vmem [resolvable:$true] %s242
      %245 = dma.hbm_to_vmem [thread:$0]  %s22, 16, %s243, [#allocation31]
    $region93: #{net_forward.1} parent=1 // pred_fallthru
      _
    // Predicated region
    $region94: #{net_forward.1} parent=1 // pred_check
      _
    $region95: #{net_forward.1} parent=1 // pred_check_branch
      %247 = sbr.rel (0) target = $region97
    $region96: #{net_forward.1} parent=1 // pred_region
      %s249 = ssub.s32 16, 16
      %250 = vsyncadd [#allocation31], %s249
      %s252 = sshll.u32 [#allocation32], 4
      %s253 = int_to_ptr.vmem [resolvable:$true] %s252
      %255 = dma.hbm_to_vmem [thread:$0]  %s23, 16, %s253, [#allocation31]
    $region97: #{net_forward.1} parent=1 // pred_fallthru
      _
    // Predicated region
    $region98: #{net_forward.1} parent=1 // pred_check
      _
    $region99: #{net_forward.1} parent=1 // pred_check_branch
      %257 = sbr.rel (0) target = $region101
    $region100: #{net_forward.1} parent=1 // pred_region
      _
    $region101: #{net_forward.1} parent=1 // pred_fallthru
      _
    // Predicated region
    $region102: #{net_forward.1} parent=1 // pred_check
      _
    $region103: #{net_forward.1} parent=1 // pred_check_branch
      %259 = sbr.rel (0) target = $region105
    $region104: #{net_forward.1} parent=1 // pred_region
      %260 = dma.done [#allocation5], 256
    $region105: #{net_forward.1} parent=1 // pred_fallthru
      _
    // Predicated region
    $region106: #{net_forward.1} parent=1 // pred_check
      _
    $region107: #{net_forward.1} parent=1 // pred_check_branch
      %262 = sbr.rel (0) target = $region109
    $region108: #{net_forward.1} parent=1 // pred_region
      %263 = dma.done [#allocation7], 16
    $region109: #{net_forward.1} parent=1 // pred_fallthru
      _
    // Predicated region
    $region110: #{net_forward.1} parent=1 // pred_check
      _
    $region111: #{net_forward.1} parent=1 // pred_check_branch
      %265 = sbr.rel (0) target = $region113
    $region112: #{net_forward.1} parent=1 // pred_region
      %266 = dma.done [#allocation7], 16
    $region113: #{net_forward.1} parent=1 // pred_fallthru
      _
    // Predicated region
    $region114: #{net_forward.1} parent=1 // pred_check
      _
    $region115: #{net_forward.1} parent=1 // pred_check_branch
      %268 = sbr.rel (0) target = $region117
    $region116: #{net_forward.1} parent=1 // pred_region
      %269 = dma.done [#allocation10], 128
    $region117: #{net_forward.1} parent=1 // pred_fallthru
      _
    // Predicated region
    $region118: #{net_forward.1} parent=1 // pred_check
      _
    $region119: #{net_forward.1} parent=1 // pred_check_branch
      %271 = sbr.rel (0) target = $region121
    $region120: #{net_forward.1} parent=1 // pred_region
      %272 = dma.done [#allocation10], 16
    $region121: #{net_forward.1} parent=1 // pred_fallthru
      _
    // Predicated region
    $region122: #{net_forward.1} parent=1 // pred_check
      _
    $region123: #{net_forward.1} parent=1 // pred_check_branch
      %274 = sbr.rel (0) target = $region125
    $region124: #{net_forward.1} parent=1 // pred_region
      %275 = dma.done [#allocation13], 65536
    $region125: #{net_forward.1} parent=1 // pred_fallthru
      _
    // Predicated region
    $region126: #{net_forward.1} parent=1 // pred_check
      _
    $region127: #{net_forward.1} parent=1 // pred_check_branch
      %277 = sbr.rel (0) target = $region129
    $region128: #{net_forward.1} parent=1 // pred_region
      %278 = dma.done [#allocation13], 512
    $region129: #{net_forward.1} parent=1 // pred_fallthru
      _
    // Predicated region
    $region130: #{net_forward.1} parent=1 // pred_check
      _
    $region131: #{net_forward.1} parent=1 // pred_check_branch
      %280 = sbr.rel (0) target = $region133
    $region132: #{net_forward.1} parent=1 // pred_region
      %281 = dma.done [#allocation16], 1024
    $region133: #{net_forward.1} parent=1 // pred_fallthru
      _
    // Predicated region
    $region134: #{net_forward.1} parent=1 // pred_check
      _
    $region135: #{net_forward.1} parent=1 // pred_check_branch
      %283 = sbr.rel (0) target = $region137
    $region136: #{net_forward.1} parent=1 // pred_region
      %284 = dma.done [#allocation16], 16
    $region137: #{net_forward.1} parent=1 // pred_fallthru
      _
    // Predicated region
    $region138: #{net_forward.1} parent=1 // pred_check
      _
    $region139: #{net_forward.1} parent=1 // pred_check_branch
      %286 = sbr.rel (0) target = $region141
    $region140: #{net_forward.1} parent=1 // pred_region
      %287 = dma.done [#allocation19], 2048
    $region141: #{net_forward.1} parent=1 // pred_fallthru
      _
    // Predicated region
    $region142: #{net_forward.1} parent=1 // pred_check
      _
    $region143: #{net_forward.1} parent=1 // pred_check_branch
      %289 = sbr.rel (0) target = $region145
    $region144: #{net_forward.1} parent=1 // pred_region
      %290 = dma.done [#allocation19], 32
    $region145: #{net_forward.1} parent=1 // pred_fallthru
      _
    // Predicated region
    $region146: #{net_forward.1} parent=1 // pred_check
      _
    $region147: #{net_forward.1} parent=1 // pred_check_branch
      %292 = sbr.rel (0) target = $region149
    $region148: #{net_forward.1} parent=1 // pred_region
      %293 = dma.done [#allocation22], 2048
    $region149: #{net_forward.1} parent=1 // pred_fallthru
      _
    // Predicated region
    $region150: #{net_forward.1} parent=1 // pred_check
      _
    $region151: #{net_forward.1} parent=1 // pred_check_branch
      %295 = sbr.rel (0) target = $region153
    $region152: #{net_forward.1} parent=1 // pred_region
      %296 = dma.done [#allocation22], 32
    $region153: #{net_forward.1} parent=1 // pred_fallthru
      _
    // Predicated region
    $region154: #{net_forward.1} parent=1 // pred_check
      _
    $region155: #{net_forward.1} parent=1 // pred_check_branch
      %298 = sbr.rel (0) target = $region157
    $region156: #{net_forward.1} parent=1 // pred_region
      %299 = dma.done [#allocation25], 4096
    $region157: #{net_forward.1} parent=1 // pred_fallthru
      _
    // Predicated region
    $region158: #{net_forward.1} parent=1 // pred_check
      _
    $region159: #{net_forward.1} parent=1 // pred_check_branch
      %301 = sbr.rel (0) target = $region161
    $region160: #{net_forward.1} parent=1 // pred_region
      %302 = dma.done [#allocation25], 32
    $region161: #{net_forward.1} parent=1 // pred_fallthru
      _
    // Predicated region
    $region162: #{net_forward.1} parent=1 // pred_check
      _
    $region163: #{net_forward.1} parent=1 // pred_check_branch
      %304 = sbr.rel (0) target = $region165
    $region164: #{net_forward.1} parent=1 // pred_region
      %305 = dma.done [#allocation28], 2048
    $region165: #{net_forward.1} parent=1 // pred_fallthru
      _
    // Predicated region
    $region166: #{net_forward.1} parent=1 // pred_check
      _
    $region167: #{net_forward.1} parent=1 // pred_check_branch
      %307 = sbr.rel (0) target = $region169
    $region168: #{net_forward.1} parent=1 // pred_region
      %308 = dma.done [#allocation28], 32
    $region169: #{net_forward.1} parent=1 // pred_fallthru
      _
    // Predicated region
    $region170: #{net_forward.1} parent=1 // pred_check
      _
    $region171: #{net_forward.1} parent=1 // pred_check_branch
      %310 = sbr.rel (0) target = $region173
    $region172: #{net_forward.1} parent=1 // pred_region
      %311 = dma.done [#allocation31], 16
    $region173: #{net_forward.1} parent=1 // pred_fallthru
      _
    // Predicated region
    $region174: #{net_forward.1} parent=1 // pred_check
      _
    $region175: #{net_forward.1} parent=1 // pred_check_branch
      %313 = sbr.rel (0) target = $region177
    $region176: #{net_forward.1} parent=1 // pred_region
      %314 = dma.done [#allocation31], 16
    $region177: #{net_forward.1} parent=1 // pred_fallthru
      _
    %v315 = vld [vmem:[%s2] sm:$0xff]
    %v316 = vld [vmem:[%s2 + $0x8] sm:$0xff]
    %v317 = vld [vmem:[%s2 + $0x10] sm:$0xff]
    %v318 = vld [vmem:[%s2 + $0x18] sm:$0xff]
    %v319 = vlaneseq
    %v320 = vand.u32 %v319, 127
    %321 = vset.pattern.permute.xlu0 0
    %322 = vperm.xlu0 %321, %v315
    %v323 = vpop.permute.xlu0 %322
    %324 = vset.pattern.permute.xlu0 0
    %325 = vperm.xlu0 %324, %v316
    %v326 = vpop.permute.xlu0 %325
    %327 = vset.pattern.permute.xlu0 0
    %328 = vperm.xlu0 %327, %v317
    %v329 = vpop.permute.xlu0 %328
    %330 = vset.pattern.permute.xlu0 0
    %331 = vperm.xlu0 %330, %v318
    %v332 = vpop.permute.xlu0 %331
    %vm333 = vcmp.eq.s32.totalorder %v323, %v320
    %vm334 = vcmp.eq.s32.totalorder %v326, %v320
    %vm335 = vcmp.eq.s32.totalorder %v329, %v320
    %vm336 = vcmp.eq.s32.totalorder %v332, %v320
    %v337 = vsel %vm333, 1.0, 0.0
    %v338 = vsel %vm334, 1.0, 0.0
    %v339 = vsel %vm335, 1.0, 0.0
    %v340 = vsel %vm336, 1.0, 0.0
    %v341 = vlaneseq
    %v342 = vshrl.u32 %v341, 7
    %v343 = vadd.s32 %v342, 8
    %v344 = vld [vmem:[%s3] sm:$0x1]
    %v345 = vlaneseq
    %v346 = vshrl.u32 %v345, 7
    %v347 = vsub.s32 0, %v346
    %v348 = vrot.slane %v344, %v347
    %vm349 = vcmp.eq.s32.totalorder %v342, %v348
    %vm350 = vcmp.eq.s32.totalorder %v343, %v348
    %v351 = vsel %vm349, 1.0, 0.0
    %v352 = vsel %vm350, 1.0, 0.0
    %v353 = vld [vmem:[#allocation6] sm:$0x1]
    %v354 = vlaneseq
    %v355 = vshrl.u32 %v354, 7
    %v356 = vsub.s32 0, %v355
    %v357 = vrot.slane %v353, %v356
    %vm358 = vcmp.eq.s32.totalorder %v342, %v357
    %v359 = vld [vmem:[#allocation4] sm:$0xff]
    %v360 = vld [vmem:[#allocation4 + $0x8] sm:$0xff]
    %v361 = vld [vmem:[%s5] sm:$0xff]
    %v362 = vld [vmem:[%s5 + $0x8] sm:$0xff]
    %v363 = vld [vmem:[%s5 + $0x10] sm:$0xff]
    %v364 = vld [vmem:[%s5 + $0x18] sm:$0xff]
    %v365 = vld [vmem:[%s5 + $0x20] sm:$0xff]
    %v366 = vld [vmem:[%s5 + $0x28] sm:$0xff]
    %v367 = vld [vmem:[%s5 + $0x30] sm:$0xff]
    %v368 = vld [vmem:[%s5 + $0x38] sm:$0xff]
    %v369 = vld [vmem:[%s5 + $0x40] sm:$0xff]
    %v370 = vld [vmem:[%s5 + $0x48] sm:$0x7]
    %v371 = vld [vmem:[#allocation8] sm:$0x1]
    %v373 = vlaneseq
    %v374 = vshrl.u32 %v373, 7
    %v375 = vsub.s32 0, %v374
    %v376 = vrot.slane %v371, %v375
    %vm378 = vcmask 613376
    %v380 = vsel %vm378, %v359, 0
    %v383 = vsel %vm378, %v360, 0
    %vm385 = vcmask 1042432
    %v387 = vsel %vm385, %v370, 0
    %389 = vmatprep.subr.mxu0 0.0
    %390 = vmatpush1.msra.mxu0 0.0
    %391 = vmatprep.subr.mxu0 0.0
    %392 = vmatpush1.msra.mxu0 0.0
    %393 = vmatprep.subr.mxu0 0.0
    %394 = vmatpush1.msra.mxu0 0.0
    %395 = vmatprep.subr.mxu0 0.0
    %396 = vmatpush1.msra.mxu0 0.0
    %397 = vmatprep.subr.mxu0 0.0
    %398 = vmatpush1.msra.mxu0 0.0
    %399 = vmatprep.subr.mxu0 0.0
    %400 = vmatpush1.msra.mxu0 0.0
    %401 = vmatprep.subr.mxu0 0.0
    %402 = vmatpush1.msra.mxu0 %v387
    %403 = vmatprep.subr.mxu0 0.0
    %404 = vmatpush1.msra.mxu0 %v369
    %405 = vmatprep.subr.mxu0 0.0
    %406 = vmatpush1.msra.mxu0 %v368
    %407 = vmatprep.subr.mxu0 0.0
    %408 = vmatpush1.msra.mxu0 %v367
    %409 = vmatprep.subr.mxu0 0.0
    %410 = vmatpush1.msra.mxu0 %v366
    %411 = vmatprep.subr.mxu0 0.0
    %412 = vmatpush1.msra.mxu0 %v365
    %413 = vmatprep.subr.mxu0 0.0
    %414 = vmatpush1.msra.mxu0 %v364
    %415 = vmatprep.subr.mxu0 0.0
    %416 = vmatpush1.msra.mxu0 %v363
    %417 = vmatprep.subr.mxu0 0.0
    %418 = vmatpush1.msra.mxu0 %v362
    %419 = vmatprep.subr.mxu0 0.0
    %420 = vmatpush1.msra.mxu0 %v361
    %421 = vmatprep.subr.mxu0 0.0
    %422 = vmatpush2.msra.mxu0 0.0
    %423 = vmatprep.subr.mxu0 0.0
    %424 = vmatpush2.msra.mxu0 0.0
    %425 = vmatprep.subr.mxu0 0.0
    %426 = vmatpush2.msra.mxu0 0.0
    %427 = vmatprep.subr.mxu0 0.0
    %428 = vmatpush2.msra.mxu0 0.0
    %429 = vmatprep.subr.mxu0 0.0
    %430 = vmatpush2.msra.mxu0 0.0
    %431 = vmatprep.subr.mxu0 0.0
    %432 = vmatpush2.msra.mxu0 0.0
    %433 = vmatprep.subr.mxu0 0.0
    %434 = vmatpush2.msra.mxu0 0.0
    %435 = vmatprep.subr.mxu0 0.0
    %436 = vmatpush2.msra.mxu0 0.0
    %437 = vmatprep.subr.mxu0 0.0
    %438 = vmatpush2.msra.mxu0 0.0
    %439 = vmatprep.subr.mxu0 0.0
    %440 = vmatpush2.msra.mxu0 0.0
    %441 = vmatprep.subr.mxu0 0.0
    %442 = vmatpush2.msra.mxu0 0.0
    %443 = vmatprep.subr.mxu0 0.0
    %444 = vmatpush2.msra.mxu0 0.0
    %445 = vmatprep.subr.mxu0 0.0
    %446 = vmatpush2.msra.mxu0 0.0
    %447 = vmatprep.subr.mxu0 0.0
    %448 = vmatpush2.msra.mxu0 0.0
    %449 = vmatprep.subr.mxu0 0.0
    %450 = vmatpush2.msra.mxu0 0.0
    %451 = vmatprep.subr.mxu0 0.0
    %452 = vmatpush2.msra.mxu0 0.0
    %453 = vmatprep.mubr.f32.mxu0 0.0
    %454 = vmatmul.mubr.f32.gmra.mxu0 %v380
    %v455 = vpop.f32.mrf.mxu0
    %v456 = vadd.f32 %v376, %v455
    %v457 = vpop.f32.mrf.mxu0
    %458 = vmatprep.mubr.f32.mxu0 0.0
    %459 = vmatmul.mubr.f32.gmra.mxu0 %v383
    %v460 = vpop.f32.mrf.mxu0
    %v461 = vadd.f32 %v376, %v460
    %v462 = vpop.f32.mrf.mxu0
    %463 = vdwg.mxu0
    %v464 = vmax.f32 %v456, 0.0
    %v465 = vmax.f32 %v461, 0.0
    %v466 = vld [vmem:[%s1] sm:$0xff]
    %v467 = vld [vmem:[%s1 + $0x8] sm:$0xff]
    %v468 = vld [vmem:[%s1 + $0x10] sm:$0xff]
    %v469 = vld [vmem:[%s1 + $0x18] sm:$0xff]
    %v470 = vld [vmem:[#allocation9] sm:$0x3f]
    %v471 = vld [vmem:[#allocation11] sm:$0x1]
    %v473 = vlaneseq
    %v474 = vshrl.u32 %v473, 7
    %v475 = vsub.s32 0, %v474
    %v476 = vrot.slane %v471, %v475
    %vm478 = vcmask 48128
    %v480 = vsel %vm478, %v466, 0
    %v483 = vsel %vm478, %v467, 0
    %v486 = vsel %vm478, %v468, 0
    %v489 = vsel %vm478, %v469, 0
    %vm491 = vcmask 1045504
    %v493 = vsel %vm491, %v470, 0
    %495 = vmatprep.subr.mxu0 0.0
    %496 = vmatpush1.msra.mxu0 0.0
    %497 = vmatprep.subr.mxu0 0.0
    %498 = vmatpush1.msra.mxu0 0.0
    %499 = vmatprep.subr.mxu0 0.0
    %500 = vmatpush1.msra.mxu0 0.0
    %501 = vmatprep.subr.mxu0 0.0
    %502 = vmatpush1.msra.mxu0 0.0
    %503 = vmatprep.subr.mxu0 0.0
    %504 = vmatpush1.msra.mxu0 0.0
    %505 = vmatprep.subr.mxu0 0.0
    %506 = vmatpush1.msra.mxu0 0.0
    %507 = vmatprep.subr.mxu0 0.0
    %508 = vmatpush1.msra.mxu0 0.0
    %509 = vmatprep.subr.mxu0 0.0
    %510 = vmatpush1.msra.mxu0 0.0
    %511 = vmatprep.subr.mxu0 0.0
    %512 = vmatpush1.msra.mxu0 0.0
    %513 = vmatprep.subr.mxu0 0.0
    %514 = vmatpush1.msra.mxu0 0.0
    %515 = vmatprep.subr.mxu0 0.0
    %516 = vmatpush1.msra.mxu0 0.0
    %517 = vmatprep.subr.mxu0 0.0
    %518 = vmatpush1.msra.mxu0 0.0
    %519 = vmatprep.subr.mxu0 0.0
    %520 = vmatpush1.msra.mxu0 0.0
    %521 = vmatprep.subr.mxu0 0.0
    %522 = vmatpush1.msra.mxu0 0.0
    %523 = vmatprep.subr.mxu0 0.0
    %524 = vmatpush1.msra.mxu0 0.0
    %525 = vmatprep.subr.mxu0 0.0
    %526 = vmatpush1.msra.mxu0 %v493
    %527 = vmatprep.subr.mxu0 0.0
    %528 = vmatpush2.msra.mxu0 0.0
    %529 = vmatprep.subr.mxu0 0.0
    %530 = vmatpush2.msra.mxu0 0.0
    %531 = vmatprep.subr.mxu0 0.0
    %532 = vmatpush2.msra.mxu0 0.0
    %533 = vmatprep.subr.mxu0 0.0
    %534 = vmatpush2.msra.mxu0 0.0
    %535 = vmatprep.subr.mxu0 0.0
    %536 = vmatpush2.msra.mxu0 0.0
    %537 = vmatprep.subr.mxu0 0.0
    %538 = vmatpush2.msra.mxu0 0.0
    %539 = vmatprep.subr.mxu0 0.0
    %540 = vmatpush2.msra.mxu0 0.0
    %541 = vmatprep.subr.mxu0 0.0
    %542 = vmatpush2.msra.mxu0 0.0
    %543 = vmatprep.subr.mxu0 0.0
    %544 = vmatpush2.msra.mxu0 0.0
    %545 = vmatprep.subr.mxu0 0.0
    %546 = vmatpush2.msra.mxu0 0.0
    %547 = vmatprep.subr.mxu0 0.0
    %548 = vmatpush2.msra.mxu0 0.0
    %549 = vmatprep.subr.mxu0 0.0
    %550 = vmatpush2.msra.mxu0 0.0
    %551 = vmatprep.subr.mxu0 0.0
    %552 = vmatpush2.msra.mxu0 0.0
    %553 = vmatprep.subr.mxu0 0.0
    %554 = vmatpush2.msra.mxu0 0.0
    %555 = vmatprep.subr.mxu0 0.0
    %556 = vmatpush2.msra.mxu0 0.0
    %557 = vmatprep.subr.mxu0 0.0
    %558 = vmatpush2.msra.mxu0 0.0
    %559 = vmatprep.mubr.f32.mxu0 0.0
    %560 = vmatmul.mubr.f32.gmra.mxu0 %v480
    %v561 = vpop.f32.mrf.mxu0
    %v562 = vadd.f32 %v476, %v561
    %v563 = vpop.f32.mrf.mxu0
    %564 = vmatprep.mubr.f32.mxu0 0.0
    %565 = vmatmul.mubr.f32.gmra.mxu0 %v483
    %v566 = vpop.f32.mrf.mxu0
    %v567 = vadd.f32 %v476, %v566
    %v568 = vpop.f32.mrf.mxu0
    %569 = vmatprep.mubr.f32.mxu0 0.0
    %570 = vmatmul.mubr.f32.gmra.mxu0 %v486
    %v571 = vpop.f32.mrf.mxu0
    %v572 = vadd.f32 %v476, %v571
    %v573 = vpop.f32.mrf.mxu0
    %574 = vmatprep.mubr.f32.mxu0 0.0
    %575 = vmatmul.mubr.f32.gmra.mxu0 %v489
    %v576 = vpop.f32.mrf.mxu0
    %v577 = vadd.f32 %v476, %v576
    %v578 = vpop.f32.mrf.mxu0
    %579 = vdwg.mxu0
    %v580 = vmax.f32 %v562, 0.0
    %v581 = vmax.f32 %v567, 0.0
    %v582 = vmax.f32 %v572, 0.0
    %v583 = vmax.f32 %v577, 0.0
    %v584 = vld [vmem:[#allocation12] sm:$0xff]
    %v585 = vld [vmem:[#allocation12 + $0x8] sm:$0xff]
    %v586 = vld [vmem:[#allocation12 + $0x10] sm:$0xff]
    %v587 = vld [vmem:[#allocation12 + $0x18] sm:$0xff]
    %v588 = vld [vmem:[#allocation12 + $0x100] sm:$0xff]
    %v589 = vld [vmem:[#allocation12 + $0x108] sm:$0xff]
    %v590 = vld [vmem:[#allocation12 + $0x110] sm:$0xff]
    %v591 = vld [vmem:[#allocation12 + $0x118] sm:$0xff]
    %v592 = vld [vmem:[#allocation12 + $0x200] sm:$0xff]
    %v593 = vld [vmem:[#allocation12 + $0x208] sm:$0xff]
    %v594 = vld [vmem:[#allocation12 + $0x210] sm:$0xff]
    %v595 = vld [vmem:[#allocation12 + $0x218] sm:$0xff]
    %v596 = vld [vmem:[#allocation12 + $0x300] sm:$0xff]
    %v597 = vld [vmem:[#allocation12 + $0x308] sm:$0xff]
    %v598 = vld [vmem:[#allocation12 + $0x310] sm:$0xff]
    %v599 = vld [vmem:[#allocation12 + $0x318] sm:$0xff]
    %v600 = vld [vmem:[#allocation12 + $0x400] sm:$0xff]
    %v601 = vld [vmem:[#allocation12 + $0x408] sm:$0xff]
    %v602 = vld [vmem:[#allocation12 + $0x410] sm:$0xff]
    %v603 = vld [vmem:[#allocation12 + $0x418] sm:$0xff]
    %v604 = vld [vmem:[#allocation12 + $0x500] sm:$0xff]
    %v605 = vld [vmem:[#allocation12 + $0x508] sm:$0xff]
    %v606 = vld [vmem:[#allocation12 + $0x510] sm:$0xff]
    %v607 = vld [vmem:[#allocation12 + $0x518] sm:$0xff]
    %v608 = vld [vmem:[#allocation12 + $0x600] sm:$0xff]
    %v609 = vld [vmem:[#allocation12 + $0x608] sm:$0xff]
    %v610 = vld [vmem:[#allocation12 + $0x610] sm:$0xff]
    %v611 = vld [vmem:[#allocation12 + $0x618] sm:$0xff]
    %v612 = vld [vmem:[#allocation12 + $0x700] sm:$0xff]
    %v613 = vld [vmem:[#allocation12 + $0x708] sm:$0xff]
    %v614 = vld [vmem:[#allocation12 + $0x710] sm:$0xff]
    %v615 = vld [vmem:[#allocation12 + $0x718] sm:$0xff]
    %v616 = vld [vmem:[#allocation12 + $0x800] sm:$0xff]
    %v617 = vld [vmem:[#allocation12 + $0x808] sm:$0xff]
    %v618 = vld [vmem:[#allocation12 + $0x810] sm:$0xff]
    %v619 = vld [vmem:[#allocation12 + $0x818] sm:$0xff]
    %v620 = vld [vmem:[#allocation12 + $0x900] sm:$0xff]
    %v621 = vld [vmem:[#allocation12 + $0x908] sm:$0xff]
    %v622 = vld [vmem:[#allocation12 + $0x910] sm:$0xff]
    %v623 = vld [vmem:[#allocation12 + $0x918] sm:$0xff]
    %v624 = vld [vmem:[#allocation12 + $0xa00] sm:$0xff]
    %v625 = vld [vmem:[#allocation12 + $0xa08] sm:$0xff]
    %v626 = vld [vmem:[#allocation12 + $0xa10] sm:$0xff]
    %v627 = vld [vmem:[#allocation12 + $0xa18] sm:$0xff]
    %v628 = vld [vmem:[#allocation12 + $0xb00] sm:$0xff]
    %v629 = vld [vmem:[#allocation12 + $0xb08] sm:$0xff]
    %v630 = vld [vmem:[#allocation12 + $0xb10] sm:$0xff]
    %v631 = vld [vmem:[#allocation12 + $0xb18] sm:$0xff]
    %v632 = vld [vmem:[#allocation12 + $0xc00] sm:$0xff]
    %v633 = vld [vmem:[#allocation12 + $0xc08] sm:$0xff]
    %v634 = vld [vmem:[#allocation12 + $0xc10] sm:$0xff]
    %v635 = vld [vmem:[#allocation12 + $0xc18] sm:$0xff]
    %v636 = vld [vmem:[#allocation12 + $0xd00] sm:$0xff]
    %v637 = vld [vmem:[#allocation12 + $0xd08] sm:$0xff]
    %v638 = vld [vmem:[#allocation12 + $0xd10] sm:$0xff]
    %v639 = vld [vmem:[#allocation12 + $0xd18] sm:$0xff]
    %v640 = vld [vmem:[#allocation12 + $0xe00] sm:$0xff]
    %v641 = vld [vmem:[#allocation12 + $0xe08] sm:$0xff]
    %v642 = vld [vmem:[#allocation12 + $0xe10] sm:$0xff]
    %v643 = vld [vmem:[#allocation12 + $0xe18] sm:$0xff]
    %v644 = vld [vmem:[#allocation12 + $0xf00] sm:$0xff]
    %v645 = vld [vmem:[#allocation12 + $0xf08] sm:$0xff]
    %v646 = vld [vmem:[#allocation12 + $0xf10] sm:$0xff]
    %v647 = vld [vmem:[#allocation12 + $0xf18] sm:$0xff]
    %v648 = vld [vmem:[#allocation14] sm:$0xf]
    %v650 = vlaneseq
    %v651 = vshrl.u32 %v650, 7
    %v652 = vsub.s32 0, %v651
    %v653 = vrot.slane %v648, %v652
    %v654 = vlaneseq
    %v655 = vshrl.u32 %v654, 7
    %v656 = vsub.s32 1, %v655
    %v657 = vrot.slane %v648, %v656
    %v658 = vlaneseq
    %v659 = vshrl.u32 %v658, 7
    %v660 = vsub.s32 2, %v659
    %v661 = vrot.slane %v648, %v660
    %v662 = vlaneseq
    %v663 = vshrl.u32 %v662, 7
    %v664 = vsub.s32 3, %v663
    %v665 = vrot.slane %v648, %v664
    %670 = vmatprep.subr.mxu0 %v645
    %671 = vmatpush1.msra.mxu0 %v644
    %672 = vmatprep.subr.mxu0 %v641
    %673 = vmatpush1.msra.mxu0 %v640
    %674 = vmatprep.subr.mxu0 %v637
    %675 = vmatpush1.msra.mxu0 %v636
    %676 = vmatprep.subr.mxu0 %v633
    %677 = vmatpush1.msra.mxu0 %v632
    %678 = vmatprep.subr.mxu0 %v629
    %679 = vmatpush1.msra.mxu0 %v628
    %680 = vmatprep.subr.mxu0 %v625
    %681 = vmatpush1.msra.mxu0 %v624
    %682 = vmatprep.subr.mxu0 %v621
    %683 = vmatpush1.msra.mxu0 %v620
    %684 = vmatprep.subr.mxu0 %v617
    %685 = vmatpush1.msra.mxu0 %v616
    %686 = vmatprep.subr.mxu0 %v613
    %687 = vmatpush1.msra.mxu0 %v612
    %688 = vmatprep.subr.mxu0 %v609
    %689 = vmatpush1.msra.mxu0 %v608
    %690 = vmatprep.subr.mxu0 %v605
    %691 = vmatpush1.msra.mxu0 %v604
    %692 = vmatprep.subr.mxu0 %v601
    %693 = vmatpush1.msra.mxu0 %v600
    %694 = vmatprep.subr.mxu0 %v597
    %695 = vmatpush1.msra.mxu0 %v596
    %696 = vmatprep.subr.mxu0 %v593
    %697 = vmatpush1.msra.mxu0 %v592
    %698 = vmatprep.subr.mxu0 %v589
    %699 = vmatpush1.msra.mxu0 %v588
    %700 = vmatprep.subr.mxu0 %v585
    %701 = vmatpush1.msra.mxu0 %v584
    %702 = vmatprep.subr.mxu0 0.0
    %703 = vmatpush2.msra.mxu0 0.0
    %704 = vmatprep.subr.mxu0 0.0
    %705 = vmatpush2.msra.mxu0 0.0
    %706 = vmatprep.subr.mxu0 0.0
    %707 = vmatpush2.msra.mxu0 0.0
    %708 = vmatprep.subr.mxu0 0.0
    %709 = vmatpush2.msra.mxu0 0.0
    %710 = vmatprep.subr.mxu0 0.0
    %711 = vmatpush2.msra.mxu0 0.0
    %712 = vmatprep.subr.mxu0 0.0
    %713 = vmatpush2.msra.mxu0 0.0
    %714 = vmatprep.subr.mxu0 0.0
    %715 = vmatpush2.msra.mxu0 0.0
    %716 = vmatprep.subr.mxu0 0.0
    %717 = vmatpush2.msra.mxu0 0.0
    %718 = vmatprep.subr.mxu0 0.0
    %719 = vmatpush2.msra.mxu0 0.0
    %720 = vmatprep.subr.mxu0 0.0
    %721 = vmatpush2.msra.mxu0 0.0
    %722 = vmatprep.subr.mxu0 0.0
    %723 = vmatpush2.msra.mxu0 0.0
    %724 = vmatprep.subr.mxu0 0.0
    %725 = vmatpush2.msra.mxu0 0.0
    %726 = vmatprep.subr.mxu0 0.0
    %727 = vmatpush2.msra.mxu0 0.0
    %728 = vmatprep.subr.mxu0 0.0
    %729 = vmatpush2.msra.mxu0 0.0
    %730 = vmatprep.subr.mxu0 0.0
    %731 = vmatpush2.msra.mxu0 0.0
    %732 = vmatprep.subr.mxu0 0.0
    %733 = vmatpush2.msra.mxu0 0.0
    %734 = vmatprep.mubr.f32.mxu0 0.0
    %735 = vmatmul.mubr.f32.gmra.mxu0 %v580
    %v736 = vpop.f32.mrf.mxu0
    %v737 = vadd.f32 %v653, %v736
    %v738 = vpop.f32.mrf.mxu0
    %v739 = vadd.f32 %v657, %v738
    %740 = vmatprep.mubr.f32.mxu0 0.0
    %741 = vmatmul.mubr.f32.gmra.mxu0 %v581
    %v742 = vpop.f32.mrf.mxu0
    %v743 = vadd.f32 %v653, %v742
    %v744 = vpop.f32.mrf.mxu0
    %v745 = vadd.f32 %v657, %v744
    %746 = vmatprep.mubr.f32.mxu0 0.0
    %747 = vmatmul.mubr.f32.gmra.mxu0 %v582
    %v748 = vpop.f32.mrf.mxu0
    %v749 = vadd.f32 %v653, %v748
    %v750 = vpop.f32.mrf.mxu0
    %v751 = vadd.f32 %v657, %v750
    %752 = vmatprep.mubr.f32.mxu0 0.0
    %753 = vmatmul.mubr.f32.gmra.mxu0 %v583
    %v754 = vpop.f32.mrf.mxu0
    %v755 = vadd.f32 %v653, %v754
    %v756 = vpop.f32.mrf.mxu0
    %v757 = vadd.f32 %v657, %v756
    %758 = vdwg.mxu0
    %759 = vmatprep.subr.mxu0 %v647
    %760 = vmatpush1.msra.mxu0 %v646
    %761 = vmatprep.subr.mxu0 %v643
    %762 = vmatpush1.msra.mxu0 %v642
    %763 = vmatprep.subr.mxu0 %v639
    %764 = vmatpush1.msra.mxu0 %v638
    %765 = vmatprep.subr.mxu0 %v635
    %766 = vmatpush1.msra.mxu0 %v634
    %767 = vmatprep.subr.mxu0 %v631
    %768 = vmatpush1.msra.mxu0 %v630
    %769 = vmatprep.subr.mxu0 %v627
    %770 = vmatpush1.msra.mxu0 %v626
    %771 = vmatprep.subr.mxu0 %v623
    %772 = vmatpush1.msra.mxu0 %v622
    %773 = vmatprep.subr.mxu0 %v619
    %774 = vmatpush1.msra.mxu0 %v618
    %775 = vmatprep.subr.mxu0 %v615
    %776 = vmatpush1.msra.mxu0 %v614
    %777 = vmatprep.subr.mxu0 %v611
    %778 = vmatpush1.msra.mxu0 %v610
    %779 = vmatprep.subr.mxu0 %v607
    %780 = vmatpush1.msra.mxu0 %v606
    %781 = vmatprep.subr.mxu0 %v603
    %782 = vmatpush1.msra.mxu0 %v602
    %783 = vmatprep.subr.mxu0 %v599
    %784 = vmatpush1.msra.mxu0 %v598
    %785 = vmatprep.subr.mxu0 %v595
    %786 = vmatpush1.msra.mxu0 %v594
    %787 = vmatprep.subr.mxu0 %v591
    %788 = vmatpush1.msra.mxu0 %v590
    %789 = vmatprep.subr.mxu0 %v587
    %790 = vmatpush1.msra.mxu0 %v586
    %791 = vmatprep.subr.mxu0 0.0
    %792 = vmatpush2.msra.mxu0 0.0
    %793 = vmatprep.subr.mxu0 0.0
    %794 = vmatpush2.msra.mxu0 0.0
    %795 = vmatprep.subr.mxu0 0.0
    %796 = vmatpush2.msra.mxu0 0.0
    %797 = vmatprep.subr.mxu0 0.0
    %798 = vmatpush2.msra.mxu0 0.0
    %799 = vmatprep.subr.mxu0 0.0
    %800 = vmatpush2.msra.mxu0 0.0
    %801 = vmatprep.subr.mxu0 0.0
    %802 = vmatpush2.msra.mxu0 0.0
    %803 = vmatprep.subr.mxu0 0.0
    %804 = vmatpush2.msra.mxu0 0.0
    %805 = vmatprep.subr.mxu0 0.0
    %806 = vmatpush2.msra.mxu0 0.0
    %807 = vmatprep.subr.mxu0 0.0
    %808 = vmatpush2.msra.mxu0 0.0
    %809 = vmatprep.subr.mxu0 0.0
    %810 = vmatpush2.msra.mxu0 0.0
    %811 = vmatprep.subr.mxu0 0.0
    %812 = vmatpush2.msra.mxu0 0.0
    %813 = vmatprep.subr.mxu0 0.0
    %814 = vmatpush2.msra.mxu0 0.0
    %815 = vmatprep.subr.mxu0 0.0
    %816 = vmatpush2.msra.mxu0 0.0
    %817 = vmatprep.subr.mxu0 0.0
    %818 = vmatpush2.msra.mxu0 0.0
    %819 = vmatprep.subr.mxu0 0.0
    %820 = vmatpush2.msra.mxu0 0.0
    %821 = vmatprep.subr.mxu0 0.0
    %822 = vmatpush2.msra.mxu0 0.0
    %823 = vmatprep.mubr.f32.mxu0 0.0
    %824 = vmatmul.mubr.f32.gmra.mxu0 %v580
    %v825 = vpop.f32.mrf.mxu0
    %v826 = vadd.f32 %v661, %v825
    %v827 = vpop.f32.mrf.mxu0
    %v828 = vadd.f32 %v665, %v827
    %829 = vmatprep.mubr.f32.mxu0 0.0
    %830 = vmatmul.mubr.f32.gmra.mxu0 %v581
    %v831 = vpop.f32.mrf.mxu0
    %v832 = vadd.f32 %v661, %v831
    %v833 = vpop.f32.mrf.mxu0
    %v834 = vadd.f32 %v665, %v833
    %835 = vmatprep.mubr.f32.mxu0 0.0
    %836 = vmatmul.mubr.f32.gmra.mxu0 %v582
    %v837 = vpop.f32.mrf.mxu0
    %v838 = vadd.f32 %v661, %v837
    %v839 = vpop.f32.mrf.mxu0
    %v840 = vadd.f32 %v665, %v839
    %841 = vmatprep.mubr.f32.mxu0 0.0
    %842 = vmatmul.mubr.f32.gmra.mxu0 %v583
    %v843 = vpop.f32.mrf.mxu0
    %v844 = vadd.f32 %v661, %v843
    %v845 = vpop.f32.mrf.mxu0
    %v846 = vadd.f32 %v665, %v845
    %847 = vdwg.mxu0
    %848 = vst [vmem:[#allocation2] sm:$0xff] %v737
    %849 = vst [vmem:[#allocation2 + $0x8] sm:$0xff] %v739
    %850 = vst [vmem:[#allocation2 + $0x10] sm:$0xff] %v826
    %851 = vst [vmem:[#allocation2 + $0x18] sm:$0xff] %v828
    %852 = vst [vmem:[#allocation2 + $0x100] sm:$0xff] %v743
    %853 = vst [vmem:[#allocation2 + $0x108] sm:$0xff] %v745
    %854 = vst [vmem:[#allocation2 + $0x110] sm:$0xff] %v832
    %855 = vst [vmem:[#allocation2 + $0x118] sm:$0xff] %v834
    %856 = vst [vmem:[#allocation2 + $0x200] sm:$0xff] %v749
    %857 = vst [vmem:[#allocation2 + $0x208] sm:$0xff] %v751
    %858 = vst [vmem:[#allocation2 + $0x210] sm:$0xff] %v838
    %859 = vst [vmem:[#allocation2 + $0x218] sm:$0xff] %v840
    %860 = vst [vmem:[#allocation2 + $0x300] sm:$0xff] %v755
    %861 = vst [vmem:[#allocation2 + $0x308] sm:$0xff] %v757
    %862 = vst [vmem:[#allocation2 + $0x310] sm:$0xff] %v844
    %863 = vst [vmem:[#allocation2 + $0x318] sm:$0xff] %v846
    %v864 = vld [vmem:[#allocation12 + $0x20] sm:$0xff]
    %v865 = vld [vmem:[#allocation12 + $0x28] sm:$0xff]
    %v866 = vld [vmem:[#allocation12 + $0x30] sm:$0xff]
    %v867 = vld [vmem:[#allocation12 + $0x38] sm:$0xff]
    %v868 = vld [vmem:[#allocation12 + $0x120] sm:$0xff]
    %v869 = vld [vmem:[#allocation12 + $0x128] sm:$0xff]
    %v870 = vld [vmem:[#allocation12 + $0x130] sm:$0xff]
    %v871 = vld [vmem:[#allocation12 + $0x138] sm:$0xff]
    %v872 = vld [vmem:[#allocation12 + $0x220] sm:$0xff]
    %v873 = vld [vmem:[#allocation12 + $0x228] sm:$0xff]
    %v874 = vld [vmem:[#allocation12 + $0x230] sm:$0xff]
    %v875 = vld [vmem:[#allocation12 + $0x238] sm:$0xff]
    %v876 = vld [vmem:[#allocation12 + $0x320] sm:$0xff]
    %v877 = vld [vmem:[#allocation12 + $0x328] sm:$0xff]
    %v878 = vld [vmem:[#allocation12 + $0x330] sm:$0xff]
    %v879 = vld [vmem:[#allocation12 + $0x338] sm:$0xff]
    %v880 = vld [vmem:[#allocation12 + $0x420] sm:$0xff]
    %v881 = vld [vmem:[#allocation12 + $0x428] sm:$0xff]
    %v882 = vld [vmem:[#allocation12 + $0x430] sm:$0xff]
    %v883 = vld [vmem:[#allocation12 + $0x438] sm:$0xff]
    %v884 = vld [vmem:[#allocation12 + $0x520] sm:$0xff]
    %v885 = vld [vmem:[#allocation12 + $0x528] sm:$0xff]
    %v886 = vld [vmem:[#allocation12 + $0x530] sm:$0xff]
    %v887 = vld [vmem:[#allocation12 + $0x538] sm:$0xff]
    %v888 = vld [vmem:[#allocation12 + $0x620] sm:$0xff]
    %v889 = vld [vmem:[#allocation12 + $0x628] sm:$0xff]
    %v890 = vld [vmem:[#allocation12 + $0x630] sm:$0xff]
    %v891 = vld [vmem:[#allocation12 + $0x638] sm:$0xff]
    %v892 = vld [vmem:[#allocation12 + $0x720] sm:$0xff]
    %v893 = vld [vmem:[#allocation12 + $0x728] sm:$0xff]
    %v894 = vld [vmem:[#allocation12 + $0x730] sm:$0xff]
    %v895 = vld [vmem:[#allocation12 + $0x738] sm:$0xff]
    %v896 = vld [vmem:[#allocation12 + $0x820] sm:$0xff]
    %v897 = vld [vmem:[#allocation12 + $0x828] sm:$0xff]
    %v898 = vld [vmem:[#allocation12 + $0x830] sm:$0xff]
    %v899 = vld [vmem:[#allocation12 + $0x838] sm:$0xff]
    %v900 = vld [vmem:[#allocation12 + $0x920] sm:$0xff]
    %v901 = vld [vmem:[#allocation12 + $0x928] sm:$0xff]
    %v902 = vld [vmem:[#allocation12 + $0x930] sm:$0xff]
    %v903 = vld [vmem:[#allocation12 + $0x938] sm:$0xff]
    %v904 = vld [vmem:[#allocation12 + $0xa20] sm:$0xff]
    %v905 = vld [vmem:[#allocation12 + $0xa28] sm:$0xff]
    %v906 = vld [vmem:[#allocation12 + $0xa30] sm:$0xff]
    %v907 = vld [vmem:[#allocation12 + $0xa38] sm:$0xff]
    %v908 = vld [vmem:[#allocation12 + $0xb20] sm:$0xff]
    %v909 = vld [vmem:[#allocation12 + $0xb28] sm:$0xff]
    %v910 = vld [vmem:[#allocation12 + $0xb30] sm:$0xff]
    %v911 = vld [vmem:[#allocation12 + $0xb38] sm:$0xff]
    %v912 = vld [vmem:[#allocation12 + $0xc20] sm:$0xff]
    %v913 = vld [vmem:[#allocation12 + $0xc28] sm:$0xff]
    %v914 = vld [vmem:[#allocation12 + $0xc30] sm:$0xff]
    %v915 = vld [vmem:[#allocation12 + $0xc38] sm:$0xff]
    %v916 = vld [vmem:[#allocation12 + $0xd20] sm:$0xff]
    %v917 = vld [vmem:[#allocation12 + $0xd28] sm:$0xff]
    %v918 = vld [vmem:[#allocation12 + $0xd30] sm:$0xff]
    %v919 = vld [vmem:[#allocation12 + $0xd38] sm:$0xff]
    %v920 = vld [vmem:[#allocation12 + $0xe20] sm:$0xff]
    %v921 = vld [vmem:[#allocation12 + $0xe28] sm:$0xff]
    %v922 = vld [vmem:[#allocation12 + $0xe30] sm:$0xff]
    %v923 = vld [vmem:[#allocation12 + $0xe38] sm:$0xff]
    %v924 = vld [vmem:[#allocation12 + $0xf20] sm:$0xff]
    %v925 = vld [vmem:[#allocation12 + $0xf28] sm:$0xff]
    %v926 = vld [vmem:[#allocation12 + $0xf30] sm:$0xff]
    %v927 = vld [vmem:[#allocation12 + $0xf38] sm:$0xff]
    %v928 = vld [vmem:[#allocation14 + $0x4] sm:$0xf]
    %v930 = vlaneseq
    %v931 = vshrl.u32 %v930, 7
    %v932 = vsub.s32 0, %v931
    %v933 = vrot.slane %v928, %v932
    %v934 = vlaneseq
    %v935 = vshrl.u32 %v934, 7
    %v936 = vsub.s32 1, %v935
    %v937 = vrot.slane %v928, %v936
    %v938 = vlaneseq
    %v939 = vshrl.u32 %v938, 7
    %v940 = vsub.s32 2, %v939
    %v941 = vrot.slane %v928, %v940
    %v942 = vlaneseq
    %v943 = vshrl.u32 %v942, 7
    %v944 = vsub.s32 3, %v943
    %v945 = vrot.slane %v928, %v944
    %950 = vmatprep.subr.mxu0 %v925
    %951 = vmatpush1.msra.mxu0 %v924
    %952 = vmatprep.subr.mxu0 %v921
    %953 = vmatpush1.msra.mxu0 %v920
    %954 = vmatprep.subr.mxu0 %v917
    %955 = vmatpush1.msra.mxu0 %v916
    %956 = vmatprep.subr.mxu0 %v913
    %957 = vmatpush1.msra.mxu0 %v912
    %958 = vmatprep.subr.mxu0 %v909
    %959 = vmatpush1.msra.mxu0 %v908
    %960 = vmatprep.subr.mxu0 %v905
    %961 = vmatpush1.msra.mxu0 %v904
    %962 = vmatprep.subr.mxu0 %v901
    %963 = vmatpush1.msra.mxu0 %v900
    %964 = vmatprep.subr.mxu0 %v897
    %965 = vmatpush1.msra.mxu0 %v896
    %966 = vmatprep.subr.mxu0 %v893
    %967 = vmatpush1.msra.mxu0 %v892
    %968 = vmatprep.subr.mxu0 %v889
    %969 = vmatpush1.msra.mxu0 %v888
    %970 = vmatprep.subr.mxu0 %v885
    %971 = vmatpush1.msra.mxu0 %v884
    %972 = vmatprep.subr.mxu0 %v881
    %973 = vmatpush1.msra.mxu0 %v880
    %974 = vmatprep.subr.mxu0 %v877
    %975 = vmatpush1.msra.mxu0 %v876
    %976 = vmatprep.subr.mxu0 %v873
    %977 = vmatpush1.msra.mxu0 %v872
    %978 = vmatprep.subr.mxu0 %v869
    %979 = vmatpush1.msra.mxu0 %v868
    %980 = vmatprep.subr.mxu0 %v865
    %981 = vmatpush1.msra.mxu0 %v864
    %982 = vmatprep.subr.mxu0 0.0
    %983 = vmatpush2.msra.mxu0 0.0
    %984 = vmatprep.subr.mxu0 0.0
    %985 = vmatpush2.msra.mxu0 0.0
    %986 = vmatprep.subr.mxu0 0.0
    %987 = vmatpush2.msra.mxu0 0.0
    %988 = vmatprep.subr.mxu0 0.0
    %989 = vmatpush2.msra.mxu0 0.0
    %990 = vmatprep.subr.mxu0 0.0
    %991 = vmatpush2.msra.mxu0 0.0
    %992 = vmatprep.subr.mxu0 0.0
    %993 = vmatpush2.msra.mxu0 0.0
    %994 = vmatprep.subr.mxu0 0.0
    %995 = vmatpush2.msra.mxu0 0.0
    %996 = vmatprep.subr.mxu0 0.0
    %997 = vmatpush2.msra.mxu0 0.0
    %998 = vmatprep.subr.mxu0 0.0
    %999 = vmatpush2.msra.mxu0 0.0
    %1000 = vmatprep.subr.mxu0 0.0
    %1001 = vmatpush2.msra.mxu0 0.0
    %1002 = vmatprep.subr.mxu0 0.0
    %1003 = vmatpush2.msra.mxu0 0.0
    %1004 = vmatprep.subr.mxu0 0.0
    %1005 = vmatpush2.msra.mxu0 0.0
    %1006 = vmatprep.subr.mxu0 0.0
    %1007 = vmatpush2.msra.mxu0 0.0
    %1008 = vmatprep.subr.mxu0 0.0
    %1009 = vmatpush2.msra.mxu0 0.0
    %1010 = vmatprep.subr.mxu0 0.0
    %1011 = vmatpush2.msra.mxu0 0.0
    %1012 = vmatprep.subr.mxu0 0.0
    %1013 = vmatpush2.msra.mxu0 0.0
    %1014 = vmatprep.mubr.f32.mxu0 0.0
    %1015 = vmatmul.mubr.f32.gmra.mxu0 %v580
    %v1016 = vpop.f32.mrf.mxu0
    %v1017 = vadd.f32 %v933, %v1016
    %v1018 = vpop.f32.mrf.mxu0
    %v1019 = vadd.f32 %v937, %v1018
    %1020 = vmatprep.mubr.f32.mxu0 0.0
    %1021 = vmatmul.mubr.f32.gmra.mxu0 %v581
    %v1022 = vpop.f32.mrf.mxu0
    %v1023 = vadd.f32 %v933, %v1022
    %v1024 = vpop.f32.mrf.mxu0
    %v1025 = vadd.f32 %v937, %v1024
    %1026 = vmatprep.mubr.f32.mxu0 0.0
    %1027 = vmatmul.mubr.f32.gmra.mxu0 %v582
    %v1028 = vpop.f32.mrf.mxu0
    %v1029 = vadd.f32 %v933, %v1028
    %v1030 = vpop.f32.mrf.mxu0
    %v1031 = vadd.f32 %v937, %v1030
    %1032 = vmatprep.mubr.f32.mxu0 0.0
    %1033 = vmatmul.mubr.f32.gmra.mxu0 %v583
    %v1034 = vpop.f32.mrf.mxu0
    %v1035 = vadd.f32 %v933, %v1034
    %v1036 = vpop.f32.mrf.mxu0
    %v1037 = vadd.f32 %v937, %v1036
    %1038 = vdwg.mxu0
    %1039 = vmatprep.subr.mxu0 %v927
    %1040 = vmatpush1.msra.mxu0 %v926
    %1041 = vmatprep.subr.mxu0 %v923
    %1042 = vmatpush1.msra.mxu0 %v922
    %1043 = vmatprep.subr.mxu0 %v919
    %1044 = vmatpush1.msra.mxu0 %v918
    %1045 = vmatprep.subr.mxu0 %v915
    %1046 = vmatpush1.msra.mxu0 %v914
    %1047 = vmatprep.subr.mxu0 %v911
    %1048 = vmatpush1.msra.mxu0 %v910
    %1049 = vmatprep.subr.mxu0 %v907
    %1050 = vmatpush1.msra.mxu0 %v906
    %1051 = vmatprep.subr.mxu0 %v903
    %1052 = vmatpush1.msra.mxu0 %v902
    %1053 = vmatprep.subr.mxu0 %v899
    %1054 = vmatpush1.msra.mxu0 %v898
    %1055 = vmatprep.subr.mxu0 %v895
    %1056 = vmatpush1.msra.mxu0 %v894
    %1057 = vmatprep.subr.mxu0 %v891
    %1058 = vmatpush1.msra.mxu0 %v890
    %1059 = vmatprep.subr.mxu0 %v887
    %1060 = vmatpush1.msra.mxu0 %v886
    %1061 = vmatprep.subr.mxu0 %v883
    %1062 = vmatpush1.msra.mxu0 %v882
    %1063 = vmatprep.subr.mxu0 %v879
    %1064 = vmatpush1.msra.mxu0 %v878
    %1065 = vmatprep.subr.mxu0 %v875
    %1066 = vmatpush1.msra.mxu0 %v874
    %1067 = vmatprep.subr.mxu0 %v871
    %1068 = vmatpush1.msra.mxu0 %v870
    %1069 = vmatprep.subr.mxu0 %v867
    %1070 = vmatpush1.msra.mxu0 %v866
    %1071 = vmatprep.subr.mxu0 0.0
    %1072 = vmatpush2.msra.mxu0 0.0
    %1073 = vmatprep.subr.mxu0 0.0
    %1074 = vmatpush2.msra.mxu0 0.0
    %1075 = vmatprep.subr.mxu0 0.0
    %1076 = vmatpush2.msra.mxu0 0.0
    %1077 = vmatprep.subr.mxu0 0.0
    %1078 = vmatpush2.msra.mxu0 0.0
    %1079 = vmatprep.subr.mxu0 0.0
    %1080 = vmatpush2.msra.mxu0 0.0
    %1081 = vmatprep.subr.mxu0 0.0
    %1082 = vmatpush2.msra.mxu0 0.0
    %1083 = vmatprep.subr.mxu0 0.0
    %1084 = vmatpush2.msra.mxu0 0.0
    %1085 = vmatprep.subr.mxu0 0.0
    %1086 = vmatpush2.msra.mxu0 0.0
    %1087 = vmatprep.subr.mxu0 0.0
    %1088 = vmatpush2.msra.mxu0 0.0
    %1089 = vmatprep.subr.mxu0 0.0
    %1090 = vmatpush2.msra.mxu0 0.0
    %1091 = vmatprep.subr.mxu0 0.0
    %1092 = vmatpush2.msra.mxu0 0.0
    %1093 = vmatprep.subr.mxu0 0.0
    %1094 = vmatpush2.msra.mxu0 0.0
    %1095 = vmatprep.subr.mxu0 0.0
    %1096 = vmatpush2.msra.mxu0 0.0
    %1097 = vmatprep.subr.mxu0 0.0
    %1098 = vmatpush2.msra.mxu0 0.0
    %1099 = vmatprep.subr.mxu0 0.0
    %1100 = vmatpush2.msra.mxu0 0.0
    %1101 = vmatprep.subr.mxu0 0.0
    %1102 = vmatpush2.msra.mxu0 0.0
    %1103 = vmatprep.mubr.f32.mxu0 0.0
    %1104 = vmatmul.mubr.f32.gmra.mxu0 %v580
    %v1105 = vpop.f32.mrf.mxu0
    %v1106 = vadd.f32 %v941, %v1105
    %v1107 = vpop.f32.mrf.mxu0
    %v1108 = vadd.f32 %v945, %v1107
    %1109 = vmatprep.mubr.f32.mxu0 0.0
    %1110 = vmatmul.mubr.f32.gmra.mxu0 %v581
    %v1111 = vpop.f32.mrf.mxu0
    %v1112 = vadd.f32 %v941, %v1111
    %v1113 = vpop.f32.mrf.mxu0
    %v1114 = vadd.f32 %v945, %v1113
    %1115 = vmatprep.mubr.f32.mxu0 0.0
    %1116 = vmatmul.mubr.f32.gmra.mxu0 %v582
    %v1117 = vpop.f32.mrf.mxu0
    %v1118 = vadd.f32 %v941, %v1117
    %v1119 = vpop.f32.mrf.mxu0
    %v1120 = vadd.f32 %v945, %v1119
    %1121 = vmatprep.mubr.f32.mxu0 0.0
    %1122 = vmatmul.mubr.f32.gmra.mxu0 %v583
    %v1123 = vpop.f32.mrf.mxu0
    %v1124 = vadd.f32 %v941, %v1123
    %v1125 = vpop.f32.mrf.mxu0
    %v1126 = vadd.f32 %v945, %v1125
    %1127 = vdwg.mxu0
    %1128 = vst [vmem:[#allocation2 + $0x20] sm:$0xff] %v1017
    %1129 = vst [vmem:[#allocation2 + $0x28] sm:$0xff] %v1019
    %1130 = vst [vmem:[#allocation2 + $0x30] sm:$0xff] %v1106
    %1131 = vst [vmem:[#allocation2 + $0x38] sm:$0xff] %v1108
    %1132 = vst [vmem:[#allocation2 + $0x120] sm:$0xff] %v1023
    %1133 = vst [vmem:[#allocation2 + $0x128] sm:$0xff] %v1025
    %1134 = vst [vmem:[#allocation2 + $0x130] sm:$0xff] %v1112
    %1135 = vst [vmem:[#allocation2 + $0x138] sm:$0xff] %v1114
    %1136 = vst [vmem:[#allocation2 + $0x220] sm:$0xff] %v1029
    %1137 = vst [vmem:[#allocation2 + $0x228] sm:$0xff] %v1031
    %1138 = vst [vmem:[#allocation2 + $0x230] sm:$0xff] %v1118
    %1139 = vst [vmem:[#allocation2 + $0x238] sm:$0xff] %v1120
    %1140 = vst [vmem:[#allocation2 + $0x320] sm:$0xff] %v1035
    %1141 = vst [vmem:[#allocation2 + $0x328] sm:$0xff] %v1037
    %1142 = vst [vmem:[#allocation2 + $0x330] sm:$0xff] %v1124
    %1143 = vst [vmem:[#allocation2 + $0x338] sm:$0xff] %v1126
    %v1144 = vld [vmem:[#allocation12 + $0x40] sm:$0xff]
    %v1145 = vld [vmem:[#allocation12 + $0x48] sm:$0xff]
    %v1146 = vld [vmem:[#allocation12 + $0x50] sm:$0xff]
    %v1147 = vld [vmem:[#allocation12 + $0x58] sm:$0xff]
    %v1148 = vld [vmem:[#allocation12 + $0x140] sm:$0xff]
    %v1149 = vld [vmem:[#allocation12 + $0x148] sm:$0xff]
    %v1150 = vld [vmem:[#allocation12 + $0x150] sm:$0xff]
    %v1151 = vld [vmem:[#allocation12 + $0x158] sm:$0xff]
    %v1152 = vld [vmem:[#allocation12 + $0x240] sm:$0xff]
    %v1153 = vld [vmem:[#allocation12 + $0x248] sm:$0xff]
    %v1154 = vld [vmem:[#allocation12 + $0x250] sm:$0xff]
    %v1155 = vld [vmem:[#allocation12 + $0x258] sm:$0xff]
    %v1156 = vld [vmem:[#allocation12 + $0x340] sm:$0xff]
    %v1157 = vld [vmem:[#allocation12 + $0x348] sm:$0xff]
    %v1158 = vld [vmem:[#allocation12 + $0x350] sm:$0xff]
    %v1159 = vld [vmem:[#allocation12 + $0x358] sm:$0xff]
    %v1160 = vld [vmem:[#allocation12 + $0x440] sm:$0xff]
    %v1161 = vld [vmem:[#allocation12 + $0x448] sm:$0xff]
    %v1162 = vld [vmem:[#allocation12 + $0x450] sm:$0xff]
    %v1163 = vld [vmem:[#allocation12 + $0x458] sm:$0xff]
    %v1164 = vld [vmem:[#allocation12 + $0x540] sm:$0xff]
    %v1165 = vld [vmem:[#allocation12 + $0x548] sm:$0xff]
    %v1166 = vld [vmem:[#allocation12 + $0x550] sm:$0xff]
    %v1167 = vld [vmem:[#allocation12 + $0x558] sm:$0xff]
    %v1168 = vld [vmem:[#allocation12 + $0x640] sm:$0xff]
    %v1169 = vld [vmem:[#allocation12 + $0x648] sm:$0xff]
    %v1170 = vld [vmem:[#allocation12 + $0x650] sm:$0xff]
    %v1171 = vld [vmem:[#allocation12 + $0x658] sm:$0xff]
    %v1172 = vld [vmem:[#allocation12 + $0x740] sm:$0xff]
    %v1173 = vld [vmem:[#allocation12 + $0x748] sm:$0xff]
    %v1174 = vld [vmem:[#allocation12 + $0x750] sm:$0xff]
    %v1175 = vld [vmem:[#allocation12 + $0x758] sm:$0xff]
    %v1176 = vld [vmem:[#allocation12 + $0x840] sm:$0xff]
    %v1177 = vld [vmem:[#allocation12 + $0x848] sm:$0xff]
    %v1178 = vld [vmem:[#allocation12 + $0x850] sm:$0xff]
    %v1179 = vld [vmem:[#allocation12 + $0x858] sm:$0xff]
    %v1180 = vld [vmem:[#allocation12 + $0x940] sm:$0xff]
    %v1181 = vld [vmem:[#allocation12 + $0x948] sm:$0xff]
    %v1182 = vld [vmem:[#allocation12 + $0x950] sm:$0xff]
    %v1183 = vld [vmem:[#allocation12 + $0x958] sm:$0xff]
    %v1184 = vld [vmem:[#allocation12 + $0xa40] sm:$0xff]
    %v1185 = vld [vmem:[#allocation12 + $0xa48] sm:$0xff]
    %v1186 = vld [vmem:[#allocation12 + $0xa50] sm:$0xff]
    %v1187 = vld [vmem:[#allocation12 + $0xa58] sm:$0xff]
    %v1188 = vld [vmem:[#allocation12 + $0xb40] sm:$0xff]
    %v1189 = vld [vmem:[#allocation12 + $0xb48] sm:$0xff]
    %v1190 = vld [vmem:[#allocation12 + $0xb50] sm:$0xff]
    %v1191 = vld [vmem:[#allocation12 + $0xb58] sm:$0xff]
    %v1192 = vld [vmem:[#allocation12 + $0xc40] sm:$0xff]
    %v1193 = vld [vmem:[#allocation12 + $0xc48] sm:$0xff]
    %v1194 = vld [vmem:[#allocation12 + $0xc50] sm:$0xff]
    %v1195 = vld [vmem:[#allocation12 + $0xc58] sm:$0xff]
    %v1196 = vld [vmem:[#allocation12 + $0xd40] sm:$0xff]
    %v1197 = vld [vmem:[#allocation12 + $0xd48] sm:$0xff]
    %v1198 = vld [vmem:[#allocation12 + $0xd50] sm:$0xff]
    %v1199 = vld [vmem:[#allocation12 + $0xd58] sm:$0xff]
    %v1200 = vld [vmem:[#allocation12 + $0xe40] sm:$0xff]
    %v1201 = vld [vmem:[#allocation12 + $0xe48] sm:$0xff]
    %v1202 = vld [vmem:[#allocation12 + $0xe50] sm:$0xff]
    %v1203 = vld [vmem:[#allocation12 + $0xe58] sm:$0xff]
    %v1204 = vld [vmem:[#allocation12 + $0xf40] sm:$0xff]
    %v1205 = vld [vmem:[#allocation12 + $0xf48] sm:$0xff]
    %v1206 = vld [vmem:[#allocation12 + $0xf50] sm:$0xff]
    %v1207 = vld [vmem:[#allocation12 + $0xf58] sm:$0xff]
    %v1208 = vld [vmem:[#allocation14 + $0x8] sm:$0xf]
    %v1210 = vlaneseq
    %v1211 = vshrl.u32 %v1210, 7
    %v1212 = vsub.s32 0, %v1211
    %v1213 = vrot.slane %v1208, %v1212
    %v1214 = vlaneseq
    %v1215 = vshrl.u32 %v1214, 7
    %v1216 = vsub.s32 1, %v1215
    %v1217 = vrot.slane %v1208, %v1216
    %v1218 = vlaneseq
    %v1219 = vshrl.u32 %v1218, 7
    %v1220 = vsub.s32 2, %v1219
    %v1221 = vrot.slane %v1208, %v1220
    %v1222 = vlaneseq
    %v1223 = vshrl.u32 %v1222, 7
    %v1224 = vsub.s32 3, %v1223
    %v1225 = vrot.slane %v1208, %v1224
    %1230 = vmatprep.subr.mxu0 %v1205
    %1231 = vmatpush1.msra.mxu0 %v1204
    %1232 = vmatprep.subr.mxu0 %v1201
    %1233 = vmatpush1.msra.mxu0 %v1200
    %1234 = vmatprep.subr.mxu0 %v1197
    %1235 = vmatpush1.msra.mxu0 %v1196
    %1236 = vmatprep.subr.mxu0 %v1193
    %1237 = vmatpush1.msra.mxu0 %v1192
    %1238 = vmatprep.subr.mxu0 %v1189
    %1239 = vmatpush1.msra.mxu0 %v1188
    %1240 = vmatprep.subr.mxu0 %v1185
    %1241 = vmatpush1.msra.mxu0 %v1184
    %1242 = vmatprep.subr.mxu0 %v1181
    %1243 = vmatpush1.msra.mxu0 %v1180
    %1244 = vmatprep.subr.mxu0 %v1177
    %1245 = vmatpush1.msra.mxu0 %v1176
    %1246 = vmatprep.subr.mxu0 %v1173
    %1247 = vmatpush1.msra.mxu0 %v1172
    %1248 = vmatprep.subr.mxu0 %v1169
    %1249 = vmatpush1.msra.mxu0 %v1168
    %1250 = vmatprep.subr.mxu0 %v1165
    %1251 = vmatpush1.msra.mxu0 %v1164
    %1252 = vmatprep.subr.mxu0 %v1161
    %1253 = vmatpush1.msra.mxu0 %v1160
    %1254 = vmatprep.subr.mxu0 %v1157
    %1255 = vmatpush1.msra.mxu0 %v1156
    %1256 = vmatprep.subr.mxu0 %v1153
    %1257 = vmatpush1.msra.mxu0 %v1152
    %1258 = vmatprep.subr.mxu0 %v1149
    %1259 = vmatpush1.msra.mxu0 %v1148
    %1260 = vmatprep.subr.mxu0 %v1145
    %1261 = vmatpush1.msra.mxu0 %v1144
    %1262 = vmatprep.subr.mxu0 0.0
    %1263 = vmatpush2.msra.mxu0 0.0
    %1264 = vmatprep.subr.mxu0 0.0
    %1265 = vmatpush2.msra.mxu0 0.0
    %1266 = vmatprep.subr.mxu0 0.0
    %1267 = vmatpush2.msra.mxu0 0.0
    %1268 = vmatprep.subr.mxu0 0.0
    %1269 = vmatpush2.msra.mxu0 0.0
    %1270 = vmatprep.subr.mxu0 0.0
    %1271 = vmatpush2.msra.mxu0 0.0
    %1272 = vmatprep.subr.mxu0 0.0
    %1273 = vmatpush2.msra.mxu0 0.0
    %1274 = vmatprep.subr.mxu0 0.0
    %1275 = vmatpush2.msra.mxu0 0.0
    %1276 = vmatprep.subr.mxu0 0.0
    %1277 = vmatpush2.msra.mxu0 0.0
    %1278 = vmatprep.subr.mxu0 0.0
    %1279 = vmatpush2.msra.mxu0 0.0
    %1280 = vmatprep.subr.mxu0 0.0
    %1281 = vmatpush2.msra.mxu0 0.0
    %1282 = vmatprep.subr.mxu0 0.0
    %1283 = vmatpush2.msra.mxu0 0.0
    %1284 = vmatprep.subr.mxu0 0.0
    %1285 = vmatpush2.msra.mxu0 0.0
    %1286 = vmatprep.subr.mxu0 0.0
    %1287 = vmatpush2.msra.mxu0 0.0
    %1288 = vmatprep.subr.mxu0 0.0
    %1289 = vmatpush2.msra.mxu0 0.0
    %1290 = vmatprep.subr.mxu0 0.0
    %1291 = vmatpush2.msra.mxu0 0.0
    %1292 = vmatprep.subr.mxu0 0.0
    %1293 = vmatpush2.msra.mxu0 0.0
    %1294 = vmatprep.mubr.f32.mxu0 0.0
    %1295 = vmatmul.mubr.f32.gmra.mxu0 %v580
    %v1296 = vpop.f32.mrf.mxu0
    %v1297 = vadd.f32 %v1213, %v1296
    %v1298 = vpop.f32.mrf.mxu0
    %v1299 = vadd.f32 %v1217, %v1298
    %1300 = vmatprep.mubr.f32.mxu0 0.0
    %1301 = vmatmul.mubr.f32.gmra.mxu0 %v581
    %v1302 = vpop.f32.mrf.mxu0
    %v1303 = vadd.f32 %v1213, %v1302
    %v1304 = vpop.f32.mrf.mxu0
    %v1305 = vadd.f32 %v1217, %v1304
    %1306 = vmatprep.mubr.f32.mxu0 0.0
    %1307 = vmatmul.mubr.f32.gmra.mxu0 %v582
    %v1308 = vpop.f32.mrf.mxu0
    %v1309 = vadd.f32 %v1213, %v1308
    %v1310 = vpop.f32.mrf.mxu0
    %v1311 = vadd.f32 %v1217, %v1310
    %1312 = vmatprep.mubr.f32.mxu0 0.0
    %1313 = vmatmul.mubr.f32.gmra.mxu0 %v583
    %v1314 = vpop.f32.mrf.mxu0
    %v1315 = vadd.f32 %v1213, %v1314
    %v1316 = vpop.f32.mrf.mxu0
    %v1317 = vadd.f32 %v1217, %v1316
    %1318 = vdwg.mxu0
    %1319 = vmatprep.subr.mxu0 %v1207
    %1320 = vmatpush1.msra.mxu0 %v1206
    %1321 = vmatprep.subr.mxu0 %v1203
    %1322 = vmatpush1.msra.mxu0 %v1202
    %1323 = vmatprep.subr.mxu0 %v1199
    %1324 = vmatpush1.msra.mxu0 %v1198
    %1325 = vmatprep.subr.mxu0 %v1195
    %1326 = vmatpush1.msra.mxu0 %v1194
    %1327 = vmatprep.subr.mxu0 %v1191
    %1328 = vmatpush1.msra.mxu0 %v1190
    %1329 = vmatprep.subr.mxu0 %v1187
    %1330 = vmatpush1.msra.mxu0 %v1186
    %1331 = vmatprep.subr.mxu0 %v1183
    %1332 = vmatpush1.msra.mxu0 %v1182
    %1333 = vmatprep.subr.mxu0 %v1179
    %1334 = vmatpush1.msra.mxu0 %v1178
    %1335 = vmatprep.subr.mxu0 %v1175
    %1336 = vmatpush1.msra.mxu0 %v1174
    %1337 = vmatprep.subr.mxu0 %v1171
    %1338 = vmatpush1.msra.mxu0 %v1170
    %1339 = vmatprep.subr.mxu0 %v1167
    %1340 = vmatpush1.msra.mxu0 %v1166
    %1341 = vmatprep.subr.mxu0 %v1163
    %1342 = vmatpush1.msra.mxu0 %v1162
    %1343 = vmatprep.subr.mxu0 %v1159
    %1344 = vmatpush1.msra.mxu0 %v1158
    %1345 = vmatprep.subr.mxu0 %v1155
    %1346 = vmatpush1.msra.mxu0 %v1154
    %1347 = vmatprep.subr.mxu0 %v1151
    %1348 = vmatpush1.msra.mxu0 %v1150
    %1349 = vmatprep.subr.mxu0 %v1147
    %1350 = vmatpush1.msra.mxu0 %v1146
    %1351 = vmatprep.subr.mxu0 0.0
    %1352 = vmatpush2.msra.mxu0 0.0
    %1353 = vmatprep.subr.mxu0 0.0
    %1354 = vmatpush2.msra.mxu0 0.0
    %1355 = vmatprep.subr.mxu0 0.0
    %1356 = vmatpush2.msra.mxu0 0.0
    %1357 = vmatprep.subr.mxu0 0.0
    %1358 = vmatpush2.msra.mxu0 0.0
    %1359 = vmatprep.subr.mxu0 0.0
    %1360 = vmatpush2.msra.mxu0 0.0
    %1361 = vmatprep.subr.mxu0 0.0
    %1362 = vmatpush2.msra.mxu0 0.0
    %1363 = vmatprep.subr.mxu0 0.0
    %1364 = vmatpush2.msra.mxu0 0.0
    %1365 = vmatprep.subr.mxu0 0.0
    %1366 = vmatpush2.msra.mxu0 0.0
    %1367 = vmatprep.subr.mxu0 0.0
    %1368 = vmatpush2.msra.mxu0 0.0
    %1369 = vmatprep.subr.mxu0 0.0
    %1370 = vmatpush2.msra.mxu0 0.0
    %1371 = vmatprep.subr.mxu0 0.0
    %1372 = vmatpush2.msra.mxu0 0.0
    %1373 = vmatprep.subr.mxu0 0.0
    %1374 = vmatpush2.msra.mxu0 0.0
    %1375 = vmatprep.subr.mxu0 0.0
    %1376 = vmatpush2.msra.mxu0 0.0
    %1377 = vmatprep.subr.mxu0 0.0
    %1378 = vmatpush2.msra.mxu0 0.0
    %1379 = vmatprep.subr.mxu0 0.0
    %1380 = vmatpush2.msra.mxu0 0.0
    %1381 = vmatprep.subr.mxu0 0.0
    %1382 = vmatpush2.msra.mxu0 0.0
    %1383 = vmatprep.mubr.f32.mxu0 0.0
    %1384 = vmatmul.mubr.f32.gmra.mxu0 %v580
    %v1385 = vpop.f32.mrf.mxu0
    %v1386 = vadd.f32 %v1221, %v1385
    %v1387 = vpop.f32.mrf.mxu0
    %v1388 = vadd.f32 %v1225, %v1387
    %1389 = vmatprep.mubr.f32.mxu0 0.0
    %1390 = vmatmul.mubr.f32.gmra.mxu0 %v581
    %v1391 = vpop.f32.mrf.mxu0
    %v1392 = vadd.f32 %v1221, %v1391
    %v1393 = vpop.f32.mrf.mxu0
    %v1394 = vadd.f32 %v1225, %v1393
    %1395 = vmatprep.mubr.f32.mxu0 0.0
    %1396 = vmatmul.mubr.f32.gmra.mxu0 %v582
    %v1397 = vpop.f32.mrf.mxu0
    %v1398 = vadd.f32 %v1221, %v1397
    %v1399 = vpop.f32.mrf.mxu0
    %v1400 = vadd.f32 %v1225, %v1399
    %1401 = vmatprep.mubr.f32.mxu0 0.0
    %1402 = vmatmul.mubr.f32.gmra.mxu0 %v583
    %v1403 = vpop.f32.mrf.mxu0
    %v1404 = vadd.f32 %v1221, %v1403
    %v1405 = vpop.f32.mrf.mxu0
    %v1406 = vadd.f32 %v1225, %v1405
    %1407 = vdwg.mxu0
    %1408 = vst [vmem:[#allocation2 + $0x40] sm:$0xff] %v1297
    %1409 = vst [vmem:[#allocation2 + $0x48] sm:$0xff] %v1299
    %1410 = vst [vmem:[#allocation2 + $0x50] sm:$0xff] %v1386
    %1411 = vst [vmem:[#allocation2 + $0x58] sm:$0xff] %v1388
    %1412 = vst [vmem:[#allocation2 + $0x140] sm:$0xff] %v1303
    %1413 = vst [vmem:[#allocation2 + $0x148] sm:$0xff] %v1305
    %1414 = vst [vmem:[#allocation2 + $0x150] sm:$0xff] %v1392
    %1415 = vst [vmem:[#allocation2 + $0x158] sm:$0xff] %v1394
    %1416 = vst [vmem:[#allocation2 + $0x240] sm:$0xff] %v1309
    %1417 = vst [vmem:[#allocation2 + $0x248] sm:$0xff] %v1311
    %1418 = vst [vmem:[#allocation2 + $0x250] sm:$0xff] %v1398
    %1419 = vst [vmem:[#allocation2 + $0x258] sm:$0xff] %v1400
    %1420 = vst [vmem:[#allocation2 + $0x340] sm:$0xff] %v1315
    %1421 = vst [vmem:[#allocation2 + $0x348] sm:$0xff] %v1317
    %1422 = vst [vmem:[#allocation2 + $0x350] sm:$0xff] %v1404
    %1423 = vst [vmem:[#allocation2 + $0x358] sm:$0xff] %v1406
    %v1424 = vld [vmem:[#allocation12 + $0x60] sm:$0xff]
    %v1425 = vld [vmem:[#allocation12 + $0x68] sm:$0xff]
    %v1426 = vld [vmem:[#allocation12 + $0x70] sm:$0xff]
    %v1427 = vld [vmem:[#allocation12 + $0x78] sm:$0xff]
    %v1428 = vld [vmem:[#allocation12 + $0x160] sm:$0xff]
    %v1429 = vld [vmem:[#allocation12 + $0x168] sm:$0xff]
    %v1430 = vld [vmem:[#allocation12 + $0x170] sm:$0xff]
    %v1431 = vld [vmem:[#allocation12 + $0x178] sm:$0xff]
    %v1432 = vld [vmem:[#allocation12 + $0x260] sm:$0xff]
    %v1433 = vld [vmem:[#allocation12 + $0x268] sm:$0xff]
    %v1434 = vld [vmem:[#allocation12 + $0x270] sm:$0xff]
    %v1435 = vld [vmem:[#allocation12 + $0x278] sm:$0xff]
    %v1436 = vld [vmem:[#allocation12 + $0x360] sm:$0xff]
    %v1437 = vld [vmem:[#allocation12 + $0x368] sm:$0xff]
    %v1438 = vld [vmem:[#allocation12 + $0x370] sm:$0xff]
    %v1439 = vld [vmem:[#allocation12 + $0x378] sm:$0xff]
    %v1440 = vld [vmem:[#allocation12 + $0x460] sm:$0xff]
    %v1441 = vld [vmem:[#allocation12 + $0x468] sm:$0xff]
    %v1442 = vld [vmem:[#allocation12 + $0x470] sm:$0xff]
    %v1443 = vld [vmem:[#allocation12 + $0x478] sm:$0xff]
    %v1444 = vld [vmem:[#allocation12 + $0x560] sm:$0xff]
    %v1445 = vld [vmem:[#allocation12 + $0x568] sm:$0xff]
    %v1446 = vld [vmem:[#allocation12 + $0x570] sm:$0xff]
    %v1447 = vld [vmem:[#allocation12 + $0x578] sm:$0xff]
    %v1448 = vld [vmem:[#allocation12 + $0x660] sm:$0xff]
    %v1449 = vld [vmem:[#allocation12 + $0x668] sm:$0xff]
    %v1450 = vld [vmem:[#allocation12 + $0x670] sm:$0xff]
    %v1451 = vld [vmem:[#allocation12 + $0x678] sm:$0xff]
    %v1452 = vld [vmem:[#allocation12 + $0x760] sm:$0xff]
    %v1453 = vld [vmem:[#allocation12 + $0x768] sm:$0xff]
    %v1454 = vld [vmem:[#allocation12 + $0x770] sm:$0xff]
    %v1455 = vld [vmem:[#allocation12 + $0x778] sm:$0xff]
    %v1456 = vld [vmem:[#allocation12 + $0x860] sm:$0xff]
    %v1457 = vld [vmem:[#allocation12 + $0x868] sm:$0xff]
    %v1458 = vld [vmem:[#allocation12 + $0x870] sm:$0xff]
    %v1459 = vld [vmem:[#allocation12 + $0x878] sm:$0xff]
    %v1460 = vld [vmem:[#allocation12 + $0x960] sm:$0xff]
    %v1461 = vld [vmem:[#allocation12 + $0x968] sm:$0xff]
    %v1462 = vld [vmem:[#allocation12 + $0x970] sm:$0xff]
    %v1463 = vld [vmem:[#allocation12 + $0x978] sm:$0xff]
    %v1464 = vld [vmem:[#allocation12 + $0xa60] sm:$0xff]
    %v1465 = vld [vmem:[#allocation12 + $0xa68] sm:$0xff]
    %v1466 = vld [vmem:[#allocation12 + $0xa70] sm:$0xff]
    %v1467 = vld [vmem:[#allocation12 + $0xa78] sm:$0xff]
    %v1468 = vld [vmem:[#allocation12 + $0xb60] sm:$0xff]
    %v1469 = vld [vmem:[#allocation12 + $0xb68] sm:$0xff]
    %v1470 = vld [vmem:[#allocation12 + $0xb70] sm:$0xff]
    %v1471 = vld [vmem:[#allocation12 + $0xb78] sm:$0xff]
    %v1472 = vld [vmem:[#allocation12 + $0xc60] sm:$0xff]
    %v1473 = vld [vmem:[#allocation12 + $0xc68] sm:$0xff]
    %v1474 = vld [vmem:[#allocation12 + $0xc70] sm:$0xff]
    %v1475 = vld [vmem:[#allocation12 + $0xc78] sm:$0xff]
    %v1476 = vld [vmem:[#allocation12 + $0xd60] sm:$0xff]
    %v1477 = vld [vmem:[#allocation12 + $0xd68] sm:$0xff]
    %v1478 = vld [vmem:[#allocation12 + $0xd70] sm:$0xff]
    %v1479 = vld [vmem:[#allocation12 + $0xd78] sm:$0xff]
    %v1480 = vld [vmem:[#allocation12 + $0xe60] sm:$0xff]
    %v1481 = vld [vmem:[#allocation12 + $0xe68] sm:$0xff]
    %v1482 = vld [vmem:[#allocation12 + $0xe70] sm:$0xff]
    %v1483 = vld [vmem:[#allocation12 + $0xe78] sm:$0xff]
    %v1484 = vld [vmem:[#allocation12 + $0xf60] sm:$0xff]
    %v1485 = vld [vmem:[#allocation12 + $0xf68] sm:$0xff]
    %v1486 = vld [vmem:[#allocation12 + $0xf70] sm:$0xff]
    %v1487 = vld [vmem:[#allocation12 + $0xf78] sm:$0xff]
    %v1488 = vld [vmem:[#allocation14 + $0xc] sm:$0xf]
    %v1490 = vlaneseq
    %v1491 = vshrl.u32 %v1490, 7
    %v1492 = vsub.s32 0, %v1491
    %v1493 = vrot.slane %v1488, %v1492
    %v1494 = vlaneseq
    %v1495 = vshrl.u32 %v1494, 7
    %v1496 = vsub.s32 1, %v1495
    %v1497 = vrot.slane %v1488, %v1496
    %v1498 = vlaneseq
    %v1499 = vshrl.u32 %v1498, 7
    %v1500 = vsub.s32 2, %v1499
    %v1501 = vrot.slane %v1488, %v1500
    %v1502 = vlaneseq
    %v1503 = vshrl.u32 %v1502, 7
    %v1504 = vsub.s32 3, %v1503
    %v1505 = vrot.slane %v1488, %v1504
    %1510 = vmatprep.subr.mxu0 %v1485
    %1511 = vmatpush1.msra.mxu0 %v1484
    %1512 = vmatprep.subr.mxu0 %v1481
    %1513 = vmatpush1.msra.mxu0 %v1480
    %1514 = vmatprep.subr.mxu0 %v1477
    %1515 = vmatpush1.msra.mxu0 %v1476
    %1516 = vmatprep.subr.mxu0 %v1473
    %1517 = vmatpush1.msra.mxu0 %v1472
    %1518 = vmatprep.subr.mxu0 %v1469
    %1519 = vmatpush1.msra.mxu0 %v1468
    %1520 = vmatprep.subr.mxu0 %v1465
    %1521 = vmatpush1.msra.mxu0 %v1464
    %1522 = vmatprep.subr.mxu0 %v1461
    %1523 = vmatpush1.msra.mxu0 %v1460
    %1524 = vmatprep.subr.mxu0 %v1457
    %1525 = vmatpush1.msra.mxu0 %v1456
    %1526 = vmatprep.subr.mxu0 %v1453
    %1527 = vmatpush1.msra.mxu0 %v1452
    %1528 = vmatprep.subr.mxu0 %v1449
    %1529 = vmatpush1.msra.mxu0 %v1448
    %1530 = vmatprep.subr.mxu0 %v1445
    %1531 = vmatpush1.msra.mxu0 %v1444
    %1532 = vmatprep.subr.mxu0 %v1441
    %1533 = vmatpush1.msra.mxu0 %v1440
    %1534 = vmatprep.subr.mxu0 %v1437
    %1535 = vmatpush1.msra.mxu0 %v1436
    %1536 = vmatprep.subr.mxu0 %v1433
    %1537 = vmatpush1.msra.mxu0 %v1432
    %1538 = vmatprep.subr.mxu0 %v1429
    %1539 = vmatpush1.msra.mxu0 %v1428
    %1540 = vmatprep.subr.mxu0 %v1425
    %1541 = vmatpush1.msra.mxu0 %v1424
    %1542 = vmatprep.subr.mxu0 0.0
    %1543 = vmatpush2.msra.mxu0 0.0
    %1544 = vmatprep.subr.mxu0 0.0
    %1545 = vmatpush2.msra.mxu0 0.0
    %1546 = vmatprep.subr.mxu0 0.0
    %1547 = vmatpush2.msra.mxu0 0.0
    %1548 = vmatprep.subr.mxu0 0.0
    %1549 = vmatpush2.msra.mxu0 0.0
    %1550 = vmatprep.subr.mxu0 0.0
    %1551 = vmatpush2.msra.mxu0 0.0
    %1552 = vmatprep.subr.mxu0 0.0
    %1553 = vmatpush2.msra.mxu0 0.0
    %1554 = vmatprep.subr.mxu0 0.0
    %1555 = vmatpush2.msra.mxu0 0.0
    %1556 = vmatprep.subr.mxu0 0.0
    %1557 = vmatpush2.msra.mxu0 0.0
    %1558 = vmatprep.subr.mxu0 0.0
    %1559 = vmatpush2.msra.mxu0 0.0
    %1560 = vmatprep.subr.mxu0 0.0
    %1561 = vmatpush2.msra.mxu0 0.0
    %1562 = vmatprep.subr.mxu0 0.0
    %1563 = vmatpush2.msra.mxu0 0.0
    %1564 = vmatprep.subr.mxu0 0.0
    %1565 = vmatpush2.msra.mxu0 0.0
    %1566 = vmatprep.subr.mxu0 0.0
    %1567 = vmatpush2.msra.mxu0 0.0
    %1568 = vmatprep.subr.mxu0 0.0
    %1569 = vmatpush2.msra.mxu0 0.0
    %1570 = vmatprep.subr.mxu0 0.0
    %1571 = vmatpush2.msra.mxu0 0.0
    %1572 = vmatprep.subr.mxu0 0.0
    %1573 = vmatpush2.msra.mxu0 0.0
    %1574 = vmatprep.mubr.f32.mxu0 0.0
    %1575 = vmatmul.mubr.f32.gmra.mxu0 %v580
    %v1576 = vpop.f32.mrf.mxu0
    %v1577 = vadd.f32 %v1493, %v1576
    %v1578 = vpop.f32.mrf.mxu0
    %v1579 = vadd.f32 %v1497, %v1578
    %1580 = vmatprep.mubr.f32.mxu0 0.0
    %1581 = vmatmul.mubr.f32.gmra.mxu0 %v581
    %v1582 = vpop.f32.mrf.mxu0
    %v1583 = vadd.f32 %v1493, %v1582
    %v1584 = vpop.f32.mrf.mxu0
    %v1585 = vadd.f32 %v1497, %v1584
    %1586 = vmatprep.mubr.f32.mxu0 0.0
    %1587 = vmatmul.mubr.f32.gmra.mxu0 %v582
    %v1588 = vpop.f32.mrf.mxu0
    %v1589 = vadd.f32 %v1493, %v1588
    %v1590 = vpop.f32.mrf.mxu0
    %v1591 = vadd.f32 %v1497, %v1590
    %1592 = vmatprep.mubr.f32.mxu0 0.0
    %1593 = vmatmul.mubr.f32.gmra.mxu0 %v583
    %v1594 = vpop.f32.mrf.mxu0
    %v1595 = vadd.f32 %v1493, %v1594
    %v1596 = vpop.f32.mrf.mxu0
    %v1597 = vadd.f32 %v1497, %v1596
    %1598 = vdwg.mxu0
    %1599 = vmatprep.subr.mxu0 %v1487
    %1600 = vmatpush1.msra.mxu0 %v1486
    %1601 = vmatprep.subr.mxu0 %v1483
    %1602 = vmatpush1.msra.mxu0 %v1482
    %1603 = vmatprep.subr.mxu0 %v1479
    %1604 = vmatpush1.msra.mxu0 %v1478
    %1605 = vmatprep.subr.mxu0 %v1475
    %1606 = vmatpush1.msra.mxu0 %v1474
    %1607 = vmatprep.subr.mxu0 %v1471
    %1608 = vmatpush1.msra.mxu0 %v1470
    %1609 = vmatprep.subr.mxu0 %v1467
    %1610 = vmatpush1.msra.mxu0 %v1466
    %1611 = vmatprep.subr.mxu0 %v1463
    %1612 = vmatpush1.msra.mxu0 %v1462
    %1613 = vmatprep.subr.mxu0 %v1459
    %1614 = vmatpush1.msra.mxu0 %v1458
    %1615 = vmatprep.subr.mxu0 %v1455
    %1616 = vmatpush1.msra.mxu0 %v1454
    %1617 = vmatprep.subr.mxu0 %v1451
    %1618 = vmatpush1.msra.mxu0 %v1450
    %1619 = vmatprep.subr.mxu0 %v1447
    %1620 = vmatpush1.msra.mxu0 %v1446
    %1621 = vmatprep.subr.mxu0 %v1443
    %1622 = vmatpush1.msra.mxu0 %v1442
    %1623 = vmatprep.subr.mxu0 %v1439
    %1624 = vmatpush1.msra.mxu0 %v1438
    %1625 = vmatprep.subr.mxu0 %v1435
    %1626 = vmatpush1.msra.mxu0 %v1434
    %1627 = vmatprep.subr.mxu0 %v1431
    %1628 = vmatpush1.msra.mxu0 %v1430
    %1629 = vmatprep.subr.mxu0 %v1427
    %1630 = vmatpush1.msra.mxu0 %v1426
    %1631 = vmatprep.subr.mxu0 0.0
    %1632 = vmatpush2.msra.mxu0 0.0
    %1633 = vmatprep.subr.mxu0 0.0
    %1634 = vmatpush2.msra.mxu0 0.0
    %1635 = vmatprep.subr.mxu0 0.0
    %1636 = vmatpush2.msra.mxu0 0.0
    %1637 = vmatprep.subr.mxu0 0.0
    %1638 = vmatpush2.msra.mxu0 0.0
    %1639 = vmatprep.subr.mxu0 0.0
    %1640 = vmatpush2.msra.mxu0 0.0
    %1641 = vmatprep.subr.mxu0 0.0
    %1642 = vmatpush2.msra.mxu0 0.0
    %1643 = vmatprep.subr.mxu0 0.0
    %1644 = vmatpush2.msra.mxu0 0.0
    %1645 = vmatprep.subr.mxu0 0.0
    %1646 = vmatpush2.msra.mxu0 0.0
    %1647 = vmatprep.subr.mxu0 0.0
    %1648 = vmatpush2.msra.mxu0 0.0
    %1649 = vmatprep.subr.mxu0 0.0
    %1650 = vmatpush2.msra.mxu0 0.0
    %1651 = vmatprep.subr.mxu0 0.0
    %1652 = vmatpush2.msra.mxu0 0.0
    %1653 = vmatprep.subr.mxu0 0.0
    %1654 = vmatpush2.msra.mxu0 0.0
    %1655 = vmatprep.subr.mxu0 0.0
    %1656 = vmatpush2.msra.mxu0 0.0
    %1657 = vmatprep.subr.mxu0 0.0
    %1658 = vmatpush2.msra.mxu0 0.0
    %1659 = vmatprep.subr.mxu0 0.0
    %1660 = vmatpush2.msra.mxu0 0.0
    %1661 = vmatprep.subr.mxu0 0.0
    %1662 = vmatpush2.msra.mxu0 0.0
    %1663 = vmatprep.mubr.f32.mxu0 0.0
    %1664 = vmatmul.mubr.f32.gmra.mxu0 %v580
    %v1665 = vpop.f32.mrf.mxu0
    %v1666 = vadd.f32 %v1501, %v1665
    %v1667 = vpop.f32.mrf.mxu0
    %v1668 = vadd.f32 %v1505, %v1667
    %1669 = vmatprep.mubr.f32.mxu0 0.0
    %1670 = vmatmul.mubr.f32.gmra.mxu0 %v581
    %v1671 = vpop.f32.mrf.mxu0
    %v1672 = vadd.f32 %v1501, %v1671
    %v1673 = vpop.f32.mrf.mxu0
    %v1674 = vadd.f32 %v1505, %v1673
    %1675 = vmatprep.mubr.f32.mxu0 0.0
    %1676 = vmatmul.mubr.f32.gmra.mxu0 %v582
    %v1677 = vpop.f32.mrf.mxu0
    %v1678 = vadd.f32 %v1501, %v1677
    %v1679 = vpop.f32.mrf.mxu0
    %v1680 = vadd.f32 %v1505, %v1679
    %1681 = vmatprep.mubr.f32.mxu0 0.0
    %1682 = vmatmul.mubr.f32.gmra.mxu0 %v583
    %v1683 = vpop.f32.mrf.mxu0
    %v1684 = vadd.f32 %v1501, %v1683
    %v1685 = vpop.f32.mrf.mxu0
    %v1686 = vadd.f32 %v1505, %v1685
    %1687 = vdwg.mxu0
    %1688 = vst [vmem:[#allocation2 + $0x60] sm:$0xff] %v1577
    %1689 = vst [vmem:[#allocation2 + $0x68] sm:$0xff] %v1579
    %1690 = vst [vmem:[#allocation2 + $0x70] sm:$0xff] %v1666
    %1691 = vst [vmem:[#allocation2 + $0x78] sm:$0xff] %v1668
    %1692 = vst [vmem:[#allocation2 + $0x160] sm:$0xff] %v1583
    %1693 = vst [vmem:[#allocation2 + $0x168] sm:$0xff] %v1585
    %1694 = vst [vmem:[#allocation2 + $0x170] sm:$0xff] %v1672
    %1695 = vst [vmem:[#allocation2 + $0x178] sm:$0xff] %v1674
    %1696 = vst [vmem:[#allocation2 + $0x260] sm:$0xff] %v1589
    %1697 = vst [vmem:[#allocation2 + $0x268] sm:$0xff] %v1591
    %1698 = vst [vmem:[#allocation2 + $0x270] sm:$0xff] %v1678
    %1699 = vst [vmem:[#allocation2 + $0x278] sm:$0xff] %v1680
    %1700 = vst [vmem:[#allocation2 + $0x360] sm:$0xff] %v1595
    %1701 = vst [vmem:[#allocation2 + $0x368] sm:$0xff] %v1597
    %1702 = vst [vmem:[#allocation2 + $0x370] sm:$0xff] %v1684
    %1703 = vst [vmem:[#allocation2 + $0x378] sm:$0xff] %v1686
    %v1704 = vld [vmem:[#allocation12 + $0x80] sm:$0xff]
    %v1705 = vld [vmem:[#allocation12 + $0x88] sm:$0xff]
    %v1706 = vld [vmem:[#allocation12 + $0x90] sm:$0xff]
    %v1707 = vld [vmem:[#allocation12 + $0x98] sm:$0xff]
    %v1708 = vld [vmem:[#allocation12 + $0x180] sm:$0xff]
    %v1709 = vld [vmem:[#allocation12 + $0x188] sm:$0xff]
    %v1710 = vld [vmem:[#allocation12 + $0x190] sm:$0xff]
    %v1711 = vld [vmem:[#allocation12 + $0x198] sm:$0xff]
    %v1712 = vld [vmem:[#allocation12 + $0x280] sm:$0xff]
    %v1713 = vld [vmem:[#allocation12 + $0x288] sm:$0xff]
    %v1714 = vld [vmem:[#allocation12 + $0x290] sm:$0xff]
    %v1715 = vld [vmem:[#allocation12 + $0x298] sm:$0xff]
    %v1716 = vld [vmem:[#allocation12 + $0x380] sm:$0xff]
    %v1717 = vld [vmem:[#allocation12 + $0x388] sm:$0xff]
    %v1718 = vld [vmem:[#allocation12 + $0x390] sm:$0xff]
    %v1719 = vld [vmem:[#allocation12 + $0x398] sm:$0xff]
    %v1720 = vld [vmem:[#allocation12 + $0x480] sm:$0xff]
    %v1721 = vld [vmem:[#allocation12 + $0x488] sm:$0xff]
    %v1722 = vld [vmem:[#allocation12 + $0x490] sm:$0xff]
    %v1723 = vld [vmem:[#allocation12 + $0x498] sm:$0xff]
    %v1724 = vld [vmem:[#allocation12 + $0x580] sm:$0xff]
    %v1725 = vld [vmem:[#allocation12 + $0x588] sm:$0xff]
    %v1726 = vld [vmem:[#allocation12 + $0x590] sm:$0xff]
    %v1727 = vld [vmem:[#allocation12 + $0x598] sm:$0xff]
    %v1728 = vld [vmem:[#allocation12 + $0x680] sm:$0xff]
    %v1729 = vld [vmem:[#allocation12 + $0x688] sm:$0xff]
    %v1730 = vld [vmem:[#allocation12 + $0x690] sm:$0xff]
    %v1731 = vld [vmem:[#allocation12 + $0x698] sm:$0xff]
    %v1732 = vld [vmem:[#allocation12 + $0x780] sm:$0xff]
    %v1733 = vld [vmem:[#allocation12 + $0x788] sm:$0xff]
    %v1734 = vld [vmem:[#allocation12 + $0x790] sm:$0xff]
    %v1735 = vld [vmem:[#allocation12 + $0x798] sm:$0xff]
    %v1736 = vld [vmem:[#allocation12 + $0x880] sm:$0xff]
    %v1737 = vld [vmem:[#allocation12 + $0x888] sm:$0xff]
    %v1738 = vld [vmem:[#allocation12 + $0x890] sm:$0xff]
    %v1739 = vld [vmem:[#allocation12 + $0x898] sm:$0xff]
    %v1740 = vld [vmem:[#allocation12 + $0x980] sm:$0xff]
    %v1741 = vld [vmem:[#allocation12 + $0x988] sm:$0xff]
    %v1742 = vld [vmem:[#allocation12 + $0x990] sm:$0xff]
    %v1743 = vld [vmem:[#allocation12 + $0x998] sm:$0xff]
    %v1744 = vld [vmem:[#allocation12 + $0xa80] sm:$0xff]
    %v1745 = vld [vmem:[#allocation12 + $0xa88] sm:$0xff]
    %v1746 = vld [vmem:[#allocation12 + $0xa90] sm:$0xff]
    %v1747 = vld [vmem:[#allocation12 + $0xa98] sm:$0xff]
    %v1748 = vld [vmem:[#allocation12 + $0xb80] sm:$0xff]
    %v1749 = vld [vmem:[#allocation12 + $0xb88] sm:$0xff]
    %v1750 = vld [vmem:[#allocation12 + $0xb90] sm:$0xff]
    %v1751 = vld [vmem:[#allocation12 + $0xb98] sm:$0xff]
    %v1752 = vld [vmem:[#allocation12 + $0xc80] sm:$0xff]
    %v1753 = vld [vmem:[#allocation12 + $0xc88] sm:$0xff]
    %v1754 = vld [vmem:[#allocation12 + $0xc90] sm:$0xff]
    %v1755 = vld [vmem:[#allocation12 + $0xc98] sm:$0xff]
    %v1756 = vld [vmem:[#allocation12 + $0xd80] sm:$0xff]
    %v1757 = vld [vmem:[#allocation12 + $0xd88] sm:$0xff]
    %v1758 = vld [vmem:[#allocation12 + $0xd90] sm:$0xff]
    %v1759 = vld [vmem:[#allocation12 + $0xd98] sm:$0xff]
    %v1760 = vld [vmem:[#allocation12 + $0xe80] sm:$0xff]
    %v1761 = vld [vmem:[#allocation12 + $0xe88] sm:$0xff]
    %v1762 = vld [vmem:[#allocation12 + $0xe90] sm:$0xff]
    %v1763 = vld [vmem:[#allocation12 + $0xe98] sm:$0xff]
    %v1764 = vld [vmem:[#allocation12 + $0xf80] sm:$0xff]
    %v1765 = vld [vmem:[#allocation12 + $0xf88] sm:$0xff]
    %v1766 = vld [vmem:[#allocation12 + $0xf90] sm:$0xff]
    %v1767 = vld [vmem:[#allocation12 + $0xf98] sm:$0xff]
    %v1768 = vld [vmem:[#allocation14 + $0x10] sm:$0xf]
    %v1770 = vlaneseq
    %v1771 = vshrl.u32 %v1770, 7
    %v1772 = vsub.s32 0, %v1771
    %v1773 = vrot.slane %v1768, %v1772
    %v1774 = vlaneseq
    %v1775 = vshrl.u32 %v1774, 7
    %v1776 = vsub.s32 1, %v1775
    %v1777 = vrot.slane %v1768, %v1776
    %v1778 = vlaneseq
    %v1779 = vshrl.u32 %v1778, 7
    %v1780 = vsub.s32 2, %v1779
    %v1781 = vrot.slane %v1768, %v1780
    %v1782 = vlaneseq
    %v1783 = vshrl.u32 %v1782, 7
    %v1784 = vsub.s32 3, %v1783
    %v1785 = vrot.slane %v1768, %v1784
    %1790 = vmatprep.subr.mxu0 %v1765
    %1791 = vmatpush1.msra.mxu0 %v1764
    %1792 = vmatprep.subr.mxu0 %v1761
    %1793 = vmatpush1.msra.mxu0 %v1760
    %1794 = vmatprep.subr.mxu0 %v1757
    %1795 = vmatpush1.msra.mxu0 %v1756
    %1796 = vmatprep.subr.mxu0 %v1753
    %1797 = vmatpush1.msra.mxu0 %v1752
    %1798 = vmatprep.subr.mxu0 %v1749
    %1799 = vmatpush1.msra.mxu0 %v1748
    %1800 = vmatprep.subr.mxu0 %v1745
    %1801 = vmatpush1.msra.mxu0 %v1744
    %1802 = vmatprep.subr.mxu0 %v1741
    %1803 = vmatpush1.msra.mxu0 %v1740
    %1804 = vmatprep.subr.mxu0 %v1737
    %1805 = vmatpush1.msra.mxu0 %v1736
    %1806 = vmatprep.subr.mxu0 %v1733
    %1807 = vmatpush1.msra.mxu0 %v1732
    %1808 = vmatprep.subr.mxu0 %v1729
    %1809 = vmatpush1.msra.mxu0 %v1728
    %1810 = vmatprep.subr.mxu0 %v1725
    %1811 = vmatpush1.msra.mxu0 %v1724
    %1812 = vmatprep.subr.mxu0 %v1721
    %1813 = vmatpush1.msra.mxu0 %v1720
    %1814 = vmatprep.subr.mxu0 %v1717
    %1815 = vmatpush1.msra.mxu0 %v1716
    %1816 = vmatprep.subr.mxu0 %v1713
    %1817 = vmatpush1.msra.mxu0 %v1712
    %1818 = vmatprep.subr.mxu0 %v1709
    %1819 = vmatpush1.msra.mxu0 %v1708
    %1820 = vmatprep.subr.mxu0 %v1705
    %1821 = vmatpush1.msra.mxu0 %v1704
    %1822 = vmatprep.subr.mxu0 0.0
    %1823 = vmatpush2.msra.mxu0 0.0
    %1824 = vmatprep.subr.mxu0 0.0
    %1825 = vmatpush2.msra.mxu0 0.0
    %1826 = vmatprep.subr.mxu0 0.0
    %1827 = vmatpush2.msra.mxu0 0.0
    %1828 = vmatprep.subr.mxu0 0.0
    %1829 = vmatpush2.msra.mxu0 0.0
    %1830 = vmatprep.subr.mxu0 0.0
    %1831 = vmatpush2.msra.mxu0 0.0
    %1832 = vmatprep.subr.mxu0 0.0
    %1833 = vmatpush2.msra.mxu0 0.0
    %1834 = vmatprep.subr.mxu0 0.0
    %1835 = vmatpush2.msra.mxu0 0.0
    %1836 = vmatprep.subr.mxu0 0.0
    %1837 = vmatpush2.msra.mxu0 0.0
    %1838 = vmatprep.subr.mxu0 0.0
    %1839 = vmatpush2.msra.mxu0 0.0
    %1840 = vmatprep.subr.mxu0 0.0
    %1841 = vmatpush2.msra.mxu0 0.0
    %1842 = vmatprep.subr.mxu0 0.0
    %1843 = vmatpush2.msra.mxu0 0.0
    %1844 = vmatprep.subr.mxu0 0.0
    %1845 = vmatpush2.msra.mxu0 0.0
    %1846 = vmatprep.subr.mxu0 0.0
    %1847 = vmatpush2.msra.mxu0 0.0
    %1848 = vmatprep.subr.mxu0 0.0
    %1849 = vmatpush2.msra.mxu0 0.0
    %1850 = vmatprep.subr.mxu0 0.0
    %1851 = vmatpush2.msra.mxu0 0.0
    %1852 = vmatprep.subr.mxu0 0.0
    %1853 = vmatpush2.msra.mxu0 0.0
    %1854 = vmatprep.mubr.f32.mxu0 0.0
    %1855 = vmatmul.mubr.f32.gmra.mxu0 %v580
    %v1856 = vpop.f32.mrf.mxu0
    %v1857 = vadd.f32 %v1773, %v1856
    %v1858 = vpop.f32.mrf.mxu0
    %v1859 = vadd.f32 %v1777, %v1858
    %1860 = vmatprep.mubr.f32.mxu0 0.0
    %1861 = vmatmul.mubr.f32.gmra.mxu0 %v581
    %v1862 = vpop.f32.mrf.mxu0
    %v1863 = vadd.f32 %v1773, %v1862
    %v1864 = vpop.f32.mrf.mxu0
    %v1865 = vadd.f32 %v1777, %v1864
    %1866 = vmatprep.mubr.f32.mxu0 0.0
    %1867 = vmatmul.mubr.f32.gmra.mxu0 %v582
    %v1868 = vpop.f32.mrf.mxu0
    %v1869 = vadd.f32 %v1773, %v1868
    %v1870 = vpop.f32.mrf.mxu0
    %v1871 = vadd.f32 %v1777, %v1870
    %1872 = vmatprep.mubr.f32.mxu0 0.0
    %1873 = vmatmul.mubr.f32.gmra.mxu0 %v583
    %v1874 = vpop.f32.mrf.mxu0
    %v1875 = vadd.f32 %v1773, %v1874
    %v1876 = vpop.f32.mrf.mxu0
    %v1877 = vadd.f32 %v1777, %v1876
    %1878 = vdwg.mxu0
    %1879 = vmatprep.subr.mxu0 %v1767
    %1880 = vmatpush1.msra.mxu0 %v1766
    %1881 = vmatprep.subr.mxu0 %v1763
    %1882 = vmatpush1.msra.mxu0 %v1762
    %1883 = vmatprep.subr.mxu0 %v1759
    %1884 = vmatpush1.msra.mxu0 %v1758
    %1885 = vmatprep.subr.mxu0 %v1755
    %1886 = vmatpush1.msra.mxu0 %v1754
    %1887 = vmatprep.subr.mxu0 %v1751
    %1888 = vmatpush1.msra.mxu0 %v1750
    %1889 = vmatprep.subr.mxu0 %v1747
    %1890 = vmatpush1.msra.mxu0 %v1746
    %1891 = vmatprep.subr.mxu0 %v1743
    %1892 = vmatpush1.msra.mxu0 %v1742
    %1893 = vmatprep.subr.mxu0 %v1739
    %1894 = vmatpush1.msra.mxu0 %v1738
    %1895 = vmatprep.subr.mxu0 %v1735
    %1896 = vmatpush1.msra.mxu0 %v1734
    %1897 = vmatprep.subr.mxu0 %v1731
    %1898 = vmatpush1.msra.mxu0 %v1730
    %1899 = vmatprep.subr.mxu0 %v1727
    %1900 = vmatpush1.msra.mxu0 %v1726
    %1901 = vmatprep.subr.mxu0 %v1723
    %1902 = vmatpush1.msra.mxu0 %v1722
    %1903 = vmatprep.subr.mxu0 %v1719
    %1904 = vmatpush1.msra.mxu0 %v1718
    %1905 = vmatprep.subr.mxu0 %v1715
    %1906 = vmatpush1.msra.mxu0 %v1714
    %1907 = vmatprep.subr.mxu0 %v1711
    %1908 = vmatpush1.msra.mxu0 %v1710
    %1909 = vmatprep.subr.mxu0 %v1707
    %1910 = vmatpush1.msra.mxu0 %v1706
    %1911 = vmatprep.subr.mxu0 0.0
    %1912 = vmatpush2.msra.mxu0 0.0
    %1913 = vmatprep.subr.mxu0 0.0
    %1914 = vmatpush2.msra.mxu0 0.0
    %1915 = vmatprep.subr.mxu0 0.0
    %1916 = vmatpush2.msra.mxu0 0.0
    %1917 = vmatprep.subr.mxu0 0.0
    %1918 = vmatpush2.msra.mxu0 0.0
    %1919 = vmatprep.subr.mxu0 0.0
    %1920 = vmatpush2.msra.mxu0 0.0
    %1921 = vmatprep.subr.mxu0 0.0
    %1922 = vmatpush2.msra.mxu0 0.0
    %1923 = vmatprep.subr.mxu0 0.0
    %1924 = vmatpush2.msra.mxu0 0.0
    %1925 = vmatprep.subr.mxu0 0.0
    %1926 = vmatpush2.msra.mxu0 0.0
    %1927 = vmatprep.subr.mxu0 0.0
    %1928 = vmatpush2.msra.mxu0 0.0
    %1929 = vmatprep.subr.mxu0 0.0
    %1930 = vmatpush2.msra.mxu0 0.0
    %1931 = vmatprep.subr.mxu0 0.0
    %1932 = vmatpush2.msra.mxu0 0.0
    %1933 = vmatprep.subr.mxu0 0.0
    %1934 = vmatpush2.msra.mxu0 0.0
    %1935 = vmatprep.subr.mxu0 0.0
    %1936 = vmatpush2.msra.mxu0 0.0
    %1937 = vmatprep.subr.mxu0 0.0
    %1938 = vmatpush2.msra.mxu0 0.0
    %1939 = vmatprep.subr.mxu0 0.0
    %1940 = vmatpush2.msra.mxu0 0.0
    %1941 = vmatprep.subr.mxu0 0.0
    %1942 = vmatpush2.msra.mxu0 0.0
    %1943 = vmatprep.mubr.f32.mxu0 0.0
    %1944 = vmatmul.mubr.f32.gmra.mxu0 %v580
    %v1945 = vpop.f32.mrf.mxu0
    %v1946 = vadd.f32 %v1781, %v1945
    %v1947 = vpop.f32.mrf.mxu0
    %v1948 = vadd.f32 %v1785, %v1947
    %1949 = vmatprep.mubr.f32.mxu0 0.0
    %1950 = vmatmul.mubr.f32.gmra.mxu0 %v581
    %v1951 = vpop.f32.mrf.mxu0
    %v1952 = vadd.f32 %v1781, %v1951
    %v1953 = vpop.f32.mrf.mxu0
    %v1954 = vadd.f32 %v1785, %v1953
    %1955 = vmatprep.mubr.f32.mxu0 0.0
    %1956 = vmatmul.mubr.f32.gmra.mxu0 %v582
    %v1957 = vpop.f32.mrf.mxu0
    %v1958 = vadd.f32 %v1781, %v1957
    %v1959 = vpop.f32.mrf.mxu0
    %v1960 = vadd.f32 %v1785, %v1959
    %1961 = vmatprep.mubr.f32.mxu0 0.0
    %1962 = vmatmul.mubr.f32.gmra.mxu0 %v583
    %v1963 = vpop.f32.mrf.mxu0
    %v1964 = vadd.f32 %v1781, %v1963
    %v1965 = vpop.f32.mrf.mxu0
    %v1966 = vadd.f32 %v1785, %v1965
    %1967 = vdwg.mxu0
    %1968 = vst [vmem:[#allocation2 + $0x80] sm:$0xff] %v1857
    %1969 = vst [vmem:[#allocation2 + $0x88] sm:$0xff] %v1859
    %1970 = vst [vmem:[#allocation2 + $0x90] sm:$0xff] %v1946
    %1971 = vst [vmem:[#allocation2 + $0x98] sm:$0xff] %v1948
    %1972 = vst [vmem:[#allocation2 + $0x180] sm:$0xff] %v1863
    %1973 = vst [vmem:[#allocation2 + $0x188] sm:$0xff] %v1865
    %1974 = vst [vmem:[#allocation2 + $0x190] sm:$0xff] %v1952
    %1975 = vst [vmem:[#allocation2 + $0x198] sm:$0xff] %v1954
    %1976 = vst [vmem:[#allocation2 + $0x280] sm:$0xff] %v1869
    %1977 = vst [vmem:[#allocation2 + $0x288] sm:$0xff] %v1871
    %1978 = vst [vmem:[#allocation2 + $0x290] sm:$0xff] %v1958
    %1979 = vst [vmem:[#allocation2 + $0x298] sm:$0xff] %v1960
    %1980 = vst [vmem:[#allocation2 + $0x380] sm:$0xff] %v1875
    %1981 = vst [vmem:[#allocation2 + $0x388] sm:$0xff] %v1877
    %1982 = vst [vmem:[#allocation2 + $0x390] sm:$0xff] %v1964
    %1983 = vst [vmem:[#allocation2 + $0x398] sm:$0xff] %v1966
    %v1984 = vld [vmem:[#allocation12 + $0xa0] sm:$0xff]
    %v1985 = vld [vmem:[#allocation12 + $0xa8] sm:$0xff]
    %v1986 = vld [vmem:[#allocation12 + $0xb0] sm:$0xff]
    %v1987 = vld [vmem:[#allocation12 + $0xb8] sm:$0xff]
    %v1988 = vld [vmem:[#allocation12 + $0x1a0] sm:$0xff]
    %v1989 = vld [vmem:[#allocation12 + $0x1a8] sm:$0xff]
    %v1990 = vld [vmem:[#allocation12 + $0x1b0] sm:$0xff]
    %v1991 = vld [vmem:[#allocation12 + $0x1b8] sm:$0xff]
    %v1992 = vld [vmem:[#allocation12 + $0x2a0] sm:$0xff]
    %v1993 = vld [vmem:[#allocation12 + $0x2a8] sm:$0xff]
    %v1994 = vld [vmem:[#allocation12 + $0x2b0] sm:$0xff]
    %v1995 = vld [vmem:[#allocation12 + $0x2b8] sm:$0xff]
    %v1996 = vld [vmem:[#allocation12 + $0x3a0] sm:$0xff]
    %v1997 = vld [vmem:[#allocation12 + $0x3a8] sm:$0xff]
    %v1998 = vld [vmem:[#allocation12 + $0x3b0] sm:$0xff]
    %v1999 = vld [vmem:[#allocation12 + $0x3b8] sm:$0xff]
    %v2000 = vld [vmem:[#allocation12 + $0x4a0] sm:$0xff]
    %v2001 = vld [vmem:[#allocation12 + $0x4a8] sm:$0xff]
    %v2002 = vld [vmem:[#allocation12 + $0x4b0] sm:$0xff]
    %v2003 = vld [vmem:[#allocation12 + $0x4b8] sm:$0xff]
    %v2004 = vld [vmem:[#allocation12 + $0x5a0] sm:$0xff]
    %v2005 = vld [vmem:[#allocation12 + $0x5a8] sm:$0xff]
    %v2006 = vld [vmem:[#allocation12 + $0x5b0] sm:$0xff]
    %v2007 = vld [vmem:[#allocation12 + $0x5b8] sm:$0xff]
    %v2008 = vld [vmem:[#allocation12 + $0x6a0] sm:$0xff]
    %v2009 = vld [vmem:[#allocation12 + $0x6a8] sm:$0xff]
    %v2010 = vld [vmem:[#allocation12 + $0x6b0] sm:$0xff]
    %v2011 = vld [vmem:[#allocation12 + $0x6b8] sm:$0xff]
    %v2012 = vld [vmem:[#allocation12 + $0x7a0] sm:$0xff]
    %v2013 = vld [vmem:[#allocation12 + $0x7a8] sm:$0xff]
    %v2014 = vld [vmem:[#allocation12 + $0x7b0] sm:$0xff]
    %v2015 = vld [vmem:[#allocation12 + $0x7b8] sm:$0xff]
    %v2016 = vld [vmem:[#allocation12 + $0x8a0] sm:$0xff]
    %v2017 = vld [vmem:[#allocation12 + $0x8a8] sm:$0xff]
    %v2018 = vld [vmem:[#allocation12 + $0x8b0] sm:$0xff]
    %v2019 = vld [vmem:[#allocation12 + $0x8b8] sm:$0xff]
    %v2020 = vld [vmem:[#allocation12 + $0x9a0] sm:$0xff]
    %v2021 = vld [vmem:[#allocation12 + $0x9a8] sm:$0xff]
    %v2022 = vld [vmem:[#allocation12 + $0x9b0] sm:$0xff]
    %v2023 = vld [vmem:[#allocation12 + $0x9b8] sm:$0xff]
    %v2024 = vld [vmem:[#allocation12 + $0xaa0] sm:$0xff]
    %v2025 = vld [vmem:[#allocation12 + $0xaa8] sm:$0xff]
    %v2026 = vld [vmem:[#allocation12 + $0xab0] sm:$0xff]
    %v2027 = vld [vmem:[#allocation12 + $0xab8] sm:$0xff]
    %v2028 = vld [vmem:[#allocation12 + $0xba0] sm:$0xff]
    %v2029 = vld [vmem:[#allocation12 + $0xba8] sm:$0xff]
    %v2030 = vld [vmem:[#allocation12 + $0xbb0] sm:$0xff]
    %v2031 = vld [vmem:[#allocation12 + $0xbb8] sm:$0xff]
    %v2032 = vld [vmem:[#allocation12 + $0xca0] sm:$0xff]
    %v2033 = vld [vmem:[#allocation12 + $0xca8] sm:$0xff]
    %v2034 = vld [vmem:[#allocation12 + $0xcb0] sm:$0xff]
    %v2035 = vld [vmem:[#allocation12 + $0xcb8] sm:$0xff]
    %v2036 = vld [vmem:[#allocation12 + $0xda0] sm:$0xff]
    %v2037 = vld [vmem:[#allocation12 + $0xda8] sm:$0xff]
    %v2038 = vld [vmem:[#allocation12 + $0xdb0] sm:$0xff]
    %v2039 = vld [vmem:[#allocation12 + $0xdb8] sm:$0xff]
    %v2040 = vld [vmem:[#allocation12 + $0xea0] sm:$0xff]
    %v2041 = vld [vmem:[#allocation12 + $0xea8] sm:$0xff]
    %v2042 = vld [vmem:[#allocation12 + $0xeb0] sm:$0xff]
    %v2043 = vld [vmem:[#allocation12 + $0xeb8] sm:$0xff]
    %v2044 = vld [vmem:[#allocation12 + $0xfa0] sm:$0xff]
    %v2045 = vld [vmem:[#allocation12 + $0xfa8] sm:$0xff]
    %v2046 = vld [vmem:[#allocation12 + $0xfb0] sm:$0xff]
    %v2047 = vld [vmem:[#allocation12 + $0xfb8] sm:$0xff]
    %v2048 = vld [vmem:[#allocation14 + $0x14] sm:$0xf]
    %v2050 = vlaneseq
    %v2051 = vshrl.u32 %v2050, 7
    %v2052 = vsub.s32 0, %v2051
    %v2053 = vrot.slane %v2048, %v2052
    %v2054 = vlaneseq
    %v2055 = vshrl.u32 %v2054, 7
    %v2056 = vsub.s32 1, %v2055
    %v2057 = vrot.slane %v2048, %v2056
    %v2058 = vlaneseq
    %v2059 = vshrl.u32 %v2058, 7
    %v2060 = vsub.s32 2, %v2059
    %v2061 = vrot.slane %v2048, %v2060
    %v2062 = vlaneseq
    %v2063 = vshrl.u32 %v2062, 7
    %v2064 = vsub.s32 3, %v2063
    %v2065 = vrot.slane %v2048, %v2064
    %2070 = vmatprep.subr.mxu0 %v2045
    %2071 = vmatpush1.msra.mxu0 %v2044
    %2072 = vmatprep.subr.mxu0 %v2041
    %2073 = vmatpush1.msra.mxu0 %v2040
    %2074 = vmatprep.subr.mxu0 %v2037
    %2075 = vmatpush1.msra.mxu0 %v2036
    %2076 = vmatprep.subr.mxu0 %v2033
    %2077 = vmatpush1.msra.mxu0 %v2032
    %2078 = vmatprep.subr.mxu0 %v2029
    %2079 = vmatpush1.msra.mxu0 %v2028
    %2080 = vmatprep.subr.mxu0 %v2025
    %2081 = vmatpush1.msra.mxu0 %v2024
    %2082 = vmatprep.subr.mxu0 %v2021
    %2083 = vmatpush1.msra.mxu0 %v2020
    %2084 = vmatprep.subr.mxu0 %v2017
    %2085 = vmatpush1.msra.mxu0 %v2016
    %2086 = vmatprep.subr.mxu0 %v2013
    %2087 = vmatpush1.msra.mxu0 %v2012
    %2088 = vmatprep.subr.mxu0 %v2009
    %2089 = vmatpush1.msra.mxu0 %v2008
    %2090 = vmatprep.subr.mxu0 %v2005
    %2091 = vmatpush1.msra.mxu0 %v2004
    %2092 = vmatprep.subr.mxu0 %v2001
    %2093 = vmatpush1.msra.mxu0 %v2000
    %2094 = vmatprep.subr.mxu0 %v1997
    %2095 = vmatpush1.msra.mxu0 %v1996
    %2096 = vmatprep.subr.mxu0 %v1993
    %2097 = vmatpush1.msra.mxu0 %v1992
    %2098 = vmatprep.subr.mxu0 %v1989
    %2099 = vmatpush1.msra.mxu0 %v1988
    %2100 = vmatprep.subr.mxu0 %v1985
    %2101 = vmatpush1.msra.mxu0 %v1984
    %2102 = vmatprep.subr.mxu0 0.0
    %2103 = vmatpush2.msra.mxu0 0.0
    %2104 = vmatprep.subr.mxu0 0.0
    %2105 = vmatpush2.msra.mxu0 0.0
    %2106 = vmatprep.subr.mxu0 0.0
    %2107 = vmatpush2.msra.mxu0 0.0
    %2108 = vmatprep.subr.mxu0 0.0
    %2109 = vmatpush2.msra.mxu0 0.0
    %2110 = vmatprep.subr.mxu0 0.0
    %2111 = vmatpush2.msra.mxu0 0.0
    %2112 = vmatprep.subr.mxu0 0.0
    %2113 = vmatpush2.msra.mxu0 0.0
    %2114 = vmatprep.subr.mxu0 0.0
    %2115 = vmatpush2.msra.mxu0 0.0
    %2116 = vmatprep.subr.mxu0 0.0
    %2117 = vmatpush2.msra.mxu0 0.0
    %2118 = vmatprep.subr.mxu0 0.0
    %2119 = vmatpush2.msra.mxu0 0.0
    %2120 = vmatprep.subr.mxu0 0.0
    %2121 = vmatpush2.msra.mxu0 0.0
    %2122 = vmatprep.subr.mxu0 0.0
    %2123 = vmatpush2.msra.mxu0 0.0
    %2124 = vmatprep.subr.mxu0 0.0
    %2125 = vmatpush2.msra.mxu0 0.0
    %2126 = vmatprep.subr.mxu0 0.0
    %2127 = vmatpush2.msra.mxu0 0.0
    %2128 = vmatprep.subr.mxu0 0.0
    %2129 = vmatpush2.msra.mxu0 0.0
    %2130 = vmatprep.subr.mxu0 0.0
    %2131 = vmatpush2.msra.mxu0 0.0
    %2132 = vmatprep.subr.mxu0 0.0
    %2133 = vmatpush2.msra.mxu0 0.0
    %2134 = vmatprep.mubr.f32.mxu0 0.0
    %2135 = vmatmul.mubr.f32.gmra.mxu0 %v580
    %v2136 = vpop.f32.mrf.mxu0
    %v2137 = vadd.f32 %v2053, %v2136
    %v2138 = vpop.f32.mrf.mxu0
    %v2139 = vadd.f32 %v2057, %v2138
    %2140 = vmatprep.mubr.f32.mxu0 0.0
    %2141 = vmatmul.mubr.f32.gmra.mxu0 %v581
    %v2142 = vpop.f32.mrf.mxu0
    %v2143 = vadd.f32 %v2053, %v2142
    %v2144 = vpop.f32.mrf.mxu0
    %v2145 = vadd.f32 %v2057, %v2144
    %2146 = vmatprep.mubr.f32.mxu0 0.0
    %2147 = vmatmul.mubr.f32.gmra.mxu0 %v582
    %v2148 = vpop.f32.mrf.mxu0
    %v2149 = vadd.f32 %v2053, %v2148
    %v2150 = vpop.f32.mrf.mxu0
    %v2151 = vadd.f32 %v2057, %v2150
    %2152 = vmatprep.mubr.f32.mxu0 0.0
    %2153 = vmatmul.mubr.f32.gmra.mxu0 %v583
    %v2154 = vpop.f32.mrf.mxu0
    %v2155 = vadd.f32 %v2053, %v2154
    %v2156 = vpop.f32.mrf.mxu0
    %v2157 = vadd.f32 %v2057, %v2156
    %2158 = vdwg.mxu0
    %2159 = vmatprep.subr.mxu0 %v2047
    %2160 = vmatpush1.msra.mxu0 %v2046
    %2161 = vmatprep.subr.mxu0 %v2043
    %2162 = vmatpush1.msra.mxu0 %v2042
    %2163 = vmatprep.subr.mxu0 %v2039
    %2164 = vmatpush1.msra.mxu0 %v2038
    %2165 = vmatprep.subr.mxu0 %v2035
    %2166 = vmatpush1.msra.mxu0 %v2034
    %2167 = vmatprep.subr.mxu0 %v2031
    %2168 = vmatpush1.msra.mxu0 %v2030
    %2169 = vmatprep.subr.mxu0 %v2027
    %2170 = vmatpush1.msra.mxu0 %v2026
    %2171 = vmatprep.subr.mxu0 %v2023
    %2172 = vmatpush1.msra.mxu0 %v2022
    %2173 = vmatprep.subr.mxu0 %v2019
    %2174 = vmatpush1.msra.mxu0 %v2018
    %2175 = vmatprep.subr.mxu0 %v2015
    %2176 = vmatpush1.msra.mxu0 %v2014
    %2177 = vmatprep.subr.mxu0 %v2011
    %2178 = vmatpush1.msra.mxu0 %v2010
    %2179 = vmatprep.subr.mxu0 %v2007
    %2180 = vmatpush1.msra.mxu0 %v2006
    %2181 = vmatprep.subr.mxu0 %v2003
    %2182 = vmatpush1.msra.mxu0 %v2002
    %2183 = vmatprep.subr.mxu0 %v1999
    %2184 = vmatpush1.msra.mxu0 %v1998
    %2185 = vmatprep.subr.mxu0 %v1995
    %2186 = vmatpush1.msra.mxu0 %v1994
    %2187 = vmatprep.subr.mxu0 %v1991
    %2188 = vmatpush1.msra.mxu0 %v1990
    %2189 = vmatprep.subr.mxu0 %v1987
    %2190 = vmatpush1.msra.mxu0 %v1986
    %2191 = vmatprep.subr.mxu0 0.0
    %2192 = vmatpush2.msra.mxu0 0.0
    %2193 = vmatprep.subr.mxu0 0.0
    %2194 = vmatpush2.msra.mxu0 0.0
    %2195 = vmatprep.subr.mxu0 0.0
    %2196 = vmatpush2.msra.mxu0 0.0
    %2197 = vmatprep.subr.mxu0 0.0
    %2198 = vmatpush2.msra.mxu0 0.0
    %2199 = vmatprep.subr.mxu0 0.0
    %2200 = vmatpush2.msra.mxu0 0.0
    %2201 = vmatprep.subr.mxu0 0.0
    %2202 = vmatpush2.msra.mxu0 0.0
    %2203 = vmatprep.subr.mxu0 0.0
    %2204 = vmatpush2.msra.mxu0 0.0
    %2205 = vmatprep.subr.mxu0 0.0
    %2206 = vmatpush2.msra.mxu0 0.0
    %2207 = vmatprep.subr.mxu0 0.0
    %2208 = vmatpush2.msra.mxu0 0.0
    %2209 = vmatprep.subr.mxu0 0.0
    %2210 = vmatpush2.msra.mxu0 0.0
    %2211 = vmatprep.subr.mxu0 0.0
    %2212 = vmatpush2.msra.mxu0 0.0
    %2213 = vmatprep.subr.mxu0 0.0
    %2214 = vmatpush2.msra.mxu0 0.0
    %2215 = vmatprep.subr.mxu0 0.0
    %2216 = vmatpush2.msra.mxu0 0.0
    %2217 = vmatprep.subr.mxu0 0.0
    %2218 = vmatpush2.msra.mxu0 0.0
    %2219 = vmatprep.subr.mxu0 0.0
    %2220 = vmatpush2.msra.mxu0 0.0
    %2221 = vmatprep.subr.mxu0 0.0
    %2222 = vmatpush2.msra.mxu0 0.0
    %2223 = vmatprep.mubr.f32.mxu0 0.0
    %2224 = vmatmul.mubr.f32.gmra.mxu0 %v580
    %v2225 = vpop.f32.mrf.mxu0
    %v2226 = vadd.f32 %v2061, %v2225
    %v2227 = vpop.f32.mrf.mxu0
    %v2228 = vadd.f32 %v2065, %v2227
    %2229 = vmatprep.mubr.f32.mxu0 0.0
    %2230 = vmatmul.mubr.f32.gmra.mxu0 %v581
    %v2231 = vpop.f32.mrf.mxu0
    %v2232 = vadd.f32 %v2061, %v2231
    %v2233 = vpop.f32.mrf.mxu0
    %v2234 = vadd.f32 %v2065, %v2233
    %2235 = vmatprep.mubr.f32.mxu0 0.0
    %2236 = vmatmul.mubr.f32.gmra.mxu0 %v582
    %v2237 = vpop.f32.mrf.mxu0
    %v2238 = vadd.f32 %v2061, %v2237
    %v2239 = vpop.f32.mrf.mxu0
    %v2240 = vadd.f32 %v2065, %v2239
    %2241 = vmatprep.mubr.f32.mxu0 0.0
    %2242 = vmatmul.mubr.f32.gmra.mxu0 %v583
    %v2243 = vpop.f32.mrf.mxu0
    %v2244 = vadd.f32 %v2061, %v2243
    %v2245 = vpop.f32.mrf.mxu0
    %v2246 = vadd.f32 %v2065, %v2245
    %2247 = vdwg.mxu0
    %2248 = vst [vmem:[#allocation2 + $0xa0] sm:$0xff] %v2137
    %2249 = vst [vmem:[#allocation2 + $0xa8] sm:$0xff] %v2139
    %2250 = vst [vmem:[#allocation2 + $0xb0] sm:$0xff] %v2226
    %2251 = vst [vmem:[#allocation2 + $0xb8] sm:$0xff] %v2228
    %2252 = vst [vmem:[#allocation2 + $0x1a0] sm:$0xff] %v2143
    %2253 = vst [vmem:[#allocation2 + $0x1a8] sm:$0xff] %v2145
    %2254 = vst [vmem:[#allocation2 + $0x1b0] sm:$0xff] %v2232
    %2255 = vst [vmem:[#allocation2 + $0x1b8] sm:$0xff] %v2234
    %2256 = vst [vmem:[#allocation2 + $0x2a0] sm:$0xff] %v2149
    %2257 = vst [vmem:[#allocation2 + $0x2a8] sm:$0xff] %v2151
    %2258 = vst [vmem:[#allocation2 + $0x2b0] sm:$0xff] %v2238
    %2259 = vst [vmem:[#allocation2 + $0x2b8] sm:$0xff] %v2240
    %2260 = vst [vmem:[#allocation2 + $0x3a0] sm:$0xff] %v2155
    %2261 = vst [vmem:[#allocation2 + $0x3a8] sm:$0xff] %v2157
    %2262 = vst [vmem:[#allocation2 + $0x3b0] sm:$0xff] %v2244
    %2263 = vst [vmem:[#allocation2 + $0x3b8] sm:$0xff] %v2246
    %v2264 = vld [vmem:[#allocation12 + $0xc0] sm:$0xff]
    %v2265 = vld [vmem:[#allocation12 + $0xc8] sm:$0xff]
    %v2266 = vld [vmem:[#allocation12 + $0xd0] sm:$0xff]
    %v2267 = vld [vmem:[#allocation12 + $0xd8] sm:$0xff]
    %v2268 = vld [vmem:[#allocation12 + $0x1c0] sm:$0xff]
    %v2269 = vld [vmem:[#allocation12 + $0x1c8] sm:$0xff]
    %v2270 = vld [vmem:[#allocation12 + $0x1d0] sm:$0xff]
    %v2271 = vld [vmem:[#allocation12 + $0x1d8] sm:$0xff]
    %v2272 = vld [vmem:[#allocation12 + $0x2c0] sm:$0xff]
    %v2273 = vld [vmem:[#allocation12 + $0x2c8] sm:$0xff]
    %v2274 = vld [vmem:[#allocation12 + $0x2d0] sm:$0xff]
    %v2275 = vld [vmem:[#allocation12 + $0x2d8] sm:$0xff]
    %v2276 = vld [vmem:[#allocation12 + $0x3c0] sm:$0xff]
    %v2277 = vld [vmem:[#allocation12 + $0x3c8] sm:$0xff]
    %v2278 = vld [vmem:[#allocation12 + $0x3d0] sm:$0xff]
    %v2279 = vld [vmem:[#allocation12 + $0x3d8] sm:$0xff]
    %v2280 = vld [vmem:[#allocation12 + $0x4c0] sm:$0xff]
    %v2281 = vld [vmem:[#allocation12 + $0x4c8] sm:$0xff]
    %v2282 = vld [vmem:[#allocation12 + $0x4d0] sm:$0xff]
    %v2283 = vld [vmem:[#allocation12 + $0x4d8] sm:$0xff]
    %v2284 = vld [vmem:[#allocation12 + $0x5c0] sm:$0xff]
    %v2285 = vld [vmem:[#allocation12 + $0x5c8] sm:$0xff]
    %v2286 = vld [vmem:[#allocation12 + $0x5d0] sm:$0xff]
    %v2287 = vld [vmem:[#allocation12 + $0x5d8] sm:$0xff]
    %v2288 = vld [vmem:[#allocation12 + $0x6c0] sm:$0xff]
    %v2289 = vld [vmem:[#allocation12 + $0x6c8] sm:$0xff]
    %v2290 = vld [vmem:[#allocation12 + $0x6d0] sm:$0xff]
    %v2291 = vld [vmem:[#allocation12 + $0x6d8] sm:$0xff]
    %v2292 = vld [vmem:[#allocation12 + $0x7c0] sm:$0xff]
    %v2293 = vld [vmem:[#allocation12 + $0x7c8] sm:$0xff]
    %v2294 = vld [vmem:[#allocation12 + $0x7d0] sm:$0xff]
    %v2295 = vld [vmem:[#allocation12 + $0x7d8] sm:$0xff]
    %v2296 = vld [vmem:[#allocation12 + $0x8c0] sm:$0xff]
    %v2297 = vld [vmem:[#allocation12 + $0x8c8] sm:$0xff]
    %v2298 = vld [vmem:[#allocation12 + $0x8d0] sm:$0xff]
    %v2299 = vld [vmem:[#allocation12 + $0x8d8] sm:$0xff]
    %v2300 = vld [vmem:[#allocation12 + $0x9c0] sm:$0xff]
    %v2301 = vld [vmem:[#allocation12 + $0x9c8] sm:$0xff]
    %v2302 = vld [vmem:[#allocation12 + $0x9d0] sm:$0xff]
    %v2303 = vld [vmem:[#allocation12 + $0x9d8] sm:$0xff]
    %v2304 = vld [vmem:[#allocation12 + $0xac0] sm:$0xff]
    %v2305 = vld [vmem:[#allocation12 + $0xac8] sm:$0xff]
    %v2306 = vld [vmem:[#allocation12 + $0xad0] sm:$0xff]
    %v2307 = vld [vmem:[#allocation12 + $0xad8] sm:$0xff]
    %v2308 = vld [vmem:[#allocation12 + $0xbc0] sm:$0xff]
    %v2309 = vld [vmem:[#allocation12 + $0xbc8] sm:$0xff]
    %v2310 = vld [vmem:[#allocation12 + $0xbd0] sm:$0xff]
    %v2311 = vld [vmem:[#allocation12 + $0xbd8] sm:$0xff]
    %v2312 = vld [vmem:[#allocation12 + $0xcc0] sm:$0xff]
    %v2313 = vld [vmem:[#allocation12 + $0xcc8] sm:$0xff]
    %v2314 = vld [vmem:[#allocation12 + $0xcd0] sm:$0xff]
    %v2315 = vld [vmem:[#allocation12 + $0xcd8] sm:$0xff]
    %v2316 = vld [vmem:[#allocation12 + $0xdc0] sm:$0xff]
    %v2317 = vld [vmem:[#allocation12 + $0xdc8] sm:$0xff]
    %v2318 = vld [vmem:[#allocation12 + $0xdd0] sm:$0xff]
    %v2319 = vld [vmem:[#allocation12 + $0xdd8] sm:$0xff]
    %v2320 = vld [vmem:[#allocation12 + $0xec0] sm:$0xff]
    %v2321 = vld [vmem:[#allocation12 + $0xec8] sm:$0xff]
    %v2322 = vld [vmem:[#allocation12 + $0xed0] sm:$0xff]
    %v2323 = vld [vmem:[#allocation12 + $0xed8] sm:$0xff]
    %v2324 = vld [vmem:[#allocation12 + $0xfc0] sm:$0xff]
    %v2325 = vld [vmem:[#allocation12 + $0xfc8] sm:$0xff]
    %v2326 = vld [vmem:[#allocation12 + $0xfd0] sm:$0xff]
    %v2327 = vld [vmem:[#allocation12 + $0xfd8] sm:$0xff]
    %v2328 = vld [vmem:[#allocation14 + $0x18] sm:$0xf]
    %v2330 = vlaneseq
    %v2331 = vshrl.u32 %v2330, 7
    %v2332 = vsub.s32 0, %v2331
    %v2333 = vrot.slane %v2328, %v2332
    %v2334 = vlaneseq
    %v2335 = vshrl.u32 %v2334, 7
    %v2336 = vsub.s32 1, %v2335
    %v2337 = vrot.slane %v2328, %v2336
    %v2338 = vlaneseq
    %v2339 = vshrl.u32 %v2338, 7
    %v2340 = vsub.s32 2, %v2339
    %v2341 = vrot.slane %v2328, %v2340
    %v2342 = vlaneseq
    %v2343 = vshrl.u32 %v2342, 7
    %v2344 = vsub.s32 3, %v2343
    %v2345 = vrot.slane %v2328, %v2344
    %2350 = vmatprep.subr.mxu0 %v2325
    %2351 = vmatpush1.msra.mxu0 %v2324
    %2352 = vmatprep.subr.mxu0 %v2321
    %2353 = vmatpush1.msra.mxu0 %v2320
    %2354 = vmatprep.subr.mxu0 %v2317
    %2355 = vmatpush1.msra.mxu0 %v2316
    %2356 = vmatprep.subr.mxu0 %v2313
    %2357 = vmatpush1.msra.mxu0 %v2312
    %2358 = vmatprep.subr.mxu0 %v2309
    %2359 = vmatpush1.msra.mxu0 %v2308
    %2360 = vmatprep.subr.mxu0 %v2305
    %2361 = vmatpush1.msra.mxu0 %v2304
    %2362 = vmatprep.subr.mxu0 %v2301
    %2363 = vmatpush1.msra.mxu0 %v2300
    %2364 = vmatprep.subr.mxu0 %v2297
    %2365 = vmatpush1.msra.mxu0 %v2296
    %2366 = vmatprep.subr.mxu0 %v2293
    %2367 = vmatpush1.msra.mxu0 %v2292
    %2368 = vmatprep.subr.mxu0 %v2289
    %2369 = vmatpush1.msra.mxu0 %v2288
    %2370 = vmatprep.subr.mxu0 %v2285
    %2371 = vmatpush1.msra.mxu0 %v2284
    %2372 = vmatprep.subr.mxu0 %v2281
    %2373 = vmatpush1.msra.mxu0 %v2280
    %2374 = vmatprep.subr.mxu0 %v2277
    %2375 = vmatpush1.msra.mxu0 %v2276
    %2376 = vmatprep.subr.mxu0 %v2273
    %2377 = vmatpush1.msra.mxu0 %v2272
    %2378 = vmatprep.subr.mxu0 %v2269
    %2379 = vmatpush1.msra.mxu0 %v2268
    %2380 = vmatprep.subr.mxu0 %v2265
    %2381 = vmatpush1.msra.mxu0 %v2264
    %2382 = vmatprep.subr.mxu0 0.0
    %2383 = vmatpush2.msra.mxu0 0.0
    %2384 = vmatprep.subr.mxu0 0.0
    %2385 = vmatpush2.msra.mxu0 0.0
    %2386 = vmatprep.subr.mxu0 0.0
    %2387 = vmatpush2.msra.mxu0 0.0
    %2388 = vmatprep.subr.mxu0 0.0
    %2389 = vmatpush2.msra.mxu0 0.0
    %2390 = vmatprep.subr.mxu0 0.0
    %2391 = vmatpush2.msra.mxu0 0.0
    %2392 = vmatprep.subr.mxu0 0.0
    %2393 = vmatpush2.msra.mxu0 0.0
    %2394 = vmatprep.subr.mxu0 0.0
    %2395 = vmatpush2.msra.mxu0 0.0
    %2396 = vmatprep.subr.mxu0 0.0
    %2397 = vmatpush2.msra.mxu0 0.0
    %2398 = vmatprep.subr.mxu0 0.0
    %2399 = vmatpush2.msra.mxu0 0.0
    %2400 = vmatprep.subr.mxu0 0.0
    %2401 = vmatpush2.msra.mxu0 0.0
    %2402 = vmatprep.subr.mxu0 0.0
    %2403 = vmatpush2.msra.mxu0 0.0
    %2404 = vmatprep.subr.mxu0 0.0
    %2405 = vmatpush2.msra.mxu0 0.0
    %2406 = vmatprep.subr.mxu0 0.0
    %2407 = vmatpush2.msra.mxu0 0.0
    %2408 = vmatprep.subr.mxu0 0.0
    %2409 = vmatpush2.msra.mxu0 0.0
    %2410 = vmatprep.subr.mxu0 0.0
    %2411 = vmatpush2.msra.mxu0 0.0
    %2412 = vmatprep.subr.mxu0 0.0
    %2413 = vmatpush2.msra.mxu0 0.0
    %2414 = vmatprep.mubr.f32.mxu0 0.0
    %2415 = vmatmul.mubr.f32.gmra.mxu0 %v580
    %v2416 = vpop.f32.mrf.mxu0
    %v2417 = vadd.f32 %v2333, %v2416
    %v2418 = vpop.f32.mrf.mxu0
    %v2419 = vadd.f32 %v2337, %v2418
    %2420 = vmatprep.mubr.f32.mxu0 0.0
    %2421 = vmatmul.mubr.f32.gmra.mxu0 %v581
    %v2422 = vpop.f32.mrf.mxu0
    %v2423 = vadd.f32 %v2333, %v2422
    %v2424 = vpop.f32.mrf.mxu0
    %v2425 = vadd.f32 %v2337, %v2424
    %2426 = vmatprep.mubr.f32.mxu0 0.0
    %2427 = vmatmul.mubr.f32.gmra.mxu0 %v582
    %v2428 = vpop.f32.mrf.mxu0
    %v2429 = vadd.f32 %v2333, %v2428
    %v2430 = vpop.f32.mrf.mxu0
    %v2431 = vadd.f32 %v2337, %v2430
    %2432 = vmatprep.mubr.f32.mxu0 0.0
    %2433 = vmatmul.mubr.f32.gmra.mxu0 %v583
    %v2434 = vpop.f32.mrf.mxu0
    %v2435 = vadd.f32 %v2333, %v2434
    %v2436 = vpop.f32.mrf.mxu0
    %v2437 = vadd.f32 %v2337, %v2436
    %2438 = vdwg.mxu0
    %2439 = vmatprep.subr.mxu0 %v2327
    %2440 = vmatpush1.msra.mxu0 %v2326
    %2441 = vmatprep.subr.mxu0 %v2323
    %2442 = vmatpush1.msra.mxu0 %v2322
    %2443 = vmatprep.subr.mxu0 %v2319
    %2444 = vmatpush1.msra.mxu0 %v2318
    %2445 = vmatprep.subr.mxu0 %v2315
    %2446 = vmatpush1.msra.mxu0 %v2314
    %2447 = vmatprep.subr.mxu0 %v2311
    %2448 = vmatpush1.msra.mxu0 %v2310
    %2449 = vmatprep.subr.mxu0 %v2307
    %2450 = vmatpush1.msra.mxu0 %v2306
    %2451 = vmatprep.subr.mxu0 %v2303
    %2452 = vmatpush1.msra.mxu0 %v2302
    %2453 = vmatprep.subr.mxu0 %v2299
    %2454 = vmatpush1.msra.mxu0 %v2298
    %2455 = vmatprep.subr.mxu0 %v2295
    %2456 = vmatpush1.msra.mxu0 %v2294
    %2457 = vmatprep.subr.mxu0 %v2291
    %2458 = vmatpush1.msra.mxu0 %v2290
    %2459 = vmatprep.subr.mxu0 %v2287
    %2460 = vmatpush1.msra.mxu0 %v2286
    %2461 = vmatprep.subr.mxu0 %v2283
    %2462 = vmatpush1.msra.mxu0 %v2282
    %2463 = vmatprep.subr.mxu0 %v2279
    %2464 = vmatpush1.msra.mxu0 %v2278
    %2465 = vmatprep.subr.mxu0 %v2275
    %2466 = vmatpush1.msra.mxu0 %v2274
    %2467 = vmatprep.subr.mxu0 %v2271
    %2468 = vmatpush1.msra.mxu0 %v2270
    %2469 = vmatprep.subr.mxu0 %v2267
    %2470 = vmatpush1.msra.mxu0 %v2266
    %2471 = vmatprep.subr.mxu0 0.0
    %2472 = vmatpush2.msra.mxu0 0.0
    %2473 = vmatprep.subr.mxu0 0.0
    %2474 = vmatpush2.msra.mxu0 0.0
    %2475 = vmatprep.subr.mxu0 0.0
    %2476 = vmatpush2.msra.mxu0 0.0
    %2477 = vmatprep.subr.mxu0 0.0
    %2478 = vmatpush2.msra.mxu0 0.0
    %2479 = vmatprep.subr.mxu0 0.0
    %2480 = vmatpush2.msra.mxu0 0.0
    %2481 = vmatprep.subr.mxu0 0.0
    %2482 = vmatpush2.msra.mxu0 0.0
    %2483 = vmatprep.subr.mxu0 0.0
    %2484 = vmatpush2.msra.mxu0 0.0
    %2485 = vmatprep.subr.mxu0 0.0
    %2486 = vmatpush2.msra.mxu0 0.0
    %2487 = vmatprep.subr.mxu0 0.0
    %2488 = vmatpush2.msra.mxu0 0.0
    %2489 = vmatprep.subr.mxu0 0.0
    %2490 = vmatpush2.msra.mxu0 0.0
    %2491 = vmatprep.subr.mxu0 0.0
    %2492 = vmatpush2.msra.mxu0 0.0
    %2493 = vmatprep.subr.mxu0 0.0
    %2494 = vmatpush2.msra.mxu0 0.0
    %2495 = vmatprep.subr.mxu0 0.0
    %2496 = vmatpush2.msra.mxu0 0.0
    %2497 = vmatprep.subr.mxu0 0.0
    %2498 = vmatpush2.msra.mxu0 0.0
    %2499 = vmatprep.subr.mxu0 0.0
    %2500 = vmatpush2.msra.mxu0 0.0
    %2501 = vmatprep.subr.mxu0 0.0
    %2502 = vmatpush2.msra.mxu0 0.0
    %2503 = vmatprep.mubr.f32.mxu0 0.0
    %2504 = vmatmul.mubr.f32.gmra.mxu0 %v580
    %v2505 = vpop.f32.mrf.mxu0
    %v2506 = vadd.f32 %v2341, %v2505
    %v2507 = vpop.f32.mrf.mxu0
    %v2508 = vadd.f32 %v2345, %v2507
    %2509 = vmatprep.mubr.f32.mxu0 0.0
    %2510 = vmatmul.mubr.f32.gmra.mxu0 %v581
    %v2511 = vpop.f32.mrf.mxu0
    %v2512 = vadd.f32 %v2341, %v2511
    %v2513 = vpop.f32.mrf.mxu0
    %v2514 = vadd.f32 %v2345, %v2513
    %2515 = vmatprep.mubr.f32.mxu0 0.0
    %2516 = vmatmul.mubr.f32.gmra.mxu0 %v582
    %v2517 = vpop.f32.mrf.mxu0
    %v2518 = vadd.f32 %v2341, %v2517
    %v2519 = vpop.f32.mrf.mxu0
    %v2520 = vadd.f32 %v2345, %v2519
    %2521 = vmatprep.mubr.f32.mxu0 0.0
    %2522 = vmatmul.mubr.f32.gmra.mxu0 %v583
    %v2523 = vpop.f32.mrf.mxu0
    %v2524 = vadd.f32 %v2341, %v2523
    %v2525 = vpop.f32.mrf.mxu0
    %v2526 = vadd.f32 %v2345, %v2525
    %2527 = vdwg.mxu0
    %2528 = vst [vmem:[#allocation2 + $0xc0] sm:$0xff] %v2417
    %2529 = vst [vmem:[#allocation2 + $0xc8] sm:$0xff] %v2419
    %2530 = vst [vmem:[#allocation2 + $0xd0] sm:$0xff] %v2506
    %2531 = vst [vmem:[#allocation2 + $0xd8] sm:$0xff] %v2508
    %2532 = vst [vmem:[#allocation2 + $0x1c0] sm:$0xff] %v2423
    %2533 = vst [vmem:[#allocation2 + $0x1c8] sm:$0xff] %v2425
    %2534 = vst [vmem:[#allocation2 + $0x1d0] sm:$0xff] %v2512
    %2535 = vst [vmem:[#allocation2 + $0x1d8] sm:$0xff] %v2514
    %2536 = vst [vmem:[#allocation2 + $0x2c0] sm:$0xff] %v2429
    %2537 = vst [vmem:[#allocation2 + $0x2c8] sm:$0xff] %v2431
    %2538 = vst [vmem:[#allocation2 + $0x2d0] sm:$0xff] %v2518
    %2539 = vst [vmem:[#allocation2 + $0x2d8] sm:$0xff] %v2520
    %2540 = vst [vmem:[#allocation2 + $0x3c0] sm:$0xff] %v2435
    %2541 = vst [vmem:[#allocation2 + $0x3c8] sm:$0xff] %v2437
    %2542 = vst [vmem:[#allocation2 + $0x3d0] sm:$0xff] %v2524
    %2543 = vst [vmem:[#allocation2 + $0x3d8] sm:$0xff] %v2526
    %v2544 = vld [vmem:[#allocation12 + $0xe0] sm:$0xff]
    %v2545 = vld [vmem:[#allocation12 + $0xe8] sm:$0xff]
    %v2546 = vld [vmem:[#allocation12 + $0xf0] sm:$0xff]
    %v2547 = vld [vmem:[#allocation12 + $0xf8] sm:$0xff]
    %v2548 = vld [vmem:[#allocation12 + $0x1e0] sm:$0xff]
    %v2549 = vld [vmem:[#allocation12 + $0x1e8] sm:$0xff]
    %v2550 = vld [vmem:[#allocation12 + $0x1f0] sm:$0xff]
    %v2551 = vld [vmem:[#allocation12 + $0x1f8] sm:$0xff]
    %v2552 = vld [vmem:[#allocation12 + $0x2e0] sm:$0xff]
    %v2553 = vld [vmem:[#allocation12 + $0x2e8] sm:$0xff]
    %v2554 = vld [vmem:[#allocation12 + $0x2f0] sm:$0xff]
    %v2555 = vld [vmem:[#allocation12 + $0x2f8] sm:$0xff]
    %v2556 = vld [vmem:[#allocation12 + $0x3e0] sm:$0xff]
    %v2557 = vld [vmem:[#allocation12 + $0x3e8] sm:$0xff]
    %v2558 = vld [vmem:[#allocation12 + $0x3f0] sm:$0xff]
    %v2559 = vld [vmem:[#allocation12 + $0x3f8] sm:$0xff]
    %v2560 = vld [vmem:[#allocation12 + $0x4e0] sm:$0xff]
    %v2561 = vld [vmem:[#allocation12 + $0x4e8] sm:$0xff]
    %v2562 = vld [vmem:[#allocation12 + $0x4f0] sm:$0xff]
    %v2563 = vld [vmem:[#allocation12 + $0x4f8] sm:$0xff]
    %v2564 = vld [vmem:[#allocation12 + $0x5e0] sm:$0xff]
    %v2565 = vld [vmem:[#allocation12 + $0x5e8] sm:$0xff]
    %v2566 = vld [vmem:[#allocation12 + $0x5f0] sm:$0xff]
    %v2567 = vld [vmem:[#allocation12 + $0x5f8] sm:$0xff]
    %v2568 = vld [vmem:[#allocation12 + $0x6e0] sm:$0xff]
    %v2569 = vld [vmem:[#allocation12 + $0x6e8] sm:$0xff]
    %v2570 = vld [vmem:[#allocation12 + $0x6f0] sm:$0xff]
    %v2571 = vld [vmem:[#allocation12 + $0x6f8] sm:$0xff]
    %v2572 = vld [vmem:[#allocation12 + $0x7e0] sm:$0xff]
    %v2573 = vld [vmem:[#allocation12 + $0x7e8] sm:$0xff]
    %v2574 = vld [vmem:[#allocation12 + $0x7f0] sm:$0xff]
    %v2575 = vld [vmem:[#allocation12 + $0x7f8] sm:$0xff]
    %v2576 = vld [vmem:[#allocation12 + $0x8e0] sm:$0xff]
    %v2577 = vld [vmem:[#allocation12 + $0x8e8] sm:$0xff]
    %v2578 = vld [vmem:[#allocation12 + $0x8f0] sm:$0xff]
    %v2579 = vld [vmem:[#allocation12 + $0x8f8] sm:$0xff]
    %v2580 = vld [vmem:[#allocation12 + $0x9e0] sm:$0xff]
    %v2581 = vld [vmem:[#allocation12 + $0x9e8] sm:$0xff]
    %v2582 = vld [vmem:[#allocation12 + $0x9f0] sm:$0xff]
    %v2583 = vld [vmem:[#allocation12 + $0x9f8] sm:$0xff]
    %v2584 = vld [vmem:[#allocation12 + $0xae0] sm:$0xff]
    %v2585 = vld [vmem:[#allocation12 + $0xae8] sm:$0xff]
    %v2586 = vld [vmem:[#allocation12 + $0xaf0] sm:$0xff]
    %v2587 = vld [vmem:[#allocation12 + $0xaf8] sm:$0xff]
    %v2588 = vld [vmem:[#allocation12 + $0xbe0] sm:$0xff]
    %v2589 = vld [vmem:[#allocation12 + $0xbe8] sm:$0xff]
    %v2590 = vld [vmem:[#allocation12 + $0xbf0] sm:$0xff]
    %v2591 = vld [vmem:[#allocation12 + $0xbf8] sm:$0xff]
    %v2592 = vld [vmem:[#allocation12 + $0xce0] sm:$0xff]
    %v2593 = vld [vmem:[#allocation12 + $0xce8] sm:$0xff]
    %v2594 = vld [vmem:[#allocation12 + $0xcf0] sm:$0xff]
    %v2595 = vld [vmem:[#allocation12 + $0xcf8] sm:$0xff]
    %v2596 = vld [vmem:[#allocation12 + $0xde0] sm:$0xff]
    %v2597 = vld [vmem:[#allocation12 + $0xde8] sm:$0xff]
    %v2598 = vld [vmem:[#allocation12 + $0xdf0] sm:$0xff]
    %v2599 = vld [vmem:[#allocation12 + $0xdf8] sm:$0xff]
    %v2600 = vld [vmem:[#allocation12 + $0xee0] sm:$0xff]
    %v2601 = vld [vmem:[#allocation12 + $0xee8] sm:$0xff]
    %v2602 = vld [vmem:[#allocation12 + $0xef0] sm:$0xff]
    %v2603 = vld [vmem:[#allocation12 + $0xef8] sm:$0xff]
    %v2604 = vld [vmem:[#allocation12 + $0xfe0] sm:$0xff]
    %v2605 = vld [vmem:[#allocation12 + $0xfe8] sm:$0xff]
    %v2606 = vld [vmem:[#allocation12 + $0xff0] sm:$0xff]
    %v2607 = vld [vmem:[#allocation12 + $0xff8] sm:$0xff]
    %v2608 = vld [vmem:[#allocation14 + $0x1c] sm:$0xf]
    %v2610 = vlaneseq
    %v2611 = vshrl.u32 %v2610, 7
    %v2612 = vsub.s32 0, %v2611
    %v2613 = vrot.slane %v2608, %v2612
    %v2614 = vlaneseq
    %v2615 = vshrl.u32 %v2614, 7
    %v2616 = vsub.s32 1, %v2615
    %v2617 = vrot.slane %v2608, %v2616
    %v2618 = vlaneseq
    %v2619 = vshrl.u32 %v2618, 7
    %v2620 = vsub.s32 2, %v2619
    %v2621 = vrot.slane %v2608, %v2620
    %v2622 = vlaneseq
    %v2623 = vshrl.u32 %v2622, 7
    %v2624 = vsub.s32 3, %v2623
    %v2625 = vrot.slane %v2608, %v2624
    %2630 = vmatprep.subr.mxu0 %v2605
    %2631 = vmatpush1.msra.mxu0 %v2604
    %2632 = vmatprep.subr.mxu0 %v2601
    %2633 = vmatpush1.msra.mxu0 %v2600
    %2634 = vmatprep.subr.mxu0 %v2597
    %2635 = vmatpush1.msra.mxu0 %v2596
    %2636 = vmatprep.subr.mxu0 %v2593
    %2637 = vmatpush1.msra.mxu0 %v2592
    %2638 = vmatprep.subr.mxu0 %v2589
    %2639 = vmatpush1.msra.mxu0 %v2588
    %2640 = vmatprep.subr.mxu0 %v2585
    %2641 = vmatpush1.msra.mxu0 %v2584
    %2642 = vmatprep.subr.mxu0 %v2581
    %2643 = vmatpush1.msra.mxu0 %v2580
    %2644 = vmatprep.subr.mxu0 %v2577
    %2645 = vmatpush1.msra.mxu0 %v2576
    %2646 = vmatprep.subr.mxu0 %v2573
    %2647 = vmatpush1.msra.mxu0 %v2572
    %2648 = vmatprep.subr.mxu0 %v2569
    %2649 = vmatpush1.msra.mxu0 %v2568
    %2650 = vmatprep.subr.mxu0 %v2565
    %2651 = vmatpush1.msra.mxu0 %v2564
    %2652 = vmatprep.subr.mxu0 %v2561
    %2653 = vmatpush1.msra.mxu0 %v2560
    %2654 = vmatprep.subr.mxu0 %v2557
    %2655 = vmatpush1.msra.mxu0 %v2556
    %2656 = vmatprep.subr.mxu0 %v2553
    %2657 = vmatpush1.msra.mxu0 %v2552
    %2658 = vmatprep.subr.mxu0 %v2549
    %2659 = vmatpush1.msra.mxu0 %v2548
    %2660 = vmatprep.subr.mxu0 %v2545
    %2661 = vmatpush1.msra.mxu0 %v2544
    %2662 = vmatprep.subr.mxu0 0.0
    %2663 = vmatpush2.msra.mxu0 0.0
    %2664 = vmatprep.subr.mxu0 0.0
    %2665 = vmatpush2.msra.mxu0 0.0
    %2666 = vmatprep.subr.mxu0 0.0
    %2667 = vmatpush2.msra.mxu0 0.0
    %2668 = vmatprep.subr.mxu0 0.0
    %2669 = vmatpush2.msra.mxu0 0.0
    %2670 = vmatprep.subr.mxu0 0.0
    %2671 = vmatpush2.msra.mxu0 0.0
    %2672 = vmatprep.subr.mxu0 0.0
    %2673 = vmatpush2.msra.mxu0 0.0
    %2674 = vmatprep.subr.mxu0 0.0
    %2675 = vmatpush2.msra.mxu0 0.0
    %2676 = vmatprep.subr.mxu0 0.0
    %2677 = vmatpush2.msra.mxu0 0.0
    %2678 = vmatprep.subr.mxu0 0.0
    %2679 = vmatpush2.msra.mxu0 0.0
    %2680 = vmatprep.subr.mxu0 0.0
    %2681 = vmatpush2.msra.mxu0 0.0
    %2682 = vmatprep.subr.mxu0 0.0
    %2683 = vmatpush2.msra.mxu0 0.0
    %2684 = vmatprep.subr.mxu0 0.0
    %2685 = vmatpush2.msra.mxu0 0.0
    %2686 = vmatprep.subr.mxu0 0.0
    %2687 = vmatpush2.msra.mxu0 0.0
    %2688 = vmatprep.subr.mxu0 0.0
    %2689 = vmatpush2.msra.mxu0 0.0
    %2690 = vmatprep.subr.mxu0 0.0
    %2691 = vmatpush2.msra.mxu0 0.0
    %2692 = vmatprep.subr.mxu0 0.0
    %2693 = vmatpush2.msra.mxu0 0.0
    %2694 = vmatprep.mubr.f32.mxu0 0.0
    %2695 = vmatmul.mubr.f32.gmra.mxu0 %v580
    %v2696 = vpop.f32.mrf.mxu0
    %v2697 = vadd.f32 %v2613, %v2696
    %v2698 = vpop.f32.mrf.mxu0
    %v2699 = vadd.f32 %v2617, %v2698
    %2700 = vmatprep.mubr.f32.mxu0 0.0
    %2701 = vmatmul.mubr.f32.gmra.mxu0 %v581
    %v2702 = vpop.f32.mrf.mxu0
    %v2703 = vadd.f32 %v2613, %v2702
    %v2704 = vpop.f32.mrf.mxu0
    %v2705 = vadd.f32 %v2617, %v2704
    %2706 = vmatprep.mubr.f32.mxu0 0.0
    %2707 = vmatmul.mubr.f32.gmra.mxu0 %v582
    %v2708 = vpop.f32.mrf.mxu0
    %v2709 = vadd.f32 %v2613, %v2708
    %v2710 = vpop.f32.mrf.mxu0
    %v2711 = vadd.f32 %v2617, %v2710
    %2712 = vmatprep.mubr.f32.mxu0 0.0
    %2713 = vmatmul.mubr.f32.gmra.mxu0 %v583
    %v2714 = vpop.f32.mrf.mxu0
    %v2715 = vadd.f32 %v2613, %v2714
    %v2716 = vpop.f32.mrf.mxu0
    %v2717 = vadd.f32 %v2617, %v2716
    %2718 = vdwg.mxu0
    %2719 = vmatprep.subr.mxu0 %v2607
    %2720 = vmatpush1.msra.mxu0 %v2606
    %2721 = vmatprep.subr.mxu0 %v2603
    %2722 = vmatpush1.msra.mxu0 %v2602
    %2723 = vmatprep.subr.mxu0 %v2599
    %2724 = vmatpush1.msra.mxu0 %v2598
    %2725 = vmatprep.subr.mxu0 %v2595
    %2726 = vmatpush1.msra.mxu0 %v2594
    %2727 = vmatprep.subr.mxu0 %v2591
    %2728 = vmatpush1.msra.mxu0 %v2590
    %2729 = vmatprep.subr.mxu0 %v2587
    %2730 = vmatpush1.msra.mxu0 %v2586
    %2731 = vmatprep.subr.mxu0 %v2583
    %2732 = vmatpush1.msra.mxu0 %v2582
    %2733 = vmatprep.subr.mxu0 %v2579
    %2734 = vmatpush1.msra.mxu0 %v2578
    %2735 = vmatprep.subr.mxu0 %v2575
    %2736 = vmatpush1.msra.mxu0 %v2574
    %2737 = vmatprep.subr.mxu0 %v2571
    %2738 = vmatpush1.msra.mxu0 %v2570
    %2739 = vmatprep.subr.mxu0 %v2567
    %2740 = vmatpush1.msra.mxu0 %v2566
    %2741 = vmatprep.subr.mxu0 %v2563
    %2742 = vmatpush1.msra.mxu0 %v2562
    %2743 = vmatprep.subr.mxu0 %v2559
    %2744 = vmatpush1.msra.mxu0 %v2558
    %2745 = vmatprep.subr.mxu0 %v2555
    %2746 = vmatpush1.msra.mxu0 %v2554
    %2747 = vmatprep.subr.mxu0 %v2551
    %2748 = vmatpush1.msra.mxu0 %v2550
    %2749 = vmatprep.subr.mxu0 %v2547
    %2750 = vmatpush1.msra.mxu0 %v2546
    %2751 = vmatprep.subr.mxu0 0.0
    %2752 = vmatpush2.msra.mxu0 0.0
    %2753 = vmatprep.subr.mxu0 0.0
    %2754 = vmatpush2.msra.mxu0 0.0
    %2755 = vmatprep.subr.mxu0 0.0
    %2756 = vmatpush2.msra.mxu0 0.0
    %2757 = vmatprep.subr.mxu0 0.0
    %2758 = vmatpush2.msra.mxu0 0.0
    %2759 = vmatprep.subr.mxu0 0.0
    %2760 = vmatpush2.msra.mxu0 0.0
    %2761 = vmatprep.subr.mxu0 0.0
    %2762 = vmatpush2.msra.mxu0 0.0
    %2763 = vmatprep.subr.mxu0 0.0
    %2764 = vmatpush2.msra.mxu0 0.0
    %2765 = vmatprep.subr.mxu0 0.0
    %2766 = vmatpush2.msra.mxu0 0.0
    %2767 = vmatprep.subr.mxu0 0.0
    %2768 = vmatpush2.msra.mxu0 0.0
    %2769 = vmatprep.subr.mxu0 0.0
    %2770 = vmatpush2.msra.mxu0 0.0
    %2771 = vmatprep.subr.mxu0 0.0
    %2772 = vmatpush2.msra.mxu0 0.0
    %2773 = vmatprep.subr.mxu0 0.0
    %2774 = vmatpush2.msra.mxu0 0.0
    %2775 = vmatprep.subr.mxu0 0.0
    %2776 = vmatpush2.msra.mxu0 0.0
    %2777 = vmatprep.subr.mxu0 0.0
    %2778 = vmatpush2.msra.mxu0 0.0
    %2779 = vmatprep.subr.mxu0 0.0
    %2780 = vmatpush2.msra.mxu0 0.0
    %2781 = vmatprep.subr.mxu0 0.0
    %2782 = vmatpush2.msra.mxu0 0.0
    %2783 = vmatprep.mubr.f32.mxu0 0.0
    %2784 = vmatmul.mubr.f32.gmra.mxu0 %v580
    %v2785 = vpop.f32.mrf.mxu0
    %v2786 = vadd.f32 %v2621, %v2785
    %v2787 = vpop.f32.mrf.mxu0
    %v2788 = vadd.f32 %v2625, %v2787
    %2789 = vmatprep.mubr.f32.mxu0 0.0
    %2790 = vmatmul.mubr.f32.gmra.mxu0 %v581
    %v2791 = vpop.f32.mrf.mxu0
    %v2792 = vadd.f32 %v2621, %v2791
    %v2793 = vpop.f32.mrf.mxu0
    %v2794 = vadd.f32 %v2625, %v2793
    %2795 = vmatprep.mubr.f32.mxu0 0.0
    %2796 = vmatmul.mubr.f32.gmra.mxu0 %v582
    %v2797 = vpop.f32.mrf.mxu0
    %v2798 = vadd.f32 %v2621, %v2797
    %v2799 = vpop.f32.mrf.mxu0
    %v2800 = vadd.f32 %v2625, %v2799
    %2801 = vmatprep.mubr.f32.mxu0 0.0
    %2802 = vmatmul.mubr.f32.gmra.mxu0 %v583
    %v2803 = vpop.f32.mrf.mxu0
    %v2804 = vadd.f32 %v2621, %v2803
    %v2805 = vpop.f32.mrf.mxu0
    %v2806 = vadd.f32 %v2625, %v2805
    %2807 = vdwg.mxu0
    %2808 = vst [vmem:[#allocation2 + $0xe0] sm:$0xff] %v2697
    %2809 = vst [vmem:[#allocation2 + $0xe8] sm:$0xff] %v2699
    %2810 = vst [vmem:[#allocation2 + $0xf0] sm:$0xff] %v2786
    %2811 = vst [vmem:[#allocation2 + $0xf8] sm:$0xff] %v2788
    %2812 = vst [vmem:[#allocation2 + $0x1e0] sm:$0xff] %v2703
    %2813 = vst [vmem:[#allocation2 + $0x1e8] sm:$0xff] %v2705
    %2814 = vst [vmem:[#allocation2 + $0x1f0] sm:$0xff] %v2792
    %2815 = vst [vmem:[#allocation2 + $0x1f8] sm:$0xff] %v2794
    %2816 = vst [vmem:[#allocation2 + $0x2e0] sm:$0xff] %v2709
    %2817 = vst [vmem:[#allocation2 + $0x2e8] sm:$0xff] %v2711
    %2818 = vst [vmem:[#allocation2 + $0x2f0] sm:$0xff] %v2798
    %2819 = vst [vmem:[#allocation2 + $0x2f8] sm:$0xff] %v2800
    %2820 = vst [vmem:[#allocation2 + $0x3e0] sm:$0xff] %v2715
    %2821 = vst [vmem:[#allocation2 + $0x3e8] sm:$0xff] %v2717
    %2822 = vst [vmem:[#allocation2 + $0x3f0] sm:$0xff] %v2804
    %2823 = vst [vmem:[#allocation2 + $0x3f8] sm:$0xff] %v2806
    loop: start=0, step=1, limit=5
    $region178: #{net_forward.1} parent=1 // loop_pre_header
      _
    $region179: #{net_forward.1} parent=1 // loop_header
      %s2825 = sphi 0, %s2829
      %p2826 = scmp.ge.s32.totalorder %s2825, 5
      %v2830 = vphi %v464, %v5554
      %v2831 = vphi %v465, %v5556
    $region180: #{net_forward.1} parent=1 // loop_header_branch
      %2828 = sbr.rel (%p2826) target = $region184
    $region181: #{net_forward.1} parent=1 // loop_body
      %vm2832 = vcmask 130048
      %v2834 = vsel %vm2832, %v337, 0
      %v2837 = vsel %vm2832, %v338, 0
      %v2840 = vsel %vm2832, %v339, 0
      %v2843 = vsel %vm2832, %v340, 0
      %2845 = vmatprep.subr.mxu0 0.0
      %2846 = vmatpush1.msra.mxu0 0.0
      %2847 = vmatprep.subr.mxu0 0.0
      %2848 = vmatpush1.msra.mxu0 0.0
      %2849 = vmatprep.subr.mxu0 0.0
      %2850 = vmatpush1.msra.mxu0 0.0
      %2851 = vmatprep.subr.mxu0 0.0
      %2852 = vmatpush1.msra.mxu0 0.0
      %2853 = vmatprep.subr.mxu0 0.0
      %2854 = vmatpush1.msra.mxu0 0.0
      %2855 = vmatprep.subr.mxu0 0.0
      %2856 = vmatpush1.msra.mxu0 0.0
      %2857 = vmatprep.subr.mxu0 0.0
      %2858 = vmatpush1.msra.mxu0 0.0
      %2859 = vmatprep.subr.mxu0 0.0
      %2860 = vmatpush1.msra.mxu0 0.0
      %2861 = vmatprep.subr.mxu0 0.0
      %2862 = vmatpush1.msra.mxu0 0.0
      %2863 = vmatprep.subr.mxu0 0.0
      %2864 = vmatpush1.msra.mxu0 0.0
      %2865 = vmatprep.subr.mxu0 0.0
      %2866 = vmatpush1.msra.mxu0 0.0
      %2867 = vmatprep.subr.mxu0 0.0
      %2868 = vmatpush1.msra.mxu0 0.0
      %2869 = vmatprep.subr.mxu0 0.0
      %2870 = vmatpush1.msra.mxu0 0.0
      %2871 = vmatprep.subr.mxu0 0.0
      %2872 = vmatpush1.msra.mxu0 0.0
      %2873 = vmatprep.subr.mxu0 0.0
      %2874 = vmatpush1.msra.mxu0 %v2831
      %2875 = vmatprep.subr.mxu0 0.0
      %2876 = vmatpush1.msra.mxu0 %v2830
      %2877 = vmatprep.subr.mxu0 0.0
      %2878 = vmatpush2.msra.mxu0 0.0
      %2879 = vmatprep.subr.mxu0 0.0
      %2880 = vmatpush2.msra.mxu0 0.0
      %2881 = vmatprep.subr.mxu0 0.0
      %2882 = vmatpush2.msra.mxu0 0.0
      %2883 = vmatprep.subr.mxu0 0.0
      %2884 = vmatpush2.msra.mxu0 0.0
      %2885 = vmatprep.subr.mxu0 0.0
      %2886 = vmatpush2.msra.mxu0 0.0
      %2887 = vmatprep.subr.mxu0 0.0
      %2888 = vmatpush2.msra.mxu0 0.0
      %2889 = vmatprep.subr.mxu0 0.0
      %2890 = vmatpush2.msra.mxu0 0.0
      %2891 = vmatprep.subr.mxu0 0.0
      %2892 = vmatpush2.msra.mxu0 0.0
      %2893 = vmatprep.subr.mxu0 0.0
      %2894 = vmatpush2.msra.mxu0 0.0
      %2895 = vmatprep.subr.mxu0 0.0
      %2896 = vmatpush2.msra.mxu0 0.0
      %2897 = vmatprep.subr.mxu0 0.0
      %2898 = vmatpush2.msra.mxu0 0.0
      %2899 = vmatprep.subr.mxu0 0.0
      %2900 = vmatpush2.msra.mxu0 0.0
      %2901 = vmatprep.subr.mxu0 0.0
      %2902 = vmatpush2.msra.mxu0 0.0
      %2903 = vmatprep.subr.mxu0 0.0
      %2904 = vmatpush2.msra.mxu0 0.0
      %2905 = vmatprep.subr.mxu0 0.0
      %2906 = vmatpush2.msra.mxu0 0.0
      %2907 = vmatprep.subr.mxu0 0.0
      %2908 = vmatpush2.msra.mxu0 0.0
      %2909 = vmatprep.mubr.f32.mxu0 0.0
      %2910 = vmatmul.mubr.f32.gmra.mxu0 %v2834
      %v2911 = vpop.f32.mrf.mxu0
      %v2912 = vadd.f32 0.0, %v2911
      %v2913 = vpop.f32.mrf.mxu0
      %2914 = vmatprep.mubr.f32.mxu0 0.0
      %2915 = vmatmul.mubr.f32.gmra.mxu0 %v2837
      %v2916 = vpop.f32.mrf.mxu0
      %v2917 = vadd.f32 0.0, %v2916
      %v2918 = vpop.f32.mrf.mxu0
      %2919 = vmatprep.mubr.f32.mxu0 0.0
      %2920 = vmatmul.mubr.f32.gmra.mxu0 %v2840
      %v2921 = vpop.f32.mrf.mxu0
      %v2922 = vadd.f32 0.0, %v2921
      %v2923 = vpop.f32.mrf.mxu0
      %2924 = vmatprep.mubr.f32.mxu0 0.0
      %2925 = vmatmul.mubr.f32.gmra.mxu0 %v2843
      %v2926 = vpop.f32.mrf.mxu0
      %v2927 = vadd.f32 0.0, %v2926
      %v2928 = vpop.f32.mrf.mxu0
      %2929 = vdwg.mxu0
      %v2930 = vld [vmem:[#allocation2] sm:$0xff]
      %v2931 = vld [vmem:[#allocation2 + $0x100] sm:$0xff]
      %v2932 = vld [vmem:[#allocation2 + $0x200] sm:$0xff]
      %v2933 = vld [vmem:[#allocation2 + $0x300] sm:$0xff]
      %2935 = vset.pattern.permute.xlu0 0
      %2936 = vperm.xlu0 %2935, %v2912
      %v2937 = vpop.permute.xlu0 %2936
      %2940 = vset.pattern.permute.xlu0 0
      %2941 = vperm.xlu0 %2940, %v2917
      %v2942 = vpop.permute.xlu0 %2941
      %2945 = vset.pattern.permute.xlu0 0
      %2946 = vperm.xlu0 %2945, %v2922
      %v2947 = vpop.permute.xlu0 %2946
      %2950 = vset.pattern.permute.xlu0 0
      %2951 = vperm.xlu0 %2950, %v2927
      %v2952 = vpop.permute.xlu0 %2951
      %v2954 = vmul.f32 %v2937, %v2930
      %v2955 = vmul.f32 %v2942, %v2931
      %v2956 = vmul.f32 %v2947, %v2932
      %v2957 = vmul.f32 %v2952, %v2933
      %v2958 = vadd.f32 %v2954, 0.0
      %v2959 = vadd.f32 %v2955, 0.0
      %v2960 = vadd.f32 %v2956, 0.0
      %v2961 = vadd.f32 %v2957, 0.0
      %2962 = vset.pattern.permute.xlu0 1
      %2963 = vperm.xlu0 %2962, %v2912
      %v2964 = vpop.permute.xlu0 %2963
      %2966 = vset.pattern.permute.xlu0 1
      %2967 = vperm.xlu0 %2966, %v2917
      %v2968 = vpop.permute.xlu0 %2967
      %2970 = vset.pattern.permute.xlu0 1
      %2971 = vperm.xlu0 %2970, %v2922
      %v2972 = vpop.permute.xlu0 %2971
      %2974 = vset.pattern.permute.xlu0 1
      %2975 = vperm.xlu0 %2974, %v2927
      %v2976 = vpop.permute.xlu0 %2975
      %v2978 = vmul.f32 %v2964, %v2930
      %v2979 = vmul.f32 %v2968, %v2931
      %v2980 = vmul.f32 %v2972, %v2932
      %v2981 = vmul.f32 %v2976, %v2933
      %2986 = vrot.lane.b32.xlu0 %v2978, 64
      %v2987 = vpop.permute.xlu0 %2986
      %2988 = vrot.lane.b32.xlu0 %v2979, 64
      %v2989 = vpop.permute.xlu0 %2988
      %2990 = vrot.lane.b32.xlu0 %v2980, 64
      %v2991 = vpop.permute.xlu0 %2990
      %2992 = vrot.lane.b32.xlu0 %v2981, 64
      %v2993 = vpop.permute.xlu0 %2992
      %v2998 = vadd.f32 %v2958, %v2987
      %v2999 = vadd.f32 %v2959, %v2989
      %v3000 = vadd.f32 %v2960, %v2991
      %v3001 = vadd.f32 %v2961, %v2993
      %v3002 = vld [vmem:[#allocation2 + $0x8] sm:$0xff]
      %v3003 = vld [vmem:[#allocation2 + $0x108] sm:$0xff]
      %v3004 = vld [vmem:[#allocation2 + $0x208] sm:$0xff]
      %v3005 = vld [vmem:[#allocation2 + $0x308] sm:$0xff]
      %3006 = vset.pattern.permute.xlu0 2
      %3007 = vperm.xlu0 %3006, %v2912
      %v3008 = vpop.permute.xlu0 %3007
      %3010 = vset.pattern.permute.xlu0 2
      %3011 = vperm.xlu0 %3010, %v2917
      %v3012 = vpop.permute.xlu0 %3011
      %3014 = vset.pattern.permute.xlu0 2
      %3015 = vperm.xlu0 %3014, %v2922
      %v3016 = vpop.permute.xlu0 %3015
      %3018 = vset.pattern.permute.xlu0 2
      %3019 = vperm.xlu0 %3018, %v2927
      %v3020 = vpop.permute.xlu0 %3019
      %v3022 = vmul.f32 %v3008, %v3002
      %v3023 = vmul.f32 %v3012, %v3003
      %v3024 = vmul.f32 %v3016, %v3004
      %v3025 = vmul.f32 %v3020, %v3005
      %v3026 = vadd.f32 %v2998, %v3022
      %v3027 = vadd.f32 %v2999, %v3023
      %v3028 = vadd.f32 %v3000, %v3024
      %v3029 = vadd.f32 %v3001, %v3025
      %3030 = vset.pattern.permute.xlu0 3
      %3031 = vperm.xlu0 %3030, %v2912
      %v3032 = vpop.permute.xlu0 %3031
      %3034 = vset.pattern.permute.xlu0 3
      %3035 = vperm.xlu0 %3034, %v2917
      %v3036 = vpop.permute.xlu0 %3035
      %3038 = vset.pattern.permute.xlu0 3
      %3039 = vperm.xlu0 %3038, %v2922
      %v3040 = vpop.permute.xlu0 %3039
      %3042 = vset.pattern.permute.xlu0 3
      %3043 = vperm.xlu0 %3042, %v2927
      %v3044 = vpop.permute.xlu0 %3043
      %v3046 = vmul.f32 %v3032, %v3002
      %v3047 = vmul.f32 %v3036, %v3003
      %v3048 = vmul.f32 %v3040, %v3004
      %v3049 = vmul.f32 %v3044, %v3005
      %3054 = vrot.lane.b32.xlu0 %v3046, 64
      %v3055 = vpop.permute.xlu0 %3054
      %3056 = vrot.lane.b32.xlu0 %v3047, 64
      %v3057 = vpop.permute.xlu0 %3056
      %3058 = vrot.lane.b32.xlu0 %v3048, 64
      %v3059 = vpop.permute.xlu0 %3058
      %3060 = vrot.lane.b32.xlu0 %v3049, 64
      %v3061 = vpop.permute.xlu0 %3060
      %v3066 = vadd.f32 %v3026, %v3055
      %v3067 = vadd.f32 %v3027, %v3057
      %v3068 = vadd.f32 %v3028, %v3059
      %v3069 = vadd.f32 %v3029, %v3061
      %v3070 = vld [vmem:[#allocation2 + $0x10] sm:$0xff]
      %v3071 = vld [vmem:[#allocation2 + $0x110] sm:$0xff]
      %v3072 = vld [vmem:[#allocation2 + $0x210] sm:$0xff]
      %v3073 = vld [vmem:[#allocation2 + $0x310] sm:$0xff]
      %3074 = vset.pattern.permute.xlu0 4
      %3075 = vperm.xlu0 %3074, %v2912
      %v3076 = vpop.permute.xlu0 %3075
      %3078 = vset.pattern.permute.xlu0 4
      %3079 = vperm.xlu0 %3078, %v2917
      %v3080 = vpop.permute.xlu0 %3079
      %3082 = vset.pattern.permute.xlu0 4
      %3083 = vperm.xlu0 %3082, %v2922
      %v3084 = vpop.permute.xlu0 %3083
      %3086 = vset.pattern.permute.xlu0 4
      %3087 = vperm.xlu0 %3086, %v2927
      %v3088 = vpop.permute.xlu0 %3087
      %v3090 = vmul.f32 %v3076, %v3070
      %v3091 = vmul.f32 %v3080, %v3071
      %v3092 = vmul.f32 %v3084, %v3072
      %v3093 = vmul.f32 %v3088, %v3073
      %v3094 = vadd.f32 %v3066, %v3090
      %v3095 = vadd.f32 %v3067, %v3091
      %v3096 = vadd.f32 %v3068, %v3092
      %v3097 = vadd.f32 %v3069, %v3093
      %3098 = vset.pattern.permute.xlu0 5
      %3099 = vperm.xlu0 %3098, %v2912
      %v3100 = vpop.permute.xlu0 %3099
      %3102 = vset.pattern.permute.xlu0 5
      %3103 = vperm.xlu0 %3102, %v2917
      %v3104 = vpop.permute.xlu0 %3103
      %3106 = vset.pattern.permute.xlu0 5
      %3107 = vperm.xlu0 %3106, %v2922
      %v3108 = vpop.permute.xlu0 %3107
      %3110 = vset.pattern.permute.xlu0 5
      %3111 = vperm.xlu0 %3110, %v2927
      %v3112 = vpop.permute.xlu0 %3111
      %v3114 = vmul.f32 %v3100, %v3070
      %v3115 = vmul.f32 %v3104, %v3071
      %v3116 = vmul.f32 %v3108, %v3072
      %v3117 = vmul.f32 %v3112, %v3073
      %3122 = vrot.lane.b32.xlu0 %v3114, 64
      %v3123 = vpop.permute.xlu0 %3122
      %3124 = vrot.lane.b32.xlu0 %v3115, 64
      %v3125 = vpop.permute.xlu0 %3124
      %3126 = vrot.lane.b32.xlu0 %v3116, 64
      %v3127 = vpop.permute.xlu0 %3126
      %3128 = vrot.lane.b32.xlu0 %v3117, 64
      %v3129 = vpop.permute.xlu0 %3128
      %v3134 = vadd.f32 %v3094, %v3123
      %v3135 = vadd.f32 %v3095, %v3125
      %v3136 = vadd.f32 %v3096, %v3127
      %v3137 = vadd.f32 %v3097, %v3129
      %v3138 = vld [vmem:[#allocation2 + $0x18] sm:$0xff]
      %v3139 = vld [vmem:[#allocation2 + $0x118] sm:$0xff]
      %v3140 = vld [vmem:[#allocation2 + $0x218] sm:$0xff]
      %v3141 = vld [vmem:[#allocation2 + $0x318] sm:$0xff]
      %3142 = vset.pattern.permute.xlu0 6
      %3143 = vperm.xlu0 %3142, %v2912
      %v3144 = vpop.permute.xlu0 %3143
      %3146 = vset.pattern.permute.xlu0 6
      %3147 = vperm.xlu0 %3146, %v2917
      %v3148 = vpop.permute.xlu0 %3147
      %3150 = vset.pattern.permute.xlu0 6
      %3151 = vperm.xlu0 %3150, %v2922
      %v3152 = vpop.permute.xlu0 %3151
      %3154 = vset.pattern.permute.xlu0 6
      %3155 = vperm.xlu0 %3154, %v2927
      %v3156 = vpop.permute.xlu0 %3155
      %v3158 = vmul.f32 %v3144, %v3138
      %v3159 = vmul.f32 %v3148, %v3139
      %v3160 = vmul.f32 %v3152, %v3140
      %v3161 = vmul.f32 %v3156, %v3141
      %v3162 = vadd.f32 %v3134, %v3158
      %v3163 = vadd.f32 %v3135, %v3159
      %v3164 = vadd.f32 %v3136, %v3160
      %v3165 = vadd.f32 %v3137, %v3161
      %3166 = vset.pattern.permute.xlu0 7
      %3167 = vperm.xlu0 %3166, %v2912
      %v3168 = vpop.permute.xlu0 %3167
      %3170 = vset.pattern.permute.xlu0 7
      %3171 = vperm.xlu0 %3170, %v2917
      %v3172 = vpop.permute.xlu0 %3171
      %3174 = vset.pattern.permute.xlu0 7
      %3175 = vperm.xlu0 %3174, %v2922
      %v3176 = vpop.permute.xlu0 %3175
      %3178 = vset.pattern.permute.xlu0 7
      %3179 = vperm.xlu0 %3178, %v2927
      %v3180 = vpop.permute.xlu0 %3179
      %v3182 = vmul.f32 %v3168, %v3138
      %v3183 = vmul.f32 %v3172, %v3139
      %v3184 = vmul.f32 %v3176, %v3140
      %v3185 = vmul.f32 %v3180, %v3141
      %3190 = vrot.lane.b32.xlu0 %v3182, 64
      %v3191 = vpop.permute.xlu0 %3190
      %3192 = vrot.lane.b32.xlu0 %v3183, 64
      %v3193 = vpop.permute.xlu0 %3192
      %3194 = vrot.lane.b32.xlu0 %v3184, 64
      %v3195 = vpop.permute.xlu0 %3194
      %3196 = vrot.lane.b32.xlu0 %v3185, 64
      %v3197 = vpop.permute.xlu0 %3196
      %v3202 = vadd.f32 %v3162, %v3191
      %v3203 = vadd.f32 %v3163, %v3193
      %v3204 = vadd.f32 %v3164, %v3195
      %v3205 = vadd.f32 %v3165, %v3197
      %v3206 = vld [vmem:[#allocation2 + $0x20] sm:$0xff]
      %v3207 = vld [vmem:[#allocation2 + $0x120] sm:$0xff]
      %v3208 = vld [vmem:[#allocation2 + $0x220] sm:$0xff]
      %v3209 = vld [vmem:[#allocation2 + $0x320] sm:$0xff]
      %3210 = vset.pattern.permute.xlu0 8
      %3211 = vperm.xlu0 %3210, %v2912
      %v3212 = vpop.permute.xlu0 %3211
      %3214 = vset.pattern.permute.xlu0 8
      %3215 = vperm.xlu0 %3214, %v2917
      %v3216 = vpop.permute.xlu0 %3215
      %3218 = vset.pattern.permute.xlu0 8
      %3219 = vperm.xlu0 %3218, %v2922
      %v3220 = vpop.permute.xlu0 %3219
      %3222 = vset.pattern.permute.xlu0 8
      %3223 = vperm.xlu0 %3222, %v2927
      %v3224 = vpop.permute.xlu0 %3223
      %v3226 = vmul.f32 %v3212, %v3206
      %v3227 = vmul.f32 %v3216, %v3207
      %v3228 = vmul.f32 %v3220, %v3208
      %v3229 = vmul.f32 %v3224, %v3209
      %v3230 = vadd.f32 %v3202, %v3226
      %v3231 = vadd.f32 %v3203, %v3227
      %v3232 = vadd.f32 %v3204, %v3228
      %v3233 = vadd.f32 %v3205, %v3229
      %3234 = vset.pattern.permute.xlu0 9
      %3235 = vperm.xlu0 %3234, %v2912
      %v3236 = vpop.permute.xlu0 %3235
      %3238 = vset.pattern.permute.xlu0 9
      %3239 = vperm.xlu0 %3238, %v2917
      %v3240 = vpop.permute.xlu0 %3239
      %3242 = vset.pattern.permute.xlu0 9
      %3243 = vperm.xlu0 %3242, %v2922
      %v3244 = vpop.permute.xlu0 %3243
      %3246 = vset.pattern.permute.xlu0 9
      %3247 = vperm.xlu0 %3246, %v2927
      %v3248 = vpop.permute.xlu0 %3247
      %v3250 = vmul.f32 %v3236, %v3206
      %v3251 = vmul.f32 %v3240, %v3207
      %v3252 = vmul.f32 %v3244, %v3208
      %v3253 = vmul.f32 %v3248, %v3209
      %3258 = vrot.lane.b32.xlu0 %v3250, 64
      %v3259 = vpop.permute.xlu0 %3258
      %3260 = vrot.lane.b32.xlu0 %v3251, 64
      %v3261 = vpop.permute.xlu0 %3260
      %3262 = vrot.lane.b32.xlu0 %v3252, 64
      %v3263 = vpop.permute.xlu0 %3262
      %3264 = vrot.lane.b32.xlu0 %v3253, 64
      %v3265 = vpop.permute.xlu0 %3264
      %v3270 = vadd.f32 %v3230, %v3259
      %v3271 = vadd.f32 %v3231, %v3261
      %v3272 = vadd.f32 %v3232, %v3263
      %v3273 = vadd.f32 %v3233, %v3265
      %v3274 = vld [vmem:[#allocation2 + $0x28] sm:$0xff]
      %v3275 = vld [vmem:[#allocation2 + $0x128] sm:$0xff]
      %v3276 = vld [vmem:[#allocation2 + $0x228] sm:$0xff]
      %v3277 = vld [vmem:[#allocation2 + $0x328] sm:$0xff]
      %3278 = vset.pattern.permute.xlu0 10
      %3279 = vperm.xlu0 %3278, %v2912
      %v3280 = vpop.permute.xlu0 %3279
      %3282 = vset.pattern.permute.xlu0 10
      %3283 = vperm.xlu0 %3282, %v2917
      %v3284 = vpop.permute.xlu0 %3283
      %3286 = vset.pattern.permute.xlu0 10
      %3287 = vperm.xlu0 %3286, %v2922
      %v3288 = vpop.permute.xlu0 %3287
      %3290 = vset.pattern.permute.xlu0 10
      %3291 = vperm.xlu0 %3290, %v2927
      %v3292 = vpop.permute.xlu0 %3291
      %v3294 = vmul.f32 %v3280, %v3274
      %v3295 = vmul.f32 %v3284, %v3275
      %v3296 = vmul.f32 %v3288, %v3276
      %v3297 = vmul.f32 %v3292, %v3277
      %v3298 = vadd.f32 %v3270, %v3294
      %v3299 = vadd.f32 %v3271, %v3295
      %v3300 = vadd.f32 %v3272, %v3296
      %v3301 = vadd.f32 %v3273, %v3297
      %3302 = vset.pattern.permute.xlu0 11
      %3303 = vperm.xlu0 %3302, %v2912
      %v3304 = vpop.permute.xlu0 %3303
      %3306 = vset.pattern.permute.xlu0 11
      %3307 = vperm.xlu0 %3306, %v2917
      %v3308 = vpop.permute.xlu0 %3307
      %3310 = vset.pattern.permute.xlu0 11
      %3311 = vperm.xlu0 %3310, %v2922
      %v3312 = vpop.permute.xlu0 %3311
      %3314 = vset.pattern.permute.xlu0 11
      %3315 = vperm.xlu0 %3314, %v2927
      %v3316 = vpop.permute.xlu0 %3315
      %v3318 = vmul.f32 %v3304, %v3274
      %v3319 = vmul.f32 %v3308, %v3275
      %v3320 = vmul.f32 %v3312, %v3276
      %v3321 = vmul.f32 %v3316, %v3277
      %3326 = vrot.lane.b32.xlu0 %v3318, 64
      %v3327 = vpop.permute.xlu0 %3326
      %3328 = vrot.lane.b32.xlu0 %v3319, 64
      %v3329 = vpop.permute.xlu0 %3328
      %3330 = vrot.lane.b32.xlu0 %v3320, 64
      %v3331 = vpop.permute.xlu0 %3330
      %3332 = vrot.lane.b32.xlu0 %v3321, 64
      %v3333 = vpop.permute.xlu0 %3332
      %v3338 = vadd.f32 %v3298, %v3327
      %v3339 = vadd.f32 %v3299, %v3329
      %v3340 = vadd.f32 %v3300, %v3331
      %v3341 = vadd.f32 %v3301, %v3333
      %v3342 = vld [vmem:[#allocation2 + $0x30] sm:$0xff]
      %v3343 = vld [vmem:[#allocation2 + $0x130] sm:$0xff]
      %v3344 = vld [vmem:[#allocation2 + $0x230] sm:$0xff]
      %v3345 = vld [vmem:[#allocation2 + $0x330] sm:$0xff]
      %3346 = vset.pattern.permute.xlu0 12
      %3347 = vperm.xlu0 %3346, %v2912
      %v3348 = vpop.permute.xlu0 %3347
      %3350 = vset.pattern.permute.xlu0 12
      %3351 = vperm.xlu0 %3350, %v2917
      %v3352 = vpop.permute.xlu0 %3351
      %3354 = vset.pattern.permute.xlu0 12
      %3355 = vperm.xlu0 %3354, %v2922
      %v3356 = vpop.permute.xlu0 %3355
      %3358 = vset.pattern.permute.xlu0 12
      %3359 = vperm.xlu0 %3358, %v2927
      %v3360 = vpop.permute.xlu0 %3359
      %v3362 = vmul.f32 %v3348, %v3342
      %v3363 = vmul.f32 %v3352, %v3343
      %v3364 = vmul.f32 %v3356, %v3344
      %v3365 = vmul.f32 %v3360, %v3345
      %v3366 = vadd.f32 %v3338, %v3362
      %v3367 = vadd.f32 %v3339, %v3363
      %v3368 = vadd.f32 %v3340, %v3364
      %v3369 = vadd.f32 %v3341, %v3365
      %3370 = vset.pattern.permute.xlu0 13
      %3371 = vperm.xlu0 %3370, %v2912
      %v3372 = vpop.permute.xlu0 %3371
      %3374 = vset.pattern.permute.xlu0 13
      %3375 = vperm.xlu0 %3374, %v2917
      %v3376 = vpop.permute.xlu0 %3375
      %3378 = vset.pattern.permute.xlu0 13
      %3379 = vperm.xlu0 %3378, %v2922
      %v3380 = vpop.permute.xlu0 %3379
      %3382 = vset.pattern.permute.xlu0 13
      %3383 = vperm.xlu0 %3382, %v2927
      %v3384 = vpop.permute.xlu0 %3383
      %v3386 = vmul.f32 %v3372, %v3342
      %v3387 = vmul.f32 %v3376, %v3343
      %v3388 = vmul.f32 %v3380, %v3344
      %v3389 = vmul.f32 %v3384, %v3345
      %3394 = vrot.lane.b32.xlu0 %v3386, 64
      %v3395 = vpop.permute.xlu0 %3394
      %3396 = vrot.lane.b32.xlu0 %v3387, 64
      %v3397 = vpop.permute.xlu0 %3396
      %3398 = vrot.lane.b32.xlu0 %v3388, 64
      %v3399 = vpop.permute.xlu0 %3398
      %3400 = vrot.lane.b32.xlu0 %v3389, 64
      %v3401 = vpop.permute.xlu0 %3400
      %v3406 = vadd.f32 %v3366, %v3395
      %v3407 = vadd.f32 %v3367, %v3397
      %v3408 = vadd.f32 %v3368, %v3399
      %v3409 = vadd.f32 %v3369, %v3401
      %v3410 = vld [vmem:[#allocation2 + $0x38] sm:$0xff]
      %v3411 = vld [vmem:[#allocation2 + $0x138] sm:$0xff]
      %v3412 = vld [vmem:[#allocation2 + $0x238] sm:$0xff]
      %v3413 = vld [vmem:[#allocation2 + $0x338] sm:$0xff]
      %3414 = vset.pattern.permute.xlu0 14
      %3415 = vperm.xlu0 %3414, %v2912
      %v3416 = vpop.permute.xlu0 %3415
      %3418 = vset.pattern.permute.xlu0 14
      %3419 = vperm.xlu0 %3418, %v2917
      %v3420 = vpop.permute.xlu0 %3419
      %3422 = vset.pattern.permute.xlu0 14
      %3423 = vperm.xlu0 %3422, %v2922
      %v3424 = vpop.permute.xlu0 %3423
      %3426 = vset.pattern.permute.xlu0 14
      %3427 = vperm.xlu0 %3426, %v2927
      %v3428 = vpop.permute.xlu0 %3427
      %v3430 = vmul.f32 %v3416, %v3410
      %v3431 = vmul.f32 %v3420, %v3411
      %v3432 = vmul.f32 %v3424, %v3412
      %v3433 = vmul.f32 %v3428, %v3413
      %v3434 = vadd.f32 %v3406, %v3430
      %v3435 = vadd.f32 %v3407, %v3431
      %v3436 = vadd.f32 %v3408, %v3432
      %v3437 = vadd.f32 %v3409, %v3433
      %3438 = vset.pattern.permute.xlu0 15
      %3439 = vperm.xlu0 %3438, %v2912
      %v3440 = vpop.permute.xlu0 %3439
      %3442 = vset.pattern.permute.xlu0 15
      %3443 = vperm.xlu0 %3442, %v2917
      %v3444 = vpop.permute.xlu0 %3443
      %3446 = vset.pattern.permute.xlu0 15
      %3447 = vperm.xlu0 %3446, %v2922
      %v3448 = vpop.permute.xlu0 %3447
      %3450 = vset.pattern.permute.xlu0 15
      %3451 = vperm.xlu0 %3450, %v2927
      %v3452 = vpop.permute.xlu0 %3451
      %v3454 = vmul.f32 %v3440, %v3410
      %v3455 = vmul.f32 %v3444, %v3411
      %v3456 = vmul.f32 %v3448, %v3412
      %v3457 = vmul.f32 %v3452, %v3413
      %3462 = vrot.lane.b32.xlu0 %v3454, 64
      %v3463 = vpop.permute.xlu0 %3462
      %3464 = vrot.lane.b32.xlu0 %v3455, 64
      %v3465 = vpop.permute.xlu0 %3464
      %3466 = vrot.lane.b32.xlu0 %v3456, 64
      %v3467 = vpop.permute.xlu0 %3466
      %3468 = vrot.lane.b32.xlu0 %v3457, 64
      %v3469 = vpop.permute.xlu0 %3468
      %v3474 = vadd.f32 %v3434, %v3463
      %v3475 = vadd.f32 %v3435, %v3465
      %v3476 = vadd.f32 %v3436, %v3467
      %v3477 = vadd.f32 %v3437, %v3469
      %v3478 = vld [vmem:[#allocation2 + $0x40] sm:$0xff]
      %v3479 = vld [vmem:[#allocation2 + $0x140] sm:$0xff]
      %v3480 = vld [vmem:[#allocation2 + $0x240] sm:$0xff]
      %v3481 = vld [vmem:[#allocation2 + $0x340] sm:$0xff]
      %3482 = vset.pattern.permute.xlu0 16
      %3483 = vperm.xlu0 %3482, %v2912
      %v3484 = vpop.permute.xlu0 %3483
      %3486 = vset.pattern.permute.xlu0 16
      %3487 = vperm.xlu0 %3486, %v2917
      %v3488 = vpop.permute.xlu0 %3487
      %3490 = vset.pattern.permute.xlu0 16
      %3491 = vperm.xlu0 %3490, %v2922
      %v3492 = vpop.permute.xlu0 %3491
      %3494 = vset.pattern.permute.xlu0 16
      %3495 = vperm.xlu0 %3494, %v2927
      %v3496 = vpop.permute.xlu0 %3495
      %v3498 = vmul.f32 %v3484, %v3478
      %v3499 = vmul.f32 %v3488, %v3479
      %v3500 = vmul.f32 %v3492, %v3480
      %v3501 = vmul.f32 %v3496, %v3481
      %v3502 = vadd.f32 %v3474, %v3498
      %v3503 = vadd.f32 %v3475, %v3499
      %v3504 = vadd.f32 %v3476, %v3500
      %v3505 = vadd.f32 %v3477, %v3501
      %3506 = vset.pattern.permute.xlu0 17
      %3507 = vperm.xlu0 %3506, %v2912
      %v3508 = vpop.permute.xlu0 %3507
      %3510 = vset.pattern.permute.xlu0 17
      %3511 = vperm.xlu0 %3510, %v2917
      %v3512 = vpop.permute.xlu0 %3511
      %3514 = vset.pattern.permute.xlu0 17
      %3515 = vperm.xlu0 %3514, %v2922
      %v3516 = vpop.permute.xlu0 %3515
      %3518 = vset.pattern.permute.xlu0 17
      %3519 = vperm.xlu0 %3518, %v2927
      %v3520 = vpop.permute.xlu0 %3519
      %v3522 = vmul.f32 %v3508, %v3478
      %v3523 = vmul.f32 %v3512, %v3479
      %v3524 = vmul.f32 %v3516, %v3480
      %v3525 = vmul.f32 %v3520, %v3481
      %3530 = vrot.lane.b32.xlu0 %v3522, 64
      %v3531 = vpop.permute.xlu0 %3530
      %3532 = vrot.lane.b32.xlu0 %v3523, 64
      %v3533 = vpop.permute.xlu0 %3532
      %3534 = vrot.lane.b32.xlu0 %v3524, 64
      %v3535 = vpop.permute.xlu0 %3534
      %3536 = vrot.lane.b32.xlu0 %v3525, 64
      %v3537 = vpop.permute.xlu0 %3536
      %v3542 = vadd.f32 %v3502, %v3531
      %v3543 = vadd.f32 %v3503, %v3533
      %v3544 = vadd.f32 %v3504, %v3535
      %v3545 = vadd.f32 %v3505, %v3537
      %v3546 = vld [vmem:[#allocation2 + $0x48] sm:$0xff]
      %v3547 = vld [vmem:[#allocation2 + $0x148] sm:$0xff]
      %v3548 = vld [vmem:[#allocation2 + $0x248] sm:$0xff]
      %v3549 = vld [vmem:[#allocation2 + $0x348] sm:$0xff]
      %3550 = vset.pattern.permute.xlu0 18
      %3551 = vperm.xlu0 %3550, %v2912
      %v3552 = vpop.permute.xlu0 %3551
      %3554 = vset.pattern.permute.xlu0 18
      %3555 = vperm.xlu0 %3554, %v2917
      %v3556 = vpop.permute.xlu0 %3555
      %3558 = vset.pattern.permute.xlu0 18
      %3559 = vperm.xlu0 %3558, %v2922
      %v3560 = vpop.permute.xlu0 %3559
      %3562 = vset.pattern.permute.xlu0 18
      %3563 = vperm.xlu0 %3562, %v2927
      %v3564 = vpop.permute.xlu0 %3563
      %v3566 = vmul.f32 %v3552, %v3546
      %v3567 = vmul.f32 %v3556, %v3547
      %v3568 = vmul.f32 %v3560, %v3548
      %v3569 = vmul.f32 %v3564, %v3549
      %v3570 = vadd.f32 %v3542, %v3566
      %v3571 = vadd.f32 %v3543, %v3567
      %v3572 = vadd.f32 %v3544, %v3568
      %v3573 = vadd.f32 %v3545, %v3569
      %3574 = vset.pattern.permute.xlu0 19
      %3575 = vperm.xlu0 %3574, %v2912
      %v3576 = vpop.permute.xlu0 %3575
      %3578 = vset.pattern.permute.xlu0 19
      %3579 = vperm.xlu0 %3578, %v2917
      %v3580 = vpop.permute.xlu0 %3579
      %3582 = vset.pattern.permute.xlu0 19
      %3583 = vperm.xlu0 %3582, %v2922
      %v3584 = vpop.permute.xlu0 %3583
      %3586 = vset.pattern.permute.xlu0 19
      %3587 = vperm.xlu0 %3586, %v2927
      %v3588 = vpop.permute.xlu0 %3587
      %v3590 = vmul.f32 %v3576, %v3546
      %v3591 = vmul.f32 %v3580, %v3547
      %v3592 = vmul.f32 %v3584, %v3548
      %v3593 = vmul.f32 %v3588, %v3549
      %3598 = vrot.lane.b32.xlu0 %v3590, 64
      %v3599 = vpop.permute.xlu0 %3598
      %3600 = vrot.lane.b32.xlu0 %v3591, 64
      %v3601 = vpop.permute.xlu0 %3600
      %3602 = vrot.lane.b32.xlu0 %v3592, 64
      %v3603 = vpop.permute.xlu0 %3602
      %3604 = vrot.lane.b32.xlu0 %v3593, 64
      %v3605 = vpop.permute.xlu0 %3604
      %v3610 = vadd.f32 %v3570, %v3599
      %v3611 = vadd.f32 %v3571, %v3601
      %v3612 = vadd.f32 %v3572, %v3603
      %v3613 = vadd.f32 %v3573, %v3605
      %v3614 = vld [vmem:[#allocation2 + $0x50] sm:$0xff]
      %v3615 = vld [vmem:[#allocation2 + $0x150] sm:$0xff]
      %v3616 = vld [vmem:[#allocation2 + $0x250] sm:$0xff]
      %v3617 = vld [vmem:[#allocation2 + $0x350] sm:$0xff]
      %3618 = vset.pattern.permute.xlu0 20
      %3619 = vperm.xlu0 %3618, %v2912
      %v3620 = vpop.permute.xlu0 %3619
      %3622 = vset.pattern.permute.xlu0 20
      %3623 = vperm.xlu0 %3622, %v2917
      %v3624 = vpop.permute.xlu0 %3623
      %3626 = vset.pattern.permute.xlu0 20
      %3627 = vperm.xlu0 %3626, %v2922
      %v3628 = vpop.permute.xlu0 %3627
      %3630 = vset.pattern.permute.xlu0 20
      %3631 = vperm.xlu0 %3630, %v2927
      %v3632 = vpop.permute.xlu0 %3631
      %v3634 = vmul.f32 %v3620, %v3614
      %v3635 = vmul.f32 %v3624, %v3615
      %v3636 = vmul.f32 %v3628, %v3616
      %v3637 = vmul.f32 %v3632, %v3617
      %v3638 = vadd.f32 %v3610, %v3634
      %v3639 = vadd.f32 %v3611, %v3635
      %v3640 = vadd.f32 %v3612, %v3636
      %v3641 = vadd.f32 %v3613, %v3637
      %3642 = vset.pattern.permute.xlu0 21
      %3643 = vperm.xlu0 %3642, %v2912
      %v3644 = vpop.permute.xlu0 %3643
      %3646 = vset.pattern.permute.xlu0 21
      %3647 = vperm.xlu0 %3646, %v2917
      %v3648 = vpop.permute.xlu0 %3647
      %3650 = vset.pattern.permute.xlu0 21
      %3651 = vperm.xlu0 %3650, %v2922
      %v3652 = vpop.permute.xlu0 %3651
      %3654 = vset.pattern.permute.xlu0 21
      %3655 = vperm.xlu0 %3654, %v2927
      %v3656 = vpop.permute.xlu0 %3655
      %v3658 = vmul.f32 %v3644, %v3614
      %v3659 = vmul.f32 %v3648, %v3615
      %v3660 = vmul.f32 %v3652, %v3616
      %v3661 = vmul.f32 %v3656, %v3617
      %3666 = vrot.lane.b32.xlu0 %v3658, 64
      %v3667 = vpop.permute.xlu0 %3666
      %3668 = vrot.lane.b32.xlu0 %v3659, 64
      %v3669 = vpop.permute.xlu0 %3668
      %3670 = vrot.lane.b32.xlu0 %v3660, 64
      %v3671 = vpop.permute.xlu0 %3670
      %3672 = vrot.lane.b32.xlu0 %v3661, 64
      %v3673 = vpop.permute.xlu0 %3672
      %v3678 = vadd.f32 %v3638, %v3667
      %v3679 = vadd.f32 %v3639, %v3669
      %v3680 = vadd.f32 %v3640, %v3671
      %v3681 = vadd.f32 %v3641, %v3673
      %v3682 = vld [vmem:[#allocation2 + $0x58] sm:$0xff]
      %v3683 = vld [vmem:[#allocation2 + $0x158] sm:$0xff]
      %v3684 = vld [vmem:[#allocation2 + $0x258] sm:$0xff]
      %v3685 = vld [vmem:[#allocation2 + $0x358] sm:$0xff]
      %3686 = vset.pattern.permute.xlu0 22
      %3687 = vperm.xlu0 %3686, %v2912
      %v3688 = vpop.permute.xlu0 %3687
      %3690 = vset.pattern.permute.xlu0 22
      %3691 = vperm.xlu0 %3690, %v2917
      %v3692 = vpop.permute.xlu0 %3691
      %3694 = vset.pattern.permute.xlu0 22
      %3695 = vperm.xlu0 %3694, %v2922
      %v3696 = vpop.permute.xlu0 %3695
      %3698 = vset.pattern.permute.xlu0 22
      %3699 = vperm.xlu0 %3698, %v2927
      %v3700 = vpop.permute.xlu0 %3699
      %v3702 = vmul.f32 %v3688, %v3682
      %v3703 = vmul.f32 %v3692, %v3683
      %v3704 = vmul.f32 %v3696, %v3684
      %v3705 = vmul.f32 %v3700, %v3685
      %v3706 = vadd.f32 %v3678, %v3702
      %v3707 = vadd.f32 %v3679, %v3703
      %v3708 = vadd.f32 %v3680, %v3704
      %v3709 = vadd.f32 %v3681, %v3705
      %3710 = vset.pattern.permute.xlu0 23
      %3711 = vperm.xlu0 %3710, %v2912
      %v3712 = vpop.permute.xlu0 %3711
      %3714 = vset.pattern.permute.xlu0 23
      %3715 = vperm.xlu0 %3714, %v2917
      %v3716 = vpop.permute.xlu0 %3715
      %3718 = vset.pattern.permute.xlu0 23
      %3719 = vperm.xlu0 %3718, %v2922
      %v3720 = vpop.permute.xlu0 %3719
      %3722 = vset.pattern.permute.xlu0 23
      %3723 = vperm.xlu0 %3722, %v2927
      %v3724 = vpop.permute.xlu0 %3723
      %v3726 = vmul.f32 %v3712, %v3682
      %v3727 = vmul.f32 %v3716, %v3683
      %v3728 = vmul.f32 %v3720, %v3684
      %v3729 = vmul.f32 %v3724, %v3685
      %3734 = vrot.lane.b32.xlu0 %v3726, 64
      %v3735 = vpop.permute.xlu0 %3734
      %3736 = vrot.lane.b32.xlu0 %v3727, 64
      %v3737 = vpop.permute.xlu0 %3736
      %3738 = vrot.lane.b32.xlu0 %v3728, 64
      %v3739 = vpop.permute.xlu0 %3738
      %3740 = vrot.lane.b32.xlu0 %v3729, 64
      %v3741 = vpop.permute.xlu0 %3740
      %v3746 = vadd.f32 %v3706, %v3735
      %v3747 = vadd.f32 %v3707, %v3737
      %v3748 = vadd.f32 %v3708, %v3739
      %v3749 = vadd.f32 %v3709, %v3741
      %v3750 = vld [vmem:[#allocation2 + $0x60] sm:$0xff]
      %v3751 = vld [vmem:[#allocation2 + $0x160] sm:$0xff]
      %v3752 = vld [vmem:[#allocation2 + $0x260] sm:$0xff]
      %v3753 = vld [vmem:[#allocation2 + $0x360] sm:$0xff]
      %3754 = vset.pattern.permute.xlu0 24
      %3755 = vperm.xlu0 %3754, %v2912
      %v3756 = vpop.permute.xlu0 %3755
      %3758 = vset.pattern.permute.xlu0 24
      %3759 = vperm.xlu0 %3758, %v2917
      %v3760 = vpop.permute.xlu0 %3759
      %3762 = vset.pattern.permute.xlu0 24
      %3763 = vperm.xlu0 %3762, %v2922
      %v3764 = vpop.permute.xlu0 %3763
      %3766 = vset.pattern.permute.xlu0 24
      %3767 = vperm.xlu0 %3766, %v2927
      %v3768 = vpop.permute.xlu0 %3767
      %v3770 = vmul.f32 %v3756, %v3750
      %v3771 = vmul.f32 %v3760, %v3751
      %v3772 = vmul.f32 %v3764, %v3752
      %v3773 = vmul.f32 %v3768, %v3753
      %v3774 = vadd.f32 %v3746, %v3770
      %v3775 = vadd.f32 %v3747, %v3771
      %v3776 = vadd.f32 %v3748, %v3772
      %v3777 = vadd.f32 %v3749, %v3773
      %3778 = vset.pattern.permute.xlu0 25
      %3779 = vperm.xlu0 %3778, %v2912
      %v3780 = vpop.permute.xlu0 %3779
      %3782 = vset.pattern.permute.xlu0 25
      %3783 = vperm.xlu0 %3782, %v2917
      %v3784 = vpop.permute.xlu0 %3783
      %3786 = vset.pattern.permute.xlu0 25
      %3787 = vperm.xlu0 %3786, %v2922
      %v3788 = vpop.permute.xlu0 %3787
      %3790 = vset.pattern.permute.xlu0 25
      %3791 = vperm.xlu0 %3790, %v2927
      %v3792 = vpop.permute.xlu0 %3791
      %v3794 = vmul.f32 %v3780, %v3750
      %v3795 = vmul.f32 %v3784, %v3751
      %v3796 = vmul.f32 %v3788, %v3752
      %v3797 = vmul.f32 %v3792, %v3753
      %3802 = vrot.lane.b32.xlu0 %v3794, 64
      %v3803 = vpop.permute.xlu0 %3802
      %3804 = vrot.lane.b32.xlu0 %v3795, 64
      %v3805 = vpop.permute.xlu0 %3804
      %3806 = vrot.lane.b32.xlu0 %v3796, 64
      %v3807 = vpop.permute.xlu0 %3806
      %3808 = vrot.lane.b32.xlu0 %v3797, 64
      %v3809 = vpop.permute.xlu0 %3808
      %v3814 = vadd.f32 %v3774, %v3803
      %v3815 = vadd.f32 %v3775, %v3805
      %v3816 = vadd.f32 %v3776, %v3807
      %v3817 = vadd.f32 %v3777, %v3809
      %v3818 = vld [vmem:[#allocation2 + $0x68] sm:$0xff]
      %v3819 = vld [vmem:[#allocation2 + $0x168] sm:$0xff]
      %v3820 = vld [vmem:[#allocation2 + $0x268] sm:$0xff]
      %v3821 = vld [vmem:[#allocation2 + $0x368] sm:$0xff]
      %3822 = vset.pattern.permute.xlu0 26
      %3823 = vperm.xlu0 %3822, %v2912
      %v3824 = vpop.permute.xlu0 %3823
      %3826 = vset.pattern.permute.xlu0 26
      %3827 = vperm.xlu0 %3826, %v2917
      %v3828 = vpop.permute.xlu0 %3827
      %3830 = vset.pattern.permute.xlu0 26
      %3831 = vperm.xlu0 %3830, %v2922
      %v3832 = vpop.permute.xlu0 %3831
      %3834 = vset.pattern.permute.xlu0 26
      %3835 = vperm.xlu0 %3834, %v2927
      %v3836 = vpop.permute.xlu0 %3835
      %v3838 = vmul.f32 %v3824, %v3818
      %v3839 = vmul.f32 %v3828, %v3819
      %v3840 = vmul.f32 %v3832, %v3820
      %v3841 = vmul.f32 %v3836, %v3821
      %v3842 = vadd.f32 %v3814, %v3838
      %v3843 = vadd.f32 %v3815, %v3839
      %v3844 = vadd.f32 %v3816, %v3840
      %v3845 = vadd.f32 %v3817, %v3841
      %3846 = vset.pattern.permute.xlu0 27
      %3847 = vperm.xlu0 %3846, %v2912
      %v3848 = vpop.permute.xlu0 %3847
      %3850 = vset.pattern.permute.xlu0 27
      %3851 = vperm.xlu0 %3850, %v2917
      %v3852 = vpop.permute.xlu0 %3851
      %3854 = vset.pattern.permute.xlu0 27
      %3855 = vperm.xlu0 %3854, %v2922
      %v3856 = vpop.permute.xlu0 %3855
      %3858 = vset.pattern.permute.xlu0 27
      %3859 = vperm.xlu0 %3858, %v2927
      %v3860 = vpop.permute.xlu0 %3859
      %v3862 = vmul.f32 %v3848, %v3818
      %v3863 = vmul.f32 %v3852, %v3819
      %v3864 = vmul.f32 %v3856, %v3820
      %v3865 = vmul.f32 %v3860, %v3821
      %3870 = vrot.lane.b32.xlu0 %v3862, 64
      %v3871 = vpop.permute.xlu0 %3870
      %3872 = vrot.lane.b32.xlu0 %v3863, 64
      %v3873 = vpop.permute.xlu0 %3872
      %3874 = vrot.lane.b32.xlu0 %v3864, 64
      %v3875 = vpop.permute.xlu0 %3874
      %3876 = vrot.lane.b32.xlu0 %v3865, 64
      %v3877 = vpop.permute.xlu0 %3876
      %v3882 = vadd.f32 %v3842, %v3871
      %v3883 = vadd.f32 %v3843, %v3873
      %v3884 = vadd.f32 %v3844, %v3875
      %v3885 = vadd.f32 %v3845, %v3877
      %v3886 = vld [vmem:[#allocation2 + $0x70] sm:$0xff]
      %v3887 = vld [vmem:[#allocation2 + $0x170] sm:$0xff]
      %v3888 = vld [vmem:[#allocation2 + $0x270] sm:$0xff]
      %v3889 = vld [vmem:[#allocation2 + $0x370] sm:$0xff]
      %3890 = vset.pattern.permute.xlu0 28
      %3891 = vperm.xlu0 %3890, %v2912
      %v3892 = vpop.permute.xlu0 %3891
      %3894 = vset.pattern.permute.xlu0 28
      %3895 = vperm.xlu0 %3894, %v2917
      %v3896 = vpop.permute.xlu0 %3895
      %3898 = vset.pattern.permute.xlu0 28
      %3899 = vperm.xlu0 %3898, %v2922
      %v3900 = vpop.permute.xlu0 %3899
      %3902 = vset.pattern.permute.xlu0 28
      %3903 = vperm.xlu0 %3902, %v2927
      %v3904 = vpop.permute.xlu0 %3903
      %v3906 = vmul.f32 %v3892, %v3886
      %v3907 = vmul.f32 %v3896, %v3887
      %v3908 = vmul.f32 %v3900, %v3888
      %v3909 = vmul.f32 %v3904, %v3889
      %v3910 = vadd.f32 %v3882, %v3906
      %v3911 = vadd.f32 %v3883, %v3907
      %v3912 = vadd.f32 %v3884, %v3908
      %v3913 = vadd.f32 %v3885, %v3909
      %3914 = vset.pattern.permute.xlu0 29
      %3915 = vperm.xlu0 %3914, %v2912
      %v3916 = vpop.permute.xlu0 %3915
      %3918 = vset.pattern.permute.xlu0 29
      %3919 = vperm.xlu0 %3918, %v2917
      %v3920 = vpop.permute.xlu0 %3919
      %3922 = vset.pattern.permute.xlu0 29
      %3923 = vperm.xlu0 %3922, %v2922
      %v3924 = vpop.permute.xlu0 %3923
      %3926 = vset.pattern.permute.xlu0 29
      %3927 = vperm.xlu0 %3926, %v2927
      %v3928 = vpop.permute.xlu0 %3927
      %v3930 = vmul.f32 %v3916, %v3886
      %v3931 = vmul.f32 %v3920, %v3887
      %v3932 = vmul.f32 %v3924, %v3888
      %v3933 = vmul.f32 %v3928, %v3889
      %3938 = vrot.lane.b32.xlu0 %v3930, 64
      %v3939 = vpop.permute.xlu0 %3938
      %3940 = vrot.lane.b32.xlu0 %v3931, 64
      %v3941 = vpop.permute.xlu0 %3940
      %3942 = vrot.lane.b32.xlu0 %v3932, 64
      %v3943 = vpop.permute.xlu0 %3942
      %3944 = vrot.lane.b32.xlu0 %v3933, 64
      %v3945 = vpop.permute.xlu0 %3944
      %v3950 = vadd.f32 %v3910, %v3939
      %v3951 = vadd.f32 %v3911, %v3941
      %v3952 = vadd.f32 %v3912, %v3943
      %v3953 = vadd.f32 %v3913, %v3945
      %v3954 = vld [vmem:[#allocation2 + $0x78] sm:$0xff]
      %v3955 = vld [vmem:[#allocation2 + $0x178] sm:$0xff]
      %v3956 = vld [vmem:[#allocation2 + $0x278] sm:$0xff]
      %v3957 = vld [vmem:[#allocation2 + $0x378] sm:$0xff]
      %3958 = vset.pattern.permute.xlu0 30
      %3959 = vperm.xlu0 %3958, %v2912
      %v3960 = vpop.permute.xlu0 %3959
      %3962 = vset.pattern.permute.xlu0 30
      %3963 = vperm.xlu0 %3962, %v2917
      %v3964 = vpop.permute.xlu0 %3963
      %3966 = vset.pattern.permute.xlu0 30
      %3967 = vperm.xlu0 %3966, %v2922
      %v3968 = vpop.permute.xlu0 %3967
      %3970 = vset.pattern.permute.xlu0 30
      %3971 = vperm.xlu0 %3970, %v2927
      %v3972 = vpop.permute.xlu0 %3971
      %v3974 = vmul.f32 %v3960, %v3954
      %v3975 = vmul.f32 %v3964, %v3955
      %v3976 = vmul.f32 %v3968, %v3956
      %v3977 = vmul.f32 %v3972, %v3957
      %v3978 = vadd.f32 %v3950, %v3974
      %v3979 = vadd.f32 %v3951, %v3975
      %v3980 = vadd.f32 %v3952, %v3976
      %v3981 = vadd.f32 %v3953, %v3977
      %3982 = vset.pattern.permute.xlu0 31
      %3983 = vperm.xlu0 %3982, %v2912
      %v3984 = vpop.permute.xlu0 %3983
      %3986 = vset.pattern.permute.xlu0 31
      %3987 = vperm.xlu0 %3986, %v2917
      %v3988 = vpop.permute.xlu0 %3987
      %3990 = vset.pattern.permute.xlu0 31
      %3991 = vperm.xlu0 %3990, %v2922
      %v3992 = vpop.permute.xlu0 %3991
      %3994 = vset.pattern.permute.xlu0 31
      %3995 = vperm.xlu0 %3994, %v2927
      %v3996 = vpop.permute.xlu0 %3995
      %v3998 = vmul.f32 %v3984, %v3954
      %v3999 = vmul.f32 %v3988, %v3955
      %v4000 = vmul.f32 %v3992, %v3956
      %v4001 = vmul.f32 %v3996, %v3957
      %4006 = vrot.lane.b32.xlu0 %v3998, 64
      %v4007 = vpop.permute.xlu0 %4006
      %4008 = vrot.lane.b32.xlu0 %v3999, 64
      %v4009 = vpop.permute.xlu0 %4008
      %4010 = vrot.lane.b32.xlu0 %v4000, 64
      %v4011 = vpop.permute.xlu0 %4010
      %4012 = vrot.lane.b32.xlu0 %v4001, 64
      %v4013 = vpop.permute.xlu0 %4012
      %v4018 = vadd.f32 %v3978, %v4007
      %v4019 = vadd.f32 %v3979, %v4009
      %v4020 = vadd.f32 %v3980, %v4011
      %v4021 = vadd.f32 %v3981, %v4013
      %v4022 = vld [vmem:[#allocation2 + $0x80] sm:$0xff]
      %v4023 = vld [vmem:[#allocation2 + $0x180] sm:$0xff]
      %v4024 = vld [vmem:[#allocation2 + $0x280] sm:$0xff]
      %v4025 = vld [vmem:[#allocation2 + $0x380] sm:$0xff]
      %4026 = vset.pattern.permute.xlu0 32
      %4027 = vperm.xlu0 %4026, %v2912
      %v4028 = vpop.permute.xlu0 %4027
      %4030 = vset.pattern.permute.xlu0 32
      %4031 = vperm.xlu0 %4030, %v2917
      %v4032 = vpop.permute.xlu0 %4031
      %4034 = vset.pattern.permute.xlu0 32
      %4035 = vperm.xlu0 %4034, %v2922
      %v4036 = vpop.permute.xlu0 %4035
      %4038 = vset.pattern.permute.xlu0 32
      %4039 = vperm.xlu0 %4038, %v2927
      %v4040 = vpop.permute.xlu0 %4039
      %v4042 = vmul.f32 %v4028, %v4022
      %v4043 = vmul.f32 %v4032, %v4023
      %v4044 = vmul.f32 %v4036, %v4024
      %v4045 = vmul.f32 %v4040, %v4025
      %v4046 = vadd.f32 %v4018, %v4042
      %v4047 = vadd.f32 %v4019, %v4043
      %v4048 = vadd.f32 %v4020, %v4044
      %v4049 = vadd.f32 %v4021, %v4045
      %4050 = vset.pattern.permute.xlu0 33
      %4051 = vperm.xlu0 %4050, %v2912
      %v4052 = vpop.permute.xlu0 %4051
      %4054 = vset.pattern.permute.xlu0 33
      %4055 = vperm.xlu0 %4054, %v2917
      %v4056 = vpop.permute.xlu0 %4055
      %4058 = vset.pattern.permute.xlu0 33
      %4059 = vperm.xlu0 %4058, %v2922
      %v4060 = vpop.permute.xlu0 %4059
      %4062 = vset.pattern.permute.xlu0 33
      %4063 = vperm.xlu0 %4062, %v2927
      %v4064 = vpop.permute.xlu0 %4063
      %v4066 = vmul.f32 %v4052, %v4022
      %v4067 = vmul.f32 %v4056, %v4023
      %v4068 = vmul.f32 %v4060, %v4024
      %v4069 = vmul.f32 %v4064, %v4025
      %4074 = vrot.lane.b32.xlu0 %v4066, 64
      %v4075 = vpop.permute.xlu0 %4074
      %4076 = vrot.lane.b32.xlu0 %v4067, 64
      %v4077 = vpop.permute.xlu0 %4076
      %4078 = vrot.lane.b32.xlu0 %v4068, 64
      %v4079 = vpop.permute.xlu0 %4078
      %4080 = vrot.lane.b32.xlu0 %v4069, 64
      %v4081 = vpop.permute.xlu0 %4080
      %v4086 = vadd.f32 %v4046, %v4075
      %v4087 = vadd.f32 %v4047, %v4077
      %v4088 = vadd.f32 %v4048, %v4079
      %v4089 = vadd.f32 %v4049, %v4081
      %v4090 = vld [vmem:[#allocation2 + $0x88] sm:$0xff]
      %v4091 = vld [vmem:[#allocation2 + $0x188] sm:$0xff]
      %v4092 = vld [vmem:[#allocation2 + $0x288] sm:$0xff]
      %v4093 = vld [vmem:[#allocation2 + $0x388] sm:$0xff]
      %4094 = vset.pattern.permute.xlu0 34
      %4095 = vperm.xlu0 %4094, %v2912
      %v4096 = vpop.permute.xlu0 %4095
      %4098 = vset.pattern.permute.xlu0 34
      %4099 = vperm.xlu0 %4098, %v2917
      %v4100 = vpop.permute.xlu0 %4099
      %4102 = vset.pattern.permute.xlu0 34
      %4103 = vperm.xlu0 %4102, %v2922
      %v4104 = vpop.permute.xlu0 %4103
      %4106 = vset.pattern.permute.xlu0 34
      %4107 = vperm.xlu0 %4106, %v2927
      %v4108 = vpop.permute.xlu0 %4107
      %v4110 = vmul.f32 %v4096, %v4090
      %v4111 = vmul.f32 %v4100, %v4091
      %v4112 = vmul.f32 %v4104, %v4092
      %v4113 = vmul.f32 %v4108, %v4093
      %v4114 = vadd.f32 %v4086, %v4110
      %v4115 = vadd.f32 %v4087, %v4111
      %v4116 = vadd.f32 %v4088, %v4112
      %v4117 = vadd.f32 %v4089, %v4113
      %4118 = vset.pattern.permute.xlu0 35
      %4119 = vperm.xlu0 %4118, %v2912
      %v4120 = vpop.permute.xlu0 %4119
      %4122 = vset.pattern.permute.xlu0 35
      %4123 = vperm.xlu0 %4122, %v2917
      %v4124 = vpop.permute.xlu0 %4123
      %4126 = vset.pattern.permute.xlu0 35
      %4127 = vperm.xlu0 %4126, %v2922
      %v4128 = vpop.permute.xlu0 %4127
      %4130 = vset.pattern.permute.xlu0 35
      %4131 = vperm.xlu0 %4130, %v2927
      %v4132 = vpop.permute.xlu0 %4131
      %v4134 = vmul.f32 %v4120, %v4090
      %v4135 = vmul.f32 %v4124, %v4091
      %v4136 = vmul.f32 %v4128, %v4092
      %v4137 = vmul.f32 %v4132, %v4093
      %4142 = vrot.lane.b32.xlu0 %v4134, 64
      %v4143 = vpop.permute.xlu0 %4142
      %4144 = vrot.lane.b32.xlu0 %v4135, 64
      %v4145 = vpop.permute.xlu0 %4144
      %4146 = vrot.lane.b32.xlu0 %v4136, 64
      %v4147 = vpop.permute.xlu0 %4146
      %4148 = vrot.lane.b32.xlu0 %v4137, 64
      %v4149 = vpop.permute.xlu0 %4148
      %v4154 = vadd.f32 %v4114, %v4143
      %v4155 = vadd.f32 %v4115, %v4145
      %v4156 = vadd.f32 %v4116, %v4147
      %v4157 = vadd.f32 %v4117, %v4149
      %v4158 = vld [vmem:[#allocation2 + $0x90] sm:$0xff]
      %v4159 = vld [vmem:[#allocation2 + $0x190] sm:$0xff]
      %v4160 = vld [vmem:[#allocation2 + $0x290] sm:$0xff]
      %v4161 = vld [vmem:[#allocation2 + $0x390] sm:$0xff]
      %4162 = vset.pattern.permute.xlu0 36
      %4163 = vperm.xlu0 %4162, %v2912
      %v4164 = vpop.permute.xlu0 %4163
      %4166 = vset.pattern.permute.xlu0 36
      %4167 = vperm.xlu0 %4166, %v2917
      %v4168 = vpop.permute.xlu0 %4167
      %4170 = vset.pattern.permute.xlu0 36
      %4171 = vperm.xlu0 %4170, %v2922
      %v4172 = vpop.permute.xlu0 %4171
      %4174 = vset.pattern.permute.xlu0 36
      %4175 = vperm.xlu0 %4174, %v2927
      %v4176 = vpop.permute.xlu0 %4175
      %v4178 = vmul.f32 %v4164, %v4158
      %v4179 = vmul.f32 %v4168, %v4159
      %v4180 = vmul.f32 %v4172, %v4160
      %v4181 = vmul.f32 %v4176, %v4161
      %v4182 = vadd.f32 %v4154, %v4178
      %v4183 = vadd.f32 %v4155, %v4179
      %v4184 = vadd.f32 %v4156, %v4180
      %v4185 = vadd.f32 %v4157, %v4181
      %4186 = vset.pattern.permute.xlu0 37
      %4187 = vperm.xlu0 %4186, %v2912
      %v4188 = vpop.permute.xlu0 %4187
      %4190 = vset.pattern.permute.xlu0 37
      %4191 = vperm.xlu0 %4190, %v2917
      %v4192 = vpop.permute.xlu0 %4191
      %4194 = vset.pattern.permute.xlu0 37
      %4195 = vperm.xlu0 %4194, %v2922
      %v4196 = vpop.permute.xlu0 %4195
      %4198 = vset.pattern.permute.xlu0 37
      %4199 = vperm.xlu0 %4198, %v2927
      %v4200 = vpop.permute.xlu0 %4199
      %v4202 = vmul.f32 %v4188, %v4158
      %v4203 = vmul.f32 %v4192, %v4159
      %v4204 = vmul.f32 %v4196, %v4160
      %v4205 = vmul.f32 %v4200, %v4161
      %4210 = vrot.lane.b32.xlu0 %v4202, 64
      %v4211 = vpop.permute.xlu0 %4210
      %4212 = vrot.lane.b32.xlu0 %v4203, 64
      %v4213 = vpop.permute.xlu0 %4212
      %4214 = vrot.lane.b32.xlu0 %v4204, 64
      %v4215 = vpop.permute.xlu0 %4214
      %4216 = vrot.lane.b32.xlu0 %v4205, 64
      %v4217 = vpop.permute.xlu0 %4216
      %v4222 = vadd.f32 %v4182, %v4211
      %v4223 = vadd.f32 %v4183, %v4213
      %v4224 = vadd.f32 %v4184, %v4215
      %v4225 = vadd.f32 %v4185, %v4217
      %v4226 = vld [vmem:[#allocation2 + $0x98] sm:$0xff]
      %v4227 = vld [vmem:[#allocation2 + $0x198] sm:$0xff]
      %v4228 = vld [vmem:[#allocation2 + $0x298] sm:$0xff]
      %v4229 = vld [vmem:[#allocation2 + $0x398] sm:$0xff]
      %4230 = vset.pattern.permute.xlu0 38
      %4231 = vperm.xlu0 %4230, %v2912
      %v4232 = vpop.permute.xlu0 %4231
      %4234 = vset.pattern.permute.xlu0 38
      %4235 = vperm.xlu0 %4234, %v2917
      %v4236 = vpop.permute.xlu0 %4235
      %4238 = vset.pattern.permute.xlu0 38
      %4239 = vperm.xlu0 %4238, %v2922
      %v4240 = vpop.permute.xlu0 %4239
      %4242 = vset.pattern.permute.xlu0 38
      %4243 = vperm.xlu0 %4242, %v2927
      %v4244 = vpop.permute.xlu0 %4243
      %v4246 = vmul.f32 %v4232, %v4226
      %v4247 = vmul.f32 %v4236, %v4227
      %v4248 = vmul.f32 %v4240, %v4228
      %v4249 = vmul.f32 %v4244, %v4229
      %v4250 = vadd.f32 %v4222, %v4246
      %v4251 = vadd.f32 %v4223, %v4247
      %v4252 = vadd.f32 %v4224, %v4248
      %v4253 = vadd.f32 %v4225, %v4249
      %4254 = vset.pattern.permute.xlu0 39
      %4255 = vperm.xlu0 %4254, %v2912
      %v4256 = vpop.permute.xlu0 %4255
      %4258 = vset.pattern.permute.xlu0 39
      %4259 = vperm.xlu0 %4258, %v2917
      %v4260 = vpop.permute.xlu0 %4259
      %4262 = vset.pattern.permute.xlu0 39
      %4263 = vperm.xlu0 %4262, %v2922
      %v4264 = vpop.permute.xlu0 %4263
      %4266 = vset.pattern.permute.xlu0 39
      %4267 = vperm.xlu0 %4266, %v2927
      %v4268 = vpop.permute.xlu0 %4267
      %v4270 = vmul.f32 %v4256, %v4226
      %v4271 = vmul.f32 %v4260, %v4227
      %v4272 = vmul.f32 %v4264, %v4228
      %v4273 = vmul.f32 %v4268, %v4229
      %4278 = vrot.lane.b32.xlu0 %v4270, 64
      %v4279 = vpop.permute.xlu0 %4278
      %4280 = vrot.lane.b32.xlu0 %v4271, 64
      %v4281 = vpop.permute.xlu0 %4280
      %4282 = vrot.lane.b32.xlu0 %v4272, 64
      %v4283 = vpop.permute.xlu0 %4282
      %4284 = vrot.lane.b32.xlu0 %v4273, 64
      %v4285 = vpop.permute.xlu0 %4284
      %v4290 = vadd.f32 %v4250, %v4279
      %v4291 = vadd.f32 %v4251, %v4281
      %v4292 = vadd.f32 %v4252, %v4283
      %v4293 = vadd.f32 %v4253, %v4285
      %v4294 = vld [vmem:[#allocation2 + $0xa0] sm:$0xff]
      %v4295 = vld [vmem:[#allocation2 + $0x1a0] sm:$0xff]
      %v4296 = vld [vmem:[#allocation2 + $0x2a0] sm:$0xff]
      %v4297 = vld [vmem:[#allocation2 + $0x3a0] sm:$0xff]
      %4298 = vset.pattern.permute.xlu0 40
      %4299 = vperm.xlu0 %4298, %v2912
      %v4300 = vpop.permute.xlu0 %4299
      %4302 = vset.pattern.permute.xlu0 40
      %4303 = vperm.xlu0 %4302, %v2917
      %v4304 = vpop.permute.xlu0 %4303
      %4306 = vset.pattern.permute.xlu0 40
      %4307 = vperm.xlu0 %4306, %v2922
      %v4308 = vpop.permute.xlu0 %4307
      %4310 = vset.pattern.permute.xlu0 40
      %4311 = vperm.xlu0 %4310, %v2927
      %v4312 = vpop.permute.xlu0 %4311
      %v4314 = vmul.f32 %v4300, %v4294
      %v4315 = vmul.f32 %v4304, %v4295
      %v4316 = vmul.f32 %v4308, %v4296
      %v4317 = vmul.f32 %v4312, %v4297
      %v4318 = vadd.f32 %v4290, %v4314
      %v4319 = vadd.f32 %v4291, %v4315
      %v4320 = vadd.f32 %v4292, %v4316
      %v4321 = vadd.f32 %v4293, %v4317
      %4322 = vset.pattern.permute.xlu0 41
      %4323 = vperm.xlu0 %4322, %v2912
      %v4324 = vpop.permute.xlu0 %4323
      %4326 = vset.pattern.permute.xlu0 41
      %4327 = vperm.xlu0 %4326, %v2917
      %v4328 = vpop.permute.xlu0 %4327
      %4330 = vset.pattern.permute.xlu0 41
      %4331 = vperm.xlu0 %4330, %v2922
      %v4332 = vpop.permute.xlu0 %4331
      %4334 = vset.pattern.permute.xlu0 41
      %4335 = vperm.xlu0 %4334, %v2927
      %v4336 = vpop.permute.xlu0 %4335
      %v4338 = vmul.f32 %v4324, %v4294
      %v4339 = vmul.f32 %v4328, %v4295
      %v4340 = vmul.f32 %v4332, %v4296
      %v4341 = vmul.f32 %v4336, %v4297
      %4346 = vrot.lane.b32.xlu0 %v4338, 64
      %v4347 = vpop.permute.xlu0 %4346
      %4348 = vrot.lane.b32.xlu0 %v4339, 64
      %v4349 = vpop.permute.xlu0 %4348
      %4350 = vrot.lane.b32.xlu0 %v4340, 64
      %v4351 = vpop.permute.xlu0 %4350
      %4352 = vrot.lane.b32.xlu0 %v4341, 64
      %v4353 = vpop.permute.xlu0 %4352
      %v4358 = vadd.f32 %v4318, %v4347
      %v4359 = vadd.f32 %v4319, %v4349
      %v4360 = vadd.f32 %v4320, %v4351
      %v4361 = vadd.f32 %v4321, %v4353
      %v4362 = vld [vmem:[#allocation2 + $0xa8] sm:$0xff]
      %v4363 = vld [vmem:[#allocation2 + $0x1a8] sm:$0xff]
      %v4364 = vld [vmem:[#allocation2 + $0x2a8] sm:$0xff]
      %v4365 = vld [vmem:[#allocation2 + $0x3a8] sm:$0xff]
      %4366 = vset.pattern.permute.xlu0 42
      %4367 = vperm.xlu0 %4366, %v2912
      %v4368 = vpop.permute.xlu0 %4367
      %4370 = vset.pattern.permute.xlu0 42
      %4371 = vperm.xlu0 %4370, %v2917
      %v4372 = vpop.permute.xlu0 %4371
      %4374 = vset.pattern.permute.xlu0 42
      %4375 = vperm.xlu0 %4374, %v2922
      %v4376 = vpop.permute.xlu0 %4375
      %4378 = vset.pattern.permute.xlu0 42
      %4379 = vperm.xlu0 %4378, %v2927
      %v4380 = vpop.permute.xlu0 %4379
      %v4382 = vmul.f32 %v4368, %v4362
      %v4383 = vmul.f32 %v4372, %v4363
      %v4384 = vmul.f32 %v4376, %v4364
      %v4385 = vmul.f32 %v4380, %v4365
      %v4386 = vadd.f32 %v4358, %v4382
      %v4387 = vadd.f32 %v4359, %v4383
      %v4388 = vadd.f32 %v4360, %v4384
      %v4389 = vadd.f32 %v4361, %v4385
      %4390 = vset.pattern.permute.xlu0 43
      %4391 = vperm.xlu0 %4390, %v2912
      %v4392 = vpop.permute.xlu0 %4391
      %4394 = vset.pattern.permute.xlu0 43
      %4395 = vperm.xlu0 %4394, %v2917
      %v4396 = vpop.permute.xlu0 %4395
      %4398 = vset.pattern.permute.xlu0 43
      %4399 = vperm.xlu0 %4398, %v2922
      %v4400 = vpop.permute.xlu0 %4399
      %4402 = vset.pattern.permute.xlu0 43
      %4403 = vperm.xlu0 %4402, %v2927
      %v4404 = vpop.permute.xlu0 %4403
      %v4406 = vmul.f32 %v4392, %v4362
      %v4407 = vmul.f32 %v4396, %v4363
      %v4408 = vmul.f32 %v4400, %v4364
      %v4409 = vmul.f32 %v4404, %v4365
      %4414 = vrot.lane.b32.xlu0 %v4406, 64
      %v4415 = vpop.permute.xlu0 %4414
      %4416 = vrot.lane.b32.xlu0 %v4407, 64
      %v4417 = vpop.permute.xlu0 %4416
      %4418 = vrot.lane.b32.xlu0 %v4408, 64
      %v4419 = vpop.permute.xlu0 %4418
      %4420 = vrot.lane.b32.xlu0 %v4409, 64
      %v4421 = vpop.permute.xlu0 %4420
      %v4426 = vadd.f32 %v4386, %v4415
      %v4427 = vadd.f32 %v4387, %v4417
      %v4428 = vadd.f32 %v4388, %v4419
      %v4429 = vadd.f32 %v4389, %v4421
      %v4430 = vld [vmem:[#allocation2 + $0xb0] sm:$0xff]
      %v4431 = vld [vmem:[#allocation2 + $0x1b0] sm:$0xff]
      %v4432 = vld [vmem:[#allocation2 + $0x2b0] sm:$0xff]
      %v4433 = vld [vmem:[#allocation2 + $0x3b0] sm:$0xff]
      %4434 = vset.pattern.permute.xlu0 44
      %4435 = vperm.xlu0 %4434, %v2912
      %v4436 = vpop.permute.xlu0 %4435
      %4438 = vset.pattern.permute.xlu0 44
      %4439 = vperm.xlu0 %4438, %v2917
      %v4440 = vpop.permute.xlu0 %4439
      %4442 = vset.pattern.permute.xlu0 44
      %4443 = vperm.xlu0 %4442, %v2922
      %v4444 = vpop.permute.xlu0 %4443
      %4446 = vset.pattern.permute.xlu0 44
      %4447 = vperm.xlu0 %4446, %v2927
      %v4448 = vpop.permute.xlu0 %4447
      %v4450 = vmul.f32 %v4436, %v4430
      %v4451 = vmul.f32 %v4440, %v4431
      %v4452 = vmul.f32 %v4444, %v4432
      %v4453 = vmul.f32 %v4448, %v4433
      %v4454 = vadd.f32 %v4426, %v4450
      %v4455 = vadd.f32 %v4427, %v4451
      %v4456 = vadd.f32 %v4428, %v4452
      %v4457 = vadd.f32 %v4429, %v4453
      %4458 = vset.pattern.permute.xlu0 45
      %4459 = vperm.xlu0 %4458, %v2912
      %v4460 = vpop.permute.xlu0 %4459
      %4462 = vset.pattern.permute.xlu0 45
      %4463 = vperm.xlu0 %4462, %v2917
      %v4464 = vpop.permute.xlu0 %4463
      %4466 = vset.pattern.permute.xlu0 45
      %4467 = vperm.xlu0 %4466, %v2922
      %v4468 = vpop.permute.xlu0 %4467
      %4470 = vset.pattern.permute.xlu0 45
      %4471 = vperm.xlu0 %4470, %v2927
      %v4472 = vpop.permute.xlu0 %4471
      %v4474 = vmul.f32 %v4460, %v4430
      %v4475 = vmul.f32 %v4464, %v4431
      %v4476 = vmul.f32 %v4468, %v4432
      %v4477 = vmul.f32 %v4472, %v4433
      %4482 = vrot.lane.b32.xlu0 %v4474, 64
      %v4483 = vpop.permute.xlu0 %4482
      %4484 = vrot.lane.b32.xlu0 %v4475, 64
      %v4485 = vpop.permute.xlu0 %4484
      %4486 = vrot.lane.b32.xlu0 %v4476, 64
      %v4487 = vpop.permute.xlu0 %4486
      %4488 = vrot.lane.b32.xlu0 %v4477, 64
      %v4489 = vpop.permute.xlu0 %4488
      %v4494 = vadd.f32 %v4454, %v4483
      %v4495 = vadd.f32 %v4455, %v4485
      %v4496 = vadd.f32 %v4456, %v4487
      %v4497 = vadd.f32 %v4457, %v4489
      %v4498 = vld [vmem:[#allocation2 + $0xb8] sm:$0xff]
      %v4499 = vld [vmem:[#allocation2 + $0x1b8] sm:$0xff]
      %v4500 = vld [vmem:[#allocation2 + $0x2b8] sm:$0xff]
      %v4501 = vld [vmem:[#allocation2 + $0x3b8] sm:$0xff]
      %4502 = vset.pattern.permute.xlu0 46
      %4503 = vperm.xlu0 %4502, %v2912
      %v4504 = vpop.permute.xlu0 %4503
      %4506 = vset.pattern.permute.xlu0 46
      %4507 = vperm.xlu0 %4506, %v2917
      %v4508 = vpop.permute.xlu0 %4507
      %4510 = vset.pattern.permute.xlu0 46
      %4511 = vperm.xlu0 %4510, %v2922
      %v4512 = vpop.permute.xlu0 %4511
      %4514 = vset.pattern.permute.xlu0 46
      %4515 = vperm.xlu0 %4514, %v2927
      %v4516 = vpop.permute.xlu0 %4515
      %v4518 = vmul.f32 %v4504, %v4498
      %v4519 = vmul.f32 %v4508, %v4499
      %v4520 = vmul.f32 %v4512, %v4500
      %v4521 = vmul.f32 %v4516, %v4501
      %v4522 = vadd.f32 %v4494, %v4518
      %v4523 = vadd.f32 %v4495, %v4519
      %v4524 = vadd.f32 %v4496, %v4520
      %v4525 = vadd.f32 %v4497, %v4521
      %4526 = vset.pattern.permute.xlu0 47
      %4527 = vperm.xlu0 %4526, %v2912
      %v4528 = vpop.permute.xlu0 %4527
      %4530 = vset.pattern.permute.xlu0 47
      %4531 = vperm.xlu0 %4530, %v2917
      %v4532 = vpop.permute.xlu0 %4531
      %4534 = vset.pattern.permute.xlu0 47
      %4535 = vperm.xlu0 %4534, %v2922
      %v4536 = vpop.permute.xlu0 %4535
      %4538 = vset.pattern.permute.xlu0 47
      %4539 = vperm.xlu0 %4538, %v2927
      %v4540 = vpop.permute.xlu0 %4539
      %v4542 = vmul.f32 %v4528, %v4498
      %v4543 = vmul.f32 %v4532, %v4499
      %v4544 = vmul.f32 %v4536, %v4500
      %v4545 = vmul.f32 %v4540, %v4501
      %4550 = vrot.lane.b32.xlu0 %v4542, 64
      %v4551 = vpop.permute.xlu0 %4550
      %4552 = vrot.lane.b32.xlu0 %v4543, 64
      %v4553 = vpop.permute.xlu0 %4552
      %4554 = vrot.lane.b32.xlu0 %v4544, 64
      %v4555 = vpop.permute.xlu0 %4554
      %4556 = vrot.lane.b32.xlu0 %v4545, 64
      %v4557 = vpop.permute.xlu0 %4556
      %v4562 = vadd.f32 %v4522, %v4551
      %v4563 = vadd.f32 %v4523, %v4553
      %v4564 = vadd.f32 %v4524, %v4555
      %v4565 = vadd.f32 %v4525, %v4557
      %v4566 = vld [vmem:[#allocation2 + $0xc0] sm:$0xff]
      %v4567 = vld [vmem:[#allocation2 + $0x1c0] sm:$0xff]
      %v4568 = vld [vmem:[#allocation2 + $0x2c0] sm:$0xff]
      %v4569 = vld [vmem:[#allocation2 + $0x3c0] sm:$0xff]
      %4570 = vset.pattern.permute.xlu0 48
      %4571 = vperm.xlu0 %4570, %v2912
      %v4572 = vpop.permute.xlu0 %4571
      %4574 = vset.pattern.permute.xlu0 48
      %4575 = vperm.xlu0 %4574, %v2917
      %v4576 = vpop.permute.xlu0 %4575
      %4578 = vset.pattern.permute.xlu0 48
      %4579 = vperm.xlu0 %4578, %v2922
      %v4580 = vpop.permute.xlu0 %4579
      %4582 = vset.pattern.permute.xlu0 48
      %4583 = vperm.xlu0 %4582, %v2927
      %v4584 = vpop.permute.xlu0 %4583
      %v4586 = vmul.f32 %v4572, %v4566
      %v4587 = vmul.f32 %v4576, %v4567
      %v4588 = vmul.f32 %v4580, %v4568
      %v4589 = vmul.f32 %v4584, %v4569
      %v4590 = vadd.f32 %v4562, %v4586
      %v4591 = vadd.f32 %v4563, %v4587
      %v4592 = vadd.f32 %v4564, %v4588
      %v4593 = vadd.f32 %v4565, %v4589
      %4594 = vset.pattern.permute.xlu0 49
      %4595 = vperm.xlu0 %4594, %v2912
      %v4596 = vpop.permute.xlu0 %4595
      %4598 = vset.pattern.permute.xlu0 49
      %4599 = vperm.xlu0 %4598, %v2917
      %v4600 = vpop.permute.xlu0 %4599
      %4602 = vset.pattern.permute.xlu0 49
      %4603 = vperm.xlu0 %4602, %v2922
      %v4604 = vpop.permute.xlu0 %4603
      %4606 = vset.pattern.permute.xlu0 49
      %4607 = vperm.xlu0 %4606, %v2927
      %v4608 = vpop.permute.xlu0 %4607
      %v4610 = vmul.f32 %v4596, %v4566
      %v4611 = vmul.f32 %v4600, %v4567
      %v4612 = vmul.f32 %v4604, %v4568
      %v4613 = vmul.f32 %v4608, %v4569
      %4618 = vrot.lane.b32.xlu0 %v4610, 64
      %v4619 = vpop.permute.xlu0 %4618
      %4620 = vrot.lane.b32.xlu0 %v4611, 64
      %v4621 = vpop.permute.xlu0 %4620
      %4622 = vrot.lane.b32.xlu0 %v4612, 64
      %v4623 = vpop.permute.xlu0 %4622
      %4624 = vrot.lane.b32.xlu0 %v4613, 64
      %v4625 = vpop.permute.xlu0 %4624
      %v4630 = vadd.f32 %v4590, %v4619
      %v4631 = vadd.f32 %v4591, %v4621
      %v4632 = vadd.f32 %v4592, %v4623
      %v4633 = vadd.f32 %v4593, %v4625
      %v4634 = vld [vmem:[#allocation2 + $0xc8] sm:$0xff]
      %v4635 = vld [vmem:[#allocation2 + $0x1c8] sm:$0xff]
      %v4636 = vld [vmem:[#allocation2 + $0x2c8] sm:$0xff]
      %v4637 = vld [vmem:[#allocation2 + $0x3c8] sm:$0xff]
      %4638 = vset.pattern.permute.xlu0 50
      %4639 = vperm.xlu0 %4638, %v2912
      %v4640 = vpop.permute.xlu0 %4639
      %4642 = vset.pattern.permute.xlu0 50
      %4643 = vperm.xlu0 %4642, %v2917
      %v4644 = vpop.permute.xlu0 %4643
      %4646 = vset.pattern.permute.xlu0 50
      %4647 = vperm.xlu0 %4646, %v2922
      %v4648 = vpop.permute.xlu0 %4647
      %4650 = vset.pattern.permute.xlu0 50
      %4651 = vperm.xlu0 %4650, %v2927
      %v4652 = vpop.permute.xlu0 %4651
      %v4654 = vmul.f32 %v4640, %v4634
      %v4655 = vmul.f32 %v4644, %v4635
      %v4656 = vmul.f32 %v4648, %v4636
      %v4657 = vmul.f32 %v4652, %v4637
      %v4658 = vadd.f32 %v4630, %v4654
      %v4659 = vadd.f32 %v4631, %v4655
      %v4660 = vadd.f32 %v4632, %v4656
      %v4661 = vadd.f32 %v4633, %v4657
      %4662 = vset.pattern.permute.xlu0 51
      %4663 = vperm.xlu0 %4662, %v2912
      %v4664 = vpop.permute.xlu0 %4663
      %4666 = vset.pattern.permute.xlu0 51
      %4667 = vperm.xlu0 %4666, %v2917
      %v4668 = vpop.permute.xlu0 %4667
      %4670 = vset.pattern.permute.xlu0 51
      %4671 = vperm.xlu0 %4670, %v2922
      %v4672 = vpop.permute.xlu0 %4671
      %4674 = vset.pattern.permute.xlu0 51
      %4675 = vperm.xlu0 %4674, %v2927
      %v4676 = vpop.permute.xlu0 %4675
      %v4678 = vmul.f32 %v4664, %v4634
      %v4679 = vmul.f32 %v4668, %v4635
      %v4680 = vmul.f32 %v4672, %v4636
      %v4681 = vmul.f32 %v4676, %v4637
      %4686 = vrot.lane.b32.xlu0 %v4678, 64
      %v4687 = vpop.permute.xlu0 %4686
      %4688 = vrot.lane.b32.xlu0 %v4679, 64
      %v4689 = vpop.permute.xlu0 %4688
      %4690 = vrot.lane.b32.xlu0 %v4680, 64
      %v4691 = vpop.permute.xlu0 %4690
      %4692 = vrot.lane.b32.xlu0 %v4681, 64
      %v4693 = vpop.permute.xlu0 %4692
      %v4698 = vadd.f32 %v4658, %v4687
      %v4699 = vadd.f32 %v4659, %v4689
      %v4700 = vadd.f32 %v4660, %v4691
      %v4701 = vadd.f32 %v4661, %v4693
      %v4702 = vld [vmem:[#allocation2 + $0xd0] sm:$0xff]
      %v4703 = vld [vmem:[#allocation2 + $0x1d0] sm:$0xff]
      %v4704 = vld [vmem:[#allocation2 + $0x2d0] sm:$0xff]
      %v4705 = vld [vmem:[#allocation2 + $0x3d0] sm:$0xff]
      %4706 = vset.pattern.permute.xlu0 52
      %4707 = vperm.xlu0 %4706, %v2912
      %v4708 = vpop.permute.xlu0 %4707
      %4710 = vset.pattern.permute.xlu0 52
      %4711 = vperm.xlu0 %4710, %v2917
      %v4712 = vpop.permute.xlu0 %4711
      %4714 = vset.pattern.permute.xlu0 52
      %4715 = vperm.xlu0 %4714, %v2922
      %v4716 = vpop.permute.xlu0 %4715
      %4718 = vset.pattern.permute.xlu0 52
      %4719 = vperm.xlu0 %4718, %v2927
      %v4720 = vpop.permute.xlu0 %4719
      %v4722 = vmul.f32 %v4708, %v4702
      %v4723 = vmul.f32 %v4712, %v4703
      %v4724 = vmul.f32 %v4716, %v4704
      %v4725 = vmul.f32 %v4720, %v4705
      %v4726 = vadd.f32 %v4698, %v4722
      %v4727 = vadd.f32 %v4699, %v4723
      %v4728 = vadd.f32 %v4700, %v4724
      %v4729 = vadd.f32 %v4701, %v4725
      %4730 = vset.pattern.permute.xlu0 53
      %4731 = vperm.xlu0 %4730, %v2912
      %v4732 = vpop.permute.xlu0 %4731
      %4734 = vset.pattern.permute.xlu0 53
      %4735 = vperm.xlu0 %4734, %v2917
      %v4736 = vpop.permute.xlu0 %4735
      %4738 = vset.pattern.permute.xlu0 53
      %4739 = vperm.xlu0 %4738, %v2922
      %v4740 = vpop.permute.xlu0 %4739
      %4742 = vset.pattern.permute.xlu0 53
      %4743 = vperm.xlu0 %4742, %v2927
      %v4744 = vpop.permute.xlu0 %4743
      %v4746 = vmul.f32 %v4732, %v4702
      %v4747 = vmul.f32 %v4736, %v4703
      %v4748 = vmul.f32 %v4740, %v4704
      %v4749 = vmul.f32 %v4744, %v4705
      %4754 = vrot.lane.b32.xlu0 %v4746, 64
      %v4755 = vpop.permute.xlu0 %4754
      %4756 = vrot.lane.b32.xlu0 %v4747, 64
      %v4757 = vpop.permute.xlu0 %4756
      %4758 = vrot.lane.b32.xlu0 %v4748, 64
      %v4759 = vpop.permute.xlu0 %4758
      %4760 = vrot.lane.b32.xlu0 %v4749, 64
      %v4761 = vpop.permute.xlu0 %4760
      %v4766 = vadd.f32 %v4726, %v4755
      %v4767 = vadd.f32 %v4727, %v4757
      %v4768 = vadd.f32 %v4728, %v4759
      %v4769 = vadd.f32 %v4729, %v4761
      %v4770 = vld [vmem:[#allocation2 + $0xd8] sm:$0xff]
      %v4771 = vld [vmem:[#allocation2 + $0x1d8] sm:$0xff]
      %v4772 = vld [vmem:[#allocation2 + $0x2d8] sm:$0xff]
      %v4773 = vld [vmem:[#allocation2 + $0x3d8] sm:$0xff]
      %4774 = vset.pattern.permute.xlu0 54
      %4775 = vperm.xlu0 %4774, %v2912
      %v4776 = vpop.permute.xlu0 %4775
      %4778 = vset.pattern.permute.xlu0 54
      %4779 = vperm.xlu0 %4778, %v2917
      %v4780 = vpop.permute.xlu0 %4779
      %4782 = vset.pattern.permute.xlu0 54
      %4783 = vperm.xlu0 %4782, %v2922
      %v4784 = vpop.permute.xlu0 %4783
      %4786 = vset.pattern.permute.xlu0 54
      %4787 = vperm.xlu0 %4786, %v2927
      %v4788 = vpop.permute.xlu0 %4787
      %v4790 = vmul.f32 %v4776, %v4770
      %v4791 = vmul.f32 %v4780, %v4771
      %v4792 = vmul.f32 %v4784, %v4772
      %v4793 = vmul.f32 %v4788, %v4773
      %v4794 = vadd.f32 %v4766, %v4790
      %v4795 = vadd.f32 %v4767, %v4791
      %v4796 = vadd.f32 %v4768, %v4792
      %v4797 = vadd.f32 %v4769, %v4793
      %4798 = vset.pattern.permute.xlu0 55
      %4799 = vperm.xlu0 %4798, %v2912
      %v4800 = vpop.permute.xlu0 %4799
      %4802 = vset.pattern.permute.xlu0 55
      %4803 = vperm.xlu0 %4802, %v2917
      %v4804 = vpop.permute.xlu0 %4803
      %4806 = vset.pattern.permute.xlu0 55
      %4807 = vperm.xlu0 %4806, %v2922
      %v4808 = vpop.permute.xlu0 %4807
      %4810 = vset.pattern.permute.xlu0 55
      %4811 = vperm.xlu0 %4810, %v2927
      %v4812 = vpop.permute.xlu0 %4811
      %v4814 = vmul.f32 %v4800, %v4770
      %v4815 = vmul.f32 %v4804, %v4771
      %v4816 = vmul.f32 %v4808, %v4772
      %v4817 = vmul.f32 %v4812, %v4773
      %4822 = vrot.lane.b32.xlu0 %v4814, 64
      %v4823 = vpop.permute.xlu0 %4822
      %4824 = vrot.lane.b32.xlu0 %v4815, 64
      %v4825 = vpop.permute.xlu0 %4824
      %4826 = vrot.lane.b32.xlu0 %v4816, 64
      %v4827 = vpop.permute.xlu0 %4826
      %4828 = vrot.lane.b32.xlu0 %v4817, 64
      %v4829 = vpop.permute.xlu0 %4828
      %v4834 = vadd.f32 %v4794, %v4823
      %v4835 = vadd.f32 %v4795, %v4825
      %v4836 = vadd.f32 %v4796, %v4827
      %v4837 = vadd.f32 %v4797, %v4829
      %v4838 = vld [vmem:[#allocation2 + $0xe0] sm:$0xff]
      %v4839 = vld [vmem:[#allocation2 + $0x1e0] sm:$0xff]
      %v4840 = vld [vmem:[#allocation2 + $0x2e0] sm:$0xff]
      %v4841 = vld [vmem:[#allocation2 + $0x3e0] sm:$0xff]
      %4842 = vset.pattern.permute.xlu0 56
      %4843 = vperm.xlu0 %4842, %v2912
      %v4844 = vpop.permute.xlu0 %4843
      %4846 = vset.pattern.permute.xlu0 56
      %4847 = vperm.xlu0 %4846, %v2917
      %v4848 = vpop.permute.xlu0 %4847
      %4850 = vset.pattern.permute.xlu0 56
      %4851 = vperm.xlu0 %4850, %v2922
      %v4852 = vpop.permute.xlu0 %4851
      %4854 = vset.pattern.permute.xlu0 56
      %4855 = vperm.xlu0 %4854, %v2927
      %v4856 = vpop.permute.xlu0 %4855
      %v4858 = vmul.f32 %v4844, %v4838
      %v4859 = vmul.f32 %v4848, %v4839
      %v4860 = vmul.f32 %v4852, %v4840
      %v4861 = vmul.f32 %v4856, %v4841
      %v4862 = vadd.f32 %v4834, %v4858
      %v4863 = vadd.f32 %v4835, %v4859
      %v4864 = vadd.f32 %v4836, %v4860
      %v4865 = vadd.f32 %v4837, %v4861
      %4866 = vset.pattern.permute.xlu0 57
      %4867 = vperm.xlu0 %4866, %v2912
      %v4868 = vpop.permute.xlu0 %4867
      %4870 = vset.pattern.permute.xlu0 57
      %4871 = vperm.xlu0 %4870, %v2917
      %v4872 = vpop.permute.xlu0 %4871
      %4874 = vset.pattern.permute.xlu0 57
      %4875 = vperm.xlu0 %4874, %v2922
      %v4876 = vpop.permute.xlu0 %4875
      %4878 = vset.pattern.permute.xlu0 57
      %4879 = vperm.xlu0 %4878, %v2927
      %v4880 = vpop.permute.xlu0 %4879
      %v4882 = vmul.f32 %v4868, %v4838
      %v4883 = vmul.f32 %v4872, %v4839
      %v4884 = vmul.f32 %v4876, %v4840
      %v4885 = vmul.f32 %v4880, %v4841
      %4890 = vrot.lane.b32.xlu0 %v4882, 64
      %v4891 = vpop.permute.xlu0 %4890
      %4892 = vrot.lane.b32.xlu0 %v4883, 64
      %v4893 = vpop.permute.xlu0 %4892
      %4894 = vrot.lane.b32.xlu0 %v4884, 64
      %v4895 = vpop.permute.xlu0 %4894
      %4896 = vrot.lane.b32.xlu0 %v4885, 64
      %v4897 = vpop.permute.xlu0 %4896
      %v4902 = vadd.f32 %v4862, %v4891
      %v4903 = vadd.f32 %v4863, %v4893
      %v4904 = vadd.f32 %v4864, %v4895
      %v4905 = vadd.f32 %v4865, %v4897
      %v4906 = vld [vmem:[#allocation2 + $0xe8] sm:$0xff]
      %v4907 = vld [vmem:[#allocation2 + $0x1e8] sm:$0xff]
      %v4908 = vld [vmem:[#allocation2 + $0x2e8] sm:$0xff]
      %v4909 = vld [vmem:[#allocation2 + $0x3e8] sm:$0xff]
      %4910 = vset.pattern.permute.xlu0 58
      %4911 = vperm.xlu0 %4910, %v2912
      %v4912 = vpop.permute.xlu0 %4911
      %4914 = vset.pattern.permute.xlu0 58
      %4915 = vperm.xlu0 %4914, %v2917
      %v4916 = vpop.permute.xlu0 %4915
      %4918 = vset.pattern.permute.xlu0 58
      %4919 = vperm.xlu0 %4918, %v2922
      %v4920 = vpop.permute.xlu0 %4919
      %4922 = vset.pattern.permute.xlu0 58
      %4923 = vperm.xlu0 %4922, %v2927
      %v4924 = vpop.permute.xlu0 %4923
      %v4926 = vmul.f32 %v4912, %v4906
      %v4927 = vmul.f32 %v4916, %v4907
      %v4928 = vmul.f32 %v4920, %v4908
      %v4929 = vmul.f32 %v4924, %v4909
      %v4930 = vadd.f32 %v4902, %v4926
      %v4931 = vadd.f32 %v4903, %v4927
      %v4932 = vadd.f32 %v4904, %v4928
      %v4933 = vadd.f32 %v4905, %v4929
      %4934 = vset.pattern.permute.xlu0 59
      %4935 = vperm.xlu0 %4934, %v2912
      %v4936 = vpop.permute.xlu0 %4935
      %4938 = vset.pattern.permute.xlu0 59
      %4939 = vperm.xlu0 %4938, %v2917
      %v4940 = vpop.permute.xlu0 %4939
      %4942 = vset.pattern.permute.xlu0 59
      %4943 = vperm.xlu0 %4942, %v2922
      %v4944 = vpop.permute.xlu0 %4943
      %4946 = vset.pattern.permute.xlu0 59
      %4947 = vperm.xlu0 %4946, %v2927
      %v4948 = vpop.permute.xlu0 %4947
      %v4950 = vmul.f32 %v4936, %v4906
      %v4951 = vmul.f32 %v4940, %v4907
      %v4952 = vmul.f32 %v4944, %v4908
      %v4953 = vmul.f32 %v4948, %v4909
      %4958 = vrot.lane.b32.xlu0 %v4950, 64
      %v4959 = vpop.permute.xlu0 %4958
      %4960 = vrot.lane.b32.xlu0 %v4951, 64
      %v4961 = vpop.permute.xlu0 %4960
      %4962 = vrot.lane.b32.xlu0 %v4952, 64
      %v4963 = vpop.permute.xlu0 %4962
      %4964 = vrot.lane.b32.xlu0 %v4953, 64
      %v4965 = vpop.permute.xlu0 %4964
      %v4970 = vadd.f32 %v4930, %v4959
      %v4971 = vadd.f32 %v4931, %v4961
      %v4972 = vadd.f32 %v4932, %v4963
      %v4973 = vadd.f32 %v4933, %v4965
      %v4974 = vld [vmem:[#allocation2 + $0xf0] sm:$0xff]
      %v4975 = vld [vmem:[#allocation2 + $0x1f0] sm:$0xff]
      %v4976 = vld [vmem:[#allocation2 + $0x2f0] sm:$0xff]
      %v4977 = vld [vmem:[#allocation2 + $0x3f0] sm:$0xff]
      %4978 = vset.pattern.permute.xlu0 60
      %4979 = vperm.xlu0 %4978, %v2912
      %v4980 = vpop.permute.xlu0 %4979
      %4982 = vset.pattern.permute.xlu0 60
      %4983 = vperm.xlu0 %4982, %v2917
      %v4984 = vpop.permute.xlu0 %4983
      %4986 = vset.pattern.permute.xlu0 60
      %4987 = vperm.xlu0 %4986, %v2922
      %v4988 = vpop.permute.xlu0 %4987
      %4990 = vset.pattern.permute.xlu0 60
      %4991 = vperm.xlu0 %4990, %v2927
      %v4992 = vpop.permute.xlu0 %4991
      %v4994 = vmul.f32 %v4980, %v4974
      %v4995 = vmul.f32 %v4984, %v4975
      %v4996 = vmul.f32 %v4988, %v4976
      %v4997 = vmul.f32 %v4992, %v4977
      %v4998 = vadd.f32 %v4970, %v4994
      %v4999 = vadd.f32 %v4971, %v4995
      %v5000 = vadd.f32 %v4972, %v4996
      %v5001 = vadd.f32 %v4973, %v4997
      %5002 = vset.pattern.permute.xlu0 61
      %5003 = vperm.xlu0 %5002, %v2912
      %v5004 = vpop.permute.xlu0 %5003
      %5006 = vset.pattern.permute.xlu0 61
      %5007 = vperm.xlu0 %5006, %v2917
      %v5008 = vpop.permute.xlu0 %5007
      %5010 = vset.pattern.permute.xlu0 61
      %5011 = vperm.xlu0 %5010, %v2922
      %v5012 = vpop.permute.xlu0 %5011
      %5014 = vset.pattern.permute.xlu0 61
      %5015 = vperm.xlu0 %5014, %v2927
      %v5016 = vpop.permute.xlu0 %5015
      %v5018 = vmul.f32 %v5004, %v4974
      %v5019 = vmul.f32 %v5008, %v4975
      %v5020 = vmul.f32 %v5012, %v4976
      %v5021 = vmul.f32 %v5016, %v4977
      %5026 = vrot.lane.b32.xlu0 %v5018, 64
      %v5027 = vpop.permute.xlu0 %5026
      %5028 = vrot.lane.b32.xlu0 %v5019, 64
      %v5029 = vpop.permute.xlu0 %5028
      %5030 = vrot.lane.b32.xlu0 %v5020, 64
      %v5031 = vpop.permute.xlu0 %5030
      %5032 = vrot.lane.b32.xlu0 %v5021, 64
      %v5033 = vpop.permute.xlu0 %5032
      %v5038 = vadd.f32 %v4998, %v5027
      %v5039 = vadd.f32 %v4999, %v5029
      %v5040 = vadd.f32 %v5000, %v5031
      %v5041 = vadd.f32 %v5001, %v5033
      %v5042 = vld [vmem:[#allocation2 + $0xf8] sm:$0xff]
      %v5043 = vld [vmem:[#allocation2 + $0x1f8] sm:$0xff]
      %v5044 = vld [vmem:[#allocation2 + $0x2f8] sm:$0xff]
      %v5045 = vld [vmem:[#allocation2 + $0x3f8] sm:$0xff]
      %5046 = vset.pattern.permute.xlu0 62
      %5047 = vperm.xlu0 %5046, %v2912
      %v5048 = vpop.permute.xlu0 %5047
      %5050 = vset.pattern.permute.xlu0 62
      %5051 = vperm.xlu0 %5050, %v2917
      %v5052 = vpop.permute.xlu0 %5051
      %5054 = vset.pattern.permute.xlu0 62
      %5055 = vperm.xlu0 %5054, %v2922
      %v5056 = vpop.permute.xlu0 %5055
      %5058 = vset.pattern.permute.xlu0 62
      %5059 = vperm.xlu0 %5058, %v2927
      %v5060 = vpop.permute.xlu0 %5059
      %v5062 = vmul.f32 %v5048, %v5042
      %v5063 = vmul.f32 %v5052, %v5043
      %v5064 = vmul.f32 %v5056, %v5044
      %v5065 = vmul.f32 %v5060, %v5045
      %v5066 = vadd.f32 %v5038, %v5062
      %v5067 = vadd.f32 %v5039, %v5063
      %v5068 = vadd.f32 %v5040, %v5064
      %v5069 = vadd.f32 %v5041, %v5065
      %5070 = vset.pattern.permute.xlu0 63
      %5071 = vperm.xlu0 %5070, %v2912
      %v5072 = vpop.permute.xlu0 %5071
      %5074 = vset.pattern.permute.xlu0 63
      %5075 = vperm.xlu0 %5074, %v2917
      %v5076 = vpop.permute.xlu0 %5075
      %5078 = vset.pattern.permute.xlu0 63
      %5079 = vperm.xlu0 %5078, %v2922
      %v5080 = vpop.permute.xlu0 %5079
      %5082 = vset.pattern.permute.xlu0 63
      %5083 = vperm.xlu0 %5082, %v2927
      %v5084 = vpop.permute.xlu0 %5083
      %v5086 = vmul.f32 %v5072, %v5042
      %v5087 = vmul.f32 %v5076, %v5043
      %v5088 = vmul.f32 %v5080, %v5044
      %v5089 = vmul.f32 %v5084, %v5045
      %5094 = vrot.lane.b32.xlu0 %v5086, 64
      %v5095 = vpop.permute.xlu0 %5094
      %5096 = vrot.lane.b32.xlu0 %v5087, 64
      %v5097 = vpop.permute.xlu0 %5096
      %5098 = vrot.lane.b32.xlu0 %v5088, 64
      %v5099 = vpop.permute.xlu0 %5098
      %5100 = vrot.lane.b32.xlu0 %v5089, 64
      %v5101 = vpop.permute.xlu0 %5100
      %v5106 = vadd.f32 %v5066, %v5095
      %v5107 = vadd.f32 %v5067, %v5097
      %v5108 = vadd.f32 %v5068, %v5099
      %v5109 = vadd.f32 %v5069, %v5101
      %v5110 = vld [vmem:[#allocation15] sm:$0xff]
      %v5111 = vld [vmem:[#allocation15 + $0x8] sm:$0xff]
      %v5112 = vld [vmem:[#allocation15 + $0x10] sm:$0xff]
      %v5113 = vld [vmem:[#allocation15 + $0x18] sm:$0xff]
      %v5114 = vld [vmem:[#allocation15 + $0x20] sm:$0xff]
      %v5115 = vld [vmem:[#allocation15 + $0x28] sm:$0xff]
      %v5116 = vld [vmem:[#allocation15 + $0x30] sm:$0xff]
      %v5117 = vld [vmem:[#allocation15 + $0x38] sm:$0xff]
      %vm5118 = vcmask 523264
      %v5120 = vsel %vm5118, %v2830, 0
      %v5123 = vsel %vm5118, %v2831, 0
      %5125 = vmatprep.subr.mxu0 0.0
      %5126 = vmatpush1.msra.mxu0 0.0
      %5127 = vmatprep.subr.mxu0 0.0
      %5128 = vmatpush1.msra.mxu0 0.0
      %5129 = vmatprep.subr.mxu0 0.0
      %5130 = vmatpush1.msra.mxu0 0.0
      %5131 = vmatprep.subr.mxu0 0.0
      %5132 = vmatpush1.msra.mxu0 0.0
      %5133 = vmatprep.subr.mxu0 0.0
      %5134 = vmatpush1.msra.mxu0 0.0
      %5135 = vmatprep.subr.mxu0 0.0
      %5136 = vmatpush1.msra.mxu0 0.0
      %5137 = vmatprep.subr.mxu0 0.0
      %5138 = vmatpush1.msra.mxu0 0.0
      %5139 = vmatprep.subr.mxu0 0.0
      %5140 = vmatpush1.msra.mxu0 0.0
      %5141 = vmatprep.subr.mxu0 0.0
      %5142 = vmatpush1.msra.mxu0 %v5117
      %5143 = vmatprep.subr.mxu0 0.0
      %5144 = vmatpush1.msra.mxu0 %v5116
      %5145 = vmatprep.subr.mxu0 0.0
      %5146 = vmatpush1.msra.mxu0 %v5115
      %5147 = vmatprep.subr.mxu0 0.0
      %5148 = vmatpush1.msra.mxu0 %v5114
      %5149 = vmatprep.subr.mxu0 0.0
      %5150 = vmatpush1.msra.mxu0 %v5113
      %5151 = vmatprep.subr.mxu0 0.0
      %5152 = vmatpush1.msra.mxu0 %v5112
      %5153 = vmatprep.subr.mxu0 0.0
      %5154 = vmatpush1.msra.mxu0 %v5111
      %5155 = vmatprep.subr.mxu0 0.0
      %5156 = vmatpush1.msra.mxu0 %v5110
      %5157 = vmatprep.subr.mxu0 0.0
      %5158 = vmatpush2.msra.mxu0 0.0
      %5159 = vmatprep.subr.mxu0 0.0
      %5160 = vmatpush2.msra.mxu0 0.0
      %5161 = vmatprep.subr.mxu0 0.0
      %5162 = vmatpush2.msra.mxu0 0.0
      %5163 = vmatprep.subr.mxu0 0.0
      %5164 = vmatpush2.msra.mxu0 0.0
      %5165 = vmatprep.subr.mxu0 0.0
      %5166 = vmatpush2.msra.mxu0 0.0
      %5167 = vmatprep.subr.mxu0 0.0
      %5168 = vmatpush2.msra.mxu0 0.0
      %5169 = vmatprep.subr.mxu0 0.0
      %5170 = vmatpush2.msra.mxu0 0.0
      %5171 = vmatprep.subr.mxu0 0.0
      %5172 = vmatpush2.msra.mxu0 0.0
      %5173 = vmatprep.subr.mxu0 0.0
      %5174 = vmatpush2.msra.mxu0 0.0
      %5175 = vmatprep.subr.mxu0 0.0
      %5176 = vmatpush2.msra.mxu0 0.0
      %5177 = vmatprep.subr.mxu0 0.0
      %5178 = vmatpush2.msra.mxu0 0.0
      %5179 = vmatprep.subr.mxu0 0.0
      %5180 = vmatpush2.msra.mxu0 0.0
      %5181 = vmatprep.subr.mxu0 0.0
      %5182 = vmatpush2.msra.mxu0 0.0
      %5183 = vmatprep.subr.mxu0 0.0
      %5184 = vmatpush2.msra.mxu0 0.0
      %5185 = vmatprep.subr.mxu0 0.0
      %5186 = vmatpush2.msra.mxu0 0.0
      %5187 = vmatprep.subr.mxu0 0.0
      %5188 = vmatpush2.msra.mxu0 0.0
      %5189 = vmatprep.mubr.f32.mxu0 0.0
      %5190 = vmatmul.mubr.f32.gmra.mxu0 %v5120
      %v5191 = vpop.f32.mrf.mxu0
      %v5192 = vadd.f32 0.0, %v5191
      %v5193 = vpop.f32.mrf.mxu0
      %5194 = vmatprep.mubr.f32.mxu0 0.0
      %5195 = vmatmul.mubr.f32.gmra.mxu0 %v5123
      %v5196 = vpop.f32.mrf.mxu0
      %v5197 = vadd.f32 0.0, %v5196
      %v5198 = vpop.f32.mrf.mxu0
      %5199 = vdwg.mxu0
      %vm5200 = vcmask 261120
      %v5202 = vsel %vm5200, %v351, 0
      %v5205 = vsel %vm5200, %v352, 0
      %5207 = vmatprep.subr.mxu0 0.0
      %5208 = vmatpush1.msra.mxu0 0.0
      %5209 = vmatprep.subr.mxu0 0.0
      %5210 = vmatpush1.msra.mxu0 0.0
      %5211 = vmatprep.subr.mxu0 0.0
      %5212 = vmatpush1.msra.mxu0 0.0
      %5213 = vmatprep.subr.mxu0 0.0
      %5214 = vmatpush1.msra.mxu0 0.0
      %5215 = vmatprep.subr.mxu0 0.0
      %5216 = vmatpush1.msra.mxu0 0.0
      %5217 = vmatprep.subr.mxu0 0.0
      %5218 = vmatpush1.msra.mxu0 0.0
      %5219 = vmatprep.subr.mxu0 0.0
      %5220 = vmatpush1.msra.mxu0 0.0
      %5221 = vmatprep.subr.mxu0 0.0
      %5222 = vmatpush1.msra.mxu0 0.0
      %5223 = vmatprep.subr.mxu0 0.0
      %5224 = vmatpush1.msra.mxu0 0.0
      %5225 = vmatprep.subr.mxu0 0.0
      %5226 = vmatpush1.msra.mxu0 0.0
      %5227 = vmatprep.subr.mxu0 0.0
      %5228 = vmatpush1.msra.mxu0 0.0
      %5229 = vmatprep.subr.mxu0 0.0
      %5230 = vmatpush1.msra.mxu0 0.0
      %5231 = vmatprep.subr.mxu0 0.0
      %5232 = vmatpush1.msra.mxu0 %v5109
      %5233 = vmatprep.subr.mxu0 0.0
      %5234 = vmatpush1.msra.mxu0 %v5108
      %5235 = vmatprep.subr.mxu0 0.0
      %5236 = vmatpush1.msra.mxu0 %v5107
      %5237 = vmatprep.subr.mxu0 0.0
      %5238 = vmatpush1.msra.mxu0 %v5106
      %5239 = vmatprep.subr.mxu0 0.0
      %5240 = vmatpush2.msra.mxu0 0.0
      %5241 = vmatprep.subr.mxu0 0.0
      %5242 = vmatpush2.msra.mxu0 0.0
      %5243 = vmatprep.subr.mxu0 0.0
      %5244 = vmatpush2.msra.mxu0 0.0
      %5245 = vmatprep.subr.mxu0 0.0
      %5246 = vmatpush2.msra.mxu0 0.0
      %5247 = vmatprep.subr.mxu0 0.0
      %5248 = vmatpush2.msra.mxu0 0.0
      %5249 = vmatprep.subr.mxu0 0.0
      %5250 = vmatpush2.msra.mxu0 0.0
      %5251 = vmatprep.subr.mxu0 0.0
      %5252 = vmatpush2.msra.mxu0 0.0
      %5253 = vmatprep.subr.mxu0 0.0
      %5254 = vmatpush2.msra.mxu0 0.0
      %5255 = vmatprep.subr.mxu0 0.0
      %5256 = vmatpush2.msra.mxu0 0.0
      %5257 = vmatprep.subr.mxu0 0.0
      %5258 = vmatpush2.msra.mxu0 0.0
      %5259 = vmatprep.subr.mxu0 0.0
      %5260 = vmatpush2.msra.mxu0 0.0
      %5261 = vmatprep.subr.mxu0 0.0
      %5262 = vmatpush2.msra.mxu0 0.0
      %5263 = vmatprep.subr.mxu0 0.0
      %5264 = vmatpush2.msra.mxu0 0.0
      %5265 = vmatprep.subr.mxu0 0.0
      %5266 = vmatpush2.msra.mxu0 0.0
      %5267 = vmatprep.subr.mxu0 0.0
      %5268 = vmatpush2.msra.mxu0 0.0
      %5269 = vmatprep.subr.mxu0 0.0
      %5270 = vmatpush2.msra.mxu0 0.0
      %5271 = vmatprep.mubr.f32.mxu0 0.0
      %5272 = vmatmul.mubr.f32.gmra.mxu0 %v5202
      %v5273 = vpop.f32.mrf.mxu0
      %v5274 = vadd.f32 %v5192, %v5273
      %v5275 = vpop.f32.mrf.mxu0
      %5276 = vmatprep.mubr.f32.mxu0 0.0
      %5277 = vmatmul.mubr.f32.gmra.mxu0 %v5205
      %v5278 = vpop.f32.mrf.mxu0
      %v5279 = vadd.f32 %v5197, %v5278
      %v5280 = vpop.f32.mrf.mxu0
      %5281 = vdwg.mxu0
      %v5282 = vld [vmem:[#allocation17] sm:$0x1]
      %v5284 = vlaneseq
      %v5285 = vshrl.u32 %v5284, 7
      %v5286 = vsub.s32 0, %v5285
      %v5287 = vrot.slane %v5282, %v5286
      %v5289 = vadd.f32 %v5274, %v5287
      %v5290 = vadd.f32 %v5279, %v5287
      %v5291 = vmax.f32 %v5289, 0.0
      %v5292 = vmax.f32 %v5290, 0.0
      %v5293 = vld [vmem:[#allocation18] sm:$0xff]
      %v5294 = vld [vmem:[#allocation18 + $0x8] sm:$0xff]
      %v5295 = vld [vmem:[#allocation18 + $0x10] sm:$0xff]
      %v5296 = vld [vmem:[#allocation18 + $0x18] sm:$0xff]
      %v5297 = vld [vmem:[#allocation18 + $0x20] sm:$0xff]
      %v5298 = vld [vmem:[#allocation18 + $0x28] sm:$0xff]
      %v5299 = vld [vmem:[#allocation18 + $0x30] sm:$0xff]
      %v5300 = vld [vmem:[#allocation18 + $0x38] sm:$0xff]
      %v5301 = vld [vmem:[#allocation18 + $0x40] sm:$0xff]
      %v5302 = vld [vmem:[#allocation18 + $0x48] sm:$0xff]
      %v5303 = vld [vmem:[#allocation18 + $0x50] sm:$0xff]
      %v5304 = vld [vmem:[#allocation18 + $0x58] sm:$0xff]
      %v5305 = vld [vmem:[#allocation18 + $0x60] sm:$0xff]
      %v5306 = vld [vmem:[#allocation18 + $0x68] sm:$0xff]
      %v5307 = vld [vmem:[#allocation18 + $0x70] sm:$0xff]
      %v5308 = vld [vmem:[#allocation18 + $0x78] sm:$0xff]
      %v5309 = vld [vmem:[#allocation20] sm:$0x3]
      %v5311 = vlaneseq
      %v5312 = vshrl.u32 %v5311, 7
      %v5313 = vsub.s32 0, %v5312
      %v5314 = vrot.slane %v5309, %v5313
      %v5315 = vlaneseq
      %v5316 = vshrl.u32 %v5315, 7
      %v5317 = vsub.s32 1, %v5316
      %v5318 = vrot.slane %v5309, %v5317
      %v5322 = vsel %vm5118, %v5291, 0
      %v5325 = vsel %vm5118, %v5292, 0
      %5327 = vmatprep.subr.mxu0 0.0
      %5328 = vmatpush1.msra.mxu0 0.0
      %5329 = vmatprep.subr.mxu0 0.0
      %5330 = vmatpush1.msra.mxu0 0.0
      %5331 = vmatprep.subr.mxu0 0.0
      %5332 = vmatpush1.msra.mxu0 0.0
      %5333 = vmatprep.subr.mxu0 0.0
      %5334 = vmatpush1.msra.mxu0 0.0
      %5335 = vmatprep.subr.mxu0 0.0
      %5336 = vmatpush1.msra.mxu0 0.0
      %5337 = vmatprep.subr.mxu0 0.0
      %5338 = vmatpush1.msra.mxu0 0.0
      %5339 = vmatprep.subr.mxu0 0.0
      %5340 = vmatpush1.msra.mxu0 0.0
      %5341 = vmatprep.subr.mxu0 0.0
      %5342 = vmatpush1.msra.mxu0 0.0
      %5343 = vmatprep.subr.mxu0 %v5308
      %5344 = vmatpush1.msra.mxu0 %v5307
      %5345 = vmatprep.subr.mxu0 %v5306
      %5346 = vmatpush1.msra.mxu0 %v5305
      %5347 = vmatprep.subr.mxu0 %v5304
      %5348 = vmatpush1.msra.mxu0 %v5303
      %5349 = vmatprep.subr.mxu0 %v5302
      %5350 = vmatpush1.msra.mxu0 %v5301
      %5351 = vmatprep.subr.mxu0 %v5300
      %5352 = vmatpush1.msra.mxu0 %v5299
      %5353 = vmatprep.subr.mxu0 %v5298
      %5354 = vmatpush1.msra.mxu0 %v5297
      %5355 = vmatprep.subr.mxu0 %v5296
      %5356 = vmatpush1.msra.mxu0 %v5295
      %5357 = vmatprep.subr.mxu0 %v5294
      %5358 = vmatpush1.msra.mxu0 %v5293
      %5359 = vmatprep.subr.mxu0 0.0
      %5360 = vmatpush2.msra.mxu0 0.0
      %5361 = vmatprep.subr.mxu0 0.0
      %5362 = vmatpush2.msra.mxu0 0.0
      %5363 = vmatprep.subr.mxu0 0.0
      %5364 = vmatpush2.msra.mxu0 0.0
      %5365 = vmatprep.subr.mxu0 0.0
      %5366 = vmatpush2.msra.mxu0 0.0
      %5367 = vmatprep.subr.mxu0 0.0
      %5368 = vmatpush2.msra.mxu0 0.0
      %5369 = vmatprep.subr.mxu0 0.0
      %5370 = vmatpush2.msra.mxu0 0.0
      %5371 = vmatprep.subr.mxu0 0.0
      %5372 = vmatpush2.msra.mxu0 0.0
      %5373 = vmatprep.subr.mxu0 0.0
      %5374 = vmatpush2.msra.mxu0 0.0
      %5375 = vmatprep.subr.mxu0 0.0
      %5376 = vmatpush2.msra.mxu0 0.0
      %5377 = vmatprep.subr.mxu0 0.0
      %5378 = vmatpush2.msra.mxu0 0.0
      %5379 = vmatprep.subr.mxu0 0.0
      %5380 = vmatpush2.msra.mxu0 0.0
      %5381 = vmatprep.subr.mxu0 0.0
      %5382 = vmatpush2.msra.mxu0 0.0
      %5383 = vmatprep.subr.mxu0 0.0
      %5384 = vmatpush2.msra.mxu0 0.0
      %5385 = vmatprep.subr.mxu0 0.0
      %5386 = vmatpush2.msra.mxu0 0.0
      %5387 = vmatprep.subr.mxu0 0.0
      %5388 = vmatpush2.msra.mxu0 0.0
      %5389 = vmatprep.subr.mxu0 0.0
      %5390 = vmatpush2.msra.mxu0 0.0
      %5391 = vmatprep.mubr.f32.mxu0 0.0
      %5392 = vmatmul.mubr.f32.gmra.mxu0 %v5322
      %v5393 = vpop.f32.mrf.mxu0
      %v5394 = vadd.f32 %v5314, %v5393
      %v5395 = vpop.f32.mrf.mxu0
      %v5396 = vadd.f32 %v5318, %v5395
      %5397 = vmatprep.mubr.f32.mxu0 0.0
      %5398 = vmatmul.mubr.f32.gmra.mxu0 %v5325
      %v5399 = vpop.f32.mrf.mxu0
      %v5400 = vadd.f32 %v5314, %v5399
      %v5401 = vpop.f32.mrf.mxu0
      %v5402 = vadd.f32 %v5318, %v5401
      %5403 = vdwg.mxu0
      %v5404 = vld [vmem:[#allocation21] sm:$0xff]
      %v5405 = vld [vmem:[#allocation21 + $0x8] sm:$0xff]
      %v5406 = vld [vmem:[#allocation21 + $0x10] sm:$0xff]
      %v5407 = vld [vmem:[#allocation21 + $0x18] sm:$0xff]
      %v5408 = vld [vmem:[#allocation21 + $0x20] sm:$0xff]
      %v5409 = vld [vmem:[#allocation21 + $0x28] sm:$0xff]
      %v5410 = vld [vmem:[#allocation21 + $0x30] sm:$0xff]
      %v5411 = vld [vmem:[#allocation21 + $0x38] sm:$0xff]
      %v5412 = vld [vmem:[#allocation21 + $0x40] sm:$0xff]
      %v5413 = vld [vmem:[#allocation21 + $0x48] sm:$0xff]
      %v5414 = vld [vmem:[#allocation21 + $0x50] sm:$0xff]
      %v5415 = vld [vmem:[#allocation21 + $0x58] sm:$0xff]
      %v5416 = vld [vmem:[#allocation21 + $0x60] sm:$0xff]
      %v5417 = vld [vmem:[#allocation21 + $0x68] sm:$0xff]
      %v5418 = vld [vmem:[#allocation21 + $0x70] sm:$0xff]
      %v5419 = vld [vmem:[#allocation21 + $0x78] sm:$0xff]
      %v5420 = vld [vmem:[#allocation23] sm:$0x3]
      %v5422 = vlaneseq
      %v5423 = vshrl.u32 %v5422, 7
      %v5424 = vsub.s32 0, %v5423
      %v5425 = vrot.slane %v5420, %v5424
      %v5426 = vlaneseq
      %v5427 = vshrl.u32 %v5426, 7
      %v5428 = vsub.s32 1, %v5427
      %v5429 = vrot.slane %v5420, %v5428
      %5432 = vmatprep.subr.mxu0 0.0
      %5433 = vmatpush1.msra.mxu0 0.0
      %5434 = vmatprep.subr.mxu0 0.0
      %5435 = vmatpush1.msra.mxu0 0.0
      %5436 = vmatprep.subr.mxu0 0.0
      %5437 = vmatpush1.msra.mxu0 0.0
      %5438 = vmatprep.subr.mxu0 0.0
      %5439 = vmatpush1.msra.mxu0 0.0
      %5440 = vmatprep.subr.mxu0 0.0
      %5441 = vmatpush1.msra.mxu0 0.0
      %5442 = vmatprep.subr.mxu0 0.0
      %5443 = vmatpush1.msra.mxu0 0.0
      %5444 = vmatprep.subr.mxu0 0.0
      %5445 = vmatpush1.msra.mxu0 0.0
      %5446 = vmatprep.subr.mxu0 0.0
      %5447 = vmatpush1.msra.mxu0 0.0
      %5448 = vmatprep.subr.mxu0 %v5419
      %5449 = vmatpush1.msra.mxu0 %v5418
      %5450 = vmatprep.subr.mxu0 %v5417
      %5451 = vmatpush1.msra.mxu0 %v5416
      %5452 = vmatprep.subr.mxu0 %v5415
      %5453 = vmatpush1.msra.mxu0 %v5414
      %5454 = vmatprep.subr.mxu0 %v5413
      %5455 = vmatpush1.msra.mxu0 %v5412
      %5456 = vmatprep.subr.mxu0 %v5411
      %5457 = vmatpush1.msra.mxu0 %v5410
      %5458 = vmatprep.subr.mxu0 %v5409
      %5459 = vmatpush1.msra.mxu0 %v5408
      %5460 = vmatprep.subr.mxu0 %v5407
      %5461 = vmatpush1.msra.mxu0 %v5406
      %5462 = vmatprep.subr.mxu0 %v5405
      %5463 = vmatpush1.msra.mxu0 %v5404
      %5464 = vmatprep.subr.mxu0 0.0
      %5465 = vmatpush2.msra.mxu0 0.0
      %5466 = vmatprep.subr.mxu0 0.0
      %5467 = vmatpush2.msra.mxu0 0.0
      %5468 = vmatprep.subr.mxu0 0.0
      %5469 = vmatpush2.msra.mxu0 0.0
      %5470 = vmatprep.subr.mxu0 0.0
      %5471 = vmatpush2.msra.mxu0 0.0
      %5472 = vmatprep.subr.mxu0 0.0
      %5473 = vmatpush2.msra.mxu0 0.0
      %5474 = vmatprep.subr.mxu0 0.0
      %5475 = vmatpush2.msra.mxu0 0.0
      %5476 = vmatprep.subr.mxu0 0.0
      %5477 = vmatpush2.msra.mxu0 0.0
      %5478 = vmatprep.subr.mxu0 0.0
      %5479 = vmatpush2.msra.mxu0 0.0
      %5480 = vmatprep.subr.mxu0 0.0
      %5481 = vmatpush2.msra.mxu0 0.0
      %5482 = vmatprep.subr.mxu0 0.0
      %5483 = vmatpush2.msra.mxu0 0.0
      %5484 = vmatprep.subr.mxu0 0.0
      %5485 = vmatpush2.msra.mxu0 0.0
      %5486 = vmatprep.subr.mxu0 0.0
      %5487 = vmatpush2.msra.mxu0 0.0
      %5488 = vmatprep.subr.mxu0 0.0
      %5489 = vmatpush2.msra.mxu0 0.0
      %5490 = vmatprep.subr.mxu0 0.0
      %5491 = vmatpush2.msra.mxu0 0.0
      %5492 = vmatprep.subr.mxu0 0.0
      %5493 = vmatpush2.msra.mxu0 0.0
      %5494 = vmatprep.subr.mxu0 0.0
      %5495 = vmatpush2.msra.mxu0 0.0
      %5496 = vmatprep.mubr.f32.mxu0 0.0
      %5497 = vmatmul.mubr.f32.gmra.mxu0 %v5120
      %v5498 = vpop.f32.mrf.mxu0
      %v5499 = vadd.f32 %v5425, %v5498
      %v5500 = vpop.f32.mrf.mxu0
      %v5501 = vadd.f32 %v5429, %v5500
      %5502 = vmatprep.mubr.f32.mxu0 0.0
      %5503 = vmatmul.mubr.f32.gmra.mxu0 %v5123
      %v5504 = vpop.f32.mrf.mxu0
      %v5505 = vadd.f32 %v5425, %v5504
      %v5506 = vpop.f32.mrf.mxu0
      %v5507 = vadd.f32 %v5429, %v5506
      %5508 = vdwg.mxu0
      %v5509 = vadd.f32 %v5394, %v5499
      %v5510 = vadd.f32 %v5400, %v5505
      %v5511 = vxor.u32 %v5509, 2147483648
      %v5512 = vxor.u32 %v5510, 2147483648
      %v5513 = vmul.f32 %v5511, 1.442695
      %v5514 = vpow.pop %v5513
      %v5515 = vmul.f32 %v5512, 1.442695
      %v5516 = vpow.pop %v5515
      %v5517 = vadd.f32 %v5514, 1.0
      %v5518 = vadd.f32 %v5516, 1.0
      %v5519 = vrcp.pop %v5517
      %v5520 = vmul.f32 1.0, %v5519
      %v5521 = vrcp.pop %v5518
      %v5522 = vmul.f32 1.0, %v5521
      %v5523 = vmul.f32 %v5520, %v5501
      %v5524 = vmul.f32 %v5522, %v5507
      %v5525 = vadd.f32 %v5396, %v5523
      %v5526 = vadd.f32 %v5402, %v5524
      %v5527 = vtanh.pop %v5525
      %v5528 = vtanh.pop %v5526
      %v5529 = vsub.f32 1.0, %v5520
      %v5530 = vsub.f32 1.0, %v5522
      %5533 = vrot.lane.b32.xlu0 %v5527, 64
      %v5534 = vpop.permute.xlu0 %5533
      %5535 = vrot.lane.b32.xlu0 %v5528, 64
      %v5536 = vpop.permute.xlu0 %5535
      %v5539 = vmul.f32 %v5529, %v5534
      %v5540 = vmul.f32 %v5530, %v5536
      %5541 = vrot.lane.b32.xlu0 %v2830, 64
      %v5542 = vpop.permute.xlu0 %5541
      %5543 = vrot.lane.b32.xlu0 %v2831, 64
      %v5544 = vpop.permute.xlu0 %5543
      %v5547 = vmul.f32 %v5520, %v5542
      %v5548 = vmul.f32 %v5522, %v5544
      %v5549 = vadd.f32 %v5539, %v5547
      %v5550 = vadd.f32 %v5540, %v5548
      %5553 = vrot.lane.b32.xlu0 %v5549, 64
      %v5554 = vpop.permute.xlu0 %5553
      %5555 = vrot.lane.b32.xlu0 %v5550, 64
      %v5556 = vpop.permute.xlu0 %5555
    $region182: #{net_forward.1} parent=1 // loop_footer
      %s2829 = sadd.s32 1, %s2825
    $region183: #{net_forward.1} parent=1 // loop_footer_branch
      %2824 = sbr.rel target = $region179
    $region184: #{net_forward.1} parent=1 // loop_exit
      _
    %v5559 = vld [vmem:[#allocation24] sm:$0xff]
    %v5560 = vld [vmem:[#allocation24 + $0x8] sm:$0xff]
    %v5561 = vld [vmem:[#allocation24 + $0x10] sm:$0xff]
    %v5562 = vld [vmem:[#allocation24 + $0x18] sm:$0xff]
    %v5563 = vld [vmem:[#allocation24 + $0x20] sm:$0xff]
    %v5564 = vld [vmem:[#allocation24 + $0x28] sm:$0xff]
    %v5565 = vld [vmem:[#allocation24 + $0x30] sm:$0xff]
    %v5566 = vld [vmem:[#allocation24 + $0x38] sm:$0xff]
    %v5567 = vld [vmem:[#allocation24 + $0x40] sm:$0xff]
    %v5568 = vld [vmem:[#allocation24 + $0x48] sm:$0xff]
    %v5569 = vld [vmem:[#allocation24 + $0x50] sm:$0xff]
    %v5570 = vld [vmem:[#allocation24 + $0x58] sm:$0xff]
    %v5571 = vld [vmem:[#allocation24 + $0x60] sm:$0xff]
    %v5572 = vld [vmem:[#allocation24 + $0x68] sm:$0xff]
    %v5573 = vld [vmem:[#allocation24 + $0x70] sm:$0xff]
    %v5574 = vld [vmem:[#allocation24 + $0x78] sm:$0xff]
    %v5575 = vld [vmem:[#allocation24 + $0x80] sm:$0xff]
    %v5576 = vld [vmem:[#allocation24 + $0x88] sm:$0xff]
    %v5577 = vld [vmem:[#allocation24 + $0x90] sm:$0xff]
    %v5578 = vld [vmem:[#allocation24 + $0x98] sm:$0xff]
    %v5579 = vld [vmem:[#allocation24 + $0xa0] sm:$0xff]
    %v5580 = vld [vmem:[#allocation24 + $0xa8] sm:$0xff]
    %v5581 = vld [vmem:[#allocation24 + $0xb0] sm:$0xff]
    %v5582 = vld [vmem:[#allocation24 + $0xb8] sm:$0xff]
    %v5583 = vld [vmem:[#allocation24 + $0xc0] sm:$0xff]
    %v5584 = vld [vmem:[#allocation24 + $0xc8] sm:$0xff]
    %v5585 = vld [vmem:[#allocation24 + $0xd0] sm:$0xff]
    %v5586 = vld [vmem:[#allocation24 + $0xd8] sm:$0xff]
    %v5587 = vld [vmem:[#allocation24 + $0xe0] sm:$0xff]
    %v5588 = vld [vmem:[#allocation24 + $0xe8] sm:$0xff]
    %v5589 = vld [vmem:[#allocation24 + $0xf0] sm:$0xff]
    %v5590 = vld [vmem:[#allocation24 + $0xf8] sm:$0xff]
    %v5591 = vld [vmem:[#allocation26] sm:$0x3]
    %v5593 = vlaneseq
    %v5594 = vshrl.u32 %v5593, 7
    %v5595 = vsub.s32 0, %v5594
    %v5596 = vrot.slane %v5591, %v5595
    %v5597 = vlaneseq
    %v5598 = vshrl.u32 %v5597, 7
    %v5599 = vsub.s32 1, %v5598
    %v5600 = vrot.slane %v5591, %v5599
    %5603 = vmatprep.subr.mxu0 %v5590
    %5604 = vmatpush1.msra.mxu0 %v5589
    %5605 = vmatprep.subr.mxu0 %v5588
    %5606 = vmatpush1.msra.mxu0 %v5587
    %5607 = vmatprep.subr.mxu0 %v5586
    %5608 = vmatpush1.msra.mxu0 %v5585
    %5609 = vmatprep.subr.mxu0 %v5584
    %5610 = vmatpush1.msra.mxu0 %v5583
    %5611 = vmatprep.subr.mxu0 %v5582
    %5612 = vmatpush1.msra.mxu0 %v5581
    %5613 = vmatprep.subr.mxu0 %v5580
    %5614 = vmatpush1.msra.mxu0 %v5579
    %5615 = vmatprep.subr.mxu0 %v5578
    %5616 = vmatpush1.msra.mxu0 %v5577
    %5617 = vmatprep.subr.mxu0 %v5576
    %5618 = vmatpush1.msra.mxu0 %v5575
    %5619 = vmatprep.subr.mxu0 %v5574
    %5620 = vmatpush1.msra.mxu0 %v5573
    %5621 = vmatprep.subr.mxu0 %v5572
    %5622 = vmatpush1.msra.mxu0 %v5571
    %5623 = vmatprep.subr.mxu0 %v5570
    %5624 = vmatpush1.msra.mxu0 %v5569
    %5625 = vmatprep.subr.mxu0 %v5568
    %5626 = vmatpush1.msra.mxu0 %v5567
    %5627 = vmatprep.subr.mxu0 %v5566
    %5628 = vmatpush1.msra.mxu0 %v5565
    %5629 = vmatprep.subr.mxu0 %v5564
    %5630 = vmatpush1.msra.mxu0 %v5563
    %5631 = vmatprep.subr.mxu0 %v5562
    %5632 = vmatpush1.msra.mxu0 %v5561
    %5633 = vmatprep.subr.mxu0 %v5560
    %5634 = vmatpush1.msra.mxu0 %v5559
    %5635 = vmatprep.subr.mxu0 0.0
    %5636 = vmatpush2.msra.mxu0 0.0
    %5637 = vmatprep.subr.mxu0 0.0
    %5638 = vmatpush2.msra.mxu0 0.0
    %5639 = vmatprep.subr.mxu0 0.0
    %5640 = vmatpush2.msra.mxu0 0.0
    %5641 = vmatprep.subr.mxu0 0.0
    %5642 = vmatpush2.msra.mxu0 0.0
    %5643 = vmatprep.subr.mxu0 0.0
    %5644 = vmatpush2.msra.mxu0 0.0
    %5645 = vmatprep.subr.mxu0 0.0
    %5646 = vmatpush2.msra.mxu0 0.0
    %5647 = vmatprep.subr.mxu0 0.0
    %5648 = vmatpush2.msra.mxu0 0.0
    %5649 = vmatprep.subr.mxu0 0.0
    %5650 = vmatpush2.msra.mxu0 0.0
    %5651 = vmatprep.subr.mxu0 0.0
    %5652 = vmatpush2.msra.mxu0 0.0
    %5653 = vmatprep.subr.mxu0 0.0
    %5654 = vmatpush2.msra.mxu0 0.0
    %5655 = vmatprep.subr.mxu0 0.0
    %5656 = vmatpush2.msra.mxu0 0.0
    %5657 = vmatprep.subr.mxu0 0.0
    %5658 = vmatpush2.msra.mxu0 0.0
    %5659 = vmatprep.subr.mxu0 0.0
    %5660 = vmatpush2.msra.mxu0 0.0
    %5661 = vmatprep.subr.mxu0 0.0
    %5662 = vmatpush2.msra.mxu0 0.0
    %5663 = vmatprep.subr.mxu0 0.0
    %5664 = vmatpush2.msra.mxu0 0.0
    %5665 = vmatprep.subr.mxu0 0.0
    %5666 = vmatpush2.msra.mxu0 0.0
    %5667 = vmatprep.mubr.f32.mxu0 0.0
    %5668 = vmatmul.mubr.f32.gmra.mxu0 0.0
    %v5669 = vpop.f32.mrf.mxu0
    %v5670 = vadd.f32 %v5596, %v5669
    %v5671 = vpop.f32.mrf.mxu0
    %v5672 = vadd.f32 %v5600, %v5671
    %5673 = vdwg.mxu0
    %v5674 = vld [vmem:[#allocation27] sm:$0xff]
    %v5675 = vld [vmem:[#allocation27 + $0x8] sm:$0xff]
    %v5676 = vld [vmem:[#allocation27 + $0x10] sm:$0xff]
    %v5677 = vld [vmem:[#allocation27 + $0x18] sm:$0xff]
    %v5678 = vld [vmem:[#allocation27 + $0x20] sm:$0xff]
    %v5679 = vld [vmem:[#allocation27 + $0x28] sm:$0xff]
    %v5680 = vld [vmem:[#allocation27 + $0x30] sm:$0xff]
    %v5681 = vld [vmem:[#allocation27 + $0x38] sm:$0xff]
    %v5682 = vld [vmem:[#allocation27 + $0x40] sm:$0xff]
    %v5683 = vld [vmem:[#allocation27 + $0x48] sm:$0xff]
    %v5684 = vld [vmem:[#allocation27 + $0x50] sm:$0xff]
    %v5685 = vld [vmem:[#allocation27 + $0x58] sm:$0xff]
    %v5686 = vld [vmem:[#allocation27 + $0x60] sm:$0xff]
    %v5687 = vld [vmem:[#allocation27 + $0x68] sm:$0xff]
    %v5688 = vld [vmem:[#allocation27 + $0x70] sm:$0xff]
    %v5689 = vld [vmem:[#allocation27 + $0x78] sm:$0xff]
    %v5690 = vld [vmem:[#allocation29] sm:$0x3]
    %v5692 = vlaneseq
    %v5693 = vshrl.u32 %v5692, 7
    %v5694 = vsub.s32 0, %v5693
    %v5695 = vrot.slane %v5690, %v5694
    %v5696 = vlaneseq
    %v5697 = vshrl.u32 %v5696, 7
    %v5698 = vsub.s32 1, %v5697
    %v5699 = vrot.slane %v5690, %v5698
    %vm5702 = vcmask 523264
    %v5704 = vsel %vm5702, 0.0, 0
    %5706 = vmatprep.subr.mxu0 0.0
    %5707 = vmatpush1.msra.mxu0 0.0
    %5708 = vmatprep.subr.mxu0 0.0
    %5709 = vmatpush1.msra.mxu0 0.0
    %5710 = vmatprep.subr.mxu0 0.0
    %5711 = vmatpush1.msra.mxu0 0.0
    %5712 = vmatprep.subr.mxu0 0.0
    %5713 = vmatpush1.msra.mxu0 0.0
    %5714 = vmatprep.subr.mxu0 0.0
    %5715 = vmatpush1.msra.mxu0 0.0
    %5716 = vmatprep.subr.mxu0 0.0
    %5717 = vmatpush1.msra.mxu0 0.0
    %5718 = vmatprep.subr.mxu0 0.0
    %5719 = vmatpush1.msra.mxu0 0.0
    %5720 = vmatprep.subr.mxu0 0.0
    %5721 = vmatpush1.msra.mxu0 0.0
    %5722 = vmatprep.subr.mxu0 %v5689
    %5723 = vmatpush1.msra.mxu0 %v5688
    %5724 = vmatprep.subr.mxu0 %v5687
    %5725 = vmatpush1.msra.mxu0 %v5686
    %5726 = vmatprep.subr.mxu0 %v5685
    %5727 = vmatpush1.msra.mxu0 %v5684
    %5728 = vmatprep.subr.mxu0 %v5683
    %5729 = vmatpush1.msra.mxu0 %v5682
    %5730 = vmatprep.subr.mxu0 %v5681
    %5731 = vmatpush1.msra.mxu0 %v5680
    %5732 = vmatprep.subr.mxu0 %v5679
    %5733 = vmatpush1.msra.mxu0 %v5678
    %5734 = vmatprep.subr.mxu0 %v5677
    %5735 = vmatpush1.msra.mxu0 %v5676
    %5736 = vmatprep.subr.mxu0 %v5675
    %5737 = vmatpush1.msra.mxu0 %v5674
    %5738 = vmatprep.subr.mxu0 0.0
    %5739 = vmatpush2.msra.mxu0 0.0
    %5740 = vmatprep.subr.mxu0 0.0
    %5741 = vmatpush2.msra.mxu0 0.0
    %5742 = vmatprep.subr.mxu0 0.0
    %5743 = vmatpush2.msra.mxu0 0.0
    %5744 = vmatprep.subr.mxu0 0.0
    %5745 = vmatpush2.msra.mxu0 0.0
    %5746 = vmatprep.subr.mxu0 0.0
    %5747 = vmatpush2.msra.mxu0 0.0
    %5748 = vmatprep.subr.mxu0 0.0
    %5749 = vmatpush2.msra.mxu0 0.0
    %5750 = vmatprep.subr.mxu0 0.0
    %5751 = vmatpush2.msra.mxu0 0.0
    %5752 = vmatprep.subr.mxu0 0.0
    %5753 = vmatpush2.msra.mxu0 0.0
    %5754 = vmatprep.subr.mxu0 0.0
    %5755 = vmatpush2.msra.mxu0 0.0
    %5756 = vmatprep.subr.mxu0 0.0
    %5757 = vmatpush2.msra.mxu0 0.0
    %5758 = vmatprep.subr.mxu0 0.0
    %5759 = vmatpush2.msra.mxu0 0.0
    %5760 = vmatprep.subr.mxu0 0.0
    %5761 = vmatpush2.msra.mxu0 0.0
    %5762 = vmatprep.subr.mxu0 0.0
    %5763 = vmatpush2.msra.mxu0 0.0
    %5764 = vmatprep.subr.mxu0 0.0
    %5765 = vmatpush2.msra.mxu0 0.0
    %5766 = vmatprep.subr.mxu0 0.0
    %5767 = vmatpush2.msra.mxu0 0.0
    %5768 = vmatprep.subr.mxu0 0.0
    %5769 = vmatpush2.msra.mxu0 0.0
    %5770 = vmatprep.mubr.f32.mxu0 0.0
    %5771 = vmatmul.mubr.f32.gmra.mxu0 %v5704
    %v5772 = vpop.f32.mrf.mxu0
    %v5773 = vadd.f32 %v5695, %v5772
    %v5774 = vpop.f32.mrf.mxu0
    %v5775 = vadd.f32 %v5699, %v5774
    %5776 = vdwg.mxu0
    %v5777 = vadd.f32 %v5670, %v5773
    %v5778 = vadd.f32 %v5672, %v5775
    %v5779 = vxor.u32 %v5777, 2147483648
    %v5780 = vmul.f32 %v5779, 1.442695
    %v5781 = vpow.pop %v5780
    %v5782 = vadd.f32 %v5781, 1.0
    %v5783 = vrcp.pop %v5782
    %v5784 = vmul.f32 1.0, %v5783
    %v5785 = vtanh.pop %v5778
    %v5786 = vxor.u32 %v5778, 2147483648
    %v5787 = vmul.f32 %v5786, 1.442695
    %v5788 = vpow.pop %v5787
    %v5789 = vadd.f32 %v5788, 1.0
    %v5790 = vrcp.pop %v5789
    %v5791 = vmul.f32 1.0, %v5790
    %v5792 = vmul.f32 %v5784, 0.0
    %v5793 = vmul.f32 %v5784, %v5785
    %5795 = vrot.lane.b32.xlu0 %v5793, 64
    %v5796 = vpop.permute.xlu0 %5795
    %v5798 = vadd.f32 %v5792, %v5796
    %v5799 = vtanh.pop %v5798
    %v5800 = vmul.f32 %v5791, %v5799
    %5802 = vrot.lane.b32.xlu0 %v5800, 64
    %v5803 = vpop.permute.xlu0 %5802
    %v5804 = vsel %vm5702, %v5803, 0
    %v5807 = vsel %vm5702, %v2830, 0
    %v5810 = vsel %vm5702, %v2831, 0
    %5812 = vmatprep.subr.mxu0 0.0
    %5813 = vmatpush1.xpose.msra.mxu0 0.0
    %5814 = vmatprep.subr.mxu0 0.0
    %5815 = vmatpush1.xpose.msra.mxu0 0.0
    %5816 = vmatprep.subr.mxu0 0.0
    %5817 = vmatpush1.xpose.msra.mxu0 0.0
    %5818 = vmatprep.subr.mxu0 0.0
    %5819 = vmatpush1.xpose.msra.mxu0 0.0
    %5820 = vmatprep.subr.mxu0 0.0
    %5821 = vmatpush1.xpose.msra.mxu0 0.0
    %5822 = vmatprep.subr.mxu0 0.0
    %5823 = vmatpush1.xpose.msra.mxu0 0.0
    %5824 = vmatprep.subr.mxu0 0.0
    %5825 = vmatpush1.xpose.msra.mxu0 0.0
    %5826 = vmatprep.subr.mxu0 0.0
    %5827 = vmatpush1.xpose.msra.mxu0 0.0
    %5828 = vmatprep.subr.mxu0 0.0
    %5829 = vmatpush1.xpose.msra.mxu0 0.0
    %5830 = vmatprep.subr.mxu0 0.0
    %5831 = vmatpush1.xpose.msra.mxu0 0.0
    %5832 = vmatprep.subr.mxu0 0.0
    %5833 = vmatpush1.xpose.msra.mxu0 0.0
    %5834 = vmatprep.subr.mxu0 0.0
    %5835 = vmatpush1.xpose.msra.mxu0 0.0
    %5836 = vmatprep.subr.mxu0 0.0
    %5837 = vmatpush1.xpose.msra.mxu0 0.0
    %5838 = vmatprep.subr.mxu0 0.0
    %5839 = vmatpush1.xpose.msra.mxu0 0.0
    %5840 = vmatprep.subr.mxu0 0.0
    %5841 = vmatpush1.xpose.msra.mxu0 %v5810
    %5842 = vmatprep.subr.mxu0 0.0
    %5843 = vmatpush1.xpose.msra.mxu0 %v5807
    %5844 = vmatprep.subr.mxu0 0.0
    %5845 = vmatpush2.xpose.msra.mxu0 0.0
    %5846 = vmatprep.subr.mxu0 0.0
    %5847 = vmatpush2.xpose.msra.mxu0 0.0
    %5848 = vmatprep.subr.mxu0 0.0
    %5849 = vmatpush2.xpose.msra.mxu0 0.0
    %5850 = vmatprep.subr.mxu0 0.0
    %5851 = vmatpush2.xpose.msra.mxu0 0.0
    %5852 = vmatprep.subr.mxu0 0.0
    %5853 = vmatpush2.xpose.msra.mxu0 0.0
    %5854 = vmatprep.subr.mxu0 0.0
    %5855 = vmatpush2.xpose.msra.mxu0 0.0
    %5856 = vmatprep.subr.mxu0 0.0
    %5857 = vmatpush2.xpose.msra.mxu0 0.0
    %5858 = vmatprep.subr.mxu0 0.0
    %5859 = vmatpush2.xpose.msra.mxu0 0.0
    %5860 = vmatprep.subr.mxu0 0.0
    %5861 = vmatpush2.xpose.msra.mxu0 0.0
    %5862 = vmatprep.subr.mxu0 0.0
    %5863 = vmatpush2.xpose.msra.mxu0 0.0
    %5864 = vmatprep.subr.mxu0 0.0
    %5865 = vmatpush2.xpose.msra.mxu0 0.0
    %5866 = vmatprep.subr.mxu0 0.0
    %5867 = vmatpush2.xpose.msra.mxu0 0.0
    %5868 = vmatprep.subr.mxu0 0.0
    %5869 = vmatpush2.xpose.msra.mxu0 0.0
    %5870 = vmatprep.subr.mxu0 0.0
    %5871 = vmatpush2.xpose.msra.mxu0 0.0
    %5872 = vmatprep.subr.mxu0 0.0
    %5873 = vmatpush2.xpose.msra.mxu0 0.0
    %5874 = vmatprep.subr.mxu0 0.0
    %5875 = vmatpush2.xpose.msra.mxu0 0.0
    %5876 = vmatprep.mubr.f32.mxu0 0.0
    %5877 = vmatmul.mubr.f32.gmra.mxu0 %v5804
    %v5878 = vpop.f32.mrf.mxu0
    %v5879 = vadd.f32 0.0, %v5878
    %v5880 = vpop.f32.mrf.mxu0
    %5881 = vdwg.mxu0
    %v5882 = vsel %vm358, %v5879, -1e+30
    %vm5883 = vcmask 123904
    %v5884 = vsel %vm5883, %v5882, -inf
    %5885 = vmax.xlane.f32.xlu0 %v5884
    %v5886 = vpop.xlane.xlu0 %5885
    %v5887 = vsub.f32 %v5879, %v5886
    %v5888 = vsel %vm358, %v5887, -1e+30
    %v5889 = vmul.f32 %v5888, 1.442695
    %v5890 = vpow.pop %v5889
    %v5891 = vsel %vm5883, %v5890, 0.0
    %5892 = vadd.xlane.f32.xlu0 %v5891
    %v5893 = vpop.xlane.xlu0 %5892
    %v5894 = vrcp.pop %v5893
    %v5895 = vmul.f32 %v5890, %v5894
    %vm5896 = vcmask 130048
    %v5898 = vsel %vm5896, %v5895, 0
    %5900 = vmatprep.subr.mxu0 0.0
    %5901 = vmatpush1.msra.mxu0 0.0
    %5902 = vmatprep.subr.mxu0 0.0
    %5903 = vmatpush1.msra.mxu0 0.0
    %5904 = vmatprep.subr.mxu0 0.0
    %5905 = vmatpush1.msra.mxu0 0.0
    %5906 = vmatprep.subr.mxu0 0.0
    %5907 = vmatpush1.msra.mxu0 0.0
    %5908 = vmatprep.subr.mxu0 0.0
    %5909 = vmatpush1.msra.mxu0 0.0
    %5910 = vmatprep.subr.mxu0 0.0
    %5911 = vmatpush1.msra.mxu0 0.0
    %5912 = vmatprep.subr.mxu0 0.0
    %5913 = vmatpush1.msra.mxu0 0.0
    %5914 = vmatprep.subr.mxu0 0.0
    %5915 = vmatpush1.msra.mxu0 0.0
    %5916 = vmatprep.subr.mxu0 0.0
    %5917 = vmatpush1.msra.mxu0 0.0
    %5918 = vmatprep.subr.mxu0 0.0
    %5919 = vmatpush1.msra.mxu0 0.0
    %5920 = vmatprep.subr.mxu0 0.0
    %5921 = vmatpush1.msra.mxu0 0.0
    %5922 = vmatprep.subr.mxu0 0.0
    %5923 = vmatpush1.msra.mxu0 0.0
    %5924 = vmatprep.subr.mxu0 0.0
    %5925 = vmatpush1.msra.mxu0 0.0
    %5926 = vmatprep.subr.mxu0 0.0
    %5927 = vmatpush1.msra.mxu0 0.0
    %5928 = vmatprep.subr.mxu0 0.0
    %5929 = vmatpush1.msra.mxu0 %v2831
    %5930 = vmatprep.subr.mxu0 0.0
    %5931 = vmatpush1.msra.mxu0 %v2830
    %5932 = vmatprep.subr.mxu0 0.0
    %5933 = vmatpush2.msra.mxu0 0.0
    %5934 = vmatprep.subr.mxu0 0.0
    %5935 = vmatpush2.msra.mxu0 0.0
    %5936 = vmatprep.subr.mxu0 0.0
    %5937 = vmatpush2.msra.mxu0 0.0
    %5938 = vmatprep.subr.mxu0 0.0
    %5939 = vmatpush2.msra.mxu0 0.0
    %5940 = vmatprep.subr.mxu0 0.0
    %5941 = vmatpush2.msra.mxu0 0.0
    %5942 = vmatprep.subr.mxu0 0.0
    %5943 = vmatpush2.msra.mxu0 0.0
    %5944 = vmatprep.subr.mxu0 0.0
    %5945 = vmatpush2.msra.mxu0 0.0
    %5946 = vmatprep.subr.mxu0 0.0
    %5947 = vmatpush2.msra.mxu0 0.0
    %5948 = vmatprep.subr.mxu0 0.0
    %5949 = vmatpush2.msra.mxu0 0.0
    %5950 = vmatprep.subr.mxu0 0.0
    %5951 = vmatpush2.msra.mxu0 0.0
    %5952 = vmatprep.subr.mxu0 0.0
    %5953 = vmatpush2.msra.mxu0 0.0
    %5954 = vmatprep.subr.mxu0 0.0
    %5955 = vmatpush2.msra.mxu0 0.0
    %5956 = vmatprep.subr.mxu0 0.0
    %5957 = vmatpush2.msra.mxu0 0.0
    %5958 = vmatprep.subr.mxu0 0.0
    %5959 = vmatpush2.msra.mxu0 0.0
    %5960 = vmatprep.subr.mxu0 0.0
    %5961 = vmatpush2.msra.mxu0 0.0
    %5962 = vmatprep.subr.mxu0 0.0
    %5963 = vmatpush2.msra.mxu0 0.0
    %5964 = vmatprep.mubr.f32.mxu0 0.0
    %5965 = vmatmul.mubr.f32.gmra.mxu0 %v5898
    %v5966 = vpop.f32.mrf.mxu0
    %v5967 = vadd.f32 0.0, %v5966
    %v5968 = vpop.f32.mrf.mxu0
    %5969 = vdwg.mxu0
    %5972 = vrot.lane.b32.xlu0 %v5967, 64
    %v5973 = vpop.permute.xlu0 %5972
    %v5975 = vsel %vm5702, %v5803, %v5973
    %5976 = vmatprep.subr.mxu0 %v5590
    %5977 = vmatpush1.msra.mxu0 %v5589
    %5978 = vmatprep.subr.mxu0 %v5588
    %5979 = vmatpush1.msra.mxu0 %v5587
    %5980 = vmatprep.subr.mxu0 %v5586
    %5981 = vmatpush1.msra.mxu0 %v5585
    %5982 = vmatprep.subr.mxu0 %v5584
    %5983 = vmatpush1.msra.mxu0 %v5583
    %5984 = vmatprep.subr.mxu0 %v5582
    %5985 = vmatpush1.msra.mxu0 %v5581
    %5986 = vmatprep.subr.mxu0 %v5580
    %5987 = vmatpush1.msra.mxu0 %v5579
    %5988 = vmatprep.subr.mxu0 %v5578
    %5989 = vmatpush1.msra.mxu0 %v5577
    %5990 = vmatprep.subr.mxu0 %v5576
    %5991 = vmatpush1.msra.mxu0 %v5575
    %5992 = vmatprep.subr.mxu0 %v5574
    %5993 = vmatpush1.msra.mxu0 %v5573
    %5994 = vmatprep.subr.mxu0 %v5572
    %5995 = vmatpush1.msra.mxu0 %v5571
    %5996 = vmatprep.subr.mxu0 %v5570
    %5997 = vmatpush1.msra.mxu0 %v5569
    %5998 = vmatprep.subr.mxu0 %v5568
    %5999 = vmatpush1.msra.mxu0 %v5567
    %6000 = vmatprep.subr.mxu0 %v5566
    %6001 = vmatpush1.msra.mxu0 %v5565
    %6002 = vmatprep.subr.mxu0 %v5564
    %6003 = vmatpush1.msra.mxu0 %v5563
    %6004 = vmatprep.subr.mxu0 %v5562
    %6005 = vmatpush1.msra.mxu0 %v5561
    %6006 = vmatprep.subr.mxu0 %v5560
    %6007 = vmatpush1.msra.mxu0 %v5559
    %6008 = vmatprep.subr.mxu0 0.0
    %6009 = vmatpush2.msra.mxu0 0.0
    %6010 = vmatprep.subr.mxu0 0.0
    %6011 = vmatpush2.msra.mxu0 0.0
    %6012 = vmatprep.subr.mxu0 0.0
    %6013 = vmatpush2.msra.mxu0 0.0
    %6014 = vmatprep.subr.mxu0 0.0
    %6015 = vmatpush2.msra.mxu0 0.0
    %6016 = vmatprep.subr.mxu0 0.0
    %6017 = vmatpush2.msra.mxu0 0.0
    %6018 = vmatprep.subr.mxu0 0.0
    %6019 = vmatpush2.msra.mxu0 0.0
    %6020 = vmatprep.subr.mxu0 0.0
    %6021 = vmatpush2.msra.mxu0 0.0
    %6022 = vmatprep.subr.mxu0 0.0
    %6023 = vmatpush2.msra.mxu0 0.0
    %6024 = vmatprep.subr.mxu0 0.0
    %6025 = vmatpush2.msra.mxu0 0.0
    %6026 = vmatprep.subr.mxu0 0.0
    %6027 = vmatpush2.msra.mxu0 0.0
    %6028 = vmatprep.subr.mxu0 0.0
    %6029 = vmatpush2.msra.mxu0 0.0
    %6030 = vmatprep.subr.mxu0 0.0
    %6031 = vmatpush2.msra.mxu0 0.0
    %6032 = vmatprep.subr.mxu0 0.0
    %6033 = vmatpush2.msra.mxu0 0.0
    %6034 = vmatprep.subr.mxu0 0.0
    %6035 = vmatpush2.msra.mxu0 0.0
    %6036 = vmatprep.subr.mxu0 0.0
    %6037 = vmatpush2.msra.mxu0 0.0
    %6038 = vmatprep.subr.mxu0 0.0
    %6039 = vmatpush2.msra.mxu0 0.0
    %6040 = vmatprep.mubr.f32.mxu0 0.0
    %6041 = vmatmul.mubr.f32.gmra.mxu0 %v5975
    %v6042 = vpop.f32.mrf.mxu0
    %v6043 = vadd.f32 %v5596, %v6042
    %v6044 = vpop.f32.mrf.mxu0
    %v6045 = vadd.f32 %v5600, %v6044
    %6046 = vdwg.mxu0
    %6047 = vmatprep.subr.mxu0 0.0
    %6048 = vmatpush1.msra.mxu0 0.0
    %6049 = vmatprep.subr.mxu0 0.0
    %6050 = vmatpush1.msra.mxu0 0.0
    %6051 = vmatprep.subr.mxu0 0.0
    %6052 = vmatpush1.msra.mxu0 0.0
    %6053 = vmatprep.subr.mxu0 0.0
    %6054 = vmatpush1.msra.mxu0 0.0
    %6055 = vmatprep.subr.mxu0 0.0
    %6056 = vmatpush1.msra.mxu0 0.0
    %6057 = vmatprep.subr.mxu0 0.0
    %6058 = vmatpush1.msra.mxu0 0.0
    %6059 = vmatprep.subr.mxu0 0.0
    %6060 = vmatpush1.msra.mxu0 0.0
    %6061 = vmatprep.subr.mxu0 0.0
    %6062 = vmatpush1.msra.mxu0 0.0
    %6063 = vmatprep.subr.mxu0 %v5689
    %6064 = vmatpush1.msra.mxu0 %v5688
    %6065 = vmatprep.subr.mxu0 %v5687
    %6066 = vmatpush1.msra.mxu0 %v5686
    %6067 = vmatprep.subr.mxu0 %v5685
    %6068 = vmatpush1.msra.mxu0 %v5684
    %6069 = vmatprep.subr.mxu0 %v5683
    %6070 = vmatpush1.msra.mxu0 %v5682
    %6071 = vmatprep.subr.mxu0 %v5681
    %6072 = vmatpush1.msra.mxu0 %v5680
    %6073 = vmatprep.subr.mxu0 %v5679
    %6074 = vmatpush1.msra.mxu0 %v5678
    %6075 = vmatprep.subr.mxu0 %v5677
    %6076 = vmatpush1.msra.mxu0 %v5676
    %6077 = vmatprep.subr.mxu0 %v5675
    %6078 = vmatpush1.msra.mxu0 %v5674
    %6079 = vmatprep.subr.mxu0 0.0
    %6080 = vmatpush2.msra.mxu0 0.0
    %6081 = vmatprep.subr.mxu0 0.0
    %6082 = vmatpush2.msra.mxu0 0.0
    %6083 = vmatprep.subr.mxu0 0.0
    %6084 = vmatpush2.msra.mxu0 0.0
    %6085 = vmatprep.subr.mxu0 0.0
    %6086 = vmatpush2.msra.mxu0 0.0
    %6087 = vmatprep.subr.mxu0 0.0
    %6088 = vmatpush2.msra.mxu0 0.0
    %6089 = vmatprep.subr.mxu0 0.0
    %6090 = vmatpush2.msra.mxu0 0.0
    %6091 = vmatprep.subr.mxu0 0.0
    %6092 = vmatpush2.msra.mxu0 0.0
    %6093 = vmatprep.subr.mxu0 0.0
    %6094 = vmatpush2.msra.mxu0 0.0
    %6095 = vmatprep.subr.mxu0 0.0
    %6096 = vmatpush2.msra.mxu0 0.0
    %6097 = vmatprep.subr.mxu0 0.0
    %6098 = vmatpush2.msra.mxu0 0.0
    %6099 = vmatprep.subr.mxu0 0.0
    %6100 = vmatpush2.msra.mxu0 0.0
    %6101 = vmatprep.subr.mxu0 0.0
    %6102 = vmatpush2.msra.mxu0 0.0
    %6103 = vmatprep.subr.mxu0 0.0
    %6104 = vmatpush2.msra.mxu0 0.0
    %6105 = vmatprep.subr.mxu0 0.0
    %6106 = vmatpush2.msra.mxu0 0.0
    %6107 = vmatprep.subr.mxu0 0.0
    %6108 = vmatpush2.msra.mxu0 0.0
    %6109 = vmatprep.subr.mxu0 0.0
    %6110 = vmatpush2.msra.mxu0 0.0
    %6111 = vmatprep.mubr.f32.mxu0 0.0
    %6112 = vmatmul.mubr.f32.gmra.mxu0 %v5804
    %v6113 = vpop.f32.mrf.mxu0
    %v6114 = vadd.f32 %v5695, %v6113
    %v6115 = vpop.f32.mrf.mxu0
    %v6116 = vadd.f32 %v5699, %v6115
    %6117 = vdwg.mxu0
    %v6118 = vadd.f32 %v6043, %v6114
    %v6119 = vadd.f32 %v6045, %v6116
    %v6120 = vxor.u32 %v6118, 2147483648
    %v6121 = vmul.f32 %v6120, 1.442695
    %v6122 = vpow.pop %v6121
    %v6123 = vadd.f32 %v6122, 1.0
    %v6124 = vrcp.pop %v6123
    %v6125 = vmul.f32 1.0, %v6124
    %v6126 = vtanh.pop %v6119
    %v6127 = vxor.u32 %v6119, 2147483648
    %v6128 = vmul.f32 %v6127, 1.442695
    %v6129 = vpow.pop %v6128
    %v6130 = vadd.f32 %v6129, 1.0
    %v6131 = vrcp.pop %v6130
    %v6132 = vmul.f32 1.0, %v6131
    %v6133 = vmul.f32 %v6125, %v5798
    %v6134 = vmul.f32 %v6125, %v6126
    %6136 = vrot.lane.b32.xlu0 %v6134, 64
    %v6137 = vpop.permute.xlu0 %6136
    %v6139 = vadd.f32 %v6133, %v6137
    %v6140 = vtanh.pop %v6139
    %v6141 = vmul.f32 %v6132, %v6140
    %6143 = vrot.lane.b32.xlu0 %v6141, 64
    %v6144 = vpop.permute.xlu0 %6143
    %v6145 = vsel %vm5702, %v6144, 0
    %6147 = vmatprep.subr.mxu0 0.0
    %6148 = vmatpush1.xpose.msra.mxu0 0.0
    %6149 = vmatprep.subr.mxu0 0.0
    %6150 = vmatpush1.xpose.msra.mxu0 0.0
    %6151 = vmatprep.subr.mxu0 0.0
    %6152 = vmatpush1.xpose.msra.mxu0 0.0
    %6153 = vmatprep.subr.mxu0 0.0
    %6154 = vmatpush1.xpose.msra.mxu0 0.0
    %6155 = vmatprep.subr.mxu0 0.0
    %6156 = vmatpush1.xpose.msra.mxu0 0.0
    %6157 = vmatprep.subr.mxu0 0.0
    %6158 = vmatpush1.xpose.msra.mxu0 0.0
    %6159 = vmatprep.subr.mxu0 0.0
    %6160 = vmatpush1.xpose.msra.mxu0 0.0
    %6161 = vmatprep.subr.mxu0 0.0
    %6162 = vmatpush1.xpose.msra.mxu0 0.0
    %6163 = vmatprep.subr.mxu0 0.0
    %6164 = vmatpush1.xpose.msra.mxu0 0.0
    %6165 = vmatprep.subr.mxu0 0.0
    %6166 = vmatpush1.xpose.msra.mxu0 0.0
    %6167 = vmatprep.subr.mxu0 0.0
    %6168 = vmatpush1.xpose.msra.mxu0 0.0
    %6169 = vmatprep.subr.mxu0 0.0
    %6170 = vmatpush1.xpose.msra.mxu0 0.0
    %6171 = vmatprep.subr.mxu0 0.0
    %6172 = vmatpush1.xpose.msra.mxu0 0.0
    %6173 = vmatprep.subr.mxu0 0.0
    %6174 = vmatpush1.xpose.msra.mxu0 0.0
    %6175 = vmatprep.subr.mxu0 0.0
    %6176 = vmatpush1.xpose.msra.mxu0 %v5810
    %6177 = vmatprep.subr.mxu0 0.0
    %6178 = vmatpush1.xpose.msra.mxu0 %v5807
    %6179 = vmatprep.subr.mxu0 0.0
    %6180 = vmatpush2.xpose.msra.mxu0 0.0
    %6181 = vmatprep.subr.mxu0 0.0
    %6182 = vmatpush2.xpose.msra.mxu0 0.0
    %6183 = vmatprep.subr.mxu0 0.0
    %6184 = vmatpush2.xpose.msra.mxu0 0.0
    %6185 = vmatprep.subr.mxu0 0.0
    %6186 = vmatpush2.xpose.msra.mxu0 0.0
    %6187 = vmatprep.subr.mxu0 0.0
    %6188 = vmatpush2.xpose.msra.mxu0 0.0
    %6189 = vmatprep.subr.mxu0 0.0
    %6190 = vmatpush2.xpose.msra.mxu0 0.0
    %6191 = vmatprep.subr.mxu0 0.0
    %6192 = vmatpush2.xpose.msra.mxu0 0.0
    %6193 = vmatprep.subr.mxu0 0.0
    %6194 = vmatpush2.xpose.msra.mxu0 0.0
    %6195 = vmatprep.subr.mxu0 0.0
    %6196 = vmatpush2.xpose.msra.mxu0 0.0
    %6197 = vmatprep.subr.mxu0 0.0
    %6198 = vmatpush2.xpose.msra.mxu0 0.0
    %6199 = vmatprep.subr.mxu0 0.0
    %6200 = vmatpush2.xpose.msra.mxu0 0.0
    %6201 = vmatprep.subr.mxu0 0.0
    %6202 = vmatpush2.xpose.msra.mxu0 0.0
    %6203 = vmatprep.subr.mxu0 0.0
    %6204 = vmatpush2.xpose.msra.mxu0 0.0
    %6205 = vmatprep.subr.mxu0 0.0
    %6206 = vmatpush2.xpose.msra.mxu0 0.0
    %6207 = vmatprep.subr.mxu0 0.0
    %6208 = vmatpush2.xpose.msra.mxu0 0.0
    %6209 = vmatprep.subr.mxu0 0.0
    %6210 = vmatpush2.xpose.msra.mxu0 0.0
    %6211 = vmatprep.mubr.f32.mxu0 0.0
    %6212 = vmatmul.mubr.f32.gmra.mxu0 %v6145
    %v6213 = vpop.f32.mrf.mxu0
    %v6214 = vadd.f32 0.0, %v6213
    %v6215 = vpop.f32.mrf.mxu0
    %6216 = vdwg.mxu0
    %v6217 = vsel %vm358, %v6214, -1e+30
    %v6218 = vsel %vm5883, %v6217, -inf
    %6219 = vmax.xlane.f32.xlu0 %v6218
    %v6220 = vpop.xlane.xlu0 %6219
    %v6221 = vsub.f32 %v6214, %v6220
    %v6222 = vsel %vm358, %v6221, -1e+30
    %v6223 = vmul.f32 %v6222, 1.442695
    %v6224 = vpow.pop %v6223
    %v6225 = vsel %vm5883, %v6224, 0.0
    %6226 = vadd.xlane.f32.xlu0 %v6225
    %v6227 = vpop.xlane.xlu0 %6226
    %v6228 = vrcp.pop %v6227
    %v6229 = vmul.f32 %v6224, %v6228
    %v6231 = vsel %vm5896, %v6229, 0
    %6233 = vmatprep.subr.mxu0 0.0
    %6234 = vmatpush1.msra.mxu0 0.0
    %6235 = vmatprep.subr.mxu0 0.0
    %6236 = vmatpush1.msra.mxu0 0.0
    %6237 = vmatprep.subr.mxu0 0.0
    %6238 = vmatpush1.msra.mxu0 0.0
    %6239 = vmatprep.subr.mxu0 0.0
    %6240 = vmatpush1.msra.mxu0 0.0
    %6241 = vmatprep.subr.mxu0 0.0
    %6242 = vmatpush1.msra.mxu0 0.0
    %6243 = vmatprep.subr.mxu0 0.0
    %6244 = vmatpush1.msra.mxu0 0.0
    %6245 = vmatprep.subr.mxu0 0.0
    %6246 = vmatpush1.msra.mxu0 0.0
    %6247 = vmatprep.subr.mxu0 0.0
    %6248 = vmatpush1.msra.mxu0 0.0
    %6249 = vmatprep.subr.mxu0 0.0
    %6250 = vmatpush1.msra.mxu0 0.0
    %6251 = vmatprep.subr.mxu0 0.0
    %6252 = vmatpush1.msra.mxu0 0.0
    %6253 = vmatprep.subr.mxu0 0.0
    %6254 = vmatpush1.msra.mxu0 0.0
    %6255 = vmatprep.subr.mxu0 0.0
    %6256 = vmatpush1.msra.mxu0 0.0
    %6257 = vmatprep.subr.mxu0 0.0
    %6258 = vmatpush1.msra.mxu0 0.0
    %6259 = vmatprep.subr.mxu0 0.0
    %6260 = vmatpush1.msra.mxu0 0.0
    %6261 = vmatprep.subr.mxu0 0.0
    %6262 = vmatpush1.msra.mxu0 %v2831
    %6263 = vmatprep.subr.mxu0 0.0
    %6264 = vmatpush1.msra.mxu0 %v2830
    %6265 = vmatprep.subr.mxu0 0.0
    %6266 = vmatpush2.msra.mxu0 0.0
    %6267 = vmatprep.subr.mxu0 0.0
    %6268 = vmatpush2.msra.mxu0 0.0
    %6269 = vmatprep.subr.mxu0 0.0
    %6270 = vmatpush2.msra.mxu0 0.0
    %6271 = vmatprep.subr.mxu0 0.0
    %6272 = vmatpush2.msra.mxu0 0.0
    %6273 = vmatprep.subr.mxu0 0.0
    %6274 = vmatpush2.msra.mxu0 0.0
    %6275 = vmatprep.subr.mxu0 0.0
    %6276 = vmatpush2.msra.mxu0 0.0
    %6277 = vmatprep.subr.mxu0 0.0
    %6278 = vmatpush2.msra.mxu0 0.0
    %6279 = vmatprep.subr.mxu0 0.0
    %6280 = vmatpush2.msra.mxu0 0.0
    %6281 = vmatprep.subr.mxu0 0.0
    %6282 = vmatpush2.msra.mxu0 0.0
    %6283 = vmatprep.subr.mxu0 0.0
    %6284 = vmatpush2.msra.mxu0 0.0
    %6285 = vmatprep.subr.mxu0 0.0
    %6286 = vmatpush2.msra.mxu0 0.0
    %6287 = vmatprep.subr.mxu0 0.0
    %6288 = vmatpush2.msra.mxu0 0.0
    %6289 = vmatprep.subr.mxu0 0.0
    %6290 = vmatpush2.msra.mxu0 0.0
    %6291 = vmatprep.subr.mxu0 0.0
    %6292 = vmatpush2.msra.mxu0 0.0
    %6293 = vmatprep.subr.mxu0 0.0
    %6294 = vmatpush2.msra.mxu0 0.0
    %6295 = vmatprep.subr.mxu0 0.0
    %6296 = vmatpush2.msra.mxu0 0.0
    %6297 = vmatprep.mubr.f32.mxu0 0.0
    %6298 = vmatmul.mubr.f32.gmra.mxu0 %v6231
    %v6299 = vpop.f32.mrf.mxu0
    %v6300 = vadd.f32 0.0, %v6299
    %v6301 = vpop.f32.mrf.mxu0
    %6302 = vdwg.mxu0
    %6305 = vrot.lane.b32.xlu0 %v6300, 64
    %v6306 = vpop.permute.xlu0 %6305
    %v6308 = vsel %vm5702, %v6144, %v6306
    %6309 = vmatprep.subr.mxu0 %v5590
    %6310 = vmatpush1.msra.mxu0 %v5589
    %6311 = vmatprep.subr.mxu0 %v5588
    %6312 = vmatpush1.msra.mxu0 %v5587
    %6313 = vmatprep.subr.mxu0 %v5586
    %6314 = vmatpush1.msra.mxu0 %v5585
    %6315 = vmatprep.subr.mxu0 %v5584
    %6316 = vmatpush1.msra.mxu0 %v5583
    %6317 = vmatprep.subr.mxu0 %v5582
    %6318 = vmatpush1.msra.mxu0 %v5581
    %6319 = vmatprep.subr.mxu0 %v5580
    %6320 = vmatpush1.msra.mxu0 %v5579
    %6321 = vmatprep.subr.mxu0 %v5578
    %6322 = vmatpush1.msra.mxu0 %v5577
    %6323 = vmatprep.subr.mxu0 %v5576
    %6324 = vmatpush1.msra.mxu0 %v5575
    %6325 = vmatprep.subr.mxu0 %v5574
    %6326 = vmatpush1.msra.mxu0 %v5573
    %6327 = vmatprep.subr.mxu0 %v5572
    %6328 = vmatpush1.msra.mxu0 %v5571
    %6329 = vmatprep.subr.mxu0 %v5570
    %6330 = vmatpush1.msra.mxu0 %v5569
    %6331 = vmatprep.subr.mxu0 %v5568
    %6332 = vmatpush1.msra.mxu0 %v5567
    %6333 = vmatprep.subr.mxu0 %v5566
    %6334 = vmatpush1.msra.mxu0 %v5565
    %6335 = vmatprep.subr.mxu0 %v5564
    %6336 = vmatpush1.msra.mxu0 %v5563
    %6337 = vmatprep.subr.mxu0 %v5562
    %6338 = vmatpush1.msra.mxu0 %v5561
    %6339 = vmatprep.subr.mxu0 %v5560
    %6340 = vmatpush1.msra.mxu0 %v5559
    %6341 = vmatprep.subr.mxu0 0.0
    %6342 = vmatpush2.msra.mxu0 0.0
    %6343 = vmatprep.subr.mxu0 0.0
    %6344 = vmatpush2.msra.mxu0 0.0
    %6345 = vmatprep.subr.mxu0 0.0
    %6346 = vmatpush2.msra.mxu0 0.0
    %6347 = vmatprep.subr.mxu0 0.0
    %6348 = vmatpush2.msra.mxu0 0.0
    %6349 = vmatprep.subr.mxu0 0.0
    %6350 = vmatpush2.msra.mxu0 0.0
    %6351 = vmatprep.subr.mxu0 0.0
    %6352 = vmatpush2.msra.mxu0 0.0
    %6353 = vmatprep.subr.mxu0 0.0
    %6354 = vmatpush2.msra.mxu0 0.0
    %6355 = vmatprep.subr.mxu0 0.0
    %6356 = vmatpush2.msra.mxu0 0.0
    %6357 = vmatprep.subr.mxu0 0.0
    %6358 = vmatpush2.msra.mxu0 0.0
    %6359 = vmatprep.subr.mxu0 0.0
    %6360 = vmatpush2.msra.mxu0 0.0
    %6361 = vmatprep.subr.mxu0 0.0
    %6362 = vmatpush2.msra.mxu0 0.0
    %6363 = vmatprep.subr.mxu0 0.0
    %6364 = vmatpush2.msra.mxu0 0.0
    %6365 = vmatprep.subr.mxu0 0.0
    %6366 = vmatpush2.msra.mxu0 0.0
    %6367 = vmatprep.subr.mxu0 0.0
    %6368 = vmatpush2.msra.mxu0 0.0
    %6369 = vmatprep.subr.mxu0 0.0
    %6370 = vmatpush2.msra.mxu0 0.0
    %6371 = vmatprep.subr.mxu0 0.0
    %6372 = vmatpush2.msra.mxu0 0.0
    %6373 = vmatprep.mubr.f32.mxu0 0.0
    %6374 = vmatmul.mubr.f32.gmra.mxu0 %v6308
    %v6375 = vpop.f32.mrf.mxu0
    %v6376 = vadd.f32 %v5596, %v6375
    %v6377 = vpop.f32.mrf.mxu0
    %v6378 = vadd.f32 %v5600, %v6377
    %6379 = vdwg.mxu0
    %6380 = vmatprep.subr.mxu0 0.0
    %6381 = vmatpush1.msra.mxu0 0.0
    %6382 = vmatprep.subr.mxu0 0.0
    %6383 = vmatpush1.msra.mxu0 0.0
    %6384 = vmatprep.subr.mxu0 0.0
    %6385 = vmatpush1.msra.mxu0 0.0
    %6386 = vmatprep.subr.mxu0 0.0
    %6387 = vmatpush1.msra.mxu0 0.0
    %6388 = vmatprep.subr.mxu0 0.0
    %6389 = vmatpush1.msra.mxu0 0.0
    %6390 = vmatprep.subr.mxu0 0.0
    %6391 = vmatpush1.msra.mxu0 0.0
    %6392 = vmatprep.subr.mxu0 0.0
    %6393 = vmatpush1.msra.mxu0 0.0
    %6394 = vmatprep.subr.mxu0 0.0
    %6395 = vmatpush1.msra.mxu0 0.0
    %6396 = vmatprep.subr.mxu0 %v5689
    %6397 = vmatpush1.msra.mxu0 %v5688
    %6398 = vmatprep.subr.mxu0 %v5687
    %6399 = vmatpush1.msra.mxu0 %v5686
    %6400 = vmatprep.subr.mxu0 %v5685
    %6401 = vmatpush1.msra.mxu0 %v5684
    %6402 = vmatprep.subr.mxu0 %v5683
    %6403 = vmatpush1.msra.mxu0 %v5682
    %6404 = vmatprep.subr.mxu0 %v5681
    %6405 = vmatpush1.msra.mxu0 %v5680
    %6406 = vmatprep.subr.mxu0 %v5679
    %6407 = vmatpush1.msra.mxu0 %v5678
    %6408 = vmatprep.subr.mxu0 %v5677
    %6409 = vmatpush1.msra.mxu0 %v5676
    %6410 = vmatprep.subr.mxu0 %v5675
    %6411 = vmatpush1.msra.mxu0 %v5674
    %6412 = vmatprep.subr.mxu0 0.0
    %6413 = vmatpush2.msra.mxu0 0.0
    %6414 = vmatprep.subr.mxu0 0.0
    %6415 = vmatpush2.msra.mxu0 0.0
    %6416 = vmatprep.subr.mxu0 0.0
    %6417 = vmatpush2.msra.mxu0 0.0
    %6418 = vmatprep.subr.mxu0 0.0
    %6419 = vmatpush2.msra.mxu0 0.0
    %6420 = vmatprep.subr.mxu0 0.0
    %6421 = vmatpush2.msra.mxu0 0.0
    %6422 = vmatprep.subr.mxu0 0.0
    %6423 = vmatpush2.msra.mxu0 0.0
    %6424 = vmatprep.subr.mxu0 0.0
    %6425 = vmatpush2.msra.mxu0 0.0
    %6426 = vmatprep.subr.mxu0 0.0
    %6427 = vmatpush2.msra.mxu0 0.0
    %6428 = vmatprep.subr.mxu0 0.0
    %6429 = vmatpush2.msra.mxu0 0.0
    %6430 = vmatprep.subr.mxu0 0.0
    %6431 = vmatpush2.msra.mxu0 0.0
    %6432 = vmatprep.subr.mxu0 0.0
    %6433 = vmatpush2.msra.mxu0 0.0
    %6434 = vmatprep.subr.mxu0 0.0
    %6435 = vmatpush2.msra.mxu0 0.0
    %6436 = vmatprep.subr.mxu0 0.0
    %6437 = vmatpush2.msra.mxu0 0.0
    %6438 = vmatprep.subr.mxu0 0.0
    %6439 = vmatpush2.msra.mxu0 0.0
    %6440 = vmatprep.subr.mxu0 0.0
    %6441 = vmatpush2.msra.mxu0 0.0
    %6442 = vmatprep.subr.mxu0 0.0
    %6443 = vmatpush2.msra.mxu0 0.0
    %6444 = vmatprep.mubr.f32.mxu0 0.0
    %6445 = vmatmul.mubr.f32.gmra.mxu0 %v6145
    %v6446 = vpop.f32.mrf.mxu0
    %v6447 = vadd.f32 %v5695, %v6446
    %v6448 = vpop.f32.mrf.mxu0
    %v6449 = vadd.f32 %v5699, %v6448
    %6450 = vdwg.mxu0
    %v6451 = vadd.f32 %v6376, %v6447
    %v6452 = vadd.f32 %v6378, %v6449
    %v6453 = vxor.u32 %v6451, 2147483648
    %v6454 = vmul.f32 %v6453, 1.442695
    %v6455 = vpow.pop %v6454
    %v6456 = vadd.f32 %v6455, 1.0
    %v6457 = vrcp.pop %v6456
    %v6458 = vmul.f32 1.0, %v6457
    %v6459 = vtanh.pop %v6452
    %v6460 = vxor.u32 %v6452, 2147483648
    %v6461 = vmul.f32 %v6460, 1.442695
    %v6462 = vpow.pop %v6461
    %v6463 = vadd.f32 %v6462, 1.0
    %v6464 = vrcp.pop %v6463
    %v6465 = vmul.f32 1.0, %v6464
    %v6466 = vmul.f32 %v6458, %v6139
    %v6467 = vmul.f32 %v6458, %v6459
    %6469 = vrot.lane.b32.xlu0 %v6467, 64
    %v6470 = vpop.permute.xlu0 %6469
    %v6472 = vadd.f32 %v6466, %v6470
    %v6473 = vtanh.pop %v6472
    %v6474 = vmul.f32 %v6465, %v6473
    %6476 = vrot.lane.b32.xlu0 %v6474, 64
    %v6477 = vpop.permute.xlu0 %6476
    %v6478 = vsel %vm5702, %v6477, 0
    %6480 = vmatprep.subr.mxu0 0.0
    %6481 = vmatpush1.xpose.msra.mxu0 0.0
    %6482 = vmatprep.subr.mxu0 0.0
    %6483 = vmatpush1.xpose.msra.mxu0 0.0
    %6484 = vmatprep.subr.mxu0 0.0
    %6485 = vmatpush1.xpose.msra.mxu0 0.0
    %6486 = vmatprep.subr.mxu0 0.0
    %6487 = vmatpush1.xpose.msra.mxu0 0.0
    %6488 = vmatprep.subr.mxu0 0.0
    %6489 = vmatpush1.xpose.msra.mxu0 0.0
    %6490 = vmatprep.subr.mxu0 0.0
    %6491 = vmatpush1.xpose.msra.mxu0 0.0
    %6492 = vmatprep.subr.mxu0 0.0
    %6493 = vmatpush1.xpose.msra.mxu0 0.0
    %6494 = vmatprep.subr.mxu0 0.0
    %6495 = vmatpush1.xpose.msra.mxu0 0.0
    %6496 = vmatprep.subr.mxu0 0.0
    %6497 = vmatpush1.xpose.msra.mxu0 0.0
    %6498 = vmatprep.subr.mxu0 0.0
    %6499 = vmatpush1.xpose.msra.mxu0 0.0
    %6500 = vmatprep.subr.mxu0 0.0
    %6501 = vmatpush1.xpose.msra.mxu0 0.0
    %6502 = vmatprep.subr.mxu0 0.0
    %6503 = vmatpush1.xpose.msra.mxu0 0.0
    %6504 = vmatprep.subr.mxu0 0.0
    %6505 = vmatpush1.xpose.msra.mxu0 0.0
    %6506 = vmatprep.subr.mxu0 0.0
    %6507 = vmatpush1.xpose.msra.mxu0 0.0
    %6508 = vmatprep.subr.mxu0 0.0
    %6509 = vmatpush1.xpose.msra.mxu0 %v5810
    %6510 = vmatprep.subr.mxu0 0.0
    %6511 = vmatpush1.xpose.msra.mxu0 %v5807
    %6512 = vmatprep.subr.mxu0 0.0
    %6513 = vmatpush2.xpose.msra.mxu0 0.0
    %6514 = vmatprep.subr.mxu0 0.0
    %6515 = vmatpush2.xpose.msra.mxu0 0.0
    %6516 = vmatprep.subr.mxu0 0.0
    %6517 = vmatpush2.xpose.msra.mxu0 0.0
    %6518 = vmatprep.subr.mxu0 0.0
    %6519 = vmatpush2.xpose.msra.mxu0 0.0
    %6520 = vmatprep.subr.mxu0 0.0
    %6521 = vmatpush2.xpose.msra.mxu0 0.0
    %6522 = vmatprep.subr.mxu0 0.0
    %6523 = vmatpush2.xpose.msra.mxu0 0.0
    %6524 = vmatprep.subr.mxu0 0.0
    %6525 = vmatpush2.xpose.msra.mxu0 0.0
    %6526 = vmatprep.subr.mxu0 0.0
    %6527 = vmatpush2.xpose.msra.mxu0 0.0
    %6528 = vmatprep.subr.mxu0 0.0
    %6529 = vmatpush2.xpose.msra.mxu0 0.0
    %6530 = vmatprep.subr.mxu0 0.0
    %6531 = vmatpush2.xpose.msra.mxu0 0.0
    %6532 = vmatprep.subr.mxu0 0.0
    %6533 = vmatpush2.xpose.msra.mxu0 0.0
    %6534 = vmatprep.subr.mxu0 0.0
    %6535 = vmatpush2.xpose.msra.mxu0 0.0
    %6536 = vmatprep.subr.mxu0 0.0
    %6537 = vmatpush2.xpose.msra.mxu0 0.0
    %6538 = vmatprep.subr.mxu0 0.0
    %6539 = vmatpush2.xpose.msra.mxu0 0.0
    %6540 = vmatprep.subr.mxu0 0.0
    %6541 = vmatpush2.xpose.msra.mxu0 0.0
    %6542 = vmatprep.subr.mxu0 0.0
    %6543 = vmatpush2.xpose.msra.mxu0 0.0
    %6544 = vmatprep.mubr.f32.mxu0 0.0
    %6545 = vmatmul.mubr.f32.gmra.mxu0 %v6478
    %v6546 = vpop.f32.mrf.mxu0
    %v6547 = vadd.f32 0.0, %v6546
    %v6548 = vpop.f32.mrf.mxu0
    %6549 = vdwg.mxu0
    %v6550 = vsel %vm358, %v6547, -1e+30
    %v6551 = vsel %vm5883, %v6550, -inf
    %6552 = vmax.xlane.f32.xlu0 %v6551
    %v6553 = vpop.xlane.xlu0 %6552
    %v6554 = vsub.f32 %v6547, %v6553
    %v6555 = vsel %vm358, %v6554, -1e+30
    %v6556 = vmul.f32 %v6555, 1.442695
    %v6557 = vpow.pop %v6556
    %v6558 = vsel %vm5883, %v6557, 0.0
    %6559 = vadd.xlane.f32.xlu0 %v6558
    %v6560 = vpop.xlane.xlu0 %6559
    %v6561 = vrcp.pop %v6560
    %v6562 = vmul.f32 %v6557, %v6561
    %v6564 = vsel %vm5896, %v6562, 0
    %6566 = vmatprep.subr.mxu0 0.0
    %6567 = vmatpush1.msra.mxu0 0.0
    %6568 = vmatprep.subr.mxu0 0.0
    %6569 = vmatpush1.msra.mxu0 0.0
    %6570 = vmatprep.subr.mxu0 0.0
    %6571 = vmatpush1.msra.mxu0 0.0
    %6572 = vmatprep.subr.mxu0 0.0
    %6573 = vmatpush1.msra.mxu0 0.0
    %6574 = vmatprep.subr.mxu0 0.0
    %6575 = vmatpush1.msra.mxu0 0.0
    %6576 = vmatprep.subr.mxu0 0.0
    %6577 = vmatpush1.msra.mxu0 0.0
    %6578 = vmatprep.subr.mxu0 0.0
    %6579 = vmatpush1.msra.mxu0 0.0
    %6580 = vmatprep.subr.mxu0 0.0
    %6581 = vmatpush1.msra.mxu0 0.0
    %6582 = vmatprep.subr.mxu0 0.0
    %6583 = vmatpush1.msra.mxu0 0.0
    %6584 = vmatprep.subr.mxu0 0.0
    %6585 = vmatpush1.msra.mxu0 0.0
    %6586 = vmatprep.subr.mxu0 0.0
    %6587 = vmatpush1.msra.mxu0 0.0
    %6588 = vmatprep.subr.mxu0 0.0
    %6589 = vmatpush1.msra.mxu0 0.0
    %6590 = vmatprep.subr.mxu0 0.0
    %6591 = vmatpush1.msra.mxu0 0.0
    %6592 = vmatprep.subr.mxu0 0.0
    %6593 = vmatpush1.msra.mxu0 0.0
    %6594 = vmatprep.subr.mxu0 0.0
    %6595 = vmatpush1.msra.mxu0 %v2831
    %6596 = vmatprep.subr.mxu0 0.0
    %6597 = vmatpush1.msra.mxu0 %v2830
    %6598 = vmatprep.subr.mxu0 0.0
    %6599 = vmatpush2.msra.mxu0 0.0
    %6600 = vmatprep.subr.mxu0 0.0
    %6601 = vmatpush2.msra.mxu0 0.0
    %6602 = vmatprep.subr.mxu0 0.0
    %6603 = vmatpush2.msra.mxu0 0.0
    %6604 = vmatprep.subr.mxu0 0.0
    %6605 = vmatpush2.msra.mxu0 0.0
    %6606 = vmatprep.subr.mxu0 0.0
    %6607 = vmatpush2.msra.mxu0 0.0
    %6608 = vmatprep.subr.mxu0 0.0
    %6609 = vmatpush2.msra.mxu0 0.0
    %6610 = vmatprep.subr.mxu0 0.0
    %6611 = vmatpush2.msra.mxu0 0.0
    %6612 = vmatprep.subr.mxu0 0.0
    %6613 = vmatpush2.msra.mxu0 0.0
    %6614 = vmatprep.subr.mxu0 0.0
    %6615 = vmatpush2.msra.mxu0 0.0
    %6616 = vmatprep.subr.mxu0 0.0
    %6617 = vmatpush2.msra.mxu0 0.0
    %6618 = vmatprep.subr.mxu0 0.0
    %6619 = vmatpush2.msra.mxu0 0.0
    %6620 = vmatprep.subr.mxu0 0.0
    %6621 = vmatpush2.msra.mxu0 0.0
    %6622 = vmatprep.subr.mxu0 0.0
    %6623 = vmatpush2.msra.mxu0 0.0
    %6624 = vmatprep.subr.mxu0 0.0
    %6625 = vmatpush2.msra.mxu0 0.0
    %6626 = vmatprep.subr.mxu0 0.0
    %6627 = vmatpush2.msra.mxu0 0.0
    %6628 = vmatprep.subr.mxu0 0.0
    %6629 = vmatpush2.msra.mxu0 0.0
    %6630 = vmatprep.mubr.f32.mxu0 0.0
    %6631 = vmatmul.mubr.f32.gmra.mxu0 %v6564
    %v6632 = vpop.f32.mrf.mxu0
    %v6633 = vadd.f32 0.0, %v6632
    %v6634 = vpop.f32.mrf.mxu0
    %6635 = vdwg.mxu0
    %6638 = vrot.lane.b32.xlu0 %v6633, 64
    %v6639 = vpop.permute.xlu0 %6638
    %v6641 = vsel %vm5702, %v6477, %v6639
    %v6642 = vld [vmem:[%s21] sm:$0xff]
    %v6643 = vld [vmem:[%s21 + $0x8] sm:$0xff]
    %v6644 = vld [vmem:[%s21 + $0x10] sm:$0xff]
    %v6645 = vld [vmem:[%s21 + $0x18] sm:$0xff]
    %v6646 = vld [vmem:[%s21 + $0x20] sm:$0xff]
    %v6647 = vld [vmem:[%s21 + $0x28] sm:$0xff]
    %v6648 = vld [vmem:[%s21 + $0x30] sm:$0xff]
    %v6649 = vld [vmem:[%s21 + $0x38] sm:$0xff]
    %v6650 = vld [vmem:[%s21 + $0x40] sm:$0xff]
    %v6651 = vld [vmem:[%s21 + $0x48] sm:$0xff]
    %v6652 = vld [vmem:[%s21 + $0x50] sm:$0xff]
    %v6653 = vld [vmem:[%s21 + $0x58] sm:$0xff]
    %v6654 = vld [vmem:[%s21 + $0x60] sm:$0xff]
    %v6655 = vld [vmem:[%s21 + $0x68] sm:$0xff]
    %v6656 = vld [vmem:[%s21 + $0x70] sm:$0xff]
    %v6657 = vld [vmem:[%s21 + $0x78] sm:$0xff]
    %v6658 = vld [vmem:[#allocation30] sm:$0x1]
    %v6660 = vlaneseq
    %v6661 = vshrl.u32 %v6660, 7
    %v6662 = vsub.s32 0, %v6661
    %v6663 = vrot.slane %v6658, %v6662
    %6665 = vmatprep.subr.mxu0 0.0
    %6666 = vmatpush1.msra.mxu0 %v6657
    %6667 = vmatprep.subr.mxu0 0.0
    %6668 = vmatpush1.msra.mxu0 %v6656
    %6669 = vmatprep.subr.mxu0 0.0
    %6670 = vmatpush1.msra.mxu0 %v6655
    %6671 = vmatprep.subr.mxu0 0.0
    %6672 = vmatpush1.msra.mxu0 %v6654
    %6673 = vmatprep.subr.mxu0 0.0
    %6674 = vmatpush1.msra.mxu0 %v6653
    %6675 = vmatprep.subr.mxu0 0.0
    %6676 = vmatpush1.msra.mxu0 %v6652
    %6677 = vmatprep.subr.mxu0 0.0
    %6678 = vmatpush1.msra.mxu0 %v6651
    %6679 = vmatprep.subr.mxu0 0.0
    %6680 = vmatpush1.msra.mxu0 %v6650
    %6681 = vmatprep.subr.mxu0 0.0
    %6682 = vmatpush1.msra.mxu0 %v6649
    %6683 = vmatprep.subr.mxu0 0.0
    %6684 = vmatpush1.msra.mxu0 %v6648
    %6685 = vmatprep.subr.mxu0 0.0
    %6686 = vmatpush1.msra.mxu0 %v6647
    %6687 = vmatprep.subr.mxu0 0.0
    %6688 = vmatpush1.msra.mxu0 %v6646
    %6689 = vmatprep.subr.mxu0 0.0
    %6690 = vmatpush1.msra.mxu0 %v6645
    %6691 = vmatprep.subr.mxu0 0.0
    %6692 = vmatpush1.msra.mxu0 %v6644
    %6693 = vmatprep.subr.mxu0 0.0
    %6694 = vmatpush1.msra.mxu0 %v6643
    %6695 = vmatprep.subr.mxu0 0.0
    %6696 = vmatpush1.msra.mxu0 %v6642
    %6697 = vmatprep.subr.mxu0 0.0
    %6698 = vmatpush2.msra.mxu0 0.0
    %6699 = vmatprep.subr.mxu0 0.0
    %6700 = vmatpush2.msra.mxu0 0.0
    %6701 = vmatprep.subr.mxu0 0.0
    %6702 = vmatpush2.msra.mxu0 0.0
    %6703 = vmatprep.subr.mxu0 0.0
    %6704 = vmatpush2.msra.mxu0 0.0
    %6705 = vmatprep.subr.mxu0 0.0
    %6706 = vmatpush2.msra.mxu0 0.0
    %6707 = vmatprep.subr.mxu0 0.0
    %6708 = vmatpush2.msra.mxu0 0.0
    %6709 = vmatprep.subr.mxu0 0.0
    %6710 = vmatpush2.msra.mxu0 0.0
    %6711 = vmatprep.subr.mxu0 0.0
    %6712 = vmatpush2.msra.mxu0 0.0
    %6713 = vmatprep.subr.mxu0 0.0
    %6714 = vmatpush2.msra.mxu0 0.0
    %6715 = vmatprep.subr.mxu0 0.0
    %6716 = vmatpush2.msra.mxu0 0.0
    %6717 = vmatprep.subr.mxu0 0.0
    %6718 = vmatpush2.msra.mxu0 0.0
    %6719 = vmatprep.subr.mxu0 0.0
    %6720 = vmatpush2.msra.mxu0 0.0
    %6721 = vmatprep.subr.mxu0 0.0
    %6722 = vmatpush2.msra.mxu0 0.0
    %6723 = vmatprep.subr.mxu0 0.0
    %6724 = vmatpush2.msra.mxu0 0.0
    %6725 = vmatprep.subr.mxu0 0.0
    %6726 = vmatpush2.msra.mxu0 0.0
    %6727 = vmatprep.subr.mxu0 0.0
    %6728 = vmatpush2.msra.mxu0 0.0
    %6729 = vmatprep.mubr.f32.mxu0 0.0
    %6730 = vmatmul.mubr.f32.gmra.mxu0 %v6641
    %v6731 = vpop.f32.mrf.mxu0
    %v6732 = vadd.f32 %v6663, %v6731
    %v6733 = vpop.f32.mrf.mxu0
    %6734 = vdwg.mxu0
    %v6735 = vmax.f32 %v6732, 0.0
    %v6736 = vld [vmem:[#allocation32] sm:$0x1]
    %v6738 = vlaneseq
    %v6739 = vshrl.u32 %v6738, 7
    %v6740 = vsub.s32 0, %v6739
    %v6741 = vrot.slane %v6736, %v6740
    %v6743 = vmul.f32 %v6735, %v6741
    %vm6744 = vcmask 517120
    %v6745 = vsel %vm6744, %v6743, 0.0
    %6746 = vadd.xlane.f32.xlu0 %v6745
    %v6747 = vpop.xlane.xlu0 %6746
    %v6748 = vld [vmem:[#allocation3] sm:$0x1]
    %v6750 = vlaneseq
    %v6751 = vshrl.u32 %v6750, 7
    %v6752 = vsub.s32 0, %v6751
    %v6753 = vrot.slane %v6748, %v6752
    %v6755 = vadd.f32 %v6747, %v6753
    %vm6756 = vcmask 1024
    %6757 = vst.msk [vmem:[%s25] sm:$0x3] %vm6756, %v6755
    // Predicated region
    $region185: #{net_forward.1} parent=1 // pred_check
      _
    $region186: #{net_forward.1} parent=1 // pred_check_branch
      %6759 = sbr.rel (0) target = $region188
    $region187: #{net_forward.1} parent=1 // pred_region
      _
    $region188: #{net_forward.1} parent=1 // pred_fallthru
      _
    // Predicated region
    $region189: #{net_forward.1} parent=1 // pred_check
      _
    $region190: #{net_forward.1} parent=1 // pred_check_branch
      %6761 = sbr.rel (0) target = $region192
    $region191: #{net_forward.1} parent=1 // pred_region
      _
    $region192: #{net_forward.1} parent=1 // pred_fallthru
      _
    %6762 = vsyncpa [#allocation5], 1
    %6763 = vsyncpa [#allocation7], 1
    %6764 = vsyncpa [#allocation10], 1
    %6765 = vsyncpa [#allocation13], 1
    %6766 = vsyncpa [#allocation16], 1
    %6767 = vsyncpa [#allocation19], 1
    %6768 = vsyncpa [#allocation22], 1
    %6769 = vsyncpa [#allocation25], 1
    %6770 = vsyncpa [#allocation28], 1
    %6771 = vsyncpa [#allocation31], 1

</llo_original>
